<compile_context>
chip_gen: v7x
topology: tpu7x:2x2x1
jax: 0.10.0
libtpu: 0.0.40
codegen_flags: <defaults>
</compile_context>

<pallas_src>
import functools

import jax
import jax.numpy as jnp
from jax.experimental import pallas as pl
from jax.experimental.pallas import tpu as pltpu

EPS = 1e-5                 # torch.nn.BatchNorm3d default eps
ROWS_PER_MATMUL = 512      # target LHS rows per MXU matmul chunk (H-chunking)


def _vmem_limit_bytes():
    """Generation-aware scoped-VMEM budget: v5e/v6e have 128 MiB physical VMEM,
    v7x-class parts only 64 MiB, so stay well under that by default."""
    try:
        kind = jax.devices()[0].device_kind.lower()
    except Exception:
        kind = ""
    if "v5" in kind or "v6" in kind:
        return 96 * 1024 * 1024
    return 48 * 1024 * 1024


# ---------------------------------------------------------------------------
# Pass 1: in-kernel im2col + folded conv matmul + per-channel sum / sum-sq.
# ---------------------------------------------------------------------------
def _conv_stats_kernel(s0_ref, s1_ref, s2_ref, w_ref, y_ref, stats_ref,
                       patch_ref, *, hgt, wid, cin, cout, h_chunk):
    # s*_ref   : (1, 1, H+2, W+2, Cin) bf16 zero-padded activation, depth
    #            slices d, d+1, d+2 (depth halo via three BlockSpec views).
    # w_ref    : (27*Cin, Cout) bf16 folded conv weights (VMEM-resident).
    # y_ref    : (1, 1, H, W, Cout) bf16 conv output (pre-BN) for depth d.
    # stats_ref: (2, Cout) f32; row 0 = sum, row 1 = sum of squares.
    #            Constant index_map -> VMEM-resident accumulator over the grid.
    # patch_ref: (h_chunk, W, 27*Cin) bf16 VMEM scratch for in-kernel im2col.
    first = jnp.logical_and(pl.program_id(0) == 0, pl.program_id(1) == 0)

    @pl.when(first)
    def _():
        stats_ref[...] = jnp.zeros_like(stats_ref)

    slabs = (s0_ref, s1_ref, s2_ref)
    w = w_ref[...]
    k = 27 * cin

    s_sum = jnp.zeros((1, cout), jnp.float32)
    s_sq = jnp.zeros((1, cout), jnp.float32)

    # Static H-chunking bounds the live f32 matmul result and the im2col
    # scratch (review: don't keep the whole (rows, C) f32 tile live at once).
    for h0 in range(0, hgt, h_chunk):
        hc = min(h_chunk, hgt - h0)
        # In-kernel im2col: 27 shifted static slices of the haloed slabs,
        # written tap-major / cin-minor into the VMEM scratch.
        for kd in range(3):
            for kh in range(3):
                for kw in range(3):
                    col = (kd * 9 + kh * 3 + kw) * cin
                    patch_ref[:hc, :, col:col + cin] = (
                        slabs[kd][0, 0, kh + h0:kh + h0 + hc, kw:kw + wid, :])
        lhs = patch_ref[:hc].reshape(hc * wid, k)
        y = jnp.dot(lhs, w, preferred_element_type=jnp.float32)
        yq = y.astype(jnp.bfloat16)
        y_ref[0, 0, h0:h0 + hc, :, :] = yq.reshape(hc, wid, cout)
        yf = yq.astype(jnp.float32)      # stats of the stored (bf16) values
        s_sum = s_sum + jnp.sum(yf, axis=0, keepdims=True)
        s_sq = s_sq + jnp.sum(yf * yf, axis=0, keepdims=True)

    # Single merged (2, Cout) accumulate instead of two 1-row masked stores.
    stats_ref[...] += jnp.concatenate([s_sum, s_sq], axis=0)


# ---------------------------------------------------------------------------
# Pass 2: BatchNorm (batch statistics) + ReLU.
# ---------------------------------------------------------------------------
def _bn_scale_shift(stats_ref, gb_ref, inv_p):
    mean = stats_ref[0:1, :] * inv_p
    var = jnp.maximum(stats_ref[1:2, :] * inv_p - mean * mean, 0.0)
    inv_std = jax.lax.rsqrt(var + EPS)
    scale = gb_ref[0:1, :] * inv_std
    shift = gb_ref[1:2, :] - mean * scale
    return scale, shift


def _bn_relu_pad_kernel(y_ref, stats_ref, gb_ref, o_ref, *, inv_p, n_d):
    # Writes the NEXT layer's zero-padded bf16 input directly (fuses the
    # inter-layer jnp.pad; borders are zero = Conv3d's zero padding).
    dp = pl.program_id(1)
    scale, shift = _bn_scale_shift(stats_ref, gb_ref, inv_p)
    o_ref[...] = jnp.zeros_like(o_ref)

    @pl.when(jnp.logical_and(dp >= 1, dp <= n_d))
    def _():
        hp2, wp2 = o_ref.shape[2], o_ref.shape[3]
        y = y_ref[0, 0].astype(jnp.float32)          # (H, W, C)
        act = jnp.maximum(y * scale + shift, 0.0)
        o_ref[0, 0, 1:hp2 - 1, 1:wp2 - 1, :] = act.astype(o_ref.dtype)


def _bn_relu_kernel(y_ref, stats_ref, gb_ref, o_ref, *, inv_p):
    scale, shift = _bn_scale_shift(stats_ref, gb_ref, inv_p)
    y = y_ref[0, 0].astype(jnp.float32)
    o_ref[0, 0] = jnp.maximum(y * scale + shift, 0.0).astype(o_ref.dtype)


# ---------------------------------------------------------------------------
# One Conv3d(3, pad=1, bias folded away) + BatchNorm3d(train) + ReLU block.
# ---------------------------------------------------------------------------
def _conv_bn_relu_block(xpad, blk, *, last):
    # xpad: (N, D+2, H+2, W+2, Cin) bf16 zero-padded NDHWC activation.
    n, dp2, hp2, wp2, cin = xpad.shape
    d, hgt, wid = dp2 - 2, hp2 - 2, wp2 - 2
    w_mat, gb, cout = blk["w_mat"], blk["gb"], blk["cout"]
    k = 27 * cin
    h_chunk = max(1, min(hgt, -(-ROWS_PER_MATMUL // wid)))
    vmem_limit = _vmem_limit_bytes()

    conv_kernel = functools.partial(
        _conv_stats_kernel, hgt=hgt, wid=wid, cin=cin, cout=cout,
        h_chunk=h_chunk)

    # Pass 1: conv + BN statistics.  Both grid axes carry the stats reduction
    # (constant out index_map) -> "arbitrary".
    y, stats = pl.pallas_call(
        conv_kernel,
        grid=(n, d),
        in_specs=[pl.BlockSpec((1, 1, hp2, wp2, cin),
                               (lambda ni, di, kd=kd: (ni, di + kd, 0, 0, 0)))
                  for kd in range(3)]
                 + [pl.BlockSpec((k, cout), lambda ni, di: (0, 0))],
        out_specs=(pl.BlockSpec((1, 1, hgt, wid, cout),
                                lambda ni, di: (ni, di, 0, 0, 0)),
                   pl.BlockSpec((2, cout), lambda ni, di: (0, 0))),
        out_shape=(jax.ShapeDtypeStruct((n, d, hgt, wid, cout), jnp.bfloat16),
                   jax.ShapeDtypeStruct((2, cout), jnp.float32)),
        scratch_shapes=[pltpu.VMEM((h_chunk, wid, k), jnp.bfloat16)],
        compiler_params=pltpu.CompilerParams(
            dimension_semantics=("arbitrary", "arbitrary"),
            vmem_limit_bytes=vmem_limit),
    )(xpad, xpad, xpad, w_mat)

    inv_p = 1.0 / float(n * d * hgt * wid)

    if not last:
        # Pass 2 (intermediate layers): normalize + ReLU and emit the next
        # layer's zero-padded bf16 input directly.
        out = pl.pallas_call(
            functools.partial(_bn_relu_pad_kernel, inv_p=inv_p, n_d=d),
            grid=(n, d + 2),
            in_specs=[
                pl.BlockSpec(
                    (1, 1, hgt, wid, cout),
                    lambda ni, dpi: (ni,
                                     jnp.minimum(jnp.maximum(dpi - 1, 0),
                                                 d - 1),
                                     0, 0, 0)),
                pl.BlockSpec((2, cout), lambda ni, dpi: (0, 0)),
                pl.BlockSpec((2, cout), lambda ni, dpi: (0, 0)),
            ],
            out_specs=pl.BlockSpec((1, 1, hp2, wp2, cout),
                                   lambda ni, dpi: (ni, dpi, 0, 0, 0)),
            out_shape=jax.ShapeDtypeStruct((n, dp2, hp2, wp2, cout),
                                           jnp.bfloat16),
            compiler_params=pltpu.CompilerParams(
                dimension_semantics=("parallel", "parallel"),
                vmem_limit_bytes=vmem_limit),
        )(y, stats, gb)
    else:
        # Pass 2 (last layer): plain f32 output, no spatial padding.
        out = pl.pallas_call(
            functools.partial(_bn_relu_kernel, inv_p=inv_p),
            grid=(n, d),
            in_specs=[
                pl.BlockSpec((1, 1, hgt, wid, cout),
                             lambda ni, di: (ni, di, 0, 0, 0)),
                pl.BlockSpec((2, cout), lambda ni, di: (0, 0)),
                pl.BlockSpec((2, cout), lambda ni, di: (0, 0)),
            ],
            out_specs=pl.BlockSpec((1, 1, hgt, wid, cout),
                                   lambda ni, di: (ni, di, 0, 0, 0)),
            out_shape=jax.ShapeDtypeStruct((n, d, hgt, wid, cout),
                                           jnp.float32),
            compiler_params=pltpu.CompilerParams(
                dimension_semantics=("parallel", "parallel"),
                vmem_limit_bytes=vmem_limit),
        )(y, stats, gb)
    return out


def prepare_params(params):
    """Fold conv weights to a bf16 (27*Cin, Cout) matrix (tap-major, cin-minor,
    matching the in-kernel im2col column order) and pack gamma/beta into a
    single (2, Cout) f32 operand.  The conv bias is dropped: a per-channel
    constant added before train-mode BatchNorm is exactly cancelled by the
    mean subtraction."""
    prepped = []
    for (wgt, _bias, gamma, beta) in params:
        cout, cin = wgt.shape[0], wgt.shape[1]
        w_mat = jnp.transpose(wgt, (2, 3, 4, 1, 0)).reshape(27 * cin, cout)
        w_mat = w_mat.astype(jnp.bfloat16)
        gb = jnp.stack([gamma, beta], axis=0).astype(jnp.float32)
        prepped.append({"w_mat": w_mat, "gb": gb, "cout": cout})
    return prepped


def double_conv_forward(x_ncdhw, params):
    """DoubleConv forward: (Conv3d(3, pad=1) -> BatchNorm3d -> ReLU) x 3."""
    prepped = prepare_params(params)
    x = jnp.transpose(x_ncdhw, (0, 2, 3, 4, 1))                 # NCDHW -> NDHWC
    out = jnp.pad(x, ((0, 0), (1, 1), (1, 1), (1, 1), (0, 0)))
    out = out.astype(jnp.bfloat16)
    for li, blk in enumerate(prepped):
        out = _conv_bn_relu_block(out, blk, last=(li == len(prepped) - 1))
    return jnp.transpose(out, (0, 4, 1, 2, 3))                  # NDHWC -> NCDHW


def reference_forward(x, params):
    """Pure-JAX reference of the module's default path (NCDHW).  Mirrors the
    kernel's precision policy: bf16 conv operands with f32 accumulation and a
    bf16 round-trip of the conv intermediate; BN (train-mode batch stats) and
    ReLU in f32 with the exact PyTorch semantics (including the conv bias)."""
    for (wgt, bias, gamma, beta) in params:
        y = jax.lax.conv_general_dilated(
            x.astype(jnp.bfloat16), wgt.astype(jnp.bfloat16),
            window_strides=(1, 1, 1), padding=[(1, 1)] * 3,
            dimension_numbers=('NCDHW', 'OIDHW', 'NCDHW'),
            preferred_element_type=jnp.float32)
        y = y + bias.reshape(1, -1, 1, 1, 1)
        y = y.astype(jnp.bfloat16).astype(jnp.float32)   # bf16 intermediate
        mean = jnp.mean(y, axis=(0, 2, 3, 4), keepdims=True)
        var = jnp.mean((y - mean) ** 2, axis=(0, 2, 3, 4), keepdims=True)
        y = (y - mean) * jax.lax.rsqrt(var + EPS)
        y = y * gamma.reshape(1, -1, 1, 1, 1) + beta.reshape(1, -1, 1, 1, 1)
        x = jnp.maximum(y, 0.0)
    return x


def init_params(key, in_ch, out_ch):
    """Deterministic params for the 3 conv/BN blocks of DoubleConv."""
    params = []
    chans = [(in_ch, out_ch), (out_ch, out_ch), (out_ch, out_ch)]
    for (ci, co) in chans:
        key, kw_, kb, kg, kbe = jax.random.split(key, 5)
        wgt = 0.1 * jax.random.normal(kw_, (co, ci, 3, 3, 3), jnp.float32)
        bias = 0.05 * jax.random.normal(kb, (co,), jnp.float32)
        gamma = 1.0 + 0.1 * jax.random.normal(kg, (co,), jnp.float32)
        beta = 0.05 * jax.random.normal(kbe, (co,), jnp.float32)
        params.append((wgt, bias, gamma, beta))
    return params


if __name__ == "__main__":
    N, in_ch, out_ch = 2, 4, 8
    D = H = W = 8

    key = jax.random.PRNGKey(0)
    key, kx = jax.random.split(key)
    x = jax.random.normal(kx, (N, in_ch, D, H, W), jnp.float32)  # NCDHW
    params = init_params(key, in_ch, out_ch)

    out = jax.jit(double_conv_forward)(x, params)
    out = jax.block_until_ready(out)

    ref = jax.block_until_ready(reference_forward(x, params))
    assert out.shape == (N, out_ch, D, H, W)
    # bf16 MXU operands + bf16 intermediate storage (mirrored in the reference)
    # -> compare at a few-bf16-ulp tolerance.
    assert jnp.allclose(out, ref, atol=2e-2, rtol=2e-2), \
        float(jnp.max(jnp.abs(out - ref)))

    print("KERNEL_OK")
</pallas_src>

<mosaic_0001>
module attributes {stable_mosaic.version = 11 : i64} {
  func.func @_conv_stats_kernel(%arg0: i32, %arg1: i32, %arg2: memref<1x1x10x10x4xbf16, #tpu.memory_space<vmem>>, %arg3: memref<1x1x10x10x4xbf16, #tpu.memory_space<vmem>>, %arg4: memref<1x1x10x10x4xbf16, #tpu.memory_space<vmem>>, %arg5: memref<108x8xbf16, #tpu.memory_space<vmem>>, %arg6: memref<1x1x8x8x8xbf16, #tpu.memory_space<vmem>>, %arg7: memref<2x8xf32, #tpu.memory_space<vmem>>, %arg8: memref<8x8x108xbf16, #tpu.memory_space<vmem>>) attributes {dimension_semantics = [#tpu.dimension_semantics<arbitrary>, #tpu.dimension_semantics<arbitrary>], iteration_bounds = array<i64: 2, 8>, scalar_prefetch = 0 : i64, scratch_operands = 1 : i64, tpu.core_type = #tpu.core_type<tc>, window_params = [{transform_indices = @transform_0, window_bounds = array<i64: 1, 1, 10, 10, 4>}, {transform_indices = @transform_1, window_bounds = array<i64: 1, 1, 10, 10, 4>}, {transform_indices = @transform_2, window_bounds = array<i64: 1, 1, 10, 10, 4>}, {pipeline_mode = #tpu.pipeline_mode<synchronous>, transform_indices = @transform_3, window_bounds = array<i64: 108, 8>}, {transform_indices = @transform_4, window_bounds = array<i64: 1, 1, 8, 8, 8>}, {pipeline_mode = #tpu.pipeline_mode<synchronous>, transform_indices = @transform_5, window_bounds = array<i64: 2, 8>}]} {
    %c0_i32 = arith.constant 0 : i32
    %0 = arith.cmpi eq, %arg0, %c0_i32 : i32
    %c0_i32_0 = arith.constant 0 : i32
    %1 = arith.cmpi eq, %arg1, %c0_i32_0 : i32
    %2 = arith.andi %0, %1 : i1
    %3 = arith.extui %2 : i1 to i32
    %c0_i32_1 = arith.constant 0 : i32
    %4 = arith.cmpi ne, %3, %c0_i32_1 : i32
    scf.if %4 {
      %cst_207 = arith.constant 0.000000e+00 : f32
      %109 = vector.broadcast %cst_207 : f32 to vector<2x8xf32>
      %c0_208 = arith.constant 0 : index
      %c0_209 = arith.constant 0 : index
      %110 = vector.load %arg7[%c0_208, %c0_209] : memref<2x8xf32, #tpu.memory_space<vmem>>, vector<2x8xf32>
      tpu.vector_store %arg7[%c0_208, %c0_209], %109 {strides = array<i32>} : memref<2x8xf32, #tpu.memory_space<vmem>>, vector<2x8xf32>,
    } else {
    }
    %c0 = arith.constant 0 : index
    %c0_2 = arith.constant 0 : index
    %5 = vector.load %arg5[%c0, %c0_2] : memref<108x8xbf16, #tpu.memory_space<vmem>>, vector<108x8xbf16>
    %cst = arith.constant 0.000000e+00 : f32
    %6 = vector.broadcast %cst : f32 to vector<1x8xf32>
    %cst_3 = arith.constant 0.000000e+00 : f32
    %7 = vector.broadcast %cst_3 : f32 to vector<1x8xf32>
    %c0_4 = arith.constant 0 : index
    %c0_5 = arith.constant 0 : index
    %c0_6 = arith.constant 0 : index
    %c0_7 = arith.constant 0 : index
    %c0_8 = arith.constant 0 : index
    %8 = vector.load %arg2[%c0_4, %c0_5, %c0_6, %c0_7, %c0_8] : memref<1x1x10x10x4xbf16, #tpu.memory_space<vmem>>, vector<1x1x8x8x4xbf16>
    %9 = vector.shape_cast %8 : vector<1x1x8x8x4xbf16> to vector<8x8x4xbf16>
    %c0_9 = arith.constant 0 : index
    %c0_10 = arith.constant 0 : index
    %c0_11 = arith.constant 0 : index
    %10 = vector.load %arg8[%c0_9, %c0_10, %c0_11] : memref<8x8x108xbf16, #tpu.memory_space<vmem>>, vector<8x8x4xbf16>
    tpu.vector_store %arg8[%c0_9, %c0_10, %c0_11], %9 {strides = array<i32>} : memref<8x8x108xbf16, #tpu.memory_space<vmem>>, vector<8x8x4xbf16>,
    %c0_12 = arith.constant 0 : index
    %c0_13 = arith.constant 0 : index
    %c0_14 = arith.constant 0 : index
    %c1 = arith.constant 1 : index
    %c0_15 = arith.constant 0 : index
    %11 = vector.load %arg2[%c0_12, %c0_13, %c0_14, %c1, %c0_15] : memref<1x1x10x10x4xbf16, #tpu.memory_space<vmem>>, vector<1x1x8x8x4xbf16>
    %12 = vector.shape_cast %11 : vector<1x1x8x8x4xbf16> to vector<8x8x4xbf16>
    %c0_16 = arith.constant 0 : index
    %c0_17 = arith.constant 0 : index
    %c4 = arith.constant 4 : index
    %13 = vector.load %arg8[%c0_16, %c0_17, %c4] : memref<8x8x108xbf16, #tpu.memory_space<vmem>>, vector<8x8x4xbf16>
    tpu.vector_store %arg8[%c0_16, %c0_17, %c4], %12 {strides = array<i32>} : memref<8x8x108xbf16, #tpu.memory_space<vmem>>, vector<8x8x4xbf16>,
    %c0_18 = arith.constant 0 : index
    %c0_19 = arith.constant 0 : index
    %c0_20 = arith.constant 0 : index
    %c2 = arith.constant 2 : index
    %c0_21 = arith.constant 0 : index
    %14 = vector.load %arg2[%c0_18, %c0_19, %c0_20, %c2, %c0_21] : memref<1x1x10x10x4xbf16, #tpu.memory_space<vmem>>, vector<1x1x8x8x4xbf16>
    %15 = vector.shape_cast %14 : vector<1x1x8x8x4xbf16> to vector<8x8x4xbf16>
    %c0_22 = arith.constant 0 : index
    %c0_23 = arith.constant 0 : index
    %c8 = arith.constant 8 : index
    %16 = vector.load %arg8[%c0_22, %c0_23, %c8] : memref<8x8x108xbf16, #tpu.memory_space<vmem>>, vector<8x8x4xbf16>
    tpu.vector_store %arg8[%c0_22, %c0_23, %c8], %15 {strides = array<i32>} : memref<8x8x108xbf16, #tpu.memory_space<vmem>>, vector<8x8x4xbf16>,
    %c0_24 = arith.constant 0 : index
    %c0_25 = arith.constant 0 : index
    %c1_26 = arith.constant 1 : index
    %c0_27 = arith.constant 0 : index
    %c0_28 = arith.constant 0 : index
    %17 = vector.load %arg2[%c0_24, %c0_25, %c1_26, %c0_27, %c0_28] : memref<1x1x10x10x4xbf16, #tpu.memory_space<vmem>>, vector<1x1x8x8x4xbf16>
    %18 = vector.shape_cast %17 : vector<1x1x8x8x4xbf16> to vector<8x8x4xbf16>
    %c0_29 = arith.constant 0 : index
    %c0_30 = arith.constant 0 : index
    %c12 = arith.constant 12 : index
    %19 = vector.load %arg8[%c0_29, %c0_30, %c12] : memref<8x8x108xbf16, #tpu.memory_space<vmem>>, vector<8x8x4xbf16>
    tpu.vector_store %arg8[%c0_29, %c0_30, %c12], %18 {strides = array<i32>} : memref<8x8x108xbf16, #tpu.memory_space<vmem>>, vector<8x8x4xbf16>,
    %c0_31 = arith.constant 0 : index
    %c0_32 = arith.constant 0 : index
    %c1_33 = arith.constant 1 : index
    %c1_34 = arith.constant 1 : index
    %c0_35 = arith.constant 0 : index
    %20 = vector.load %arg2[%c0_31, %c0_32, %c1_33, %c1_34, %c0_35] : memref<1x1x10x10x4xbf16, #tpu.memory_space<vmem>>, vector<1x1x8x8x4xbf16>
    %21 = vector.shape_cast %20 : vector<1x1x8x8x4xbf16> to vector<8x8x4xbf16>
    %c0_36 = arith.constant 0 : index
    %c0_37 = arith.constant 0 : index
    %c16 = arith.constant 16 : index
    %22 = vector.load %arg8[%c0_36, %c0_37, %c16] : memref<8x8x108xbf16, #tpu.memory_space<vmem>>, vector<8x8x4xbf16>
    tpu.vector_store %arg8[%c0_36, %c0_37, %c16], %21 {strides = array<i32>} : memref<8x8x108xbf16, #tpu.memory_space<vmem>>, vector<8x8x4xbf16>,
    %c0_38 = arith.constant 0 : index
    %c0_39 = arith.constant 0 : index
    %c1_40 = arith.constant 1 : index
    %c2_41 = arith.constant 2 : index
    %c0_42 = arith.constant 0 : index
    %23 = vector.load %arg2[%c0_38, %c0_39, %c1_40, %c2_41, %c0_42] : memref<1x1x10x10x4xbf16, #tpu.memory_space<vmem>>, vector<1x1x8x8x4xbf16>
    %24 = vector.shape_cast %23 : vector<1x1x8x8x4xbf16> to vector<8x8x4xbf16>
    %c0_43 = arith.constant 0 : index
    %c0_44 = arith.constant 0 : index
    %c20 = arith.constant 20 : index
    %25 = vector.load %arg8[%c0_43, %c0_44, %c20] : memref<8x8x108xbf16, #tpu.memory_space<vmem>>, vector<8x8x4xbf16>
    tpu.vector_store %arg8[%c0_43, %c0_44, %c20], %24 {strides = array<i32>} : memref<8x8x108xbf16, #tpu.memory_space<vmem>>, vector<8x8x4xbf16>,
    %c0_45 = arith.constant 0 : index
    %c0_46 = arith.constant 0 : index
    %c2_47 = arith.constant 2 : index
    %c0_48 = arith.constant 0 : index
    %c0_49 = arith.constant 0 : index
    %26 = vector.load %arg2[%c0_45, %c0_46, %c2_47, %c0_48, %c0_49] : memref<1x1x10x10x4xbf16, #tpu.memory_space<vmem>>, vector<1x1x8x8x4xbf16>
    %27 = vector.shape_cast %26 : vector<1x1x8x8x4xbf16> to vector<8x8x4xbf16>
    %c0_50 = arith.constant 0 : index
    %c0_51 = arith.constant 0 : index
    %c24 = arith.constant 24 : index
    %28 = vector.load %arg8[%c0_50, %c0_51, %c24] : memref<8x8x108xbf16, #tpu.memory_space<vmem>>, vector<8x8x4xbf16>
    tpu.vector_store %arg8[%c0_50, %c0_51, %c24], %27 {strides = array<i32>} : memref<8x8x108xbf16, #tpu.memory_space<vmem>>, vector<8x8x4xbf16>,
    %c0_52 = arith.constant 0 : index
    %c0_53 = arith.constant 0 : index
    %c2_54 = arith.constant 2 : index
    %c1_55 = arith.constant 1 : index
    %c0_56 = arith.constant 0 : index
    %29 = vector.load %arg2[%c0_52, %c0_53, %c2_54, %c1_55, %c0_56] : memref<1x1x10x10x4xbf16, #tpu.memory_space<vmem>>, vector<1x1x8x8x4xbf16>
    %30 = vector.shape_cast %29 : vector<1x1x8x8x4xbf16> to vector<8x8x4xbf16>
    %c0_57 = arith.constant 0 : index
    %c0_58 = arith.constant 0 : index
    %c28 = arith.constant 28 : index
    %31 = vector.load %arg8[%c0_57, %c0_58, %c28] : memref<8x8x108xbf16, #tpu.memory_space<vmem>>, vector<8x8x4xbf16>
    tpu.vector_store %arg8[%c0_57, %c0_58, %c28], %30 {strides = array<i32>} : memref<8x8x108xbf16, #tpu.memory_space<vmem>>, vector<8x8x4xbf16>,
    %c0_59 = arith.constant 0 : index
    %c0_60 = arith.constant 0 : index
    %c2_61 = arith.constant 2 : index
    %c2_62 = arith.constant 2 : index
    %c0_63 = arith.constant 0 : index
    %32 = vector.load %arg2[%c0_59, %c0_60, %c2_61, %c2_62, %c0_63] : memref<1x1x10x10x4xbf16, #tpu.memory_space<vmem>>, vector<1x1x8x8x4xbf16>
    %33 = vector.shape_cast %32 : vector<1x1x8x8x4xbf16> to vector<8x8x4xbf16>
    %c0_64 = arith.constant 0 : index
    %c0_65 = arith.constant 0 : index
    %c32 = arith.constant 32 : index
    %34 = vector.load %arg8[%c0_64, %c0_65, %c32] : memref<8x8x108xbf16, #tpu.memory_space<vmem>>, vector<8x8x4xbf16>
    tpu.vector_store %arg8[%c0_64, %c0_65, %c32], %33 {strides = array<i32>} : memref<8x8x108xbf16, #tpu.memory_space<vmem>>, vector<8x8x4xbf16>,
    %c0_66 = arith.constant 0 : index
    %c0_67 = arith.constant 0 : index
    %c0_68 = arith.constant 0 : index
    %c0_69 = arith.constant 0 : index
    %c0_70 = arith.constant 0 : index
    %35 = vector.load %arg3[%c0_66, %c0_67, %c0_68, %c0_69, %c0_70] : memref<1x1x10x10x4xbf16, #tpu.memory_space<vmem>>, vector<1x1x8x8x4xbf16>
    %36 = vector.shape_cast %35 : vector<1x1x8x8x4xbf16> to vector<8x8x4xbf16>
    %c0_71 = arith.constant 0 : index
    %c0_72 = arith.constant 0 : index
    %c36 = arith.constant 36 : index
    %37 = vector.load %arg8[%c0_71, %c0_72, %c36] : memref<8x8x108xbf16, #tpu.memory_space<vmem>>, vector<8x8x4xbf16>
    tpu.vector_store %arg8[%c0_71, %c0_72, %c36], %36 {strides = array<i32>} : memref<8x8x108xbf16, #tpu.memory_space<vmem>>, vector<8x8x4xbf16>,
    %c0_73 = arith.constant 0 : index
    %c0_74 = arith.constant 0 : index
    %c0_75 = arith.constant 0 : index
    %c1_76 = arith.constant 1 : index
    %c0_77 = arith.constant 0 : index
    %38 = vector.load %arg3[%c0_73, %c0_74, %c0_75, %c1_76, %c0_77] : memref<1x1x10x10x4xbf16, #tpu.memory_space<vmem>>, vector<1x1x8x8x4xbf16>
    %39 = vector.shape_cast %38 : vector<1x1x8x8x4xbf16> to vector<8x8x4xbf16>
    %c0_78 = arith.constant 0 : index
    %c0_79 = arith.constant 0 : index
    %c40 = arith.constant 40 : index
    %40 = vector.load %arg8[%c0_78, %c0_79, %c40] : memref<8x8x108xbf16, #tpu.memory_space<vmem>>, vector<8x8x4xbf16>
    tpu.vector_store %arg8[%c0_78, %c0_79, %c40], %39 {strides = array<i32>} : memref<8x8x108xbf16, #tpu.memory_space<vmem>>, vector<8x8x4xbf16>,
    %c0_80 = arith.constant 0 : index
    %c0_81 = arith.constant 0 : index
    %c0_82 = arith.constant 0 : index
    %c2_83 = arith.constant 2 : index
    %c0_84 = arith.constant 0 : index
    %41 = vector.load %arg3[%c0_80, %c0_81, %c0_82, %c2_83, %c0_84] : memref<1x1x10x10x4xbf16, #tpu.memory_space<vmem>>, vector<1x1x8x8x4xbf16>
    %42 = vector.shape_cast %41 : vector<1x1x8x8x4xbf16> to vector<8x8x4xbf16>
    %c0_85 = arith.constant 0 : index
    %c0_86 = arith.constant 0 : index
    %c44 = arith.constant 44 : index
    %43 = vector.load %arg8[%c0_85, %c0_86, %c44] : memref<8x8x108xbf16, #tpu.memory_space<vmem>>, vector<8x8x4xbf16>
    tpu.vector_store %arg8[%c0_85, %c0_86, %c44], %42 {strides = array<i32>} : memref<8x8x108xbf16, #tpu.memory_space<vmem>>, vector<8x8x4xbf16>,
    %c0_87 = arith.constant 0 : index
    %c0_88 = arith.constant 0 : index
    %c1_89 = arith.constant 1 : index
    %c0_90 = arith.constant 0 : index
    %c0_91 = arith.constant 0 : index
    %44 = vector.load %arg3[%c0_87, %c0_88, %c1_89, %c0_90, %c0_91] : memref<1x1x10x10x4xbf16, #tpu.memory_space<vmem>>, vector<1x1x8x8x4xbf16>
    %45 = vector.shape_cast %44 : vector<1x1x8x8x4xbf16> to vector<8x8x4xbf16>
    %c0_92 = arith.constant 0 : index
    %c0_93 = arith.constant 0 : index
    %c48 = arith.constant 48 : index
    %46 = vector.load %arg8[%c0_92, %c0_93, %c48] : memref<8x8x108xbf16, #tpu.memory_space<vmem>>, vector<8x8x4xbf16>
    tpu.vector_store %arg8[%c0_92, %c0_93, %c48], %45 {strides = array<i32>} : memref<8x8x108xbf16, #tpu.memory_space<vmem>>, vector<8x8x4xbf16>,
    %c0_94 = arith.constant 0 : index
    %c0_95 = arith.constant 0 : index
    %c1_96 = arith.constant 1 : index
    %c1_97 = arith.constant 1 : index
    %c0_98 = arith.constant 0 : index
    %47 = vector.load %arg3[%c0_94, %c0_95, %c1_96, %c1_97, %c0_98] : memref<1x1x10x10x4xbf16, #tpu.memory_space<vmem>>, vector<1x1x8x8x4xbf16>
    %48 = vector.shape_cast %47 : vector<1x1x8x8x4xbf16> to vector<8x8x4xbf16>
    %c0_99 = arith.constant 0 : index
    %c0_100 = arith.constant 0 : index
    %c52 = arith.constant 52 : index
    %49 = vector.load %arg8[%c0_99, %c0_100, %c52] : memref<8x8x108xbf16, #tpu.memory_space<vmem>>, vector<8x8x4xbf16>
    tpu.vector_store %arg8[%c0_99, %c0_100, %c52], %48 {strides = array<i32>} : memref<8x8x108xbf16, #tpu.memory_space<vmem>>, vector<8x8x4xbf16>,
    %c0_101 = arith.constant 0 : index
    %c0_102 = arith.constant 0 : index
    %c1_103 = arith.constant 1 : index
    %c2_104 = arith.constant 2 : index
    %c0_105 = arith.constant 0 : index
    %50 = vector.load %arg3[%c0_101, %c0_102, %c1_103, %c2_104, %c0_105] : memref<1x1x10x10x4xbf16, #tpu.memory_space<vmem>>, vector<1x1x8x8x4xbf16>
    %51 = vector.shape_cast %50 : vector<1x1x8x8x4xbf16> to vector<8x8x4xbf16>
    %c0_106 = arith.constant 0 : index
    %c0_107 = arith.constant 0 : index
    %c56 = arith.constant 56 : index
    %52 = vector.load %arg8[%c0_106, %c0_107, %c56] : memref<8x8x108xbf16, #tpu.memory_space<vmem>>, vector<8x8x4xbf16>
    tpu.vector_store %arg8[%c0_106, %c0_107, %c56], %51 {strides = array<i32>} : memref<8x8x108xbf16, #tpu.memory_space<vmem>>, vector<8x8x4xbf16>,
    %c0_108 = arith.constant 0 : index
    %c0_109 = arith.constant 0 : index
    %c2_110 = arith.constant 2 : index
    %c0_111 = arith.constant 0 : index
    %c0_112 = arith.constant 0 : index
    %53 = vector.load %arg3[%c0_108, %c0_109, %c2_110, %c0_111, %c0_112] : memref<1x1x10x10x4xbf16, #tpu.memory_space<vmem>>, vector<1x1x8x8x4xbf16>
    %54 = vector.shape_cast %53 : vector<1x1x8x8x4xbf16> to vector<8x8x4xbf16>
    %c0_113 = arith.constant 0 : index
    %c0_114 = arith.constant 0 : index
    %c60 = arith.constant 60 : index
    %55 = vector.load %arg8[%c0_113, %c0_114, %c60] : memref<8x8x108xbf16, #tpu.memory_space<vmem>>, vector<8x8x4xbf16>
    tpu.vector_store %arg8[%c0_113, %c0_114, %c60], %54 {strides = array<i32>} : memref<8x8x108xbf16, #tpu.memory_space<vmem>>, vector<8x8x4xbf16>,
    %c0_115 = arith.constant 0 : index
    %c0_116 = arith.constant 0 : index
    %c2_117 = arith.constant 2 : index
    %c1_118 = arith.constant 1 : index
    %c0_119 = arith.constant 0 : index
    %56 = vector.load %arg3[%c0_115, %c0_116, %c2_117, %c1_118, %c0_119] : memref<1x1x10x10x4xbf16, #tpu.memory_space<vmem>>, vector<1x1x8x8x4xbf16>
    %57 = vector.shape_cast %56 : vector<1x1x8x8x4xbf16> to vector<8x8x4xbf16>
    %c0_120 = arith.constant 0 : index
    %c0_121 = arith.constant 0 : index
    %c64 = arith.constant 64 : index
    %58 = vector.load %arg8[%c0_120, %c0_121, %c64] : memref<8x8x108xbf16, #tpu.memory_space<vmem>>, vector<8x8x4xbf16>
    tpu.vector_store %arg8[%c0_120, %c0_121, %c64], %57 {strides = array<i32>} : memref<8x8x108xbf16, #tpu.memory_space<vmem>>, vector<8x8x4xbf16>,
    %c0_122 = arith.constant 0 : index
    %c0_123 = arith.constant 0 : index
    %c2_124 = arith.constant 2 : index
    %c2_125 = arith.constant 2 : index
    %c0_126 = arith.constant 0 : index
    %59 = vector.load %arg3[%c0_122, %c0_123, %c2_124, %c2_125, %c0_126] : memref<1x1x10x10x4xbf16, #tpu.memory_space<vmem>>, vector<1x1x8x8x4xbf16>
    %60 = vector.shape_cast %59 : vector<1x1x8x8x4xbf16> to vector<8x8x4xbf16>
    %c0_127 = arith.constant 0 : index
    %c0_128 = arith.constant 0 : index
    %c68 = arith.constant 68 : index
    %61 = vector.load %arg8[%c0_127, %c0_128, %c68] : memref<8x8x108xbf16, #tpu.memory_space<vmem>>, vector<8x8x4xbf16>
    tpu.vector_store %arg8[%c0_127, %c0_128, %c68], %60 {strides = array<i32>} : memref<8x8x108xbf16, #tpu.memory_space<vmem>>, vector<8x8x4xbf16>,
    %c0_129 = arith.constant 0 : index
    %c0_130 = arith.constant 0 : index
    %c0_131 = arith.constant 0 : index
    %c0_132 = arith.constant 0 : index
    %c0_133 = arith.constant 0 : index
    %62 = vector.load %arg4[%c0_129, %c0_130, %c0_131, %c0_132, %c0_133] : memref<1x1x10x10x4xbf16, #tpu.memory_space<vmem>>, vector<1x1x8x8x4xbf16>
    %63 = vector.shape_cast %62 : vector<1x1x8x8x4xbf16> to vector<8x8x4xbf16>
    %c0_134 = arith.constant 0 : index
    %c0_135 = arith.constant 0 : index
    %c72 = arith.constant 72 : index
    %64 = vector.load %arg8[%c0_134, %c0_135, %c72] : memref<8x8x108xbf16, #tpu.memory_space<vmem>>, vector<8x8x4xbf16>
    tpu.vector_store %arg8[%c0_134, %c0_135, %c72], %63 {strides = array<i32>} : memref<8x8x108xbf16, #tpu.memory_space<vmem>>, vector<8x8x4xbf16>,
    %c0_136 = arith.constant 0 : index
    %c0_137 = arith.constant 0 : index
    %c0_138 = arith.constant 0 : index
    %c1_139 = arith.constant 1 : index
    %c0_140 = arith.constant 0 : index
    %65 = vector.load %arg4[%c0_136, %c0_137, %c0_138, %c1_139, %c0_140] : memref<1x1x10x10x4xbf16, #tpu.memory_space<vmem>>, vector<1x1x8x8x4xbf16>
    %66 = vector.shape_cast %65 : vector<1x1x8x8x4xbf16> to vector<8x8x4xbf16>
    %c0_141 = arith.constant 0 : index
    %c0_142 = arith.constant 0 : index
    %c76 = arith.constant 76 : index
    %67 = vector.load %arg8[%c0_141, %c0_142, %c76] : memref<8x8x108xbf16, #tpu.memory_space<vmem>>, vector<8x8x4xbf16>
    tpu.vector_store %arg8[%c0_141, %c0_142, %c76], %66 {strides = array<i32>} : memref<8x8x108xbf16, #tpu.memory_space<vmem>>, vector<8x8x4xbf16>,
    %c0_143 = arith.constant 0 : index
    %c0_144 = arith.constant 0 : index
    %c0_145 = arith.constant 0 : index
    %c2_146 = arith.constant 2 : index
    %c0_147 = arith.constant 0 : index
    %68 = vector.load %arg4[%c0_143, %c0_144, %c0_145, %c2_146, %c0_147] : memref<1x1x10x10x4xbf16, #tpu.memory_space<vmem>>, vector<1x1x8x8x4xbf16>
    %69 = vector.shape_cast %68 : vector<1x1x8x8x4xbf16> to vector<8x8x4xbf16>
    %c0_148 = arith.constant 0 : index
    %c0_149 = arith.constant 0 : index
    %c80 = arith.constant 80 : index
    %70 = vector.load %arg8[%c0_148, %c0_149, %c80] : memref<8x8x108xbf16, #tpu.memory_space<vmem>>, vector<8x8x4xbf16>
    tpu.vector_store %arg8[%c0_148, %c0_149, %c80], %69 {strides = array<i32>} : memref<8x8x108xbf16, #tpu.memory_space<vmem>>, vector<8x8x4xbf16>,
    %c0_150 = arith.constant 0 : index
    %c0_151 = arith.constant 0 : index
    %c1_152 = arith.constant 1 : index
    %c0_153 = arith.constant 0 : index
    %c0_154 = arith.constant 0 : index
    %71 = vector.load %arg4[%c0_150, %c0_151, %c1_152, %c0_153, %c0_154] : memref<1x1x10x10x4xbf16, #tpu.memory_space<vmem>>, vector<1x1x8x8x4xbf16>
    %72 = vector.shape_cast %71 : vector<1x1x8x8x4xbf16> to vector<8x8x4xbf16>
    %c0_155 = arith.constant 0 : index
    %c0_156 = arith.constant 0 : index
    %c84 = arith.constant 84 : index
    %73 = vector.load %arg8[%c0_155, %c0_156, %c84] : memref<8x8x108xbf16, #tpu.memory_space<vmem>>, vector<8x8x4xbf16>
    tpu.vector_store %arg8[%c0_155, %c0_156, %c84], %72 {strides = array<i32>} : memref<8x8x108xbf16, #tpu.memory_space<vmem>>, vector<8x8x4xbf16>,
    %c0_157 = arith.constant 0 : index
    %c0_158 = arith.constant 0 : index
    %c1_159 = arith.constant 1 : index
    %c1_160 = arith.constant 1 : index
    %c0_161 = arith.constant 0 : index
    %74 = vector.load %arg4[%c0_157, %c0_158, %c1_159, %c1_160, %c0_161] : memref<1x1x10x10x4xbf16, #tpu.memory_space<vmem>>, vector<1x1x8x8x4xbf16>
    %75 = vector.shape_cast %74 : vector<1x1x8x8x4xbf16> to vector<8x8x4xbf16>
    %c0_162 = arith.constant 0 : index
    %c0_163 = arith.constant 0 : index
    %c88 = arith.constant 88 : index
    %76 = vector.load %arg8[%c0_162, %c0_163, %c88] : memref<8x8x108xbf16, #tpu.memory_space<vmem>>, vector<8x8x4xbf16>
    tpu.vector_store %arg8[%c0_162, %c0_163, %c88], %75 {strides = array<i32>} : memref<8x8x108xbf16, #tpu.memory_space<vmem>>, vector<8x8x4xbf16>,
    %c0_164 = arith.constant 0 : index
    %c0_165 = arith.constant 0 : index
    %c1_166 = arith.constant 1 : index
    %c2_167 = arith.constant 2 : index
    %c0_168 = arith.constant 0 : index
    %77 = vector.load %arg4[%c0_164, %c0_165, %c1_166, %c2_167, %c0_168] : memref<1x1x10x10x4xbf16, #tpu.memory_space<vmem>>, vector<1x1x8x8x4xbf16>
    %78 = vector.shape_cast %77 : vector<1x1x8x8x4xbf16> to vector<8x8x4xbf16>
    %c0_169 = arith.constant 0 : index
    %c0_170 = arith.constant 0 : index
    %c92 = arith.constant 92 : index
    %79 = vector.load %arg8[%c0_169, %c0_170, %c92] : memref<8x8x108xbf16, #tpu.memory_space<vmem>>, vector<8x8x4xbf16>
    tpu.vector_store %arg8[%c0_169, %c0_170, %c92], %78 {strides = array<i32>} : memref<8x8x108xbf16, #tpu.memory_space<vmem>>, vector<8x8x4xbf16>,
    %c0_171 = arith.constant 0 : index
    %c0_172 = arith.constant 0 : index
    %c2_173 = arith.constant 2 : index
    %c0_174 = arith.constant 0 : index
    %c0_175 = arith.constant 0 : index
    %80 = vector.load %arg4[%c0_171, %c0_172, %c2_173, %c0_174, %c0_175] : memref<1x1x10x10x4xbf16, #tpu.memory_space<vmem>>, vector<1x1x8x8x4xbf16>
    %81 = vector.shape_cast %80 : vector<1x1x8x8x4xbf16> to vector<8x8x4xbf16>
    %c0_176 = arith.constant 0 : index
    %c0_177 = arith.constant 0 : index
    %c96 = arith.constant 96 : index
    %82 = vector.load %arg8[%c0_176, %c0_177, %c96] : memref<8x8x108xbf16, #tpu.memory_space<vmem>>, vector<8x8x4xbf16>
    tpu.vector_store %arg8[%c0_176, %c0_177, %c96], %81 {strides = array<i32>} : memref<8x8x108xbf16, #tpu.memory_space<vmem>>, vector<8x8x4xbf16>,
    %c0_178 = arith.constant 0 : index
    %c0_179 = arith.constant 0 : index
    %c2_180 = arith.constant 2 : index
    %c1_181 = arith.constant 1 : index
    %c0_182 = arith.constant 0 : index
    %83 = vector.load %arg4[%c0_178, %c0_179, %c2_180, %c1_181, %c0_182] : memref<1x1x10x10x4xbf16, #tpu.memory_space<vmem>>, vector<1x1x8x8x4xbf16>
    %84 = vector.shape_cast %83 : vector<1x1x8x8x4xbf16> to vector<8x8x4xbf16>
    %c0_183 = arith.constant 0 : index
    %c0_184 = arith.constant 0 : index
    %c100 = arith.constant 100 : index
    %85 = vector.load %arg8[%c0_183, %c0_184, %c100] : memref<8x8x108xbf16, #tpu.memory_space<vmem>>, vector<8x8x4xbf16>
    tpu.vector_store %arg8[%c0_183, %c0_184, %c100], %84 {strides = array<i32>} : memref<8x8x108xbf16, #tpu.memory_space<vmem>>, vector<8x8x4xbf16>,
    %c0_185 = arith.constant 0 : index
    %c0_186 = arith.constant 0 : index
    %c2_187 = arith.constant 2 : index
    %c2_188 = arith.constant 2 : index
    %c0_189 = arith.constant 0 : index
    %86 = vector.load %arg4[%c0_185, %c0_186, %c2_187, %c2_188, %c0_189] : memref<1x1x10x10x4xbf16, #tpu.memory_space<vmem>>, vector<1x1x8x8x4xbf16>
    %87 = vector.shape_cast %86 : vector<1x1x8x8x4xbf16> to vector<8x8x4xbf16>
    %c0_190 = arith.constant 0 : index
    %c0_191 = arith.constant 0 : index
    %c104 = arith.constant 104 : index
    %88 = vector.load %arg8[%c0_190, %c0_191, %c104] : memref<8x8x108xbf16, #tpu.memory_space<vmem>>, vector<8x8x4xbf16>
    tpu.vector_store %arg8[%c0_190, %c0_191, %c104], %87 {strides = array<i32>} : memref<8x8x108xbf16, #tpu.memory_space<vmem>>, vector<8x8x4xbf16>,
    %c0_192 = arith.constant 0 : index
    %c0_193 = arith.constant 0 : index
    %c0_194 = arith.constant 0 : index
    %89 = vector.load %arg8[%c0_192, %c0_193, %c0_194] : memref<8x8x108xbf16, #tpu.memory_space<vmem>>, vector<8x8x108xbf16>
    %90 = vector.shape_cast %89 : vector<8x8x108xbf16> to vector<64x108xbf16>
    %cst_195 = arith.constant dense<0.000000e+00> : vector<64x8xf32>
    %91 = tpu.matmul %90, %5, %cst_195 {dimension_numbers = #tpu.dot_dimension_numbers<[1], [0], [0], [1], [0, 0, 1, 1], [], []>} : vector<64x108xbf16>, vector<108x8xbf16>, vector<64x8xf32> -> vector<64x8xf32>
    %92 = arith.truncf %91 : vector<64x8xf32> to vector<64x8xbf16>
    %93 = vector.shape_cast %92 : vector<64x8xbf16> to vector<8x8x8xbf16>
    %c0_196 = arith.constant 0 : index
    %c0_197 = arith.constant 0 : index
    %c0_198 = arith.constant 0 : index
    %c0_199 = arith.constant 0 : index
    %c0_200 = arith.constant 0 : index
    %94 = vector.load %arg6[%c0_196, %c0_197, %c0_198, %c0_199, %c0_200] : memref<1x1x8x8x8xbf16, #tpu.memory_space<vmem>>, vector<1x1x8x8x8xbf16>
    %95 = vector.shape_cast %94 : vector<1x1x8x8x8xbf16> to vector<8x8x8xbf16>
    %96 = vector.shape_cast %93 : vector<8x8x8xbf16> to vector<1x1x8x8x8xbf16>
    tpu.vector_store %arg6[%c0_196, %c0_197, %c0_198, %c0_199, %c0_200], %96 {strides = array<i32>} : memref<1x1x8x8x8xbf16, #tpu.memory_space<vmem>>, vector<1x1x8x8x8xbf16>,
    %97 = arith.extf %92 : vector<64x8xbf16> to vector<64x8xf32>
    %cst_201 = arith.constant dense<0.000000e+00> : vector<8xf32>
    %98 = vector.multi_reduction <add>, %97, %cst_201 [0] : vector<64x8xf32> to vector<8xf32>
    %99 = vector.shape_cast %98 : vector<8xf32> to vector<1x8xf32>
    %100 = arith.addf %6, %99 : vector<1x8xf32>
    %101 = arith.mulf %97, %97 : vector<64x8xf32>
    %cst_202 = arith.constant dense<0.000000e+00> : vector<8xf32>
    %102 = vector.multi_reduction <add>, %101, %cst_202 [0] : vector<64x8xf32> to vector<8xf32>
    %103 = vector.shape_cast %102 : vector<8xf32> to vector<1x8xf32>
    %104 = arith.addf %7, %103 : vector<1x8xf32>
    %c0_203 = arith.constant 0 : index
    %c0_204 = arith.constant 0 : index
    %105 = vector.load %arg7[%c0_203, %c0_204] : memref<2x8xf32, #tpu.memory_space<vmem>>, vector<2x8xf32>
    %106 = tpu.concatenate %100, %104 in 0 : vector<1x8xf32>, vector<1x8xf32> -> vector<2x8xf32>
    %107 = arith.addf %105, %106 : vector<2x8xf32>
    %c0_205 = arith.constant 0 : index
    %c0_206 = arith.constant 0 : index
    %108 = vector.load %arg7[%c0_205, %c0_206] : memref<2x8xf32, #tpu.memory_space<vmem>>, vector<2x8xf32>
    tpu.vector_store %arg7[%c0_205, %c0_206], %107 {strides = array<i32>} : memref<2x8xf32, #tpu.memory_space<vmem>>, vector<2x8xf32>,
    return
  }
  func.func @transform_0(%arg0: i32, %arg1: i32) -> (i32, i32, i32, i32, i32) {
    %c0_i32 = arith.constant 0 : i32
    %0 = arith.addi %arg1, %c0_i32 : i32
    %c0_i32_0 = arith.constant 0 : i32
    %c0_i32_1 = arith.constant 0 : i32
    %c0_i32_2 = arith.constant 0 : i32
    %c0_i32_3 = arith.constant 0 : i32
    return %arg0, %0, %c0_i32_0, %c0_i32_1, %c0_i32_2 : i32, i32, i32, i32, i32
  }
  func.func @transform_1(%arg0: i32, %arg1: i32) -> (i32, i32, i32, i32, i32) {
    %c1_i32 = arith.constant 1 : i32
    %0 = arith.addi %arg1, %c1_i32 : i32
    %c0_i32 = arith.constant 0 : i32
    %c0_i32_0 = arith.constant 0 : i32
    %c0_i32_1 = arith.constant 0 : i32
    %c0_i32_2 = arith.constant 0 : i32
    return %arg0, %0, %c0_i32, %c0_i32_0, %c0_i32_1 : i32, i32, i32, i32, i32
  }
  func.func @transform_2(%arg0: i32, %arg1: i32) -> (i32, i32, i32, i32, i32) {
    %c2_i32 = arith.constant 2 : i32
    %0 = arith.addi %arg1, %c2_i32 : i32
    %c0_i32 = arith.constant 0 : i32
    %c0_i32_0 = arith.constant 0 : i32
    %c0_i32_1 = arith.constant 0 : i32
    %c0_i32_2 = arith.constant 0 : i32
    return %arg0, %0, %c0_i32, %c0_i32_0, %c0_i32_1 : i32, i32, i32, i32, i32
  }
  func.func @transform_3(%arg0: i32, %arg1: i32) -> (i32, i32) {
    %c0_i32 = arith.constant 0 : i32
    %c0_i32_0 = arith.constant 0 : i32
    %c0_i32_1 = arith.constant 0 : i32
    return %c0_i32, %c0_i32_0 : i32, i32
  }
  func.func @transform_4(%arg0: i32, %arg1: i32) -> (i32, i32, i32, i32, i32) {
    %c0_i32 = arith.constant 0 : i32
    %c0_i32_0 = arith.constant 0 : i32
    %c0_i32_1 = arith.constant 0 : i32
    %c0_i32_2 = arith.constant 0 : i32
    return %arg0, %arg1, %c0_i32, %c0_i32_0, %c0_i32_1 : i32, i32, i32, i32, i32
  }
  func.func @transform_5(%arg0: i32, %arg1: i32) -> (i32, i32) {
    %c0_i32 = arith.constant 0 : i32
    %c0_i32_0 = arith.constant 0 : i32
    %c0_i32_1 = arith.constant 0 : i32
    return %c0_i32, %c0_i32_0 : i32, i32
  }
}

module attributes {stable_mosaic.version = 11 : i64} {
  func.func @_bn_relu_pad_kernel(%arg0: i32, %arg1: i32, %arg2: memref<1x1x8x8x8xbf16, #tpu.memory_space<vmem>>, %arg3: memref<2x8xf32, #tpu.memory_space<vmem>>, %arg4: memref<2x8xf32, #tpu.memory_space<vmem>>, %arg5: memref<1x1x10x10x8xbf16, #tpu.memory_space<vmem>>) attributes {dimension_semantics = [#tpu.dimension_semantics<parallel>, #tpu.dimension_semantics<parallel>], iteration_bounds = array<i64: 2, 10>, scalar_prefetch = 0 : i64, scratch_operands = 0 : i64, tpu.core_type = #tpu.core_type<tc>, window_params = [{transform_indices = @transform_0, window_bounds = array<i64: 1, 1, 8, 8, 8>}, {pipeline_mode = #tpu.pipeline_mode<synchronous>, transform_indices = @transform_1, window_bounds = array<i64: 2, 8>}, {pipeline_mode = #tpu.pipeline_mode<synchronous>, transform_indices = @transform_2, window_bounds = array<i64: 2, 8>}, {transform_indices = @transform_3, window_bounds = array<i64: 1, 1, 10, 10, 8>}]} {
    %c0 = arith.constant 0 : index
    %c0_0 = arith.constant 0 : index
    %0 = vector.load %arg3[%c0, %c0_0] : memref<2x8xf32, #tpu.memory_space<vmem>>, vector<1x8xf32>
    %cst = arith.constant 9.765625E-4 : f32
    %1 = vector.broadcast %cst : f32 to vector<1x8xf32>
    %2 = arith.mulf %0, %1 : vector<1x8xf32>
    %c1 = arith.constant 1 : index
    %c0_1 = arith.constant 0 : index
    %3 = vector.load %arg3[%c1, %c0_1] : memref<2x8xf32, #tpu.memory_space<vmem>>, vector<1x8xf32>
    %cst_2 = arith.constant 9.765625E-4 : f32
    %4 = vector.broadcast %cst_2 : f32 to vector<1x8xf32>
    %5 = arith.mulf %3, %4 : vector<1x8xf32>
    %6 = arith.mulf %2, %2 : vector<1x8xf32>
    %7 = arith.subf %5, %6 : vector<1x8xf32>
    %cst_3 = arith.constant 0.000000e+00 : f32
    %8 = vector.broadcast %cst_3 : f32 to vector<1x8xf32>
    %9 = arith.maximumf %7, %8 : vector<1x8xf32>
    %cst_4 = arith.constant 9.99999974E-6 : f32
    %10 = vector.broadcast %cst_4 : f32 to vector<1x8xf32>
    %11 = arith.addf %9, %10 : vector<1x8xf32>
    %12 = math.rsqrt %11 : vector<1x8xf32>
    %c0_5 = arith.constant 0 : index
    %c0_6 = arith.constant 0 : index
    %13 = vector.load %arg4[%c0_5, %c0_6] : memref<2x8xf32, #tpu.memory_space<vmem>>, vector<1x8xf32>
    %14 = arith.mulf %13, %12 : vector<1x8xf32>
    %c1_7 = arith.constant 1 : index
    %c0_8 = arith.constant 0 : index
    %15 = vector.load %arg4[%c1_7, %c0_8] : memref<2x8xf32, #tpu.memory_space<vmem>>, vector<1x8xf32>
    %16 = arith.mulf %2, %14 : vector<1x8xf32>
    %17 = arith.subf %15, %16 : vector<1x8xf32>
    %cst_9 = arith.constant 0.000000e+00 : bf16
    %18 = vector.broadcast %cst_9 : bf16 to vector<1x1x10x10x8xbf16>
    %c0_10 = arith.constant 0 : index
    %c0_11 = arith.constant 0 : index
    %c0_12 = arith.constant 0 : index
    %c0_13 = arith.constant 0 : index
    %c0_14 = arith.constant 0 : index
    %19 = vector.load %arg5[%c0_10, %c0_11, %c0_12, %c0_13, %c0_14] : memref<1x1x10x10x8xbf16, #tpu.memory_space<vmem>>, vector<1x1x10x10x8xbf16>
    tpu.vector_store %arg5[%c0_10, %c0_11, %c0_12, %c0_13, %c0_14], %18 {strides = array<i32>} : memref<1x1x10x10x8xbf16, #tpu.memory_space<vmem>>, vector<1x1x10x10x8xbf16>,
    %c1_i32 = arith.constant 1 : i32
    %20 = arith.cmpi sge, %arg1, %c1_i32 : i32
    %c8_i32 = arith.constant 8 : i32
    %21 = arith.cmpi sle, %arg1, %c8_i32 : i32
    %22 = arith.andi %20, %21 : i1
    %23 = arith.extui %22 : i1 to i32
    %c0_i32 = arith.constant 0 : i32
    %24 = arith.cmpi ne, %23, %c0_i32 : i32
    scf.if %24 {
      %c0_15 = arith.constant 0 : index
      %c0_16 = arith.constant 0 : index
      %c0_17 = arith.constant 0 : index
      %c0_18 = arith.constant 0 : index
      %c0_19 = arith.constant 0 : index
      %25 = vector.load %arg2[%c0_15, %c0_16, %c0_17, %c0_18, %c0_19] : memref<1x1x8x8x8xbf16, #tpu.memory_space<vmem>>, vector<1x1x8x8x8xbf16>
      %26 = vector.shape_cast %25 : vector<1x1x8x8x8xbf16> to vector<8x8x8xbf16>
      %27 = arith.extf %26 : vector<8x8x8xbf16> to vector<8x8x8xf32>
      %28 = vector.shape_cast %14 : vector<1x8xf32> to vector<1x1x8xf32>
      %29 = vector.broadcast %28 : vector<1x1x8xf32> to vector<8x8x8xf32>
      %30 = arith.mulf %27, %29 : vector<8x8x8xf32>
      %31 = vector.shape_cast %17 : vector<1x8xf32> to vector<1x1x8xf32>
      %32 = vector.broadcast %31 : vector<1x1x8xf32> to vector<8x8x8xf32>
      %33 = arith.addf %30, %32 : vector<8x8x8xf32>
      %cst_20 = arith.constant 0.000000e+00 : f32
      %34 = vector.broadcast %cst_20 : f32 to vector<8x8x8xf32>
      %35 = arith.maximumf %33, %34 : vector<8x8x8xf32>
      %36 = arith.truncf %35 : vector<8x8x8xf32> to vector<8x8x8xbf16>
      %c0_21 = arith.constant 0 : index
      %c0_22 = arith.constant 0 : index
      %c1_23 = arith.constant 1 : index
      %c1_24 = arith.constant 1 : index
      %c0_25 = arith.constant 0 : index
      %37 = vector.load %arg5[%c0_21, %c0_22, %c1_23, %c1_24, %c0_25] : memref<1x1x10x10x8xbf16, #tpu.memory_space<vmem>>, vector<1x1x8x8x8xbf16>
      %38 = vector.shape_cast %37 : vector<1x1x8x8x8xbf16> to vector<8x8x8xbf16>
      %39 = vector.shape_cast %36 : vector<8x8x8xbf16> to vector<1x1x8x8x8xbf16>
      tpu.vector_store %arg5[%c0_21, %c0_22, %c1_23, %c1_24, %c0_25], %39 {strides = array<i32>} : memref<1x1x10x10x8xbf16, #tpu.memory_space<vmem>>, vector<1x1x8x8x8xbf16>,
    } else {
    }
    return
  }
  func.func @transform_0(%arg0: i32, %arg1: i32) -> (i32, i32, i32, i32, i32) {
    %c1_i32 = arith.constant 1 : i32
    %0 = arith.subi %arg1, %c1_i32 : i32
    %c0_i32 = arith.constant 0 : i32
    %1 = arith.maxsi %0, %c0_i32 : i32
    %c7_i32 = arith.constant 7 : i32
    %2 = arith.minsi %1, %c7_i32 : i32
    %c0_i32_0 = arith.constant 0 : i32
    %c0_i32_1 = arith.constant 0 : i32
    %c0_i32_2 = arith.constant 0 : i32
    %c0_i32_3 = arith.constant 0 : i32
    return %arg0, %2, %c0_i32_0, %c0_i32_1, %c0_i32_2 : i32, i32, i32, i32, i32
  }
  func.func @transform_1(%arg0: i32, %arg1: i32) -> (i32, i32) {
    %c0_i32 = arith.constant 0 : i32
    %c0_i32_0 = arith.constant 0 : i32
    %c0_i32_1 = arith.constant 0 : i32
    return %c0_i32, %c0_i32_0 : i32, i32
  }
  func.func @transform_2(%arg0: i32, %arg1: i32) -> (i32, i32) {
    %c0_i32 = arith.constant 0 : i32
    %c0_i32_0 = arith.constant 0 : i32
    %c0_i32_1 = arith.constant 0 : i32
    return %c0_i32, %c0_i32_0 : i32, i32
  }
  func.func @transform_3(%arg0: i32, %arg1: i32) -> (i32, i32, i32, i32, i32) {
    %c0_i32 = arith.constant 0 : i32
    %c0_i32_0 = arith.constant 0 : i32
    %c0_i32_1 = arith.constant 0 : i32
    %c0_i32_2 = arith.constant 0 : i32
    return %arg0, %arg1, %c0_i32, %c0_i32_0, %c0_i32_1 : i32, i32, i32, i32, i32
  }
}

module attributes {stable_mosaic.version = 11 : i64} {
  func.func @_conv_stats_kernel(%arg0: i32, %arg1: i32, %arg2: memref<1x1x10x10x8xbf16, #tpu.memory_space<vmem>>, %arg3: memref<1x1x10x10x8xbf16, #tpu.memory_space<vmem>>, %arg4: memref<1x1x10x10x8xbf16, #tpu.memory_space<vmem>>, %arg5: memref<216x8xbf16, #tpu.memory_space<vmem>>, %arg6: memref<1x1x8x8x8xbf16, #tpu.memory_space<vmem>>, %arg7: memref<2x8xf32, #tpu.memory_space<vmem>>, %arg8: memref<8x8x216xbf16, #tpu.memory_space<vmem>>) attributes {dimension_semantics = [#tpu.dimension_semantics<arbitrary>, #tpu.dimension_semantics<arbitrary>], iteration_bounds = array<i64: 2, 8>, scalar_prefetch = 0 : i64, scratch_operands = 1 : i64, tpu.core_type = #tpu.core_type<tc>, window_params = [{transform_indices = @transform_0, window_bounds = array<i64: 1, 1, 10, 10, 8>}, {transform_indices = @transform_1, window_bounds = array<i64: 1, 1, 10, 10, 8>}, {transform_indices = @transform_2, window_bounds = array<i64: 1, 1, 10, 10, 8>}, {pipeline_mode = #tpu.pipeline_mode<synchronous>, transform_indices = @transform_3, window_bounds = array<i64: 216, 8>}, {transform_indices = @transform_4, window_bounds = array<i64: 1, 1, 8, 8, 8>}, {pipeline_mode = #tpu.pipeline_mode<synchronous>, transform_indices = @transform_5, window_bounds = array<i64: 2, 8>}]} {
    %c0_i32 = arith.constant 0 : i32
    %0 = arith.cmpi eq, %arg0, %c0_i32 : i32
    %c0_i32_0 = arith.constant 0 : i32
    %1 = arith.cmpi eq, %arg1, %c0_i32_0 : i32
    %2 = arith.andi %0, %1 : i1
    %3 = arith.extui %2 : i1 to i32
    %c0_i32_1 = arith.constant 0 : i32
    %4 = arith.cmpi ne, %3, %c0_i32_1 : i32
    scf.if %4 {
      %cst_207 = arith.constant 0.000000e+00 : f32
      %109 = vector.broadcast %cst_207 : f32 to vector<2x8xf32>
      %c0_208 = arith.constant 0 : index
      %c0_209 = arith.constant 0 : index
      %110 = vector.load %arg7[%c0_208, %c0_209] : memref<2x8xf32, #tpu.memory_space<vmem>>, vector<2x8xf32>
      tpu.vector_store %arg7[%c0_208, %c0_209], %109 {strides = array<i32>} : memref<2x8xf32, #tpu.memory_space<vmem>>, vector<2x8xf32>,
    } else {
    }
    %c0 = arith.constant 0 : index
    %c0_2 = arith.constant 0 : index
    %5 = vector.load %arg5[%c0, %c0_2] : memref<216x8xbf16, #tpu.memory_space<vmem>>, vector<216x8xbf16>
    %cst = arith.constant 0.000000e+00 : f32
    %6 = vector.broadcast %cst : f32 to vector<1x8xf32>
    %cst_3 = arith.constant 0.000000e+00 : f32
    %7 = vector.broadcast %cst_3 : f32 to vector<1x8xf32>
    %c0_4 = arith.constant 0 : index
    %c0_5 = arith.constant 0 : index
    %c0_6 = arith.constant 0 : index
    %c0_7 = arith.constant 0 : index
    %c0_8 = arith.constant 0 : index
    %8 = vector.load %arg2[%c0_4, %c0_5, %c0_6, %c0_7, %c0_8] : memref<1x1x10x10x8xbf16, #tpu.memory_space<vmem>>, vector<1x1x8x8x8xbf16>
    %9 = vector.shape_cast %8 : vector<1x1x8x8x8xbf16> to vector<8x8x8xbf16>
    %c0_9 = arith.constant 0 : index
    %c0_10 = arith.constant 0 : index
    %c0_11 = arith.constant 0 : index
    %10 = vector.load %arg8[%c0_9, %c0_10, %c0_11] : memref<8x8x216xbf16, #tpu.memory_space<vmem>>, vector<8x8x8xbf16>
    tpu.vector_store %arg8[%c0_9, %c0_10, %c0_11], %9 {strides = array<i32>} : memref<8x8x216xbf16, #tpu.memory_space<vmem>>, vector<8x8x8xbf16>,
    %c0_12 = arith.constant 0 : index
    %c0_13 = arith.constant 0 : index
    %c0_14 = arith.constant 0 : index
    %c1 = arith.constant 1 : index
    %c0_15 = arith.constant 0 : index
    %11 = vector.load %arg2[%c0_12, %c0_13, %c0_14, %c1, %c0_15] : memref<1x1x10x10x8xbf16, #tpu.memory_space<vmem>>, vector<1x1x8x8x8xbf16>
    %12 = vector.shape_cast %11 : vector<1x1x8x8x8xbf16> to vector<8x8x8xbf16>
    %c0_16 = arith.constant 0 : index
    %c0_17 = arith.constant 0 : index
    %c8 = arith.constant 8 : index
    %13 = vector.load %arg8[%c0_16, %c0_17, %c8] : memref<8x8x216xbf16, #tpu.memory_space<vmem>>, vector<8x8x8xbf16>
    tpu.vector_store %arg8[%c0_16, %c0_17, %c8], %12 {strides = array<i32>} : memref<8x8x216xbf16, #tpu.memory_space<vmem>>, vector<8x8x8xbf16>,
    %c0_18 = arith.constant 0 : index
    %c0_19 = arith.constant 0 : index
    %c0_20 = arith.constant 0 : index
    %c2 = arith.constant 2 : index
    %c0_21 = arith.constant 0 : index
    %14 = vector.load %arg2[%c0_18, %c0_19, %c0_20, %c2, %c0_21] : memref<1x1x10x10x8xbf16, #tpu.memory_space<vmem>>, vector<1x1x8x8x8xbf16>
    %15 = vector.shape_cast %14 : vector<1x1x8x8x8xbf16> to vector<8x8x8xbf16>
    %c0_22 = arith.constant 0 : index
    %c0_23 = arith.constant 0 : index
    %c16 = arith.constant 16 : index
    %16 = vector.load %arg8[%c0_22, %c0_23, %c16] : memref<8x8x216xbf16, #tpu.memory_space<vmem>>, vector<8x8x8xbf16>
    tpu.vector_store %arg8[%c0_22, %c0_23, %c16], %15 {strides = array<i32>} : memref<8x8x216xbf16, #tpu.memory_space<vmem>>, vector<8x8x8xbf16>,
    %c0_24 = arith.constant 0 : index
    %c0_25 = arith.constant 0 : index
    %c1_26 = arith.constant 1 : index
    %c0_27 = arith.constant 0 : index
    %c0_28 = arith.constant 0 : index
    %17 = vector.load %arg2[%c0_24, %c0_25, %c1_26, %c0_27, %c0_28] : memref<1x1x10x10x8xbf16, #tpu.memory_space<vmem>>, vector<1x1x8x8x8xbf16>
    %18 = vector.shape_cast %17 : vector<1x1x8x8x8xbf16> to vector<8x8x8xbf16>
    %c0_29 = arith.constant 0 : index
    %c0_30 = arith.constant 0 : index
    %c24 = arith.constant 24 : index
    %19 = vector.load %arg8[%c0_29, %c0_30, %c24] : memref<8x8x216xbf16, #tpu.memory_space<vmem>>, vector<8x8x8xbf16>
    tpu.vector_store %arg8[%c0_29, %c0_30, %c24], %18 {strides = array<i32>} : memref<8x8x216xbf16, #tpu.memory_space<vmem>>, vector<8x8x8xbf16>,
    %c0_31 = arith.constant 0 : index
    %c0_32 = arith.constant 0 : index
    %c1_33 = arith.constant 1 : index
    %c1_34 = arith.constant 1 : index
    %c0_35 = arith.constant 0 : index
    %20 = vector.load %arg2[%c0_31, %c0_32, %c1_33, %c1_34, %c0_35] : memref<1x1x10x10x8xbf16, #tpu.memory_space<vmem>>, vector<1x1x8x8x8xbf16>
    %21 = vector.shape_cast %20 : vector<1x1x8x8x8xbf16> to vector<8x8x8xbf16>
    %c0_36 = arith.constant 0 : index
    %c0_37 = arith.constant 0 : index
    %c32 = arith.constant 32 : index
    %22 = vector.load %arg8[%c0_36, %c0_37, %c32] : memref<8x8x216xbf16, #tpu.memory_space<vmem>>, vector<8x8x8xbf16>
    tpu.vector_store %arg8[%c0_36, %c0_37, %c32], %21 {strides = array<i32>} : memref<8x8x216xbf16, #tpu.memory_space<vmem>>, vector<8x8x8xbf16>,
    %c0_38 = arith.constant 0 : index
    %c0_39 = arith.constant 0 : index
    %c1_40 = arith.constant 1 : index
    %c2_41 = arith.constant 2 : index
    %c0_42 = arith.constant 0 : index
    %23 = vector.load %arg2[%c0_38, %c0_39, %c1_40, %c2_41, %c0_42] : memref<1x1x10x10x8xbf16, #tpu.memory_space<vmem>>, vector<1x1x8x8x8xbf16>
    %24 = vector.shape_cast %23 : vector<1x1x8x8x8xbf16> to vector<8x8x8xbf16>
    %c0_43 = arith.constant 0 : index
    %c0_44 = arith.constant 0 : index
    %c40 = arith.constant 40 : index
    %25 = vector.load %arg8[%c0_43, %c0_44, %c40] : memref<8x8x216xbf16, #tpu.memory_space<vmem>>, vector<8x8x8xbf16>
    tpu.vector_store %arg8[%c0_43, %c0_44, %c40], %24 {strides = array<i32>} : memref<8x8x216xbf16, #tpu.memory_space<vmem>>, vector<8x8x8xbf16>,
    %c0_45 = arith.constant 0 : index
    %c0_46 = arith.constant 0 : index
    %c2_47 = arith.constant 2 : index
    %c0_48 = arith.constant 0 : index
    %c0_49 = arith.constant 0 : index
    %26 = vector.load %arg2[%c0_45, %c0_46, %c2_47, %c0_48, %c0_49] : memref<1x1x10x10x8xbf16, #tpu.memory_space<vmem>>, vector<1x1x8x8x8xbf16>
    %27 = vector.shape_cast %26 : vector<1x1x8x8x8xbf16> to vector<8x8x8xbf16>
    %c0_50 = arith.constant 0 : index
    %c0_51 = arith.constant 0 : index
    %c48 = arith.constant 48 : index
    %28 = vector.load %arg8[%c0_50, %c0_51, %c48] : memref<8x8x216xbf16, #tpu.memory_space<vmem>>, vector<8x8x8xbf16>
    tpu.vector_store %arg8[%c0_50, %c0_51, %c48], %27 {strides = array<i32>} : memref<8x8x216xbf16, #tpu.memory_space<vmem>>, vector<8x8x8xbf16>,
    %c0_52 = arith.constant 0 : index
    %c0_53 = arith.constant 0 : index
    %c2_54 = arith.constant 2 : index
    %c1_55 = arith.constant 1 : index
    %c0_56 = arith.constant 0 : index
    %29 = vector.load %arg2[%c0_52, %c0_53, %c2_54, %c1_55, %c0_56] : memref<1x1x10x10x8xbf16, #tpu.memory_space<vmem>>, vector<1x1x8x8x8xbf16>
    %30 = vector.shape_cast %29 : vector<1x1x8x8x8xbf16> to vector<8x8x8xbf16>
    %c0_57 = arith.constant 0 : index
    %c0_58 = arith.constant 0 : index
    %c56 = arith.constant 56 : index
    %31 = vector.load %arg8[%c0_57, %c0_58, %c56] : memref<8x8x216xbf16, #tpu.memory_space<vmem>>, vector<8x8x8xbf16>
    tpu.vector_store %arg8[%c0_57, %c0_58, %c56], %30 {strides = array<i32>} : memref<8x8x216xbf16, #tpu.memory_space<vmem>>, vector<8x8x8xbf16>,
    %c0_59 = arith.constant 0 : index
    %c0_60 = arith.constant 0 : index
    %c2_61 = arith.constant 2 : index
    %c2_62 = arith.constant 2 : index
    %c0_63 = arith.constant 0 : index
    %32 = vector.load %arg2[%c0_59, %c0_60, %c2_61, %c2_62, %c0_63] : memref<1x1x10x10x8xbf16, #tpu.memory_space<vmem>>, vector<1x1x8x8x8xbf16>
    %33 = vector.shape_cast %32 : vector<1x1x8x8x8xbf16> to vector<8x8x8xbf16>
    %c0_64 = arith.constant 0 : index
    %c0_65 = arith.constant 0 : index
    %c64 = arith.constant 64 : index
    %34 = vector.load %arg8[%c0_64, %c0_65, %c64] : memref<8x8x216xbf16, #tpu.memory_space<vmem>>, vector<8x8x8xbf16>
    tpu.vector_store %arg8[%c0_64, %c0_65, %c64], %33 {strides = array<i32>} : memref<8x8x216xbf16, #tpu.memory_space<vmem>>, vector<8x8x8xbf16>,
    %c0_66 = arith.constant 0 : index
    %c0_67 = arith.constant 0 : index
    %c0_68 = arith.constant 0 : index
    %c0_69 = arith.constant 0 : index
    %c0_70 = arith.constant 0 : index
    %35 = vector.load %arg3[%c0_66, %c0_67, %c0_68, %c0_69, %c0_70] : memref<1x1x10x10x8xbf16, #tpu.memory_space<vmem>>, vector<1x1x8x8x8xbf16>
    %36 = vector.shape_cast %35 : vector<1x1x8x8x8xbf16> to vector<8x8x8xbf16>
    %c0_71 = arith.constant 0 : index
    %c0_72 = arith.constant 0 : index
    %c72 = arith.constant 72 : index
    %37 = vector.load %arg8[%c0_71, %c0_72, %c72] : memref<8x8x216xbf16, #tpu.memory_space<vmem>>, vector<8x8x8xbf16>
    tpu.vector_store %arg8[%c0_71, %c0_72, %c72], %36 {strides = array<i32>} : memref<8x8x216xbf16, #tpu.memory_space<vmem>>, vector<8x8x8xbf16>,
    %c0_73 = arith.constant 0 : index
    %c0_74 = arith.constant 0 : index
    %c0_75 = arith.constant 0 : index
    %c1_76 = arith.constant 1 : index
    %c0_77 = arith.constant 0 : index
    %38 = vector.load %arg3[%c0_73, %c0_74, %c0_75, %c1_76, %c0_77] : memref<1x1x10x10x8xbf16, #tpu.memory_space<vmem>>, vector<1x1x8x8x8xbf16>
    %39 = vector.shape_cast %38 : vector<1x1x8x8x8xbf16> to vector<8x8x8xbf16>
    %c0_78 = arith.constant 0 : index
    %c0_79 = arith.constant 0 : index
    %c80 = arith.constant 80 : index
    %40 = vector.load %arg8[%c0_78, %c0_79, %c80] : memref<8x8x216xbf16, #tpu.memory_space<vmem>>, vector<8x8x8xbf16>
    tpu.vector_store %arg8[%c0_78, %c0_79, %c80], %39 {strides = array<i32>} : memref<8x8x216xbf16, #tpu.memory_space<vmem>>, vector<8x8x8xbf16>,
    %c0_80 = arith.constant 0 : index
    %c0_81 = arith.constant 0 : index
    %c0_82 = arith.constant 0 : index
    %c2_83 = arith.constant 2 : index
    %c0_84 = arith.constant 0 : index
    %41 = vector.load %arg3[%c0_80, %c0_81, %c0_82, %c2_83, %c0_84] : memref<1x1x10x10x8xbf16, #tpu.memory_space<vmem>>, vector<1x1x8x8x8xbf16>
    %42 = vector.shape_cast %41 : vector<1x1x8x8x8xbf16> to vector<8x8x8xbf16>
    %c0_85 = arith.constant 0 : index
    %c0_86 = arith.constant 0 : index
    %c88 = arith.constant 88 : index
    %43 = vector.load %arg8[%c0_85, %c0_86, %c88] : memref<8x8x216xbf16, #tpu.memory_space<vmem>>, vector<8x8x8xbf16>
    tpu.vector_store %arg8[%c0_85, %c0_86, %c88], %42 {strides = array<i32>} : memref<8x8x216xbf16, #tpu.memory_space<vmem>>, vector<8x8x8xbf16>,
    %c0_87 = arith.constant 0 : index
    %c0_88 = arith.constant 0 : index
    %c1_89 = arith.constant 1 : index
    %c0_90 = arith.constant 0 : index
    %c0_91 = arith.constant 0 : index
    %44 = vector.load %arg3[%c0_87, %c0_88, %c1_89, %c0_90, %c0_91] : memref<1x1x10x10x8xbf16, #tpu.memory_space<vmem>>, vector<1x1x8x8x8xbf16>
    %45 = vector.shape_cast %44 : vector<1x1x8x8x8xbf16> to vector<8x8x8xbf16>
    %c0_92 = arith.constant 0 : index
    %c0_93 = arith.constant 0 : index
    %c96 = arith.constant 96 : index
    %46 = vector.load %arg8[%c0_92, %c0_93, %c96] : memref<8x8x216xbf16, #tpu.memory_space<vmem>>, vector<8x8x8xbf16>
    tpu.vector_store %arg8[%c0_92, %c0_93, %c96], %45 {strides = array<i32>} : memref<8x8x216xbf16, #tpu.memory_space<vmem>>, vector<8x8x8xbf16>,
    %c0_94 = arith.constant 0 : index
    %c0_95 = arith.constant 0 : index
    %c1_96 = arith.constant 1 : index
    %c1_97 = arith.constant 1 : index
    %c0_98 = arith.constant 0 : index
    %47 = vector.load %arg3[%c0_94, %c0_95, %c1_96, %c1_97, %c0_98] : memref<1x1x10x10x8xbf16, #tpu.memory_space<vmem>>, vector<1x1x8x8x8xbf16>
    %48 = vector.shape_cast %47 : vector<1x1x8x8x8xbf16> to vector<8x8x8xbf16>
    %c0_99 = arith.constant 0 : index
    %c0_100 = arith.constant 0 : index
    %c104 = arith.constant 104 : index
    %49 = vector.load %arg8[%c0_99, %c0_100, %c104] : memref<8x8x216xbf16, #tpu.memory_space<vmem>>, vector<8x8x8xbf16>
    tpu.vector_store %arg8[%c0_99, %c0_100, %c104], %48 {strides = array<i32>} : memref<8x8x216xbf16, #tpu.memory_space<vmem>>, vector<8x8x8xbf16>,
    %c0_101 = arith.constant 0 : index
    %c0_102 = arith.constant 0 : index
    %c1_103 = arith.constant 1 : index
    %c2_104 = arith.constant 2 : index
    %c0_105 = arith.constant 0 : index
    %50 = vector.load %arg3[%c0_101, %c0_102, %c1_103, %c2_104, %c0_105] : memref<1x1x10x10x8xbf16, #tpu.memory_space<vmem>>, vector<1x1x8x8x8xbf16>
    %51 = vector.shape_cast %50 : vector<1x1x8x8x8xbf16> to vector<8x8x8xbf16>
    %c0_106 = arith.constant 0 : index
    %c0_107 = arith.constant 0 : index
    %c112 = arith.constant 112 : index
    %52 = vector.load %arg8[%c0_106, %c0_107, %c112] : memref<8x8x216xbf16, #tpu.memory_space<vmem>>, vector<8x8x8xbf16>
    tpu.vector_store %arg8[%c0_106, %c0_107, %c112], %51 {strides = array<i32>} : memref<8x8x216xbf16, #tpu.memory_space<vmem>>, vector<8x8x8xbf16>,
    %c0_108 = arith.constant 0 : index
    %c0_109 = arith.constant 0 : index
    %c2_110 = arith.constant 2 : index
    %c0_111 = arith.constant 0 : index
    %c0_112 = arith.constant 0 : index
    %53 = vector.load %arg3[%c0_108, %c0_109, %c2_110, %c0_111, %c0_112] : memref<1x1x10x10x8xbf16, #tpu.memory_space<vmem>>, vector<1x1x8x8x8xbf16>
    %54 = vector.shape_cast %53 : vector<1x1x8x8x8xbf16> to vector<8x8x8xbf16>
    %c0_113 = arith.constant 0 : index
    %c0_114 = arith.constant 0 : index
    %c120 = arith.constant 120 : index
    %55 = vector.load %arg8[%c0_113, %c0_114, %c120] : memref<8x8x216xbf16, #tpu.memory_space<vmem>>, vector<8x8x8xbf16>
    tpu.vector_store %arg8[%c0_113, %c0_114, %c120], %54 {strides = array<i32>} : memref<8x8x216xbf16, #tpu.memory_space<vmem>>, vector<8x8x8xbf16>,
    %c0_115 = arith.constant 0 : index
    %c0_116 = arith.constant 0 : index
    %c2_117 = arith.constant 2 : index
    %c1_118 = arith.constant 1 : index
    %c0_119 = arith.constant 0 : index
    %56 = vector.load %arg3[%c0_115, %c0_116, %c2_117, %c1_118, %c0_119] : memref<1x1x10x10x8xbf16, #tpu.memory_space<vmem>>, vector<1x1x8x8x8xbf16>
    %57 = vector.shape_cast %56 : vector<1x1x8x8x8xbf16> to vector<8x8x8xbf16>
    %c0_120 = arith.constant 0 : index
    %c0_121 = arith.constant 0 : index
    %c128 = arith.constant 128 : index
    %58 = vector.load %arg8[%c0_120, %c0_121, %c128] : memref<8x8x216xbf16, #tpu.memory_space<vmem>>, vector<8x8x8xbf16>
    tpu.vector_store %arg8[%c0_120, %c0_121, %c128], %57 {strides = array<i32>} : memref<8x8x216xbf16, #tpu.memory_space<vmem>>, vector<8x8x8xbf16>,
    %c0_122 = arith.constant 0 : index
    %c0_123 = arith.constant 0 : index
    %c2_124 = arith.constant 2 : index
    %c2_125 = arith.constant 2 : index
    %c0_126 = arith.constant 0 : index
    %59 = vector.load %arg3[%c0_122, %c0_123, %c2_124, %c2_125, %c0_126] : memref<1x1x10x10x8xbf16, #tpu.memory_space<vmem>>, vector<1x1x8x8x8xbf16>
    %60 = vector.shape_cast %59 : vector<1x1x8x8x8xbf16> to vector<8x8x8xbf16>
    %c0_127 = arith.constant 0 : index
    %c0_128 = arith.constant 0 : index
    %c136 = arith.constant 136 : index
    %61 = vector.load %arg8[%c0_127, %c0_128, %c136] : memref<8x8x216xbf16, #tpu.memory_space<vmem>>, vector<8x8x8xbf16>
    tpu.vector_store %arg8[%c0_127, %c0_128, %c136], %60 {strides = array<i32>} : memref<8x8x216xbf16, #tpu.memory_space<vmem>>, vector<8x8x8xbf16>,
    %c0_129 = arith.constant 0 : index
    %c0_130 = arith.constant 0 : index
    %c0_131 = arith.constant 0 : index
    %c0_132 = arith.constant 0 : index
    %c0_133 = arith.constant 0 : index
    %62 = vector.load %arg4[%c0_129, %c0_130, %c0_131, %c0_132, %c0_133] : memref<1x1x10x10x8xbf16, #tpu.memory_space<vmem>>, vector<1x1x8x8x8xbf16>
    %63 = vector.shape_cast %62 : vector<1x1x8x8x8xbf16> to vector<8x8x8xbf16>
    %c0_134 = arith.constant 0 : index
    %c0_135 = arith.constant 0 : index
    %c144 = arith.constant 144 : index
    %64 = vector.load %arg8[%c0_134, %c0_135, %c144] : memref<8x8x216xbf16, #tpu.memory_space<vmem>>, vector<8x8x8xbf16>
    tpu.vector_store %arg8[%c0_134, %c0_135, %c144], %63 {strides = array<i32>} : memref<8x8x216xbf16, #tpu.memory_space<vmem>>, vector<8x8x8xbf16>,
    %c0_136 = arith.constant 0 : index
    %c0_137 = arith.constant 0 : index
    %c0_138 = arith.constant 0 : index
    %c1_139 = arith.constant 1 : index
    %c0_140 = arith.constant 0 : index
    %65 = vector.load %arg4[%c0_136, %c0_137, %c0_138, %c1_139, %c0_140] : memref<1x1x10x10x8xbf16, #tpu.memory_space<vmem>>, vector<1x1x8x8x8xbf16>
    %66 = vector.shape_cast %65 : vector<1x1x8x8x8xbf16> to vector<8x8x8xbf16>
    %c0_141 = arith.constant 0 : index
    %c0_142 = arith.constant 0 : index
    %c152 = arith.constant 152 : index
    %67 = vector.load %arg8[%c0_141, %c0_142, %c152] : memref<8x8x216xbf16, #tpu.memory_space<vmem>>, vector<8x8x8xbf16>
    tpu.vector_store %arg8[%c0_141, %c0_142, %c152], %66 {strides = array<i32>} : memref<8x8x216xbf16, #tpu.memory_space<vmem>>, vector<8x8x8xbf16>,
    %c0_143 = arith.constant 0 : index
    %c0_144 = arith.constant 0 : index
    %c0_145 = arith.constant 0 : index
    %c2_146 = arith.constant 2 : index
    %c0_147 = arith.constant 0 : index
    %68 = vector.load %arg4[%c0_143, %c0_144, %c0_145, %c2_146, %c0_147] : memref<1x1x10x10x8xbf16, #tpu.memory_space<vmem>>, vector<1x1x8x8x8xbf16>
    %69 = vector.shape_cast %68 : vector<1x1x8x8x8xbf16> to vector<8x8x8xbf16>
    %c0_148 = arith.constant 0 : index
    %c0_149 = arith.constant 0 : index
    %c160 = arith.constant 160 : index
    %70 = vector.load %arg8[%c0_148, %c0_149, %c160] : memref<8x8x216xbf16, #tpu.memory_space<vmem>>, vector<8x8x8xbf16>
    tpu.vector_store %arg8[%c0_148, %c0_149, %c160], %69 {strides = array<i32>} : memref<8x8x216xbf16, #tpu.memory_space<vmem>>, vector<8x8x8xbf16>,
    %c0_150 = arith.constant 0 : index
    %c0_151 = arith.constant 0 : index
    %c1_152 = arith.constant 1 : index
    %c0_153 = arith.constant 0 : index
    %c0_154 = arith.constant 0 : index
    %71 = vector.load %arg4[%c0_150, %c0_151, %c1_152, %c0_153, %c0_154] : memref<1x1x10x10x8xbf16, #tpu.memory_space<vmem>>, vector<1x1x8x8x8xbf16>
    %72 = vector.shape_cast %71 : vector<1x1x8x8x8xbf16> to vector<8x8x8xbf16>
    %c0_155 = arith.constant 0 : index
    %c0_156 = arith.constant 0 : index
    %c168 = arith.constant 168 : index
    %73 = vector.load %arg8[%c0_155, %c0_156, %c168] : memref<8x8x216xbf16, #tpu.memory_space<vmem>>, vector<8x8x8xbf16>
    tpu.vector_store %arg8[%c0_155, %c0_156, %c168], %72 {strides = array<i32>} : memref<8x8x216xbf16, #tpu.memory_space<vmem>>, vector<8x8x8xbf16>,
    %c0_157 = arith.constant 0 : index
    %c0_158 = arith.constant 0 : index
    %c1_159 = arith.constant 1 : index
    %c1_160 = arith.constant 1 : index
    %c0_161 = arith.constant 0 : index
    %74 = vector.load %arg4[%c0_157, %c0_158, %c1_159, %c1_160, %c0_161] : memref<1x1x10x10x8xbf16, #tpu.memory_space<vmem>>, vector<1x1x8x8x8xbf16>
    %75 = vector.shape_cast %74 : vector<1x1x8x8x8xbf16> to vector<8x8x8xbf16>
    %c0_162 = arith.constant 0 : index
    %c0_163 = arith.constant 0 : index
    %c176 = arith.constant 176 : index
    %76 = vector.load %arg8[%c0_162, %c0_163, %c176] : memref<8x8x216xbf16, #tpu.memory_space<vmem>>, vector<8x8x8xbf16>
    tpu.vector_store %arg8[%c0_162, %c0_163, %c176], %75 {strides = array<i32>} : memref<8x8x216xbf16, #tpu.memory_space<vmem>>, vector<8x8x8xbf16>,
    %c0_164 = arith.constant 0 : index
    %c0_165 = arith.constant 0 : index
    %c1_166 = arith.constant 1 : index
    %c2_167 = arith.constant 2 : index
    %c0_168 = arith.constant 0 : index
    %77 = vector.load %arg4[%c0_164, %c0_165, %c1_166, %c2_167, %c0_168] : memref<1x1x10x10x8xbf16, #tpu.memory_space<vmem>>, vector<1x1x8x8x8xbf16>
    %78 = vector.shape_cast %77 : vector<1x1x8x8x8xbf16> to vector<8x8x8xbf16>
    %c0_169 = arith.constant 0 : index
    %c0_170 = arith.constant 0 : index
    %c184 = arith.constant 184 : index
    %79 = vector.load %arg8[%c0_169, %c0_170, %c184] : memref<8x8x216xbf16, #tpu.memory_space<vmem>>, vector<8x8x8xbf16>
    tpu.vector_store %arg8[%c0_169, %c0_170, %c184], %78 {strides = array<i32>} : memref<8x8x216xbf16, #tpu.memory_space<vmem>>, vector<8x8x8xbf16>,
    %c0_171 = arith.constant 0 : index
    %c0_172 = arith.constant 0 : index
    %c2_173 = arith.constant 2 : index
    %c0_174 = arith.constant 0 : index
    %c0_175 = arith.constant 0 : index
    %80 = vector.load %arg4[%c0_171, %c0_172, %c2_173, %c0_174, %c0_175] : memref<1x1x10x10x8xbf16, #tpu.memory_space<vmem>>, vector<1x1x8x8x8xbf16>
    %81 = vector.shape_cast %80 : vector<1x1x8x8x8xbf16> to vector<8x8x8xbf16>
    %c0_176 = arith.constant 0 : index
    %c0_177 = arith.constant 0 : index
    %c192 = arith.constant 192 : index
    %82 = vector.load %arg8[%c0_176, %c0_177, %c192] : memref<8x8x216xbf16, #tpu.memory_space<vmem>>, vector<8x8x8xbf16>
    tpu.vector_store %arg8[%c0_176, %c0_177, %c192], %81 {strides = array<i32>} : memref<8x8x216xbf16, #tpu.memory_space<vmem>>, vector<8x8x8xbf16>,
    %c0_178 = arith.constant 0 : index
    %c0_179 = arith.constant 0 : index
    %c2_180 = arith.constant 2 : index
    %c1_181 = arith.constant 1 : index
    %c0_182 = arith.constant 0 : index
    %83 = vector.load %arg4[%c0_178, %c0_179, %c2_180, %c1_181, %c0_182] : memref<1x1x10x10x8xbf16, #tpu.memory_space<vmem>>, vector<1x1x8x8x8xbf16>
    %84 = vector.shape_cast %83 : vector<1x1x8x8x8xbf16> to vector<8x8x8xbf16>
    %c0_183 = arith.constant 0 : index
    %c0_184 = arith.constant 0 : index
    %c200 = arith.constant 200 : index
    %85 = vector.load %arg8[%c0_183, %c0_184, %c200] : memref<8x8x216xbf16, #tpu.memory_space<vmem>>, vector<8x8x8xbf16>
    tpu.vector_store %arg8[%c0_183, %c0_184, %c200], %84 {strides = array<i32>} : memref<8x8x216xbf16, #tpu.memory_space<vmem>>, vector<8x8x8xbf16>,
    %c0_185 = arith.constant 0 : index
    %c0_186 = arith.constant 0 : index
    %c2_187 = arith.constant 2 : index
    %c2_188 = arith.constant 2 : index
    %c0_189 = arith.constant 0 : index
    %86 = vector.load %arg4[%c0_185, %c0_186, %c2_187, %c2_188, %c0_189] : memref<1x1x10x10x8xbf16, #tpu.memory_space<vmem>>, vector<1x1x8x8x8xbf16>
    %87 = vector.shape_cast %86 : vector<1x1x8x8x8xbf16> to vector<8x8x8xbf16>
    %c0_190 = arith.constant 0 : index
    %c0_191 = arith.constant 0 : index
    %c208 = arith.constant 208 : index
    %88 = vector.load %arg8[%c0_190, %c0_191, %c208] : memref<8x8x216xbf16, #tpu.memory_space<vmem>>, vector<8x8x8xbf16>
    tpu.vector_store %arg8[%c0_190, %c0_191, %c208], %87 {strides = array<i32>} : memref<8x8x216xbf16, #tpu.memory_space<vmem>>, vector<8x8x8xbf16>,
    %c0_192 = arith.constant 0 : index
    %c0_193 = arith.constant 0 : index
    %c0_194 = arith.constant 0 : index
    %89 = vector.load %arg8[%c0_192, %c0_193, %c0_194] : memref<8x8x216xbf16, #tpu.memory_space<vmem>>, vector<8x8x216xbf16>
    %90 = vector.shape_cast %89 : vector<8x8x216xbf16> to vector<64x216xbf16>
    %cst_195 = arith.constant dense<0.000000e+00> : vector<64x8xf32>
    %91 = tpu.matmul %90, %5, %cst_195 {dimension_numbers = #tpu.dot_dimension_numbers<[1], [0], [0], [1], [0, 0, 1, 1], [], []>} : vector<64x216xbf16>, vector<216x8xbf16>, vector<64x8xf32> -> vector<64x8xf32>
    %92 = arith.truncf %91 : vector<64x8xf32> to vector<64x8xbf16>
    %93 = vector.shape_cast %92 : vector<64x8xbf16> to vector<8x8x8xbf16>
    %c0_196 = arith.constant 0 : index
    %c0_197 = arith.constant 0 : index
    %c0_198 = arith.constant 0 : index
    %c0_199 = arith.constant 0 : index
    %c0_200 = arith.constant 0 : index
    %94 = vector.load %arg6[%c0_196, %c0_197, %c0_198, %c0_199, %c0_200] : memref<1x1x8x8x8xbf16, #tpu.memory_space<vmem>>, vector<1x1x8x8x8xbf16>
    %95 = vector.shape_cast %94 : vector<1x1x8x8x8xbf16> to vector<8x8x8xbf16>
    %96 = vector.shape_cast %93 : vector<8x8x8xbf16> to vector<1x1x8x8x8xbf16>
    tpu.vector_store %arg6[%c0_196, %c0_197, %c0_198, %c0_199, %c0_200], %96 {strides = array<i32>} : memref<1x1x8x8x8xbf16, #tpu.memory_space<vmem>>, vector<1x1x8x8x8xbf16>,
    %97 = arith.extf %92 : vector<64x8xbf16> to vector<64x8xf32>
    %cst_201 = arith.constant dense<0.000000e+00> : vector<8xf32>
    %98 = vector.multi_reduction <add>, %97, %cst_201 [0] : vector<64x8xf32> to vector<8xf32>
    %99 = vector.shape_cast %98 : vector<8xf32> to vector<1x8xf32>
    %100 = arith.addf %6, %99 : vector<1x8xf32>
    %101 = arith.mulf %97, %97 : vector<64x8xf32>
    %cst_202 = arith.constant dense<0.000000e+00> : vector<8xf32>
    %102 = vector.multi_reduction <add>, %101, %cst_202 [0] : vector<64x8xf32> to vector<8xf32>
    %103 = vector.shape_cast %102 : vector<8xf32> to vector<1x8xf32>
    %104 = arith.addf %7, %103 : vector<1x8xf32>
    %c0_203 = arith.constant 0 : index
    %c0_204 = arith.constant 0 : index
    %105 = vector.load %arg7[%c0_203, %c0_204] : memref<2x8xf32, #tpu.memory_space<vmem>>, vector<2x8xf32>
    %106 = tpu.concatenate %100, %104 in 0 : vector<1x8xf32>, vector<1x8xf32> -> vector<2x8xf32>
    %107 = arith.addf %105, %106 : vector<2x8xf32>
    %c0_205 = arith.constant 0 : index
    %c0_206 = arith.constant 0 : index
    %108 = vector.load %arg7[%c0_205, %c0_206] : memref<2x8xf32, #tpu.memory_space<vmem>>, vector<2x8xf32>
    tpu.vector_store %arg7[%c0_205, %c0_206], %107 {strides = array<i32>} : memref<2x8xf32, #tpu.memory_space<vmem>>, vector<2x8xf32>,
    return
  }
  func.func @transform_0(%arg0: i32, %arg1: i32) -> (i32, i32, i32, i32, i32) {
    %c0_i32 = arith.constant 0 : i32
    %0 = arith.addi %arg1, %c0_i32 : i32
    %c0_i32_0 = arith.constant 0 : i32
    %c0_i32_1 = arith.constant 0 : i32
    %c0_i32_2 = arith.constant 0 : i32
    %c0_i32_3 = arith.constant 0 : i32
    return %arg0, %0, %c0_i32_0, %c0_i32_1, %c0_i32_2 : i32, i32, i32, i32, i32
  }
  func.func @transform_1(%arg0: i32, %arg1: i32) -> (i32, i32, i32, i32, i32) {
    %c1_i32 = arith.constant 1 : i32
    %0 = arith.addi %arg1, %c1_i32 : i32
    %c0_i32 = arith.constant 0 : i32
    %c0_i32_0 = arith.constant 0 : i32
    %c0_i32_1 = arith.constant 0 : i32
    %c0_i32_2 = arith.constant 0 : i32
    return %arg0, %0, %c0_i32, %c0_i32_0, %c0_i32_1 : i32, i32, i32, i32, i32
  }
  func.func @transform_2(%arg0: i32, %arg1: i32) -> (i32, i32, i32, i32, i32) {
    %c2_i32 = arith.constant 2 : i32
    %0 = arith.addi %arg1, %c2_i32 : i32
    %c0_i32 = arith.constant 0 : i32
    %c0_i32_0 = arith.constant 0 : i32
    %c0_i32_1 = arith.constant 0 : i32
    %c0_i32_2 = arith.constant 0 : i32
    return %arg0, %0, %c0_i32, %c0_i32_0, %c0_i32_1 : i32, i32, i32, i32, i32
  }
  func.func @transform_3(%arg0: i32, %arg1: i32) -> (i32, i32) {
    %c0_i32 = arith.constant 0 : i32
    %c0_i32_0 = arith.constant 0 : i32
    %c0_i32_1 = arith.constant 0 : i32
    return %c0_i32, %c0_i32_0 : i32, i32
  }
  func.func @transform_4(%arg0: i32, %arg1: i32) -> (i32, i32, i32, i32, i32) {
    %c0_i32 = arith.constant 0 : i32
    %c0_i32_0 = arith.constant 0 : i32
    %c0_i32_1 = arith.constant 0 : i32
    %c0_i32_2 = arith.constant 0 : i32
    return %arg0, %arg1, %c0_i32, %c0_i32_0, %c0_i32_1 : i32, i32, i32, i32, i32
  }
  func.func @transform_5(%arg0: i32, %arg1: i32) -> (i32, i32) {
    %c0_i32 = arith.constant 0 : i32
    %c0_i32_0 = arith.constant 0 : i32
    %c0_i32_1 = arith.constant 0 : i32
    return %c0_i32, %c0_i32_0 : i32, i32
  }
}

module attributes {stable_mosaic.version = 11 : i64} {
  func.func @_bn_relu_kernel(%arg0: i32, %arg1: i32, %arg2: memref<1x1x8x8x8xbf16, #tpu.memory_space<vmem>>, %arg3: memref<2x8xf32, #tpu.memory_space<vmem>>, %arg4: memref<2x8xf32, #tpu.memory_space<vmem>>, %arg5: memref<1x1x8x8x8xf32, #tpu.memory_space<vmem>>) attributes {dimension_semantics = [#tpu.dimension_semantics<parallel>, #tpu.dimension_semantics<parallel>], iteration_bounds = array<i64: 2, 8>, scalar_prefetch = 0 : i64, scratch_operands = 0 : i64, tpu.core_type = #tpu.core_type<tc>, window_params = [{transform_indices = @transform_0, window_bounds = array<i64: 1, 1, 8, 8, 8>}, {pipeline_mode = #tpu.pipeline_mode<synchronous>, transform_indices = @transform_1, window_bounds = array<i64: 2, 8>}, {pipeline_mode = #tpu.pipeline_mode<synchronous>, transform_indices = @transform_2, window_bounds = array<i64: 2, 8>}, {transform_indices = @transform_3, window_bounds = array<i64: 1, 1, 8, 8, 8>}]} {
    %c0 = arith.constant 0 : index
    %c0_0 = arith.constant 0 : index
    %0 = vector.load %arg3[%c0, %c0_0] : memref<2x8xf32, #tpu.memory_space<vmem>>, vector<1x8xf32>
    %cst = arith.constant 9.765625E-4 : f32
    %1 = vector.broadcast %cst : f32 to vector<1x8xf32>
    %2 = arith.mulf %0, %1 : vector<1x8xf32>
    %c1 = arith.constant 1 : index
    %c0_1 = arith.constant 0 : index
    %3 = vector.load %arg3[%c1, %c0_1] : memref<2x8xf32, #tpu.memory_space<vmem>>, vector<1x8xf32>
    %cst_2 = arith.constant 9.765625E-4 : f32
    %4 = vector.broadcast %cst_2 : f32 to vector<1x8xf32>
    %5 = arith.mulf %3, %4 : vector<1x8xf32>
    %6 = arith.mulf %2, %2 : vector<1x8xf32>
    %7 = arith.subf %5, %6 : vector<1x8xf32>
    %cst_3 = arith.constant 0.000000e+00 : f32
    %8 = vector.broadcast %cst_3 : f32 to vector<1x8xf32>
    %9 = arith.maximumf %7, %8 : vector<1x8xf32>
    %cst_4 = arith.constant 9.99999974E-6 : f32
    %10 = vector.broadcast %cst_4 : f32 to vector<1x8xf32>
    %11 = arith.addf %9, %10 : vector<1x8xf32>
    %12 = math.rsqrt %11 : vector<1x8xf32>
    %c0_5 = arith.constant 0 : index
    %c0_6 = arith.constant 0 : index
    %13 = vector.load %arg4[%c0_5, %c0_6] : memref<2x8xf32, #tpu.memory_space<vmem>>, vector<1x8xf32>
    %14 = arith.mulf %13, %12 : vector<1x8xf32>
    %c1_7 = arith.constant 1 : index
    %c0_8 = arith.constant 0 : index
    %15 = vector.load %arg4[%c1_7, %c0_8] : memref<2x8xf32, #tpu.memory_space<vmem>>, vector<1x8xf32>
    %16 = arith.mulf %2, %14 : vector<1x8xf32>
    %17 = arith.subf %15, %16 : vector<1x8xf32>
    %c0_9 = arith.constant 0 : index
    %c0_10 = arith.constant 0 : index
    %c0_11 = arith.constant 0 : index
    %c0_12 = arith.constant 0 : index
    %c0_13 = arith.constant 0 : index
    %18 = vector.load %arg2[%c0_9, %c0_10, %c0_11, %c0_12, %c0_13] : memref<1x1x8x8x8xbf16, #tpu.memory_space<vmem>>, vector<1x1x8x8x8xbf16>
    %19 = vector.shape_cast %18 : vector<1x1x8x8x8xbf16> to vector<8x8x8xbf16>
    %20 = arith.extf %19 : vector<8x8x8xbf16> to vector<8x8x8xf32>
    %21 = vector.shape_cast %14 : vector<1x8xf32> to vector<1x1x8xf32>
    %22 = vector.broadcast %21 : vector<1x1x8xf32> to vector<8x8x8xf32>
    %23 = arith.mulf %20, %22 : vector<8x8x8xf32>
    %24 = vector.shape_cast %17 : vector<1x8xf32> to vector<1x1x8xf32>
    %25 = vector.broadcast %24 : vector<1x1x8xf32> to vector<8x8x8xf32>
    %26 = arith.addf %23, %25 : vector<8x8x8xf32>
    %cst_14 = arith.constant 0.000000e+00 : f32
    %27 = vector.broadcast %cst_14 : f32 to vector<8x8x8xf32>
    %28 = arith.maximumf %26, %27 : vector<8x8x8xf32>
    %c0_15 = arith.constant 0 : index
    %c0_16 = arith.constant 0 : index
    %c0_17 = arith.constant 0 : index
    %c0_18 = arith.constant 0 : index
    %c0_19 = arith.constant 0 : index
    %29 = vector.load %arg5[%c0_15, %c0_16, %c0_17, %c0_18, %c0_19] : memref<1x1x8x8x8xf32, #tpu.memory_space<vmem>>, vector<1x1x8x8x8xf32>
    %30 = vector.shape_cast %29 : vector<1x1x8x8x8xf32> to vector<8x8x8xf32>
    %31 = vector.shape_cast %28 : vector<8x8x8xf32> to vector<1x1x8x8x8xf32>
    tpu.vector_store %arg5[%c0_15, %c0_16, %c0_17, %c0_18, %c0_19], %31 {strides = array<i32>} : memref<1x1x8x8x8xf32, #tpu.memory_space<vmem>>, vector<1x1x8x8x8xf32>,
    return
  }
  func.func @transform_0(%arg0: i32, %arg1: i32) -> (i32, i32, i32, i32, i32) {
    %c0_i32 = arith.constant 0 : i32
    %c0_i32_0 = arith.constant 0 : i32
    %c0_i32_1 = arith.constant 0 : i32
    %c0_i32_2 = arith.constant 0 : i32
    return %arg0, %arg1, %c0_i32, %c0_i32_0, %c0_i32_1 : i32, i32, i32, i32, i32
  }
  func.func @transform_1(%arg0: i32, %arg1: i32) -> (i32, i32) {
    %c0_i32 = arith.constant 0 : i32
    %c0_i32_0 = arith.constant 0 : i32
    %c0_i32_1 = arith.constant 0 : i32
    return %c0_i32, %c0_i32_0 : i32, i32
  }
  func.func @transform_2(%arg0: i32, %arg1: i32) -> (i32, i32) {
    %c0_i32 = arith.constant 0 : i32
    %c0_i32_0 = arith.constant 0 : i32
    %c0_i32_1 = arith.constant 0 : i32
    return %c0_i32, %c0_i32_0 : i32, i32
  }
  func.func @transform_3(%arg0: i32, %arg1: i32) -> (i32, i32, i32, i32, i32) {
    %c0_i32 = arith.constant 0 : i32
    %c0_i32_0 = arith.constant 0 : i32
    %c0_i32_1 = arith.constant 0 : i32
    %c0_i32_2 = arith.constant 0 : i32
    return %arg0, %arg1, %c0_i32, %c0_i32_0, %c0_i32_1 : i32, i32, i32, i32, i32
  }
}

</mosaic_0001>

<llo_original>
// kernel: double_conv_forward.7
$region0: #{double_conv_forward.7}
  #allocation0 [shape = 'u32[]', space=smem, size = 0x4, offset = 0x4, fixed_abs, tag = 'smem constant byte address 0x4 - core index']
  #allocation1 [shape = 'u32[144,128]{1,0:T(1,128)}', space=vmem, size = 0x12000, scoped, tag = 'internal scratch']
  %s0 = inlined_call_operand.vmem [shape: bf16[2,8,8,8,8], index: 0, kind: input, shape index: {}]
  %s1 = inlined_call_operand.vmem [shape: f32[2,8], index: 1, kind: input, shape index: {}]
  %s2 = inlined_call_operand.vmem [shape: f32[2,8], index: 2, kind: input, shape index: {}]
  %s3 = inlined_call_operand.vmem [shape: bf16[2,10,10,10,8], index: 3, kind: output, shape index: {}]
  %s4 = sld [smem:[#allocation0]]
  $region49: #{double_conv_forward.7} parent=0
    _
  %s6 = ssub.s32 1, %s4
  %s7 = scalar_select 0, %s6, %s4
  loop: start=0, step=1, limit=22
  $region2: #{double_conv_forward.7} parent=0 // loop_pre_header
    _
  $region3: #{double_conv_forward.7} parent=0 // loop_header
    %s9 = sphi 0, %s13
    %p10 = scmp.ge.s32.totalorder %s9, 22
    %s16 = sphi 0, %s28
    %s17 = sphi 0, %s24
    %s18 = sphi 0, %s16
    %s19 = sphi 0, %s17
    %s20 = sphi 0, %s18
    %s21 = sphi 0, %s19
    %s43 = sphi 0, %s45
    %s46 = sphi 0, %s43
    %s47 = sphi 0, %s46
    %s63 = sphi 0, %s47
    %s67 = sphi 0, %s67
    %s69 = sphi 0, %s67
    %s70 = sphi 0, %s69
    %s84 = sphi 0, %s70
    %s88 = sphi 0, %s88
    %s90 = sphi 0, %s88
    %s91 = sphi 0, %s90
    %s105 = sphi 0, %s91
    %s113 = sphi 0, %s115
    %s116 = sphi 0, %s113
    %s117 = sphi 0, %s116
    %s133 = sphi 0, %s117
  $region4: #{double_conv_forward.7} parent=0 // loop_header_branch
    %12 = sbr.rel (%p10) target = $region8
  $region5: #{double_conv_forward.7} parent=0 // loop_body
    %s14 = ssub.s32 %s9, 1
    %s15 = ssub.s32 %s9, 2
    %s22 = sadd.s32 1, %s17
    %p23 = scmp.ge.s32.totalorder %s22, 10
    %s24 = scalar_select %p23, 0, %s22
    %s25 = sadd.s32 1, %s16
    %s26 = scalar_select %p23, %s25, %s16
    %p27 = scmp.ge.s32.totalorder %s26, 2
    %s28 = scalar_select %p27, 0, %s26
    %s29 = ssub.s32 %s17, 1
    %p30 = scmp.gt.s32.totalorder %s29, 0
    %s31 = scalar_select %p30, %s29, 0
    %p32 = scmp.lt.s32.totalorder %s31, 7
    %s33 = scalar_select %p32, %s31, 7
    %s34 = ssub.s32 %s24, 1
    %p35 = scmp.gt.s32.totalorder %s34, 0
    %s36 = scalar_select %p35, %s34, 0
    %p37 = scmp.lt.s32.totalorder %s36, 7
    %s38 = scalar_select %p37, %s36, 7
    %s39 = ssub.s32 %s16, %s28
    %s40 = ssub.s32 %s33, %s38
    %s41 = sor.u32 %s39, %s40
    %p42 = scmp.eq.s32.totalorder %s41, 0
    %s44 = sadd.s32 %s43, 1
    %s45 = scalar_select %p42, %s43, %s44
    %p48 = pneg %p42
    %p49 = scmp.eq.s32.totalorder %s9, 19
    %p50 = por %p48, %p49
    %p51 = scmp.ne.s32.totalorder %s43, %s46
    %p52 = scmp.eq.s32.totalorder %s9, 0
    %p53 = por %p51, %p52
    %p54 = scmp.ne.s32.totalorder %s43, %s46
    %p55 = scmp.eq.s32.totalorder %s14, 19
    %p56 = por %p54, %p55
    %p57 = scmp.ne.s32.totalorder %s46, %s47
    %p58 = scmp.eq.s32.totalorder %s14, 0
    %p59 = por %p57, %p58
    %p60 = scmp.ne.s32.totalorder %s46, %s47
    %p61 = scmp.eq.s32.totalorder %s15, 19
    %p62 = por %p60, %p61
    %p64 = scmp.ne.s32.totalorder %s47, %s63
    %p65 = scmp.eq.s32.totalorder %s15, 0
    %p66 = por %p64, %p65
    %s68 = sadd.s32 %s67, 1
    %p71 = scmp.eq.s32.totalorder %s9, 19
    %p72 = scmp.ne.s32.totalorder %s67, %s69
    %p73 = scmp.eq.s32.totalorder %s9, 0
    %p74 = por %p72, %p73
    %p75 = scmp.ne.s32.totalorder %s67, %s69
    %p76 = scmp.eq.s32.totalorder %s14, 19
    %p77 = por %p75, %p76
    %p78 = scmp.ne.s32.totalorder %s69, %s70
    %p79 = scmp.eq.s32.totalorder %s14, 0
    %p80 = por %p78, %p79
    %p81 = scmp.ne.s32.totalorder %s69, %s70
    %p82 = scmp.eq.s32.totalorder %s15, 19
    %p83 = por %p81, %p82
    %p85 = scmp.ne.s32.totalorder %s70, %s84
    %p86 = scmp.eq.s32.totalorder %s15, 0
    %p87 = por %p85, %p86
    %s89 = sadd.s32 %s88, 1
    %p92 = scmp.eq.s32.totalorder %s9, 19
    %p93 = scmp.ne.s32.totalorder %s88, %s90
    %p94 = scmp.eq.s32.totalorder %s9, 0
    %p95 = por %p93, %p94
    %p96 = scmp.ne.s32.totalorder %s88, %s90
    %p97 = scmp.eq.s32.totalorder %s14, 19
    %p98 = por %p96, %p97
    %p99 = scmp.ne.s32.totalorder %s90, %s91
    %p100 = scmp.eq.s32.totalorder %s14, 0
    %p101 = por %p99, %p100
    %p102 = scmp.ne.s32.totalorder %s90, %s91
    %p103 = scmp.eq.s32.totalorder %s15, 19
    %p104 = por %p102, %p103
    %p106 = scmp.ne.s32.totalorder %s91, %s105
    %p107 = scmp.eq.s32.totalorder %s15, 0
    %p108 = por %p106, %p107
    %s109 = ssub.s32 %s16, %s28
    %s110 = ssub.s32 %s17, %s24
    %s111 = sor.u32 %s109, %s110
    %p112 = scmp.eq.s32.totalorder %s111, 0
    %s114 = sadd.s32 %s113, 1
    %s115 = scalar_select %p112, %s113, %s114
    %p118 = pneg %p112
    %p119 = scmp.eq.s32.totalorder %s9, 19
    %p120 = por %p118, %p119
    %p121 = scmp.ne.s32.totalorder %s113, %s116
    %p122 = scmp.eq.s32.totalorder %s9, 0
    %p123 = por %p121, %p122
    %p124 = scmp.ne.s32.totalorder %s113, %s116
    %p125 = scmp.eq.s32.totalorder %s14, 19
    %p126 = por %p124, %p125
    %p127 = scmp.ne.s32.totalorder %s116, %s117
    %p128 = scmp.eq.s32.totalorder %s14, 0
    %p129 = por %p127, %p128
    %p130 = scmp.ne.s32.totalorder %s116, %s117
    %p131 = scmp.eq.s32.totalorder %s15, 19
    %p132 = por %p130, %p131
    %p134 = scmp.ne.s32.totalorder %s117, %s133
    %p135 = scmp.eq.s32.totalorder %s15, 0
    %p136 = por %p134, %p135
    %p137 = scmp.le.s32.totalorder 1, %s9
    %p138 = scmp.lt.s32.totalorder %s9, 21
    %p139 = pnand %p137, %p138
    %p140 = pneg %p139
    // Predicated region
    $region9: #{double_conv_forward.7} parent=5 // pred_check
      _
    $region10: #{double_conv_forward.7} parent=5 // pred_check_branch
      %142 = sbr.rel (%p139) target = $region12
    $region11: #{double_conv_forward.7} parent=5 // pred_region
      %s143 = ssub.s32 %s9, 1
      // Predicated region
      $region13: #{double_conv_forward.7} parent=11 // pred_check
        %p144 = pneg %p80
      $region14: #{double_conv_forward.7} parent=11 // pred_check_branch
        %146 = sbr.rel (%p144) target = $region16
      $region15: #{double_conv_forward.7} parent=11 // pred_region
        _
      $region16: #{double_conv_forward.7} parent=11 // pred_fallthru
        _
      // Predicated region
      $region17: #{double_conv_forward.7} parent=11 // pred_check
        %p147 = pneg %p101
      $region18: #{double_conv_forward.7} parent=11 // pred_check_branch
        %149 = sbr.rel (%p147) target = $region20
      $region19: #{double_conv_forward.7} parent=11 // pred_region
        _
      $region20: #{double_conv_forward.7} parent=11 // pred_fallthru
        _
    $region12: #{double_conv_forward.7} parent=5 // pred_fallthru
      _
    %p150 = scmp.lt.s32.totalorder %s9, 20
    // Predicated region
    $region21: #{double_conv_forward.7} parent=5 // pred_check
      %p151 = pneg %p150
    $region22: #{double_conv_forward.7} parent=5 // pred_check_branch
      %153 = sbr.rel (%p151) target = $region24
    $region23: #{double_conv_forward.7} parent=5 // pred_region
      // Predicated region
      $region25: #{double_conv_forward.7} parent=23 // pred_check
        %p154 = pneg %p53
      $region26: #{double_conv_forward.7} parent=23 // pred_check_branch
        %156 = sbr.rel (%p154) target = $region28
      $region27: #{double_conv_forward.7} parent=23 // pred_region
        %s157 = ssub.s32 %s17, 1
        %p158 = scmp.gt.s32.totalorder %s157, 0
        %s159 = scalar_select %p158, %s157, 0
        %p160 = scmp.lt.s32.totalorder %s159, 7
        %s161 = scalar_select %p160, %s159, 7
        %p162 = scmp.lt.s32.totalorder %s16, 1
        %s163 = scalar_select %p162, %s16, 1
        %p164 = scmp.lt.s32.totalorder %s161, 7
        %s165 = scalar_select %p164, %s161, 7
        %s166 = smul.addr %s165, 8
        %s167 = smul.addr %s163, 64
        %s168 = sadd.s32 %s166, %s167
        %s169 = smul.addr %s168, 4
        %s170 = scalar_lea.vmem %s0, %s169
        %s171 = ssub.s32 %s17, 1
        %p172 = scmp.gt.s32.totalorder %s171, 0
        %s173 = scalar_select %p172, %s171, 0
        %p174 = scmp.lt.s32.totalorder %s173, 7
        %s175 = scalar_select %p174, %s173, 7
      $region28: #{double_conv_forward.7} parent=23 // pred_fallthru
        _
    $region24: #{double_conv_forward.7} parent=5 // pred_fallthru
      _
    %p176 = scmp.le.s32.totalorder 1, %s9
    %p177 = scmp.lt.s32.totalorder %s9, 21
    %p178 = pnand %p176, %p177
    %p179 = pneg %p178
    // Predicated region
    $region29: #{double_conv_forward.7} parent=5 // pred_check
      _
    $region30: #{double_conv_forward.7} parent=5 // pred_check_branch
      %181 = sbr.rel (%p178) target = $region32
    $region31: #{double_conv_forward.7} parent=5 // pred_region
      %s182 = ssub.s32 %s9, 1
      %s183 = ssub.s32 %s19, 1
      %p184 = scmp.gt.s32.totalorder %s183, 0
      %s185 = scalar_select %p184, %s183, 0
      %p186 = scmp.lt.s32.totalorder %s185, 7
      %s187 = scalar_select %p186, %s185, 7
      %p188 = scmp.lt.s32.totalorder %s18, 1
      %s189 = scalar_select %p188, %s18, 1
      %p190 = scmp.lt.s32.totalorder %s187, 7
      %s191 = scalar_select %p190, %s187, 7
      %s192 = smul.addr %s191, 8
      %s193 = smul.addr %s189, 64
      %s194 = sadd.s32 %s192, %s193
      %s195 = smul.addr %s194, 4
      %s196 = scalar_lea.vmem %s0, %s195
      %p197 = pneg %p59
      %p198 = pneg %p56
      %p199 = pneg %p80
      %p200 = pneg %p77
      %p201 = pneg %p101
      %p202 = pneg %p98
      %p203 = pneg %p129
      %p204 = pneg %p126
      %p205 = scmp.lt.s32.totalorder %s18, 1
      %s206 = scalar_select %p205, %s18, 1
      %p207 = scmp.lt.s32.totalorder %s19, 9
      %s208 = scalar_select %p207, %s19, 9
      %s209 = smul.addr %s208, 20
      %s210 = smul.addr %s206, 200
      %s211 = sadd.s32 %s209, %s210
      %s212 = smul.addr %s211, 4
      %s213 = scalar_lea.vmem %s3, %s212
      %s214 = ssub.s32 %s19, 1
      %p215 = scmp.gt.s32.totalorder %s214, 0
      %s216 = scalar_select %p215, %s214, 0
      %p217 = scmp.lt.s32.totalorder %s216, 7
      %s218 = scalar_select %p217, %s216, 7
      %p219 = scmp.lt.s32.totalorder %s18, 1
      %s220 = scalar_select %p219, %s18, 1
      %p221 = scmp.lt.s32.totalorder %s218, 7
      %s222 = scalar_select %p221, %s218, 7
      %s223 = smul.addr %s222, 8
      %s224 = smul.addr %s220, 64
      %s225 = sadd.s32 %s223, %s224
      %s226 = smul.addr %s225, 4
      %s227 = scalar_lea.vmem %s0, %s226
      %s228 = ssub.s32 %s19, 1
      %p229 = scmp.gt.s32.totalorder %s228, 0
      %s230 = scalar_select %p229, %s228, 0
      %p231 = scmp.lt.s32.totalorder %s230, 7
      %s232 = scalar_select %p231, %s230, 7
      %p233 = scmp.lt.s32.totalorder %s18, 1
      %s234 = scalar_select %p233, %s18, 1
      %p235 = scmp.lt.s32.totalorder %s19, 9
      %s236 = scalar_select %p235, %s19, 9
      %s237 = smul.addr %s236, 20
      %s238 = smul.addr %s234, 200
      %s239 = sadd.s32 %s237, %s238
      %s240 = smul.addr %s239, 4
      %s241 = scalar_lea.vmem %s3, %s240
      %v243 = vld [vmem:[%s1] sm:$0x1]
      %v244 = vmul.f32 %v243, 0.0009765625
      %v245 = vld [vmem:[%s1 + $0x1] sm:$0x1]
      %v246 = vmul.f32 %v245, 0.0009765625
      %v247 = vmul.f32 %v244, %v244
      %v248 = vsub.f32 %v246, %v247
      %v249 = vmax.f32 %v248, 0.0
      %v250 = vadd.f32 %v249, 1e-05
      %v251 = vrsqrt.pop %v250
      %v252 = vld [vmem:[%s2] sm:$0x1]
      %v253 = vmul.f32 %v252, %v251
      %v254 = vld [vmem:[%s2 + $0x1] sm:$0x1]
      %v255 = vmul.f32 %v244, %v253
      %v256 = vsub.f32 %v254, %v255
      %vm257 = vcmask 60416
      %258 = vst.msk [vmem:[%s241] sm:$0xf] %vm257, 0
      %vm259 = vcmask 57344
      %260 = vst.msk [vmem:[%s241 + $0x4] sm:$0x1] %vm259, 0
      %261 = vst.msk [vmem:[%s241 + $0x8] sm:$0xf] %vm257, 0
      %262 = vst.msk [vmem:[%s241 + $0xc] sm:$0x1] %vm259, 0
      %263 = vst.msk [vmem:[%s241 + $0x10] sm:$0xf] %vm257, 0
      %264 = vst.msk [vmem:[%s241 + $0x14] sm:$0x1] %vm259, 0
      %265 = vst.msk [vmem:[%s241 + $0x18] sm:$0xf] %vm257, 0
      %266 = vst.msk [vmem:[%s241 + $0x1c] sm:$0x1] %vm259, 0
      %267 = vst.msk [vmem:[%s241 + $0x20] sm:$0xf] %vm257, 0
      %268 = vst.msk [vmem:[%s241 + $0x24] sm:$0x1] %vm259, 0
      %269 = vst.msk [vmem:[%s241 + $0x28] sm:$0xf] %vm257, 0
      %270 = vst.msk [vmem:[%s241 + $0x2c] sm:$0x1] %vm259, 0
      %271 = vst.msk [vmem:[%s241 + $0x30] sm:$0xf] %vm257, 0
      %272 = vst.msk [vmem:[%s241 + $0x34] sm:$0x1] %vm259, 0
      %273 = vst.msk [vmem:[%s241 + $0x38] sm:$0xf] %vm257, 0
      %274 = vst.msk [vmem:[%s241 + $0x3c] sm:$0x1] %vm259, 0
      %275 = vst.msk [vmem:[%s241 + $0x40] sm:$0xf] %vm257, 0
      %276 = vst.msk [vmem:[%s241 + $0x44] sm:$0x1] %vm259, 0
      %277 = vst.msk [vmem:[%s241 + $0x48] sm:$0xf] %vm257, 0
      %278 = vst.msk [vmem:[%s241 + $0x4c] sm:$0x1] %vm259, 0
      %p279 = scmp.ge.s32.totalorder %s19, 1
      %p280 = scmp.le.s32.totalorder %s19, 8
      %p281 = pnand %p279, %p280
      %p282 = pneg %p281
      // Predicated region
      $region33: #{double_conv_forward.7} parent=31 // pred_check
        _
      $region34: #{double_conv_forward.7} parent=31 // pred_check_branch
        %284 = sbr.rel (%p281) target = $region36
      $region35: #{double_conv_forward.7} parent=31 // pred_region
        %v285 = vld [vmem:[%s227] sm:$0xf]
        %v286 = vld [vmem:[%s227 + $0x4] sm:$0xf]
        %v287 = vld [vmem:[%s227 + $0x8] sm:$0xf]
        %v288 = vld [vmem:[%s227 + $0xc] sm:$0xf]
        %v289 = vld [vmem:[%s227 + $0x10] sm:$0xf]
        %v290 = vld [vmem:[%s227 + $0x14] sm:$0xf]
        %v291 = vld [vmem:[%s227 + $0x18] sm:$0xf]
        %v292 = vld [vmem:[%s227 + $0x1c] sm:$0xf]
        %v293 = vunpack.c.l.bf16 %v285
        %v294 = vunpack.c.l.bf16 %v286
        %v295 = vunpack.c.l.bf16 %v287
        %v296 = vunpack.c.l.bf16 %v288
        %v297 = vunpack.c.l.bf16 %v289
        %v298 = vunpack.c.l.bf16 %v290
        %v299 = vunpack.c.l.bf16 %v291
        %v300 = vunpack.c.l.bf16 %v292
        %v301 = vlaneseq
        %v302 = vshrl.u32 %v301, 7
        %v303 = vsub.s32 0, %v302
        %v304 = vrot.slane %v253, %v303
        %v305 = vmul.f32 %v293, %v304
        %v306 = vmul.f32 %v294, %v304
        %v307 = vmul.f32 %v295, %v304
        %v308 = vmul.f32 %v296, %v304
        %v309 = vmul.f32 %v297, %v304
        %v310 = vmul.f32 %v298, %v304
        %v311 = vmul.f32 %v299, %v304
        %v312 = vmul.f32 %v300, %v304
        %v313 = vlaneseq
        %v314 = vshrl.u32 %v313, 7
        %v315 = vsub.s32 0, %v314
        %v316 = vrot.slane %v256, %v315
        %v317 = vadd.f32 %v305, %v316
        %v318 = vadd.f32 %v306, %v316
        %v319 = vadd.f32 %v307, %v316
        %v320 = vadd.f32 %v308, %v316
        %v321 = vadd.f32 %v309, %v316
        %v322 = vadd.f32 %v310, %v316
        %v323 = vadd.f32 %v311, %v316
        %v324 = vadd.f32 %v312, %v316
        %v325 = vmax.f32 %v317, 0.0
        %v326 = vmax.f32 %v318, 0.0
        %v327 = vmax.f32 %v319, 0.0
        %v328 = vmax.f32 %v320, 0.0
        %v329 = vmax.f32 %v321, 0.0
        %v330 = vmax.f32 %v322, 0.0
        %v331 = vmax.f32 %v323, 0.0
        %v332 = vmax.f32 %v324, 0.0
        %v333 = vpack.c.bf16 %v325, %v325
        %v334 = vpack.c.bf16 %v326, %v326
        %v335 = vpack.c.bf16 %v327, %v327
        %v336 = vpack.c.bf16 %v328, %v328
        %v337 = vpack.c.bf16 %v329, %v329
        %v338 = vpack.c.bf16 %v330, %v330
        %v339 = vpack.c.bf16 %v331, %v331
        %v340 = vpack.c.bf16 %v332, %v332
        %v349 = vunpack.c.l.b16 %v333
        %v350 = vunpack.c.l.b16 %v334
        %v351 = vunpack.c.l.b16 %v335
        %v352 = vunpack.c.l.b16 %v336
        %v353 = vunpack.c.l.b16 %v337
        %v354 = vunpack.c.l.b16 %v338
        %v355 = vunpack.c.l.b16 %v339
        %v356 = vunpack.c.l.b16 %v340
        %v357 = vpack.c.b16 %v349, %v349
        %v358 = vpack.c.b16 %v350, %v350
        %v359 = vpack.c.b16 %v351, %v351
        %v360 = vpack.c.b16 %v352, %v352
        %v361 = vpack.c.b16 %v353, %v353
        %v362 = vpack.c.b16 %v354, %v354
        %v363 = vpack.c.b16 %v355, %v355
        %v364 = vpack.c.b16 %v356, %v356
        %v366 = vshrl.u32 %v357, 16
        %v368 = vrot.slane %v366, 7
        %v369 = vshll.u32 %v357, 16
        %v371 = vor.u32 %v368, %v369
        %v372 = vrot.slane %v368, 4
        %v374 = vshrl.u32 %v358, 16
        %v376 = vrot.slane %v374, 7
        %v377 = vshll.u32 %v358, 16
        %v379 = vor.u32 %v376, %v377
        %v380 = vrot.slane %v376, 4
        %v382 = vshrl.u32 %v359, 16
        %v384 = vrot.slane %v382, 7
        %v385 = vshll.u32 %v359, 16
        %v387 = vor.u32 %v384, %v385
        %v388 = vrot.slane %v384, 4
        %v390 = vshrl.u32 %v360, 16
        %v392 = vrot.slane %v390, 7
        %v393 = vshll.u32 %v360, 16
        %v395 = vor.u32 %v392, %v393
        %v396 = vrot.slane %v392, 4
        %v398 = vshrl.u32 %v361, 16
        %v400 = vrot.slane %v398, 7
        %v401 = vshll.u32 %v361, 16
        %v403 = vor.u32 %v400, %v401
        %v404 = vrot.slane %v400, 4
        %v406 = vshrl.u32 %v362, 16
        %v408 = vrot.slane %v406, 7
        %v409 = vshll.u32 %v362, 16
        %v411 = vor.u32 %v408, %v409
        %v412 = vrot.slane %v408, 4
        %v414 = vshrl.u32 %v363, 16
        %v416 = vrot.slane %v414, 7
        %v417 = vshll.u32 %v363, 16
        %v419 = vor.u32 %v416, %v417
        %v420 = vrot.slane %v416, 4
        %v422 = vshrl.u32 %v364, 16
        %v424 = vrot.slane %v422, 7
        %v425 = vshll.u32 %v364, 16
        %v427 = vor.u32 %v424, %v425
        %v428 = vrot.slane %v424, 4
        %s445 = scalar_lea.vmem %s241, 8
        %vm446 = vcmask 60416
        %vm447 = vsmask.f32 7938
        %vm448 = vmand %vm446, %vm447
        %v449 = vld [vmem:[%s445] sm:$0xf]
        %v450 = vsel %vm448, %v371, %v449
        %451 = vst [vmem:[%s445] sm:$0xf] %v450
        %vm452 = vcmask 57344
        %vm453 = vsmask.f32 256
        %vm454 = vmand %vm452, %vm453
        %v455 = vld [vmem:[%s445 + $0x4] sm:$0x1]
        %v456 = vsel %vm454, %v372, %v455
        %457 = vst [vmem:[%s445 + $0x4] sm:$0x1] %v456
        %v458 = vld [vmem:[%s445 + $0x8] sm:$0xf]
        %v459 = vsel %vm448, %v379, %v458
        %460 = vst [vmem:[%s445 + $0x8] sm:$0xf] %v459
        %v461 = vld [vmem:[%s445 + $0xc] sm:$0x1]
        %v462 = vsel %vm454, %v380, %v461
        %463 = vst [vmem:[%s445 + $0xc] sm:$0x1] %v462
        %v464 = vld [vmem:[%s445 + $0x10] sm:$0xf]
        %v465 = vsel %vm448, %v387, %v464
        %466 = vst [vmem:[%s445 + $0x10] sm:$0xf] %v465
        %v467 = vld [vmem:[%s445 + $0x14] sm:$0x1]
        %v468 = vsel %vm454, %v388, %v467
        %469 = vst [vmem:[%s445 + $0x14] sm:$0x1] %v468
        %v470 = vld [vmem:[%s445 + $0x18] sm:$0xf]
        %v471 = vsel %vm448, %v395, %v470
        %472 = vst [vmem:[%s445 + $0x18] sm:$0xf] %v471
        %v473 = vld [vmem:[%s445 + $0x1c] sm:$0x1]
        %v474 = vsel %vm454, %v396, %v473
        %475 = vst [vmem:[%s445 + $0x1c] sm:$0x1] %v474
        %v476 = vld [vmem:[%s445 + $0x20] sm:$0xf]
        %v477 = vsel %vm448, %v403, %v476
        %478 = vst [vmem:[%s445 + $0x20] sm:$0xf] %v477
        %v479 = vld [vmem:[%s445 + $0x24] sm:$0x1]
        %v480 = vsel %vm454, %v404, %v479
        %481 = vst [vmem:[%s445 + $0x24] sm:$0x1] %v480
        %v482 = vld [vmem:[%s445 + $0x28] sm:$0xf]
        %v483 = vsel %vm448, %v411, %v482
        %484 = vst [vmem:[%s445 + $0x28] sm:$0xf] %v483
        %v485 = vld [vmem:[%s445 + $0x2c] sm:$0x1]
        %v486 = vsel %vm454, %v412, %v485
        %487 = vst [vmem:[%s445 + $0x2c] sm:$0x1] %v486
        %v488 = vld [vmem:[%s445 + $0x30] sm:$0xf]
        %v489 = vsel %vm448, %v419, %v488
        %490 = vst [vmem:[%s445 + $0x30] sm:$0xf] %v489
        %v491 = vld [vmem:[%s445 + $0x34] sm:$0x1]
        %v492 = vsel %vm454, %v420, %v491
        %493 = vst [vmem:[%s445 + $0x34] sm:$0x1] %v492
        %v494 = vld [vmem:[%s445 + $0x38] sm:$0xf]
        %v495 = vsel %vm448, %v427, %v494
        %496 = vst [vmem:[%s445 + $0x38] sm:$0xf] %v495
        %v497 = vld [vmem:[%s445 + $0x3c] sm:$0x1]
        %v498 = vsel %vm454, %v428, %v497
        %499 = vst [vmem:[%s445 + $0x3c] sm:$0x1] %v498
      $region36: #{double_conv_forward.7} parent=31 // pred_fallthru
        _
      %p500 = scmp.lt.s32.totalorder %s18, 1
      %s501 = scalar_select %p500, %s18, 1
      %p502 = scmp.lt.s32.totalorder %s19, 9
      %s503 = scalar_select %p502, %s19, 9
      %s504 = smul.addr %s503, 20
      %s505 = smul.addr %s501, 200
      %s506 = sadd.s32 %s504, %s505
      %s507 = smul.addr %s506, 4
      %s508 = scalar_lea.vmem %s3, %s507
      // Predicated region
      $region37: #{double_conv_forward.7} parent=31 // pred_check
        %p509 = pneg %p126
      $region38: #{double_conv_forward.7} parent=31 // pred_check_branch
        %511 = sbr.rel (%p509) target = $region40
      $region39: #{double_conv_forward.7} parent=31 // pred_region
        _
      $region40: #{double_conv_forward.7} parent=31 // pred_fallthru
        _
    $region32: #{double_conv_forward.7} parent=5 // pred_fallthru
      _
    %p512 = scmp.le.s32.totalorder 2, %s9
    // Predicated region
    $region41: #{double_conv_forward.7} parent=5 // pred_check
      %p513 = pneg %p512
    $region42: #{double_conv_forward.7} parent=5 // pred_check_branch
      %515 = sbr.rel (%p513) target = $region44
    $region43: #{double_conv_forward.7} parent=5 // pred_region
      %s516 = ssub.s32 %s9, 2
      // Predicated region
      $region45: #{double_conv_forward.7} parent=43 // pred_check
        %p517 = pneg %p132
      $region46: #{double_conv_forward.7} parent=43 // pred_check_branch
        %519 = sbr.rel (%p517) target = $region48
      $region47: #{double_conv_forward.7} parent=43 // pred_region
        %p520 = scmp.lt.s32.totalorder %s20, 1
        %s521 = scalar_select %p520, %s20, 1
        %p522 = scmp.lt.s32.totalorder %s21, 9
        %s523 = scalar_select %p522, %s21, 9
        %s524 = smul.addr %s523, 20
        %s525 = smul.addr %s521, 200
        %s526 = sadd.s32 %s524, %s525
        %s527 = smul.addr %s526, 4
        %s528 = scalar_lea.vmem %s3, %s527
      $region48: #{double_conv_forward.7} parent=43 // pred_fallthru
        _
    $region44: #{double_conv_forward.7} parent=5 // pred_fallthru
      _
  $region6: #{double_conv_forward.7} parent=0 // loop_footer
    %s13 = sadd.s32 1, %s9
  $region7: #{double_conv_forward.7} parent=0 // loop_footer_branch
    %8 = sbr.rel target = $region3
  $region8: #{double_conv_forward.7} parent=0 // loop_exit
    _

// kernel: double_conv_forward.11
$region0: #{double_conv_forward.11}
  #allocation0 [shape = 'u32[]', space=smem, size = 0x4, offset = 0x4, fixed_abs, tag = 'smem constant byte address 0x4 - core index']
  #allocation1 [shape = 'u32[144,128]{1,0:T(1,128)}', space=vmem, size = 0x12000, scoped, tag = 'internal scratch']
  %s0 = inlined_call_operand.vmem [shape: bf16[2,8,8,8,8], index: 0, kind: input, shape index: {}]
  %s1 = inlined_call_operand.vmem [shape: f32[2,8], index: 1, kind: input, shape index: {}]
  %s2 = inlined_call_operand.vmem [shape: f32[2,8], index: 2, kind: input, shape index: {}]
  %s3 = inlined_call_operand.vmem [shape: f32[2,8,8,8,8], index: 3, kind: output, shape index: {}]
  %s4 = sld [smem:[#allocation0]]
  $region45: #{double_conv_forward.11} parent=0
    _
  %s6 = ssub.s32 1, %s4
  %s7 = scalar_select 0, %s6, %s4
  loop: start=0, step=1, limit=18
  $region2: #{double_conv_forward.11} parent=0 // loop_pre_header
    _
  $region3: #{double_conv_forward.11} parent=0 // loop_header
    %s9 = sphi 0, %s13
    %p10 = scmp.ge.s32.totalorder %s9, 18
    %s16 = sphi 0, %s28
    %s17 = sphi 0, %s24
    %s18 = sphi 0, %s16
    %s19 = sphi 0, %s17
    %s20 = sphi 0, %s18
    %s21 = sphi 0, %s19
    %s33 = sphi 0, %s35
    %s36 = sphi 0, %s33
    %s37 = sphi 0, %s36
    %s53 = sphi 0, %s37
    %s57 = sphi 0, %s57
    %s59 = sphi 0, %s57
    %s60 = sphi 0, %s59
    %s74 = sphi 0, %s60
    %s78 = sphi 0, %s78
    %s80 = sphi 0, %s78
    %s81 = sphi 0, %s80
    %s95 = sphi 0, %s81
    %s103 = sphi 0, %s105
    %s106 = sphi 0, %s103
    %s107 = sphi 0, %s106
    %s123 = sphi 0, %s107
  $region4: #{double_conv_forward.11} parent=0 // loop_header_branch
    %12 = sbr.rel (%p10) target = $region8
  $region5: #{double_conv_forward.11} parent=0 // loop_body
    %s14 = ssub.s32 %s9, 1
    %s15 = ssub.s32 %s9, 2
    %s22 = sadd.s32 1, %s17
    %p23 = scmp.ge.s32.totalorder %s22, 8
    %s24 = scalar_select %p23, 0, %s22
    %s25 = sadd.s32 1, %s16
    %s26 = scalar_select %p23, %s25, %s16
    %p27 = scmp.ge.s32.totalorder %s26, 2
    %s28 = scalar_select %p27, 0, %s26
    %s29 = ssub.s32 %s16, %s28
    %s30 = ssub.s32 %s17, %s24
    %s31 = sor.u32 %s29, %s30
    %p32 = scmp.eq.s32.totalorder %s31, 0
    %s34 = sadd.s32 %s33, 1
    %s35 = scalar_select %p32, %s33, %s34
    %p38 = pneg %p32
    %p39 = scmp.eq.s32.totalorder %s9, 15
    %p40 = por %p38, %p39
    %p41 = scmp.ne.s32.totalorder %s33, %s36
    %p42 = scmp.eq.s32.totalorder %s9, 0
    %p43 = por %p41, %p42
    %p44 = scmp.ne.s32.totalorder %s33, %s36
    %p45 = scmp.eq.s32.totalorder %s14, 15
    %p46 = por %p44, %p45
    %p47 = scmp.ne.s32.totalorder %s36, %s37
    %p48 = scmp.eq.s32.totalorder %s14, 0
    %p49 = por %p47, %p48
    %p50 = scmp.ne.s32.totalorder %s36, %s37
    %p51 = scmp.eq.s32.totalorder %s15, 15
    %p52 = por %p50, %p51
    %p54 = scmp.ne.s32.totalorder %s37, %s53
    %p55 = scmp.eq.s32.totalorder %s15, 0
    %p56 = por %p54, %p55
    %s58 = sadd.s32 %s57, 1
    %p61 = scmp.eq.s32.totalorder %s9, 15
    %p62 = scmp.ne.s32.totalorder %s57, %s59
    %p63 = scmp.eq.s32.totalorder %s9, 0
    %p64 = por %p62, %p63
    %p65 = scmp.ne.s32.totalorder %s57, %s59
    %p66 = scmp.eq.s32.totalorder %s14, 15
    %p67 = por %p65, %p66
    %p68 = scmp.ne.s32.totalorder %s59, %s60
    %p69 = scmp.eq.s32.totalorder %s14, 0
    %p70 = por %p68, %p69
    %p71 = scmp.ne.s32.totalorder %s59, %s60
    %p72 = scmp.eq.s32.totalorder %s15, 15
    %p73 = por %p71, %p72
    %p75 = scmp.ne.s32.totalorder %s60, %s74
    %p76 = scmp.eq.s32.totalorder %s15, 0
    %p77 = por %p75, %p76
    %s79 = sadd.s32 %s78, 1
    %p82 = scmp.eq.s32.totalorder %s9, 15
    %p83 = scmp.ne.s32.totalorder %s78, %s80
    %p84 = scmp.eq.s32.totalorder %s9, 0
    %p85 = por %p83, %p84
    %p86 = scmp.ne.s32.totalorder %s78, %s80
    %p87 = scmp.eq.s32.totalorder %s14, 15
    %p88 = por %p86, %p87
    %p89 = scmp.ne.s32.totalorder %s80, %s81
    %p90 = scmp.eq.s32.totalorder %s14, 0
    %p91 = por %p89, %p90
    %p92 = scmp.ne.s32.totalorder %s80, %s81
    %p93 = scmp.eq.s32.totalorder %s15, 15
    %p94 = por %p92, %p93
    %p96 = scmp.ne.s32.totalorder %s81, %s95
    %p97 = scmp.eq.s32.totalorder %s15, 0
    %p98 = por %p96, %p97
    %s99 = ssub.s32 %s16, %s28
    %s100 = ssub.s32 %s17, %s24
    %s101 = sor.u32 %s99, %s100
    %p102 = scmp.eq.s32.totalorder %s101, 0
    %s104 = sadd.s32 %s103, 1
    %s105 = scalar_select %p102, %s103, %s104
    %p108 = pneg %p102
    %p109 = scmp.eq.s32.totalorder %s9, 15
    %p110 = por %p108, %p109
    %p111 = scmp.ne.s32.totalorder %s103, %s106
    %p112 = scmp.eq.s32.totalorder %s9, 0
    %p113 = por %p111, %p112
    %p114 = scmp.ne.s32.totalorder %s103, %s106
    %p115 = scmp.eq.s32.totalorder %s14, 15
    %p116 = por %p114, %p115
    %p117 = scmp.ne.s32.totalorder %s106, %s107
    %p118 = scmp.eq.s32.totalorder %s14, 0
    %p119 = por %p117, %p118
    %p120 = scmp.ne.s32.totalorder %s106, %s107
    %p121 = scmp.eq.s32.totalorder %s15, 15
    %p122 = por %p120, %p121
    %p124 = scmp.ne.s32.totalorder %s107, %s123
    %p125 = scmp.eq.s32.totalorder %s15, 0
    %p126 = por %p124, %p125
    %p127 = scmp.le.s32.totalorder 1, %s9
    %p128 = scmp.lt.s32.totalorder %s9, 17
    %p129 = pnand %p127, %p128
    %p130 = pneg %p129
    // Predicated region
    $region9: #{double_conv_forward.11} parent=5 // pred_check
      _
    $region10: #{double_conv_forward.11} parent=5 // pred_check_branch
      %132 = sbr.rel (%p129) target = $region12
    $region11: #{double_conv_forward.11} parent=5 // pred_region
      %s133 = ssub.s32 %s9, 1
      // Predicated region
      $region13: #{double_conv_forward.11} parent=11 // pred_check
        %p134 = pneg %p70
      $region14: #{double_conv_forward.11} parent=11 // pred_check_branch
        %136 = sbr.rel (%p134) target = $region16
      $region15: #{double_conv_forward.11} parent=11 // pred_region
        _
      $region16: #{double_conv_forward.11} parent=11 // pred_fallthru
        _
      // Predicated region
      $region17: #{double_conv_forward.11} parent=11 // pred_check
        %p137 = pneg %p91
      $region18: #{double_conv_forward.11} parent=11 // pred_check_branch
        %139 = sbr.rel (%p137) target = $region20
      $region19: #{double_conv_forward.11} parent=11 // pred_region
        _
      $region20: #{double_conv_forward.11} parent=11 // pred_fallthru
        _
    $region12: #{double_conv_forward.11} parent=5 // pred_fallthru
      _
    %p140 = scmp.lt.s32.totalorder %s9, 16
    // Predicated region
    $region21: #{double_conv_forward.11} parent=5 // pred_check
      %p141 = pneg %p140
    $region22: #{double_conv_forward.11} parent=5 // pred_check_branch
      %143 = sbr.rel (%p141) target = $region24
    $region23: #{double_conv_forward.11} parent=5 // pred_region
      // Predicated region
      $region25: #{double_conv_forward.11} parent=23 // pred_check
        %p144 = pneg %p43
      $region26: #{double_conv_forward.11} parent=23 // pred_check_branch
        %146 = sbr.rel (%p144) target = $region28
      $region27: #{double_conv_forward.11} parent=23 // pred_region
        %p147 = scmp.lt.s32.totalorder %s16, 1
        %s148 = scalar_select %p147, %s16, 1
        %p149 = scmp.lt.s32.totalorder %s17, 7
        %s150 = scalar_select %p149, %s17, 7
        %s151 = smul.addr %s150, 8
        %s152 = smul.addr %s148, 64
        %s153 = sadd.s32 %s151, %s152
        %s154 = smul.addr %s153, 4
        %s155 = scalar_lea.vmem %s0, %s154
      $region28: #{double_conv_forward.11} parent=23 // pred_fallthru
        _
    $region24: #{double_conv_forward.11} parent=5 // pred_fallthru
      _
    %p156 = scmp.le.s32.totalorder 1, %s9
    %p157 = scmp.lt.s32.totalorder %s9, 17
    %p158 = pnand %p156, %p157
    %p159 = pneg %p158
    // Predicated region
    $region29: #{double_conv_forward.11} parent=5 // pred_check
      _
    $region30: #{double_conv_forward.11} parent=5 // pred_check_branch
      %161 = sbr.rel (%p158) target = $region32
    $region31: #{double_conv_forward.11} parent=5 // pred_region
      %s162 = ssub.s32 %s9, 1
      %p163 = scmp.lt.s32.totalorder %s18, 1
      %s164 = scalar_select %p163, %s18, 1
      %p165 = scmp.lt.s32.totalorder %s19, 7
      %s166 = scalar_select %p165, %s19, 7
      %s167 = smul.addr %s166, 8
      %s168 = smul.addr %s164, 64
      %s169 = sadd.s32 %s167, %s168
      %s170 = smul.addr %s169, 4
      %s171 = scalar_lea.vmem %s0, %s170
      %p172 = pneg %p49
      %p173 = pneg %p46
      %p174 = pneg %p70
      %p175 = pneg %p67
      %p176 = pneg %p91
      %p177 = pneg %p88
      %p178 = pneg %p119
      %p179 = pneg %p116
      %p180 = scmp.lt.s32.totalorder %s18, 1
      %s181 = scalar_select %p180, %s18, 1
      %p182 = scmp.lt.s32.totalorder %s19, 7
      %s183 = scalar_select %p182, %s19, 7
      %s184 = smul.addr %s183, 8
      %s185 = smul.addr %s181, 64
      %s186 = sadd.s32 %s184, %s185
      %s187 = smul.addr %s186, 8
      %s188 = scalar_lea.vmem %s3, %s187
      %p189 = scmp.lt.s32.totalorder %s18, 1
      %s190 = scalar_select %p189, %s18, 1
      %p191 = scmp.lt.s32.totalorder %s19, 7
      %s192 = scalar_select %p191, %s19, 7
      %s193 = smul.addr %s192, 8
      %s194 = smul.addr %s190, 64
      %s195 = sadd.s32 %s193, %s194
      %s196 = smul.addr %s195, 4
      %s197 = scalar_lea.vmem %s0, %s196
      %p198 = scmp.lt.s32.totalorder %s18, 1
      %s199 = scalar_select %p198, %s18, 1
      %p200 = scmp.lt.s32.totalorder %s19, 7
      %s201 = scalar_select %p200, %s19, 7
      %s202 = smul.addr %s201, 8
      %s203 = smul.addr %s199, 64
      %s204 = sadd.s32 %s202, %s203
      %s205 = smul.addr %s204, 8
      %s206 = scalar_lea.vmem %s3, %s205
      %v207 = vld [vmem:[%s1] sm:$0x1]
      %v208 = vmul.f32 %v207, 0.0009765625
      %v209 = vld [vmem:[%s1 + $0x1] sm:$0x1]
      %v210 = vmul.f32 %v209, 0.0009765625
      %v211 = vmul.f32 %v208, %v208
      %v212 = vsub.f32 %v210, %v211
      %v213 = vmax.f32 %v212, 0.0
      %v214 = vadd.f32 %v213, 1e-05
      %v215 = vrsqrt.pop %v214
      %v216 = vld [vmem:[%s2] sm:$0x1]
      %v217 = vmul.f32 %v216, %v215
      %v218 = vld [vmem:[%s2 + $0x1] sm:$0x1]
      %v219 = vmul.f32 %v208, %v217
      %v220 = vsub.f32 %v218, %v219
      %v221 = vld [vmem:[%s197] sm:$0xf]
      %v222 = vld [vmem:[%s197 + $0x4] sm:$0xf]
      %v223 = vld [vmem:[%s197 + $0x8] sm:$0xf]
      %v224 = vld [vmem:[%s197 + $0xc] sm:$0xf]
      %v225 = vld [vmem:[%s197 + $0x10] sm:$0xf]
      %v226 = vld [vmem:[%s197 + $0x14] sm:$0xf]
      %v227 = vld [vmem:[%s197 + $0x18] sm:$0xf]
      %v228 = vld [vmem:[%s197 + $0x1c] sm:$0xf]
      %v229 = vunpack.c.l.bf16 %v221
      %v230 = vunpack.c.l.bf16 %v222
      %v231 = vunpack.c.l.bf16 %v223
      %v232 = vunpack.c.l.bf16 %v224
      %v233 = vunpack.c.l.bf16 %v225
      %v234 = vunpack.c.l.bf16 %v226
      %v235 = vunpack.c.l.bf16 %v227
      %v236 = vunpack.c.l.bf16 %v228
      %v237 = vlaneseq
      %v238 = vshrl.u32 %v237, 7
      %v239 = vsub.s32 0, %v238
      %v240 = vrot.slane %v217, %v239
      %v241 = vmul.f32 %v229, %v240
      %v242 = vmul.f32 %v230, %v240
      %v243 = vmul.f32 %v231, %v240
      %v244 = vmul.f32 %v232, %v240
      %v245 = vmul.f32 %v233, %v240
      %v246 = vmul.f32 %v234, %v240
      %v247 = vmul.f32 %v235, %v240
      %v248 = vmul.f32 %v236, %v240
      %v249 = vlaneseq
      %v250 = vshrl.u32 %v249, 7
      %v251 = vsub.s32 0, %v250
      %v252 = vrot.slane %v220, %v251
      %v253 = vadd.f32 %v241, %v252
      %v254 = vadd.f32 %v242, %v252
      %v255 = vadd.f32 %v243, %v252
      %v256 = vadd.f32 %v244, %v252
      %v257 = vadd.f32 %v245, %v252
      %v258 = vadd.f32 %v246, %v252
      %v259 = vadd.f32 %v247, %v252
      %v260 = vadd.f32 %v248, %v252
      %v261 = vmax.f32 %v253, 0.0
      %v262 = vmax.f32 %v254, 0.0
      %v263 = vmax.f32 %v255, 0.0
      %v264 = vmax.f32 %v256, 0.0
      %v265 = vmax.f32 %v257, 0.0
      %v266 = vmax.f32 %v258, 0.0
      %v267 = vmax.f32 %v259, 0.0
      %v268 = vmax.f32 %v260, 0.0
      %vm269 = vcmask 64512
      %270 = vst.msk [vmem:[%s206] sm:$0xff] %vm269, %v261
      %271 = vst.msk [vmem:[%s206 + $0x8] sm:$0xff] %vm269, %v262
      %272 = vst.msk [vmem:[%s206 + $0x10] sm:$0xff] %vm269, %v263
      %273 = vst.msk [vmem:[%s206 + $0x18] sm:$0xff] %vm269, %v264
      %274 = vst.msk [vmem:[%s206 + $0x20] sm:$0xff] %vm269, %v265
      %275 = vst.msk [vmem:[%s206 + $0x28] sm:$0xff] %vm269, %v266
      %276 = vst.msk [vmem:[%s206 + $0x30] sm:$0xff] %vm269, %v267
      %277 = vst.msk [vmem:[%s206 + $0x38] sm:$0xff] %vm269, %v268
      %p278 = scmp.lt.s32.totalorder %s18, 1
      %s279 = scalar_select %p278, %s18, 1
      %p280 = scmp.lt.s32.totalorder %s19, 7
      %s281 = scalar_select %p280, %s19, 7
      %s282 = smul.addr %s281, 8
      %s283 = smul.addr %s279, 64
      %s284 = sadd.s32 %s282, %s283
      %s285 = smul.addr %s284, 8
      %s286 = scalar_lea.vmem %s3, %s285
      // Predicated region
      $region33: #{double_conv_forward.11} parent=31 // pred_check
        %p287 = pneg %p116
      $region34: #{double_conv_forward.11} parent=31 // pred_check_branch
        %289 = sbr.rel (%p287) target = $region36
      $region35: #{double_conv_forward.11} parent=31 // pred_region
        _
      $region36: #{double_conv_forward.11} parent=31 // pred_fallthru
        _
    $region32: #{double_conv_forward.11} parent=5 // pred_fallthru
      _
    %p290 = scmp.le.s32.totalorder 2, %s9
    // Predicated region
    $region37: #{double_conv_forward.11} parent=5 // pred_check
      %p291 = pneg %p290
    $region38: #{double_conv_forward.11} parent=5 // pred_check_branch
      %293 = sbr.rel (%p291) target = $region40
    $region39: #{double_conv_forward.11} parent=5 // pred_region
      %s294 = ssub.s32 %s9, 2
      // Predicated region
      $region41: #{double_conv_forward.11} parent=39 // pred_check
        %p295 = pneg %p122
      $region42: #{double_conv_forward.11} parent=39 // pred_check_branch
        %297 = sbr.rel (%p295) target = $region44
      $region43: #{double_conv_forward.11} parent=39 // pred_region
        %p298 = scmp.lt.s32.totalorder %s20, 1
        %s299 = scalar_select %p298, %s20, 1
        %p300 = scmp.lt.s32.totalorder %s21, 7
        %s301 = scalar_select %p300, %s21, 7
        %s302 = smul.addr %s301, 8
        %s303 = smul.addr %s299, 64
        %s304 = sadd.s32 %s302, %s303
        %s305 = smul.addr %s304, 8
        %s306 = scalar_lea.vmem %s3, %s305
      $region44: #{double_conv_forward.11} parent=39 // pred_fallthru
        _
    $region40: #{double_conv_forward.11} parent=5 // pred_fallthru
      _
  $region6: #{double_conv_forward.11} parent=0 // loop_footer
    %s13 = sadd.s32 1, %s9
  $region7: #{double_conv_forward.11} parent=0 // loop_footer_branch
    %8 = sbr.rel target = $region3
  $region8: #{double_conv_forward.11} parent=0 // loop_exit
    _

// kernel: double_conv_forward.6
$region0: #{double_conv_forward.6}
  #allocation0 [shape = 'u32[]', space=smem, size = 0x4, offset = 0x4, fixed_abs, tag = 'smem constant byte address 0x4 - core index']
  #allocation1 [shape = 'u32[144,128]{1,0:T(1,128)}', space=vmem, size = 0x12000, scoped, tag = 'internal scratch']
  #allocation2 [shape = 'bf16[8,8,108]{2,1,0:T(8,128)(2,1)}', space=vmem, size = 0x4000, scoped, tag = 'scratch operand']
  %s0 = inlined_call_operand.vmem [shape: bf16[2,10,10,10,4], index: 0, kind: input, shape index: {}, may-alias: {0,1,2}]
  %s1 = inlined_call_operand.vmem [shape: bf16[2,10,10,10,4], index: 1, kind: input, shape index: {}, may-alias: {0,1,2}]
  %s2 = inlined_call_operand.vmem [shape: bf16[2,10,10,10,4], index: 2, kind: input, shape index: {}, may-alias: {0,1,2}]
  %s3 = inlined_call_operand.vmem [shape: bf16[108,8], index: 3, kind: input, shape index: {}]
  %s4 = inlined_call_operand.vmem [shape: bf16[2,8,8,8,8], index: 4, kind: output, shape index: {0}]
  %s5 = inlined_call_operand.vmem [shape: f32[2,8], index: 5, kind: output, shape index: {1}]
  %6 = xla_tuple %s4, %s5
  %s7 = sld [smem:[#allocation0]]
  $region61: #{double_conv_forward.6} parent=0
    _
  %s9 = ssub.s32 1, %s7
  %s10 = scalar_select 0, %s9, %s7
  loop: start=0, step=1, limit=18
  $region2: #{double_conv_forward.6} parent=0 // loop_pre_header
    _
  $region3: #{double_conv_forward.6} parent=0 // loop_header
    %s12 = sphi 0, %s16
    %p13 = scmp.ge.s32.totalorder %s12, 18
    %s19 = sphi 0, %s31
    %s20 = sphi 0, %s27
    %s21 = sphi 0, %s19
    %s22 = sphi 0, %s20
    %s23 = sphi 0, %s21
    %s24 = sphi 0, %s22
    %s36 = sphi 0, %s38
    %s39 = sphi 0, %s36
    %s40 = sphi 0, %s39
    %s56 = sphi 0, %s40
    %s66 = sphi 0, %s68
    %s69 = sphi 0, %s66
    %s70 = sphi 0, %s69
    %s86 = sphi 0, %s70
    %s96 = sphi 0, %s98
    %s99 = sphi 0, %s96
    %s100 = sphi 0, %s99
    %s116 = sphi 0, %s100
    %s120 = sphi 0, %s120
    %s122 = sphi 0, %s120
    %s123 = sphi 0, %s122
    %s137 = sphi 0, %s123
    %s145 = sphi 0, %s147
    %s148 = sphi 0, %s145
    %s149 = sphi 0, %s148
    %s165 = sphi 0, %s149
    %s169 = sphi 0, %s169
    %s171 = sphi 0, %s169
    %s172 = sphi 0, %s171
    %s186 = sphi 0, %s172
  $region4: #{double_conv_forward.6} parent=0 // loop_header_branch
    %15 = sbr.rel (%p13) target = $region8
  $region5: #{double_conv_forward.6} parent=0 // loop_body
    %s17 = ssub.s32 %s12, 1
    %s18 = ssub.s32 %s12, 2
    %s25 = sadd.s32 1, %s20
    %p26 = scmp.ge.s32.totalorder %s25, 8
    %s27 = scalar_select %p26, 0, %s25
    %s28 = sadd.s32 1, %s19
    %s29 = scalar_select %p26, %s28, %s19
    %p30 = scmp.ge.s32.totalorder %s29, 2
    %s31 = scalar_select %p30, 0, %s29
    %s32 = ssub.s32 %s19, %s31
    %s33 = ssub.s32 %s20, %s27
    %s34 = sor.u32 %s32, %s33
    %p35 = scmp.eq.s32.totalorder %s34, 0
    %s37 = sadd.s32 %s36, 1
    %s38 = scalar_select %p35, %s36, %s37
    %p41 = pneg %p35
    %p42 = scmp.eq.s32.totalorder %s12, 15
    %p43 = por %p41, %p42
    %p44 = scmp.ne.s32.totalorder %s36, %s39
    %p45 = scmp.eq.s32.totalorder %s12, 0
    %p46 = por %p44, %p45
    %p47 = scmp.ne.s32.totalorder %s36, %s39
    %p48 = scmp.eq.s32.totalorder %s17, 15
    %p49 = por %p47, %p48
    %p50 = scmp.ne.s32.totalorder %s39, %s40
    %p51 = scmp.eq.s32.totalorder %s17, 0
    %p52 = por %p50, %p51
    %p53 = scmp.ne.s32.totalorder %s39, %s40
    %p54 = scmp.eq.s32.totalorder %s18, 15
    %p55 = por %p53, %p54
    %p57 = scmp.ne.s32.totalorder %s40, %s56
    %p58 = scmp.eq.s32.totalorder %s18, 0
    %p59 = por %p57, %p58
    %s60 = sadd.s32 %s20, 1
    %s61 = sadd.s32 %s27, 1
    %s62 = ssub.s32 %s19, %s31
    %s63 = ssub.s32 %s60, %s61
    %s64 = sor.u32 %s62, %s63
    %p65 = scmp.eq.s32.totalorder %s64, 0
    %s67 = sadd.s32 %s66, 1
    %s68 = scalar_select %p65, %s66, %s67
    %p71 = pneg %p65
    %p72 = scmp.eq.s32.totalorder %s12, 15
    %p73 = por %p71, %p72
    %p74 = scmp.ne.s32.totalorder %s66, %s69
    %p75 = scmp.eq.s32.totalorder %s12, 0
    %p76 = por %p74, %p75
    %p77 = scmp.ne.s32.totalorder %s66, %s69
    %p78 = scmp.eq.s32.totalorder %s17, 15
    %p79 = por %p77, %p78
    %p80 = scmp.ne.s32.totalorder %s69, %s70
    %p81 = scmp.eq.s32.totalorder %s17, 0
    %p82 = por %p80, %p81
    %p83 = scmp.ne.s32.totalorder %s69, %s70
    %p84 = scmp.eq.s32.totalorder %s18, 15
    %p85 = por %p83, %p84
    %p87 = scmp.ne.s32.totalorder %s70, %s86
    %p88 = scmp.eq.s32.totalorder %s18, 0
    %p89 = por %p87, %p88
    %s90 = sadd.s32 %s20, 2
    %s91 = sadd.s32 %s27, 2
    %s92 = ssub.s32 %s19, %s31
    %s93 = ssub.s32 %s90, %s91
    %s94 = sor.u32 %s92, %s93
    %p95 = scmp.eq.s32.totalorder %s94, 0
    %s97 = sadd.s32 %s96, 1
    %s98 = scalar_select %p95, %s96, %s97
    %p101 = pneg %p95
    %p102 = scmp.eq.s32.totalorder %s12, 15
    %p103 = por %p101, %p102
    %p104 = scmp.ne.s32.totalorder %s96, %s99
    %p105 = scmp.eq.s32.totalorder %s12, 0
    %p106 = por %p104, %p105
    %p107 = scmp.ne.s32.totalorder %s96, %s99
    %p108 = scmp.eq.s32.totalorder %s17, 15
    %p109 = por %p107, %p108
    %p110 = scmp.ne.s32.totalorder %s99, %s100
    %p111 = scmp.eq.s32.totalorder %s17, 0
    %p112 = por %p110, %p111
    %p113 = scmp.ne.s32.totalorder %s99, %s100
    %p114 = scmp.eq.s32.totalorder %s18, 15
    %p115 = por %p113, %p114
    %p117 = scmp.ne.s32.totalorder %s100, %s116
    %p118 = scmp.eq.s32.totalorder %s18, 0
    %p119 = por %p117, %p118
    %s121 = sadd.s32 %s120, 1
    %p124 = scmp.eq.s32.totalorder %s12, 15
    %p125 = scmp.ne.s32.totalorder %s120, %s122
    %p126 = scmp.eq.s32.totalorder %s12, 0
    %p127 = por %p125, %p126
    %p128 = scmp.ne.s32.totalorder %s120, %s122
    %p129 = scmp.eq.s32.totalorder %s17, 15
    %p130 = por %p128, %p129
    %p131 = scmp.ne.s32.totalorder %s122, %s123
    %p132 = scmp.eq.s32.totalorder %s17, 0
    %p133 = por %p131, %p132
    %p134 = scmp.ne.s32.totalorder %s122, %s123
    %p135 = scmp.eq.s32.totalorder %s18, 15
    %p136 = por %p134, %p135
    %p138 = scmp.ne.s32.totalorder %s123, %s137
    %p139 = scmp.eq.s32.totalorder %s18, 0
    %p140 = por %p138, %p139
    %s141 = ssub.s32 %s19, %s31
    %s142 = ssub.s32 %s20, %s27
    %s143 = sor.u32 %s141, %s142
    %p144 = scmp.eq.s32.totalorder %s143, 0
    %s146 = sadd.s32 %s145, 1
    %s147 = scalar_select %p144, %s145, %s146
    %p150 = pneg %p144
    %p151 = scmp.eq.s32.totalorder %s12, 15
    %p152 = por %p150, %p151
    %p153 = scmp.ne.s32.totalorder %s145, %s148
    %p154 = scmp.eq.s32.totalorder %s12, 0
    %p155 = por %p153, %p154
    %p156 = scmp.ne.s32.totalorder %s145, %s148
    %p157 = scmp.eq.s32.totalorder %s17, 15
    %p158 = por %p156, %p157
    %p159 = scmp.ne.s32.totalorder %s148, %s149
    %p160 = scmp.eq.s32.totalorder %s17, 0
    %p161 = por %p159, %p160
    %p162 = scmp.ne.s32.totalorder %s148, %s149
    %p163 = scmp.eq.s32.totalorder %s18, 15
    %p164 = por %p162, %p163
    %p166 = scmp.ne.s32.totalorder %s149, %s165
    %p167 = scmp.eq.s32.totalorder %s18, 0
    %p168 = por %p166, %p167
    %s170 = sadd.s32 %s169, 1
    %p173 = scmp.eq.s32.totalorder %s12, 15
    %p174 = scmp.ne.s32.totalorder %s169, %s171
    %p175 = scmp.eq.s32.totalorder %s12, 0
    %p176 = por %p174, %p175
    %p177 = scmp.ne.s32.totalorder %s169, %s171
    %p178 = scmp.eq.s32.totalorder %s17, 15
    %p179 = por %p177, %p178
    %p180 = scmp.ne.s32.totalorder %s171, %s172
    %p181 = scmp.eq.s32.totalorder %s17, 0
    %p182 = por %p180, %p181
    %p183 = scmp.ne.s32.totalorder %s171, %s172
    %p184 = scmp.eq.s32.totalorder %s18, 15
    %p185 = por %p183, %p184
    %p187 = scmp.ne.s32.totalorder %s172, %s186
    %p188 = scmp.eq.s32.totalorder %s18, 0
    %p189 = por %p187, %p188
    %p190 = scmp.le.s32.totalorder 1, %s12
    %p191 = scmp.lt.s32.totalorder %s12, 17
    %p192 = pnand %p190, %p191
    %p193 = pneg %p192
    // Predicated region
    $region9: #{double_conv_forward.6} parent=5 // pred_check
      _
    $region10: #{double_conv_forward.6} parent=5 // pred_check_branch
      %195 = sbr.rel (%p192) target = $region12
    $region11: #{double_conv_forward.6} parent=5 // pred_region
      %s196 = ssub.s32 %s12, 1
      // Predicated region
      $region13: #{double_conv_forward.6} parent=11 // pred_check
        %p197 = pneg %p133
      $region14: #{double_conv_forward.6} parent=11 // pred_check_branch
        %199 = sbr.rel (%p197) target = $region16
      $region15: #{double_conv_forward.6} parent=11 // pred_region
        _
      $region16: #{double_conv_forward.6} parent=11 // pred_fallthru
        _
    $region12: #{double_conv_forward.6} parent=5 // pred_fallthru
      _
    %p200 = scmp.lt.s32.totalorder %s12, 16
    // Predicated region
    $region17: #{double_conv_forward.6} parent=5 // pred_check
      %p201 = pneg %p200
    $region18: #{double_conv_forward.6} parent=5 // pred_check_branch
      %203 = sbr.rel (%p201) target = $region20
    $region19: #{double_conv_forward.6} parent=5 // pred_region
      // Predicated region
      $region21: #{double_conv_forward.6} parent=19 // pred_check
        %p204 = pneg %p46
      $region22: #{double_conv_forward.6} parent=19 // pred_check_branch
        %206 = sbr.rel (%p204) target = $region24
      $region23: #{double_conv_forward.6} parent=19 // pred_region
        %p207 = scmp.lt.s32.totalorder %s19, 1
        %s208 = scalar_select %p207, %s19, 1
        %p209 = scmp.lt.s32.totalorder %s20, 9
        %s210 = scalar_select %p209, %s20, 9
        %s211 = smul.addr %s210, 20
        %s212 = smul.addr %s208, 200
        %s213 = sadd.s32 %s211, %s212
        %s214 = smul.addr %s213, 4
        %s215 = scalar_lea.vmem %s0, %s214
      $region24: #{double_conv_forward.6} parent=19 // pred_fallthru
        _
      // Predicated region
      $region25: #{double_conv_forward.6} parent=19 // pred_check
        %p216 = pneg %p76
      $region26: #{double_conv_forward.6} parent=19 // pred_check_branch
        %218 = sbr.rel (%p216) target = $region28
      $region27: #{double_conv_forward.6} parent=19 // pred_region
        %s219 = sadd.s32 %s20, 1
        %p220 = scmp.lt.s32.totalorder %s19, 1
        %s221 = scalar_select %p220, %s19, 1
        %p222 = scmp.lt.s32.totalorder %s219, 9
        %s223 = scalar_select %p222, %s219, 9
        %s224 = smul.addr %s223, 20
        %s225 = smul.addr %s221, 200
        %s226 = sadd.s32 %s224, %s225
        %s227 = smul.addr %s226, 4
        %s228 = scalar_lea.vmem %s1, %s227
        %s229 = sadd.s32 %s20, 1
      $region28: #{double_conv_forward.6} parent=19 // pred_fallthru
        _
      // Predicated region
      $region29: #{double_conv_forward.6} parent=19 // pred_check
        %p230 = pneg %p106
      $region30: #{double_conv_forward.6} parent=19 // pred_check_branch
        %232 = sbr.rel (%p230) target = $region32
      $region31: #{double_conv_forward.6} parent=19 // pred_region
        %s233 = sadd.s32 %s20, 2
        %p234 = scmp.lt.s32.totalorder %s19, 1
        %s235 = scalar_select %p234, %s19, 1
        %p236 = scmp.lt.s32.totalorder %s233, 9
        %s237 = scalar_select %p236, %s233, 9
        %s238 = smul.addr %s237, 20
        %s239 = smul.addr %s235, 200
        %s240 = sadd.s32 %s238, %s239
        %s241 = smul.addr %s240, 4
        %s242 = scalar_lea.vmem %s2, %s241
        %s243 = sadd.s32 %s20, 2
      $region32: #{double_conv_forward.6} parent=19 // pred_fallthru
        _
    $region20: #{double_conv_forward.6} parent=5 // pred_fallthru
      _
    %p244 = scmp.le.s32.totalorder 1, %s12
    %p245 = scmp.lt.s32.totalorder %s12, 17
    %p246 = pnand %p244, %p245
    %p247 = pneg %p246
    // Predicated region
    $region33: #{double_conv_forward.6} parent=5 // pred_check
      _
    $region34: #{double_conv_forward.6} parent=5 // pred_check_branch
      %249 = sbr.rel (%p246) target = $region36
    $region35: #{double_conv_forward.6} parent=5 // pred_region
      %s250 = ssub.s32 %s12, 1
      %p251 = scmp.lt.s32.totalorder %s21, 1
      %s252 = scalar_select %p251, %s21, 1
      %p253 = scmp.lt.s32.totalorder %s22, 9
      %s254 = scalar_select %p253, %s22, 9
      %s255 = smul.addr %s254, 20
      %s256 = smul.addr %s252, 200
      %s257 = sadd.s32 %s255, %s256
      %s258 = smul.addr %s257, 4
      %s259 = scalar_lea.vmem %s0, %s258
      %p260 = pneg %p52
      %p261 = pneg %p49
      %s262 = sadd.s32 %s22, 1
      %p263 = scmp.lt.s32.totalorder %s21, 1
      %s264 = scalar_select %p263, %s21, 1
      %p265 = scmp.lt.s32.totalorder %s262, 9
      %s266 = scalar_select %p265, %s262, 9
      %s267 = smul.addr %s266, 20
      %s268 = smul.addr %s264, 200
      %s269 = sadd.s32 %s267, %s268
      %s270 = smul.addr %s269, 4
      %s271 = scalar_lea.vmem %s1, %s270
      %p272 = pneg %p82
      %p273 = pneg %p79
      %s274 = sadd.s32 %s22, 2
      %p275 = scmp.lt.s32.totalorder %s21, 1
      %s276 = scalar_select %p275, %s21, 1
      %p277 = scmp.lt.s32.totalorder %s274, 9
      %s278 = scalar_select %p277, %s274, 9
      %s279 = smul.addr %s278, 20
      %s280 = smul.addr %s276, 200
      %s281 = sadd.s32 %s279, %s280
      %s282 = smul.addr %s281, 4
      %s283 = scalar_lea.vmem %s2, %s282
      %p284 = pneg %p112
      %p285 = pneg %p109
      %p286 = pneg %p133
      %p287 = pneg %p130
      %p288 = pneg %p161
      %p289 = pneg %p158
      %p290 = scmp.lt.s32.totalorder %s21, 1
      %s291 = scalar_select %p290, %s21, 1
      %p292 = scmp.lt.s32.totalorder %s22, 7
      %s293 = scalar_select %p292, %s22, 7
      %s294 = smul.addr %s293, 8
      %s295 = smul.addr %s291, 64
      %s296 = sadd.s32 %s294, %s295
      %s297 = smul.addr %s296, 4
      %s298 = scalar_lea.vmem %s4, %s297
      %p299 = pneg %p182
      %p300 = pneg %p179
      %p301 = scmp.lt.s32.totalorder %s21, 1
      %s302 = scalar_select %p301, %s21, 1
      %p303 = scmp.lt.s32.totalorder %s22, 9
      %s304 = scalar_select %p303, %s22, 9
      %s305 = smul.addr %s304, 20
      %s306 = smul.addr %s302, 200
      %s307 = sadd.s32 %s305, %s306
      %s308 = smul.addr %s307, 4
      %s309 = scalar_lea.vmem %s0, %s308
      %s310 = sadd.s32 %s22, 1
      %p311 = scmp.lt.s32.totalorder %s21, 1
      %s312 = scalar_select %p311, %s21, 1
      %p313 = scmp.lt.s32.totalorder %s310, 9
      %s314 = scalar_select %p313, %s310, 9
      %s315 = smul.addr %s314, 20
      %s316 = smul.addr %s312, 200
      %s317 = sadd.s32 %s315, %s316
      %s318 = smul.addr %s317, 4
      %s319 = scalar_lea.vmem %s1, %s318
      %s320 = sadd.s32 %s22, 1
      %s321 = sadd.s32 %s22, 2
      %p322 = scmp.lt.s32.totalorder %s21, 1
      %s323 = scalar_select %p322, %s21, 1
      %p324 = scmp.lt.s32.totalorder %s321, 9
      %s325 = scalar_select %p324, %s321, 9
      %s326 = smul.addr %s325, 20
      %s327 = smul.addr %s323, 200
      %s328 = sadd.s32 %s326, %s327
      %s329 = smul.addr %s328, 4
      %s330 = scalar_lea.vmem %s2, %s329
      %s331 = sadd.s32 %s22, 2
      %p332 = scmp.lt.s32.totalorder %s21, 1
      %s333 = scalar_select %p332, %s21, 1
      %p334 = scmp.lt.s32.totalorder %s22, 7
      %s335 = scalar_select %p334, %s22, 7
      %s336 = smul.addr %s335, 8
      %s337 = smul.addr %s333, 64
      %s338 = sadd.s32 %s336, %s337
      %s339 = smul.addr %s338, 4
      %s340 = scalar_lea.vmem %s4, %s339
      %p342 = scmp.eq.s32.totalorder %s21, 0
      %p343 = scmp.eq.s32.totalorder %s22, 0
      %p344 = pnand %p342, %p343
      %p345 = pneg %p344
      // Predicated region
      $region37: #{double_conv_forward.6} parent=35 // pred_check
        _
      $region38: #{double_conv_forward.6} parent=35 // pred_check_branch
        %347 = sbr.rel (%p344) target = $region40
      $region39: #{double_conv_forward.6} parent=35 // pred_region
        %vm348 = vcmask 58368
        %349 = vst.msk [vmem:[%s5] sm:$0x3] %vm348, 0.0
      $region40: #{double_conv_forward.6} parent=35 // pred_fallthru
        _
      %v350 = vld [vmem:[%s3] sm:$0xf]
      %v351 = vld [vmem:[%s3 + $0x4] sm:$0xf]
      %v352 = vld [vmem:[%s3 + $0x8] sm:$0xf]
      %v353 = vld [vmem:[%s3 + $0xc] sm:$0xf]
      %v354 = vld [vmem:[%s3 + $0x10] sm:$0xf]
      %v355 = vld [vmem:[%s3 + $0x14] sm:$0xf]
      %v356 = vld [vmem:[%s3 + $0x18] sm:$0xf]
      %v357 = vld [vmem:[%s3 + $0x1c] sm:$0xf]
      %v358 = vld [vmem:[%s3 + $0x20] sm:$0xf]
      %v359 = vld [vmem:[%s3 + $0x24] sm:$0xf]
      %v360 = vld [vmem:[%s3 + $0x28] sm:$0xf]
      %v361 = vld [vmem:[%s3 + $0x2c] sm:$0xf]
      %v362 = vld [vmem:[%s3 + $0x30] sm:$0xf]
      %v363 = vld [vmem:[%s3 + $0x34] sm:$0x3]
      %v364 = vld [vmem:[%s309] sm:$0xf]
      %v365 = vld [vmem:[%s309 + $0x8] sm:$0xf]
      %v366 = vld [vmem:[%s309 + $0x10] sm:$0xf]
      %v367 = vld [vmem:[%s309 + $0x18] sm:$0xf]
      %v368 = vld [vmem:[%s309 + $0x20] sm:$0xf]
      %v369 = vld [vmem:[%s309 + $0x28] sm:$0xf]
      %v370 = vld [vmem:[%s309 + $0x30] sm:$0xf]
      %v371 = vld [vmem:[%s309 + $0x38] sm:$0xf]
      %vm372 = vcmask 27648
      %373 = vst.msk [vmem:[#allocation2] sm:$0xf] %vm372, %v364
      %374 = vst.msk [vmem:[#allocation2 + $0x4] sm:$0xf] %vm372, %v365
      %375 = vst.msk [vmem:[#allocation2 + $0x8] sm:$0xf] %vm372, %v366
      %376 = vst.msk [vmem:[#allocation2 + $0xc] sm:$0xf] %vm372, %v367
      %377 = vst.msk [vmem:[#allocation2 + $0x10] sm:$0xf] %vm372, %v368
      %378 = vst.msk [vmem:[#allocation2 + $0x14] sm:$0xf] %vm372, %v369
      %379 = vst.msk [vmem:[#allocation2 + $0x18] sm:$0xf] %vm372, %v370
      %380 = vst.msk [vmem:[#allocation2 + $0x1c] sm:$0xf] %vm372, %v371
      %v381 = vld [vmem:[%s309] sm:$0xf]
      %v382 = vld [vmem:[%s309 + $0x4] sm:$0x1]
      %v383 = vld [vmem:[%s309 + $0x8] sm:$0xf]
      %v384 = vld [vmem:[%s309 + $0xc] sm:$0x1]
      %v385 = vld [vmem:[%s309 + $0x10] sm:$0xf]
      %v386 = vld [vmem:[%s309 + $0x14] sm:$0x1]
      %v387 = vld [vmem:[%s309 + $0x18] sm:$0xf]
      %v388 = vld [vmem:[%s309 + $0x1c] sm:$0x1]
      %v389 = vld [vmem:[%s309 + $0x20] sm:$0xf]
      %v390 = vld [vmem:[%s309 + $0x24] sm:$0x1]
      %v391 = vld [vmem:[%s309 + $0x28] sm:$0xf]
      %v392 = vld [vmem:[%s309 + $0x2c] sm:$0x1]
      %v393 = vld [vmem:[%s309 + $0x30] sm:$0xf]
      %v394 = vld [vmem:[%s309 + $0x34] sm:$0x1]
      %v395 = vld [vmem:[%s309 + $0x38] sm:$0xf]
      %v396 = vld [vmem:[%s309 + $0x3c] sm:$0x1]
      %vm397 = vsmask.f32 3328
      %vm398 = vsmask.f32 7440
      %vm399 = vmor %vm397, %vm398
      %v401 = vshrl.u32 %v381, 16
      %v403 = vrot.slane %v401, 4
      %v404 = vshll.u32 %v381, 16
      %v406 = vrot.slane %v404, 5
      %v407 = vor.u32 %v403, %v406
      %v408 = vrot.slane %v407, 4
      %v410 = vshll.u32 %v382, 16
      %v412 = vrot.slane %v410, 5
      %v413 = vsel %vm399, %v408, %v412
      %v415 = vshrl.u32 %v383, 16
      %v417 = vrot.slane %v415, 4
      %v418 = vshll.u32 %v383, 16
      %v420 = vrot.slane %v418, 5
      %v421 = vor.u32 %v417, %v420
      %v422 = vrot.slane %v421, 4
      %v424 = vshll.u32 %v384, 16
      %v426 = vrot.slane %v424, 5
      %v427 = vsel %vm399, %v422, %v426
      %v429 = vshrl.u32 %v385, 16
      %v431 = vrot.slane %v429, 4
      %v432 = vshll.u32 %v385, 16
      %v434 = vrot.slane %v432, 5
      %v435 = vor.u32 %v431, %v434
      %v436 = vrot.slane %v435, 4
      %v438 = vshll.u32 %v386, 16
      %v440 = vrot.slane %v438, 5
      %v441 = vsel %vm399, %v436, %v440
      %v443 = vshrl.u32 %v387, 16
      %v445 = vrot.slane %v443, 4
      %v446 = vshll.u32 %v387, 16
      %v448 = vrot.slane %v446, 5
      %v449 = vor.u32 %v445, %v448
      %v450 = vrot.slane %v449, 4
      %v452 = vshll.u32 %v388, 16
      %v454 = vrot.slane %v452, 5
      %v455 = vsel %vm399, %v450, %v454
      %v457 = vshrl.u32 %v389, 16
      %v459 = vrot.slane %v457, 4
      %v460 = vshll.u32 %v389, 16
      %v462 = vrot.slane %v460, 5
      %v463 = vor.u32 %v459, %v462
      %v464 = vrot.slane %v463, 4
      %v466 = vshll.u32 %v390, 16
      %v468 = vrot.slane %v466, 5
      %v469 = vsel %vm399, %v464, %v468
      %v471 = vshrl.u32 %v391, 16
      %v473 = vrot.slane %v471, 4
      %v474 = vshll.u32 %v391, 16
      %v476 = vrot.slane %v474, 5
      %v477 = vor.u32 %v473, %v476
      %v478 = vrot.slane %v477, 4
      %v480 = vshll.u32 %v392, 16
      %v482 = vrot.slane %v480, 5
      %v483 = vsel %vm399, %v478, %v482
      %v485 = vshrl.u32 %v393, 16
      %v487 = vrot.slane %v485, 4
      %v488 = vshll.u32 %v393, 16
      %v490 = vrot.slane %v488, 5
      %v491 = vor.u32 %v487, %v490
      %v492 = vrot.slane %v491, 4
      %v494 = vshll.u32 %v394, 16
      %v496 = vrot.slane %v494, 5
      %v497 = vsel %vm399, %v492, %v496
      %v499 = vshrl.u32 %v395, 16
      %v501 = vrot.slane %v499, 4
      %v502 = vshll.u32 %v395, 16
      %v504 = vrot.slane %v502, 5
      %v505 = vor.u32 %v501, %v504
      %v506 = vrot.slane %v505, 4
      %v508 = vshll.u32 %v396, 16
      %v510 = vrot.slane %v508, 5
      %v511 = vsel %vm399, %v506, %v510
      %512 = vrot.lane.b32.xlu0 %v413, 4
      %v513 = vpop.permute.xlu0 %512
      %514 = vrot.lane.b32.xlu0 %v427, 4
      %v515 = vpop.permute.xlu0 %514
      %516 = vrot.lane.b32.xlu0 %v441, 4
      %v517 = vpop.permute.xlu0 %516
      %518 = vrot.lane.b32.xlu0 %v455, 4
      %v519 = vpop.permute.xlu0 %518
      %520 = vrot.lane.b32.xlu0 %v469, 4
      %v521 = vpop.permute.xlu0 %520
      %522 = vrot.lane.b32.xlu0 %v483, 4
      %v523 = vpop.permute.xlu0 %522
      %524 = vrot.lane.b32.xlu0 %v497, 4
      %v525 = vpop.permute.xlu0 %524
      %526 = vrot.lane.b32.xlu0 %v511, 4
      %v527 = vpop.permute.xlu0 %526
      %vm536 = vcmask 60448
      %537 = vst.msk [vmem:[#allocation2] sm:$0xf] %vm536, %v513
      %538 = vst.msk [vmem:[#allocation2 + $0x4] sm:$0xf] %vm536, %v515
      %539 = vst.msk [vmem:[#allocation2 + $0x8] sm:$0xf] %vm536, %v517
      %540 = vst.msk [vmem:[#allocation2 + $0xc] sm:$0xf] %vm536, %v519
      %541 = vst.msk [vmem:[#allocation2 + $0x10] sm:$0xf] %vm536, %v521
      %542 = vst.msk [vmem:[#allocation2 + $0x14] sm:$0xf] %vm536, %v523
      %543 = vst.msk [vmem:[#allocation2 + $0x18] sm:$0xf] %vm536, %v525
      %544 = vst.msk [vmem:[#allocation2 + $0x1c] sm:$0xf] %vm536, %v527
      %v545 = vld [vmem:[%s309] sm:$0xe]
      %v546 = vld [vmem:[%s309 + $0x4] sm:$0x1]
      %v547 = vld [vmem:[%s309 + $0x8] sm:$0xe]
      %v548 = vld [vmem:[%s309 + $0xc] sm:$0x1]
      %v549 = vld [vmem:[%s309 + $0x10] sm:$0xe]
      %v550 = vld [vmem:[%s309 + $0x14] sm:$0x1]
      %v551 = vld [vmem:[%s309 + $0x18] sm:$0xe]
      %v552 = vld [vmem:[%s309 + $0x1c] sm:$0x1]
      %v553 = vld [vmem:[%s309 + $0x20] sm:$0xe]
      %v554 = vld [vmem:[%s309 + $0x24] sm:$0x1]
      %v555 = vld [vmem:[%s309 + $0x28] sm:$0xe]
      %v556 = vld [vmem:[%s309 + $0x2c] sm:$0x1]
      %v557 = vld [vmem:[%s309 + $0x30] sm:$0xe]
      %v558 = vld [vmem:[%s309 + $0x34] sm:$0x1]
      %v559 = vld [vmem:[%s309 + $0x38] sm:$0xe]
      %v560 = vld [vmem:[%s309 + $0x3c] sm:$0x1]
      %vm577 = vcmask 1042432
      %vm578 = vcmask 1046532
      %vm579 = vmor %vm577, %vm578
      %v580 = vrot.slane %v545, 5
      %v581 = vrot.slane %v580, 4
      %v582 = vrot.slane %v546, 5
      %v583 = vsel %vm579, %v581, %v582
      %v584 = vrot.slane %v547, 5
      %v585 = vrot.slane %v584, 4
      %v586 = vrot.slane %v548, 5
      %v587 = vsel %vm579, %v585, %v586
      %v588 = vrot.slane %v549, 5
      %v589 = vrot.slane %v588, 4
      %v590 = vrot.slane %v550, 5
      %v591 = vsel %vm579, %v589, %v590
      %v592 = vrot.slane %v551, 5
      %v593 = vrot.slane %v592, 4
      %v594 = vrot.slane %v552, 5
      %v595 = vsel %vm579, %v593, %v594
      %v596 = vrot.slane %v553, 5
      %v597 = vrot.slane %v596, 4
      %v598 = vrot.slane %v554, 5
      %v599 = vsel %vm579, %v597, %v598
      %v600 = vrot.slane %v555, 5
      %v601 = vrot.slane %v600, 4
      %v602 = vrot.slane %v556, 5
      %v603 = vsel %vm579, %v601, %v602
      %v604 = vrot.slane %v557, 5
      %v605 = vrot.slane %v604, 4
      %v606 = vrot.slane %v558, 5
      %v607 = vsel %vm579, %v605, %v606
      %v608 = vrot.slane %v559, 5
      %v609 = vrot.slane %v608, 4
      %v610 = vrot.slane %v560, 5
      %v611 = vsel %vm579, %v609, %v610
      %612 = vrot.lane.b32.xlu0 %v583, 8
      %v613 = vpop.permute.xlu0 %612
      %614 = vrot.lane.b32.xlu0 %v587, 8
      %v615 = vpop.permute.xlu0 %614
      %616 = vrot.lane.b32.xlu0 %v591, 8
      %v617 = vpop.permute.xlu0 %616
      %618 = vrot.lane.b32.xlu0 %v595, 8
      %v619 = vpop.permute.xlu0 %618
      %620 = vrot.lane.b32.xlu0 %v599, 8
      %v621 = vpop.permute.xlu0 %620
      %622 = vrot.lane.b32.xlu0 %v603, 8
      %v623 = vpop.permute.xlu0 %622
      %624 = vrot.lane.b32.xlu0 %v607, 8
      %v625 = vpop.permute.xlu0 %624
      %626 = vrot.lane.b32.xlu0 %v611, 8
      %v627 = vpop.permute.xlu0 %626
      %vm636 = vcmask 93248
      %637 = vst.msk [vmem:[#allocation2] sm:$0xf] %vm636, %v613
      %638 = vst.msk [vmem:[#allocation2 + $0x4] sm:$0xf] %vm636, %v615
      %639 = vst.msk [vmem:[#allocation2 + $0x8] sm:$0xf] %vm636, %v617
      %640 = vst.msk [vmem:[#allocation2 + $0xc] sm:$0xf] %vm636, %v619
      %641 = vst.msk [vmem:[#allocation2 + $0x10] sm:$0xf] %vm636, %v621
      %642 = vst.msk [vmem:[#allocation2 + $0x14] sm:$0xf] %vm636, %v623
      %643 = vst.msk [vmem:[#allocation2 + $0x18] sm:$0xf] %vm636, %v625
      %644 = vst.msk [vmem:[#allocation2 + $0x1c] sm:$0xf] %vm636, %v627
      %s645 = scalar_lea.vmem %s309, 8
      %v646 = vld [vmem:[%s645] sm:$0xf]
      %v647 = vld [vmem:[%s645 + $0x8] sm:$0xf]
      %v648 = vld [vmem:[%s645 + $0x10] sm:$0xf]
      %v649 = vld [vmem:[%s645 + $0x18] sm:$0xf]
      %v650 = vld [vmem:[%s645 + $0x20] sm:$0xf]
      %v651 = vld [vmem:[%s645 + $0x28] sm:$0xf]
      %v652 = vld [vmem:[%s645 + $0x30] sm:$0xf]
      %v653 = vld [vmem:[%s645 + $0x38] sm:$0xf]
      %662 = vrot.lane.b32.xlu0 %v646, 12
      %v663 = vpop.permute.xlu0 %662
      %664 = vrot.lane.b32.xlu0 %v647, 12
      %v665 = vpop.permute.xlu0 %664
      %666 = vrot.lane.b32.xlu0 %v648, 12
      %v667 = vpop.permute.xlu0 %666
      %668 = vrot.lane.b32.xlu0 %v649, 12
      %v669 = vpop.permute.xlu0 %668
      %670 = vrot.lane.b32.xlu0 %v650, 12
      %v671 = vpop.permute.xlu0 %670
      %672 = vrot.lane.b32.xlu0 %v651, 12
      %v673 = vpop.permute.xlu0 %672
      %674 = vrot.lane.b32.xlu0 %v652, 12
      %v675 = vpop.permute.xlu0 %674
      %676 = vrot.lane.b32.xlu0 %v653, 12
      %v677 = vpop.permute.xlu0 %676
      %vm686 = vcmask 126048
      %687 = vst.msk [vmem:[#allocation2] sm:$0xf] %vm686, %v663
      %688 = vst.msk [vmem:[#allocation2 + $0x4] sm:$0xf] %vm686, %v665
      %689 = vst.msk [vmem:[#allocation2 + $0x8] sm:$0xf] %vm686, %v667
      %690 = vst.msk [vmem:[#allocation2 + $0xc] sm:$0xf] %vm686, %v669
      %691 = vst.msk [vmem:[#allocation2 + $0x10] sm:$0xf] %vm686, %v671
      %692 = vst.msk [vmem:[#allocation2 + $0x14] sm:$0xf] %vm686, %v673
      %693 = vst.msk [vmem:[#allocation2 + $0x18] sm:$0xf] %vm686, %v675
      %694 = vst.msk [vmem:[#allocation2 + $0x1c] sm:$0xf] %vm686, %v677
      %v695 = vld [vmem:[%s645] sm:$0xf]
      %v696 = vld [vmem:[%s645 + $0x4] sm:$0x1]
      %v697 = vld [vmem:[%s645 + $0x8] sm:$0xf]
      %v698 = vld [vmem:[%s645 + $0xc] sm:$0x1]
      %v699 = vld [vmem:[%s645 + $0x10] sm:$0xf]
      %v700 = vld [vmem:[%s645 + $0x14] sm:$0x1]
      %v701 = vld [vmem:[%s645 + $0x18] sm:$0xf]
      %v702 = vld [vmem:[%s645 + $0x1c] sm:$0x1]
      %v703 = vld [vmem:[%s645 + $0x20] sm:$0xf]
      %v704 = vld [vmem:[%s645 + $0x24] sm:$0x1]
      %v705 = vld [vmem:[%s645 + $0x28] sm:$0xf]
      %v706 = vld [vmem:[%s645 + $0x2c] sm:$0x1]
      %v707 = vld [vmem:[%s645 + $0x30] sm:$0xf]
      %v708 = vld [vmem:[%s645 + $0x34] sm:$0x1]
      %v709 = vld [vmem:[%s645 + $0x38] sm:$0xf]
      %v710 = vld [vmem:[%s645 + $0x3c] sm:$0x1]
      %v712 = vshrl.u32 %v695, 16
      %v714 = vrot.slane %v712, 4
      %v715 = vshll.u32 %v695, 16
      %v717 = vrot.slane %v715, 5
      %v718 = vor.u32 %v714, %v717
      %v719 = vrot.slane %v718, 4
      %v721 = vshll.u32 %v696, 16
      %v723 = vrot.slane %v721, 5
      %v724 = vsel %vm399, %v719, %v723
      %v726 = vshrl.u32 %v697, 16
      %v728 = vrot.slane %v726, 4
      %v729 = vshll.u32 %v697, 16
      %v731 = vrot.slane %v729, 5
      %v732 = vor.u32 %v728, %v731
      %v733 = vrot.slane %v732, 4
      %v735 = vshll.u32 %v698, 16
      %v737 = vrot.slane %v735, 5
      %v738 = vsel %vm399, %v733, %v737
      %v740 = vshrl.u32 %v699, 16
      %v742 = vrot.slane %v740, 4
      %v743 = vshll.u32 %v699, 16
      %v745 = vrot.slane %v743, 5
      %v746 = vor.u32 %v742, %v745
      %v747 = vrot.slane %v746, 4
      %v749 = vshll.u32 %v700, 16
      %v751 = vrot.slane %v749, 5
      %v752 = vsel %vm399, %v747, %v751
      %v754 = vshrl.u32 %v701, 16
      %v756 = vrot.slane %v754, 4
      %v757 = vshll.u32 %v701, 16
      %v759 = vrot.slane %v757, 5
      %v760 = vor.u32 %v756, %v759
      %v761 = vrot.slane %v760, 4
      %v763 = vshll.u32 %v702, 16
      %v765 = vrot.slane %v763, 5
      %v766 = vsel %vm399, %v761, %v765
      %v768 = vshrl.u32 %v703, 16
      %v770 = vrot.slane %v768, 4
      %v771 = vshll.u32 %v703, 16
      %v773 = vrot.slane %v771, 5
      %v774 = vor.u32 %v770, %v773
      %v775 = vrot.slane %v774, 4
      %v777 = vshll.u32 %v704, 16
      %v779 = vrot.slane %v777, 5
      %v780 = vsel %vm399, %v775, %v779
      %v782 = vshrl.u32 %v705, 16
      %v784 = vrot.slane %v782, 4
      %v785 = vshll.u32 %v705, 16
      %v787 = vrot.slane %v785, 5
      %v788 = vor.u32 %v784, %v787
      %v789 = vrot.slane %v788, 4
      %v791 = vshll.u32 %v706, 16
      %v793 = vrot.slane %v791, 5
      %v794 = vsel %vm399, %v789, %v793
      %v796 = vshrl.u32 %v707, 16
      %v798 = vrot.slane %v796, 4
      %v799 = vshll.u32 %v707, 16
      %v801 = vrot.slane %v799, 5
      %v802 = vor.u32 %v798, %v801
      %v803 = vrot.slane %v802, 4
      %v805 = vshll.u32 %v708, 16
      %v807 = vrot.slane %v805, 5
      %v808 = vsel %vm399, %v803, %v807
      %v810 = vshrl.u32 %v709, 16
      %v812 = vrot.slane %v810, 4
      %v813 = vshll.u32 %v709, 16
      %v815 = vrot.slane %v813, 5
      %v816 = vor.u32 %v812, %v815
      %v817 = vrot.slane %v816, 4
      %v819 = vshll.u32 %v710, 16
      %v821 = vrot.slane %v819, 5
      %v822 = vsel %vm399, %v817, %v821
      %823 = vrot.lane.b32.xlu0 %v724, 16
      %v824 = vpop.permute.xlu0 %823
      %825 = vrot.lane.b32.xlu0 %v738, 16
      %v826 = vpop.permute.xlu0 %825
      %827 = vrot.lane.b32.xlu0 %v752, 16
      %v828 = vpop.permute.xlu0 %827
      %829 = vrot.lane.b32.xlu0 %v766, 16
      %v830 = vpop.permute.xlu0 %829
      %831 = vrot.lane.b32.xlu0 %v780, 16
      %v832 = vpop.permute.xlu0 %831
      %833 = vrot.lane.b32.xlu0 %v794, 16
      %v834 = vpop.permute.xlu0 %833
      %835 = vrot.lane.b32.xlu0 %v808, 16
      %v836 = vpop.permute.xlu0 %835
      %837 = vrot.lane.b32.xlu0 %v822, 16
      %v838 = vpop.permute.xlu0 %837
      %vm847 = vcmask 158848
      %848 = vst.msk [vmem:[#allocation2] sm:$0xf] %vm847, %v824
      %849 = vst.msk [vmem:[#allocation2 + $0x4] sm:$0xf] %vm847, %v826
      %850 = vst.msk [vmem:[#allocation2 + $0x8] sm:$0xf] %vm847, %v828
      %851 = vst.msk [vmem:[#allocation2 + $0xc] sm:$0xf] %vm847, %v830
      %852 = vst.msk [vmem:[#allocation2 + $0x10] sm:$0xf] %vm847, %v832
      %853 = vst.msk [vmem:[#allocation2 + $0x14] sm:$0xf] %vm847, %v834
      %854 = vst.msk [vmem:[#allocation2 + $0x18] sm:$0xf] %vm847, %v836
      %855 = vst.msk [vmem:[#allocation2 + $0x1c] sm:$0xf] %vm847, %v838
      %v856 = vld [vmem:[%s645] sm:$0xe]
      %v857 = vld [vmem:[%s645 + $0x4] sm:$0x1]
      %v858 = vld [vmem:[%s645 + $0x8] sm:$0xe]
      %v859 = vld [vmem:[%s645 + $0xc] sm:$0x1]
      %v860 = vld [vmem:[%s645 + $0x10] sm:$0xe]
      %v861 = vld [vmem:[%s645 + $0x14] sm:$0x1]
      %v862 = vld [vmem:[%s645 + $0x18] sm:$0xe]
      %v863 = vld [vmem:[%s645 + $0x1c] sm:$0x1]
      %v864 = vld [vmem:[%s645 + $0x20] sm:$0xe]
      %v865 = vld [vmem:[%s645 + $0x24] sm:$0x1]
      %v866 = vld [vmem:[%s645 + $0x28] sm:$0xe]
      %v867 = vld [vmem:[%s645 + $0x2c] sm:$0x1]
      %v868 = vld [vmem:[%s645 + $0x30] sm:$0xe]
      %v869 = vld [vmem:[%s645 + $0x34] sm:$0x1]
      %v870 = vld [vmem:[%s645 + $0x38] sm:$0xe]
      %v871 = vld [vmem:[%s645 + $0x3c] sm:$0x1]
      %v888 = vrot.slane %v856, 5
      %v889 = vrot.slane %v888, 4
      %v890 = vrot.slane %v857, 5
      %v891 = vsel %vm579, %v889, %v890
      %v892 = vrot.slane %v858, 5
      %v893 = vrot.slane %v892, 4
      %v894 = vrot.slane %v859, 5
      %v895 = vsel %vm579, %v893, %v894
      %v896 = vrot.slane %v860, 5
      %v897 = vrot.slane %v896, 4
      %v898 = vrot.slane %v861, 5
      %v899 = vsel %vm579, %v897, %v898
      %v900 = vrot.slane %v862, 5
      %v901 = vrot.slane %v900, 4
      %v902 = vrot.slane %v863, 5
      %v903 = vsel %vm579, %v901, %v902
      %v904 = vrot.slane %v864, 5
      %v905 = vrot.slane %v904, 4
      %v906 = vrot.slane %v865, 5
      %v907 = vsel %vm579, %v905, %v906
      %v908 = vrot.slane %v866, 5
      %v909 = vrot.slane %v908, 4
      %v910 = vrot.slane %v867, 5
      %v911 = vsel %vm579, %v909, %v910
      %v912 = vrot.slane %v868, 5
      %v913 = vrot.slane %v912, 4
      %v914 = vrot.slane %v869, 5
      %v915 = vsel %vm579, %v913, %v914
      %v916 = vrot.slane %v870, 5
      %v917 = vrot.slane %v916, 4
      %v918 = vrot.slane %v871, 5
      %v919 = vsel %vm579, %v917, %v918
      %920 = vrot.lane.b32.xlu0 %v891, 20
      %v921 = vpop.permute.xlu0 %920
      %922 = vrot.lane.b32.xlu0 %v895, 20
      %v923 = vpop.permute.xlu0 %922
      %924 = vrot.lane.b32.xlu0 %v899, 20
      %v925 = vpop.permute.xlu0 %924
      %926 = vrot.lane.b32.xlu0 %v903, 20
      %v927 = vpop.permute.xlu0 %926
      %928 = vrot.lane.b32.xlu0 %v907, 20
      %v929 = vpop.permute.xlu0 %928
      %930 = vrot.lane.b32.xlu0 %v911, 20
      %v931 = vpop.permute.xlu0 %930
      %932 = vrot.lane.b32.xlu0 %v915, 20
      %v933 = vpop.permute.xlu0 %932
      %934 = vrot.lane.b32.xlu0 %v919, 20
      %v935 = vpop.permute.xlu0 %934
      %vm944 = vcmask 191648
      %945 = vst.msk [vmem:[#allocation2] sm:$0xf] %vm944, %v921
      %946 = vst.msk [vmem:[#allocation2 + $0x4] sm:$0xf] %vm944, %v923
      %947 = vst.msk [vmem:[#allocation2 + $0x8] sm:$0xf] %vm944, %v925
      %948 = vst.msk [vmem:[#allocation2 + $0xc] sm:$0xf] %vm944, %v927
      %949 = vst.msk [vmem:[#allocation2 + $0x10] sm:$0xf] %vm944, %v929
      %950 = vst.msk [vmem:[#allocation2 + $0x14] sm:$0xf] %vm944, %v931
      %951 = vst.msk [vmem:[#allocation2 + $0x18] sm:$0xf] %vm944, %v933
      %952 = vst.msk [vmem:[#allocation2 + $0x1c] sm:$0xf] %vm944, %v935
      %s953 = scalar_lea.vmem %s309, 16
      %v954 = vld [vmem:[%s953] sm:$0xf]
      %v955 = vld [vmem:[%s953 + $0x8] sm:$0xf]
      %v956 = vld [vmem:[%s953 + $0x10] sm:$0xf]
      %v957 = vld [vmem:[%s953 + $0x18] sm:$0xf]
      %v958 = vld [vmem:[%s953 + $0x20] sm:$0xf]
      %v959 = vld [vmem:[%s953 + $0x28] sm:$0xf]
      %v960 = vld [vmem:[%s953 + $0x30] sm:$0xf]
      %v961 = vld [vmem:[%s953 + $0x38] sm:$0xf]
      %970 = vrot.lane.b32.xlu0 %v954, 24
      %v971 = vpop.permute.xlu0 %970
      %972 = vrot.lane.b32.xlu0 %v955, 24
      %v973 = vpop.permute.xlu0 %972
      %974 = vrot.lane.b32.xlu0 %v956, 24
      %v975 = vpop.permute.xlu0 %974
      %976 = vrot.lane.b32.xlu0 %v957, 24
      %v977 = vpop.permute.xlu0 %976
      %978 = vrot.lane.b32.xlu0 %v958, 24
      %v979 = vpop.permute.xlu0 %978
      %980 = vrot.lane.b32.xlu0 %v959, 24
      %v981 = vpop.permute.xlu0 %980
      %982 = vrot.lane.b32.xlu0 %v960, 24
      %v983 = vpop.permute.xlu0 %982
      %984 = vrot.lane.b32.xlu0 %v961, 24
      %v985 = vpop.permute.xlu0 %984
      %vm994 = vcmask 224448
      %995 = vst.msk [vmem:[#allocation2] sm:$0xf] %vm994, %v971
      %996 = vst.msk [vmem:[#allocation2 + $0x4] sm:$0xf] %vm994, %v973
      %997 = vst.msk [vmem:[#allocation2 + $0x8] sm:$0xf] %vm994, %v975
      %998 = vst.msk [vmem:[#allocation2 + $0xc] sm:$0xf] %vm994, %v977
      %999 = vst.msk [vmem:[#allocation2 + $0x10] sm:$0xf] %vm994, %v979
      %1000 = vst.msk [vmem:[#allocation2 + $0x14] sm:$0xf] %vm994, %v981
      %1001 = vst.msk [vmem:[#allocation2 + $0x18] sm:$0xf] %vm994, %v983
      %1002 = vst.msk [vmem:[#allocation2 + $0x1c] sm:$0xf] %vm994, %v985
      %v1003 = vld [vmem:[%s953] sm:$0xf]
      %v1004 = vld [vmem:[%s953 + $0x4] sm:$0x1]
      %v1005 = vld [vmem:[%s953 + $0x8] sm:$0xf]
      %v1006 = vld [vmem:[%s953 + $0xc] sm:$0x1]
      %v1007 = vld [vmem:[%s953 + $0x10] sm:$0xf]
      %v1008 = vld [vmem:[%s953 + $0x14] sm:$0x1]
      %v1009 = vld [vmem:[%s953 + $0x18] sm:$0xf]
      %v1010 = vld [vmem:[%s953 + $0x1c] sm:$0x1]
      %v1011 = vld [vmem:[%s953 + $0x20] sm:$0xf]
      %v1012 = vld [vmem:[%s953 + $0x24] sm:$0x1]
      %v1013 = vld [vmem:[%s953 + $0x28] sm:$0xf]
      %v1014 = vld [vmem:[%s953 + $0x2c] sm:$0x1]
      %v1015 = vld [vmem:[%s953 + $0x30] sm:$0xf]
      %v1016 = vld [vmem:[%s953 + $0x34] sm:$0x1]
      %v1017 = vld [vmem:[%s953 + $0x38] sm:$0xf]
      %v1018 = vld [vmem:[%s953 + $0x3c] sm:$0x1]
      %v1020 = vshrl.u32 %v1003, 16
      %v1022 = vrot.slane %v1020, 4
      %v1023 = vshll.u32 %v1003, 16
      %v1025 = vrot.slane %v1023, 5
      %v1026 = vor.u32 %v1022, %v1025
      %v1027 = vrot.slane %v1026, 4
      %v1029 = vshll.u32 %v1004, 16
      %v1031 = vrot.slane %v1029, 5
      %v1032 = vsel %vm399, %v1027, %v1031
      %v1034 = vshrl.u32 %v1005, 16
      %v1036 = vrot.slane %v1034, 4
      %v1037 = vshll.u32 %v1005, 16
      %v1039 = vrot.slane %v1037, 5
      %v1040 = vor.u32 %v1036, %v1039
      %v1041 = vrot.slane %v1040, 4
      %v1043 = vshll.u32 %v1006, 16
      %v1045 = vrot.slane %v1043, 5
      %v1046 = vsel %vm399, %v1041, %v1045
      %v1048 = vshrl.u32 %v1007, 16
      %v1050 = vrot.slane %v1048, 4
      %v1051 = vshll.u32 %v1007, 16
      %v1053 = vrot.slane %v1051, 5
      %v1054 = vor.u32 %v1050, %v1053
      %v1055 = vrot.slane %v1054, 4
      %v1057 = vshll.u32 %v1008, 16
      %v1059 = vrot.slane %v1057, 5
      %v1060 = vsel %vm399, %v1055, %v1059
      %v1062 = vshrl.u32 %v1009, 16
      %v1064 = vrot.slane %v1062, 4
      %v1065 = vshll.u32 %v1009, 16
      %v1067 = vrot.slane %v1065, 5
      %v1068 = vor.u32 %v1064, %v1067
      %v1069 = vrot.slane %v1068, 4
      %v1071 = vshll.u32 %v1010, 16
      %v1073 = vrot.slane %v1071, 5
      %v1074 = vsel %vm399, %v1069, %v1073
      %v1076 = vshrl.u32 %v1011, 16
      %v1078 = vrot.slane %v1076, 4
      %v1079 = vshll.u32 %v1011, 16
      %v1081 = vrot.slane %v1079, 5
      %v1082 = vor.u32 %v1078, %v1081
      %v1083 = vrot.slane %v1082, 4
      %v1085 = vshll.u32 %v1012, 16
      %v1087 = vrot.slane %v1085, 5
      %v1088 = vsel %vm399, %v1083, %v1087
      %v1090 = vshrl.u32 %v1013, 16
      %v1092 = vrot.slane %v1090, 4
      %v1093 = vshll.u32 %v1013, 16
      %v1095 = vrot.slane %v1093, 5
      %v1096 = vor.u32 %v1092, %v1095
      %v1097 = vrot.slane %v1096, 4
      %v1099 = vshll.u32 %v1014, 16
      %v1101 = vrot.slane %v1099, 5
      %v1102 = vsel %vm399, %v1097, %v1101
      %v1104 = vshrl.u32 %v1015, 16
      %v1106 = vrot.slane %v1104, 4
      %v1107 = vshll.u32 %v1015, 16
      %v1109 = vrot.slane %v1107, 5
      %v1110 = vor.u32 %v1106, %v1109
      %v1111 = vrot.slane %v1110, 4
      %v1113 = vshll.u32 %v1016, 16
      %v1115 = vrot.slane %v1113, 5
      %v1116 = vsel %vm399, %v1111, %v1115
      %v1118 = vshrl.u32 %v1017, 16
      %v1120 = vrot.slane %v1118, 4
      %v1121 = vshll.u32 %v1017, 16
      %v1123 = vrot.slane %v1121, 5
      %v1124 = vor.u32 %v1120, %v1123
      %v1125 = vrot.slane %v1124, 4
      %v1127 = vshll.u32 %v1018, 16
      %v1129 = vrot.slane %v1127, 5
      %v1130 = vsel %vm399, %v1125, %v1129
      %1131 = vrot.lane.b32.xlu0 %v1032, 28
      %v1132 = vpop.permute.xlu0 %1131
      %1133 = vrot.lane.b32.xlu0 %v1046, 28
      %v1134 = vpop.permute.xlu0 %1133
      %1135 = vrot.lane.b32.xlu0 %v1060, 28
      %v1136 = vpop.permute.xlu0 %1135
      %1137 = vrot.lane.b32.xlu0 %v1074, 28
      %v1138 = vpop.permute.xlu0 %1137
      %1139 = vrot.lane.b32.xlu0 %v1088, 28
      %v1140 = vpop.permute.xlu0 %1139
      %1141 = vrot.lane.b32.xlu0 %v1102, 28
      %v1142 = vpop.permute.xlu0 %1141
      %1143 = vrot.lane.b32.xlu0 %v1116, 28
      %v1144 = vpop.permute.xlu0 %1143
      %1145 = vrot.lane.b32.xlu0 %v1130, 28
      %v1146 = vpop.permute.xlu0 %1145
      %vm1155 = vcmask 257248
      %1156 = vst.msk [vmem:[#allocation2] sm:$0xf] %vm1155, %v1132
      %1157 = vst.msk [vmem:[#allocation2 + $0x4] sm:$0xf] %vm1155, %v1134
      %1158 = vst.msk [vmem:[#allocation2 + $0x8] sm:$0xf] %vm1155, %v1136
      %1159 = vst.msk [vmem:[#allocation2 + $0xc] sm:$0xf] %vm1155, %v1138
      %1160 = vst.msk [vmem:[#allocation2 + $0x10] sm:$0xf] %vm1155, %v1140
      %1161 = vst.msk [vmem:[#allocation2 + $0x14] sm:$0xf] %vm1155, %v1142
      %1162 = vst.msk [vmem:[#allocation2 + $0x18] sm:$0xf] %vm1155, %v1144
      %1163 = vst.msk [vmem:[#allocation2 + $0x1c] sm:$0xf] %vm1155, %v1146
      %v1164 = vld [vmem:[%s953] sm:$0xe]
      %v1165 = vld [vmem:[%s953 + $0x4] sm:$0x1]
      %v1166 = vld [vmem:[%s953 + $0x8] sm:$0xe]
      %v1167 = vld [vmem:[%s953 + $0xc] sm:$0x1]
      %v1168 = vld [vmem:[%s953 + $0x10] sm:$0xe]
      %v1169 = vld [vmem:[%s953 + $0x14] sm:$0x1]
      %v1170 = vld [vmem:[%s953 + $0x18] sm:$0xe]
      %v1171 = vld [vmem:[%s953 + $0x1c] sm:$0x1]
      %v1172 = vld [vmem:[%s953 + $0x20] sm:$0xe]
      %v1173 = vld [vmem:[%s953 + $0x24] sm:$0x1]
      %v1174 = vld [vmem:[%s953 + $0x28] sm:$0xe]
      %v1175 = vld [vmem:[%s953 + $0x2c] sm:$0x1]
      %v1176 = vld [vmem:[%s953 + $0x30] sm:$0xe]
      %v1177 = vld [vmem:[%s953 + $0x34] sm:$0x1]
      %v1178 = vld [vmem:[%s953 + $0x38] sm:$0xe]
      %v1179 = vld [vmem:[%s953 + $0x3c] sm:$0x1]
      %v1196 = vrot.slane %v1164, 5
      %v1197 = vrot.slane %v1196, 4
      %v1198 = vrot.slane %v1165, 5
      %v1199 = vsel %vm579, %v1197, %v1198
      %v1200 = vrot.slane %v1166, 5
      %v1201 = vrot.slane %v1200, 4
      %v1202 = vrot.slane %v1167, 5
      %v1203 = vsel %vm579, %v1201, %v1202
      %v1204 = vrot.slane %v1168, 5
      %v1205 = vrot.slane %v1204, 4
      %v1206 = vrot.slane %v1169, 5
      %v1207 = vsel %vm579, %v1205, %v1206
      %v1208 = vrot.slane %v1170, 5
      %v1209 = vrot.slane %v1208, 4
      %v1210 = vrot.slane %v1171, 5
      %v1211 = vsel %vm579, %v1209, %v1210
      %v1212 = vrot.slane %v1172, 5
      %v1213 = vrot.slane %v1212, 4
      %v1214 = vrot.slane %v1173, 5
      %v1215 = vsel %vm579, %v1213, %v1214
      %v1216 = vrot.slane %v1174, 5
      %v1217 = vrot.slane %v1216, 4
      %v1218 = vrot.slane %v1175, 5
      %v1219 = vsel %vm579, %v1217, %v1218
      %v1220 = vrot.slane %v1176, 5
      %v1221 = vrot.slane %v1220, 4
      %v1222 = vrot.slane %v1177, 5
      %v1223 = vsel %vm579, %v1221, %v1222
      %v1224 = vrot.slane %v1178, 5
      %v1225 = vrot.slane %v1224, 4
      %v1226 = vrot.slane %v1179, 5
      %v1227 = vsel %vm579, %v1225, %v1226
      %1228 = vrot.lane.b32.xlu0 %v1199, 32
      %v1229 = vpop.permute.xlu0 %1228
      %1230 = vrot.lane.b32.xlu0 %v1203, 32
      %v1231 = vpop.permute.xlu0 %1230
      %1232 = vrot.lane.b32.xlu0 %v1207, 32
      %v1233 = vpop.permute.xlu0 %1232
      %1234 = vrot.lane.b32.xlu0 %v1211, 32
      %v1235 = vpop.permute.xlu0 %1234
      %1236 = vrot.lane.b32.xlu0 %v1215, 32
      %v1237 = vpop.permute.xlu0 %1236
      %1238 = vrot.lane.b32.xlu0 %v1219, 32
      %v1239 = vpop.permute.xlu0 %1238
      %1240 = vrot.lane.b32.xlu0 %v1223, 32
      %v1241 = vpop.permute.xlu0 %1240
      %1242 = vrot.lane.b32.xlu0 %v1227, 32
      %v1243 = vpop.permute.xlu0 %1242
      %vm1252 = vcmask 290048
      %1253 = vst.msk [vmem:[#allocation2] sm:$0xf] %vm1252, %v1229
      %1254 = vst.msk [vmem:[#allocation2 + $0x4] sm:$0xf] %vm1252, %v1231
      %1255 = vst.msk [vmem:[#allocation2 + $0x8] sm:$0xf] %vm1252, %v1233
      %1256 = vst.msk [vmem:[#allocation2 + $0xc] sm:$0xf] %vm1252, %v1235
      %1257 = vst.msk [vmem:[#allocation2 + $0x10] sm:$0xf] %vm1252, %v1237
      %1258 = vst.msk [vmem:[#allocation2 + $0x14] sm:$0xf] %vm1252, %v1239
      %1259 = vst.msk [vmem:[#allocation2 + $0x18] sm:$0xf] %vm1252, %v1241
      %1260 = vst.msk [vmem:[#allocation2 + $0x1c] sm:$0xf] %vm1252, %v1243
      %v1261 = vld [vmem:[%s319] sm:$0xf]
      %v1262 = vld [vmem:[%s319 + $0x8] sm:$0xf]
      %v1263 = vld [vmem:[%s319 + $0x10] sm:$0xf]
      %v1264 = vld [vmem:[%s319 + $0x18] sm:$0xf]
      %v1265 = vld [vmem:[%s319 + $0x20] sm:$0xf]
      %v1266 = vld [vmem:[%s319 + $0x28] sm:$0xf]
      %v1267 = vld [vmem:[%s319 + $0x30] sm:$0xf]
      %v1268 = vld [vmem:[%s319 + $0x38] sm:$0xf]
      %1277 = vrot.lane.b32.xlu0 %v1261, 36
      %v1278 = vpop.permute.xlu0 %1277
      %1279 = vrot.lane.b32.xlu0 %v1262, 36
      %v1280 = vpop.permute.xlu0 %1279
      %1281 = vrot.lane.b32.xlu0 %v1263, 36
      %v1282 = vpop.permute.xlu0 %1281
      %1283 = vrot.lane.b32.xlu0 %v1264, 36
      %v1284 = vpop.permute.xlu0 %1283
      %1285 = vrot.lane.b32.xlu0 %v1265, 36
      %v1286 = vpop.permute.xlu0 %1285
      %1287 = vrot.lane.b32.xlu0 %v1266, 36
      %v1288 = vpop.permute.xlu0 %1287
      %1289 = vrot.lane.b32.xlu0 %v1267, 36
      %v1290 = vpop.permute.xlu0 %1289
      %1291 = vrot.lane.b32.xlu0 %v1268, 36
      %v1292 = vpop.permute.xlu0 %1291
      %vm1301 = vcmask 322848
      %1302 = vst.msk [vmem:[#allocation2] sm:$0xf] %vm1301, %v1278
      %1303 = vst.msk [vmem:[#allocation2 + $0x4] sm:$0xf] %vm1301, %v1280
      %1304 = vst.msk [vmem:[#allocation2 + $0x8] sm:$0xf] %vm1301, %v1282
      %1305 = vst.msk [vmem:[#allocation2 + $0xc] sm:$0xf] %vm1301, %v1284
      %1306 = vst.msk [vmem:[#allocation2 + $0x10] sm:$0xf] %vm1301, %v1286
      %1307 = vst.msk [vmem:[#allocation2 + $0x14] sm:$0xf] %vm1301, %v1288
      %1308 = vst.msk [vmem:[#allocation2 + $0x18] sm:$0xf] %vm1301, %v1290
      %1309 = vst.msk [vmem:[#allocation2 + $0x1c] sm:$0xf] %vm1301, %v1292
      %v1310 = vld [vmem:[%s319] sm:$0xf]
      %v1311 = vld [vmem:[%s319 + $0x4] sm:$0x1]
      %v1312 = vld [vmem:[%s319 + $0x8] sm:$0xf]
      %v1313 = vld [vmem:[%s319 + $0xc] sm:$0x1]
      %v1314 = vld [vmem:[%s319 + $0x10] sm:$0xf]
      %v1315 = vld [vmem:[%s319 + $0x14] sm:$0x1]
      %v1316 = vld [vmem:[%s319 + $0x18] sm:$0xf]
      %v1317 = vld [vmem:[%s319 + $0x1c] sm:$0x1]
      %v1318 = vld [vmem:[%s319 + $0x20] sm:$0xf]
      %v1319 = vld [vmem:[%s319 + $0x24] sm:$0x1]
      %v1320 = vld [vmem:[%s319 + $0x28] sm:$0xf]
      %v1321 = vld [vmem:[%s319 + $0x2c] sm:$0x1]
      %v1322 = vld [vmem:[%s319 + $0x30] sm:$0xf]
      %v1323 = vld [vmem:[%s319 + $0x34] sm:$0x1]
      %v1324 = vld [vmem:[%s319 + $0x38] sm:$0xf]
      %v1325 = vld [vmem:[%s319 + $0x3c] sm:$0x1]
      %v1327 = vshrl.u32 %v1310, 16
      %v1329 = vrot.slane %v1327, 4
      %v1330 = vshll.u32 %v1310, 16
      %v1332 = vrot.slane %v1330, 5
      %v1333 = vor.u32 %v1329, %v1332
      %v1334 = vrot.slane %v1333, 4
      %v1336 = vshll.u32 %v1311, 16
      %v1338 = vrot.slane %v1336, 5
      %v1339 = vsel %vm399, %v1334, %v1338
      %v1341 = vshrl.u32 %v1312, 16
      %v1343 = vrot.slane %v1341, 4
      %v1344 = vshll.u32 %v1312, 16
      %v1346 = vrot.slane %v1344, 5
      %v1347 = vor.u32 %v1343, %v1346
      %v1348 = vrot.slane %v1347, 4
      %v1350 = vshll.u32 %v1313, 16
      %v1352 = vrot.slane %v1350, 5
      %v1353 = vsel %vm399, %v1348, %v1352
      %v1355 = vshrl.u32 %v1314, 16
      %v1357 = vrot.slane %v1355, 4
      %v1358 = vshll.u32 %v1314, 16
      %v1360 = vrot.slane %v1358, 5
      %v1361 = vor.u32 %v1357, %v1360
      %v1362 = vrot.slane %v1361, 4
      %v1364 = vshll.u32 %v1315, 16
      %v1366 = vrot.slane %v1364, 5
      %v1367 = vsel %vm399, %v1362, %v1366
      %v1369 = vshrl.u32 %v1316, 16
      %v1371 = vrot.slane %v1369, 4
      %v1372 = vshll.u32 %v1316, 16
      %v1374 = vrot.slane %v1372, 5
      %v1375 = vor.u32 %v1371, %v1374
      %v1376 = vrot.slane %v1375, 4
      %v1378 = vshll.u32 %v1317, 16
      %v1380 = vrot.slane %v1378, 5
      %v1381 = vsel %vm399, %v1376, %v1380
      %v1383 = vshrl.u32 %v1318, 16
      %v1385 = vrot.slane %v1383, 4
      %v1386 = vshll.u32 %v1318, 16
      %v1388 = vrot.slane %v1386, 5
      %v1389 = vor.u32 %v1385, %v1388
      %v1390 = vrot.slane %v1389, 4
      %v1392 = vshll.u32 %v1319, 16
      %v1394 = vrot.slane %v1392, 5
      %v1395 = vsel %vm399, %v1390, %v1394
      %v1397 = vshrl.u32 %v1320, 16
      %v1399 = vrot.slane %v1397, 4
      %v1400 = vshll.u32 %v1320, 16
      %v1402 = vrot.slane %v1400, 5
      %v1403 = vor.u32 %v1399, %v1402
      %v1404 = vrot.slane %v1403, 4
      %v1406 = vshll.u32 %v1321, 16
      %v1408 = vrot.slane %v1406, 5
      %v1409 = vsel %vm399, %v1404, %v1408
      %v1411 = vshrl.u32 %v1322, 16
      %v1413 = vrot.slane %v1411, 4
      %v1414 = vshll.u32 %v1322, 16
      %v1416 = vrot.slane %v1414, 5
      %v1417 = vor.u32 %v1413, %v1416
      %v1418 = vrot.slane %v1417, 4
      %v1420 = vshll.u32 %v1323, 16
      %v1422 = vrot.slane %v1420, 5
      %v1423 = vsel %vm399, %v1418, %v1422
      %v1425 = vshrl.u32 %v1324, 16
      %v1427 = vrot.slane %v1425, 4
      %v1428 = vshll.u32 %v1324, 16
      %v1430 = vrot.slane %v1428, 5
      %v1431 = vor.u32 %v1427, %v1430
      %v1432 = vrot.slane %v1431, 4
      %v1434 = vshll.u32 %v1325, 16
      %v1436 = vrot.slane %v1434, 5
      %v1437 = vsel %vm399, %v1432, %v1436
      %1438 = vrot.lane.b32.xlu0 %v1339, 40
      %v1439 = vpop.permute.xlu0 %1438
      %1440 = vrot.lane.b32.xlu0 %v1353, 40
      %v1441 = vpop.permute.xlu0 %1440
      %1442 = vrot.lane.b32.xlu0 %v1367, 40
      %v1443 = vpop.permute.xlu0 %1442
      %1444 = vrot.lane.b32.xlu0 %v1381, 40
      %v1445 = vpop.permute.xlu0 %1444
      %1446 = vrot.lane.b32.xlu0 %v1395, 40
      %v1447 = vpop.permute.xlu0 %1446
      %1448 = vrot.lane.b32.xlu0 %v1409, 40
      %v1449 = vpop.permute.xlu0 %1448
      %1450 = vrot.lane.b32.xlu0 %v1423, 40
      %v1451 = vpop.permute.xlu0 %1450
      %1452 = vrot.lane.b32.xlu0 %v1437, 40
      %v1453 = vpop.permute.xlu0 %1452
      %vm1462 = vcmask 355648
      %1463 = vst.msk [vmem:[#allocation2] sm:$0xf] %vm1462, %v1439
      %1464 = vst.msk [vmem:[#allocation2 + $0x4] sm:$0xf] %vm1462, %v1441
      %1465 = vst.msk [vmem:[#allocation2 + $0x8] sm:$0xf] %vm1462, %v1443
      %1466 = vst.msk [vmem:[#allocation2 + $0xc] sm:$0xf] %vm1462, %v1445
      %1467 = vst.msk [vmem:[#allocation2 + $0x10] sm:$0xf] %vm1462, %v1447
      %1468 = vst.msk [vmem:[#allocation2 + $0x14] sm:$0xf] %vm1462, %v1449
      %1469 = vst.msk [vmem:[#allocation2 + $0x18] sm:$0xf] %vm1462, %v1451
      %1470 = vst.msk [vmem:[#allocation2 + $0x1c] sm:$0xf] %vm1462, %v1453
      %v1471 = vld [vmem:[%s319] sm:$0xe]
      %v1472 = vld [vmem:[%s319 + $0x4] sm:$0x1]
      %v1473 = vld [vmem:[%s319 + $0x8] sm:$0xe]
      %v1474 = vld [vmem:[%s319 + $0xc] sm:$0x1]
      %v1475 = vld [vmem:[%s319 + $0x10] sm:$0xe]
      %v1476 = vld [vmem:[%s319 + $0x14] sm:$0x1]
      %v1477 = vld [vmem:[%s319 + $0x18] sm:$0xe]
      %v1478 = vld [vmem:[%s319 + $0x1c] sm:$0x1]
      %v1479 = vld [vmem:[%s319 + $0x20] sm:$0xe]
      %v1480 = vld [vmem:[%s319 + $0x24] sm:$0x1]
      %v1481 = vld [vmem:[%s319 + $0x28] sm:$0xe]
      %v1482 = vld [vmem:[%s319 + $0x2c] sm:$0x1]
      %v1483 = vld [vmem:[%s319 + $0x30] sm:$0xe]
      %v1484 = vld [vmem:[%s319 + $0x34] sm:$0x1]
      %v1485 = vld [vmem:[%s319 + $0x38] sm:$0xe]
      %v1486 = vld [vmem:[%s319 + $0x3c] sm:$0x1]
      %v1503 = vrot.slane %v1471, 5
      %v1504 = vrot.slane %v1503, 4
      %v1505 = vrot.slane %v1472, 5
      %v1506 = vsel %vm579, %v1504, %v1505
      %v1507 = vrot.slane %v1473, 5
      %v1508 = vrot.slane %v1507, 4
      %v1509 = vrot.slane %v1474, 5
      %v1510 = vsel %vm579, %v1508, %v1509
      %v1511 = vrot.slane %v1475, 5
      %v1512 = vrot.slane %v1511, 4
      %v1513 = vrot.slane %v1476, 5
      %v1514 = vsel %vm579, %v1512, %v1513
      %v1515 = vrot.slane %v1477, 5
      %v1516 = vrot.slane %v1515, 4
      %v1517 = vrot.slane %v1478, 5
      %v1518 = vsel %vm579, %v1516, %v1517
      %v1519 = vrot.slane %v1479, 5
      %v1520 = vrot.slane %v1519, 4
      %v1521 = vrot.slane %v1480, 5
      %v1522 = vsel %vm579, %v1520, %v1521
      %v1523 = vrot.slane %v1481, 5
      %v1524 = vrot.slane %v1523, 4
      %v1525 = vrot.slane %v1482, 5
      %v1526 = vsel %vm579, %v1524, %v1525
      %v1527 = vrot.slane %v1483, 5
      %v1528 = vrot.slane %v1527, 4
      %v1529 = vrot.slane %v1484, 5
      %v1530 = vsel %vm579, %v1528, %v1529
      %v1531 = vrot.slane %v1485, 5
      %v1532 = vrot.slane %v1531, 4
      %v1533 = vrot.slane %v1486, 5
      %v1534 = vsel %vm579, %v1532, %v1533
      %1535 = vrot.lane.b32.xlu0 %v1506, 44
      %v1536 = vpop.permute.xlu0 %1535
      %1537 = vrot.lane.b32.xlu0 %v1510, 44
      %v1538 = vpop.permute.xlu0 %1537
      %1539 = vrot.lane.b32.xlu0 %v1514, 44
      %v1540 = vpop.permute.xlu0 %1539
      %1541 = vrot.lane.b32.xlu0 %v1518, 44
      %v1542 = vpop.permute.xlu0 %1541
      %1543 = vrot.lane.b32.xlu0 %v1522, 44
      %v1544 = vpop.permute.xlu0 %1543
      %1545 = vrot.lane.b32.xlu0 %v1526, 44
      %v1546 = vpop.permute.xlu0 %1545
      %1547 = vrot.lane.b32.xlu0 %v1530, 44
      %v1548 = vpop.permute.xlu0 %1547
      %1549 = vrot.lane.b32.xlu0 %v1534, 44
      %v1550 = vpop.permute.xlu0 %1549
      %vm1559 = vcmask 388448
      %1560 = vst.msk [vmem:[#allocation2] sm:$0xf] %vm1559, %v1536
      %1561 = vst.msk [vmem:[#allocation2 + $0x4] sm:$0xf] %vm1559, %v1538
      %1562 = vst.msk [vmem:[#allocation2 + $0x8] sm:$0xf] %vm1559, %v1540
      %1563 = vst.msk [vmem:[#allocation2 + $0xc] sm:$0xf] %vm1559, %v1542
      %1564 = vst.msk [vmem:[#allocation2 + $0x10] sm:$0xf] %vm1559, %v1544
      %1565 = vst.msk [vmem:[#allocation2 + $0x14] sm:$0xf] %vm1559, %v1546
      %1566 = vst.msk [vmem:[#allocation2 + $0x18] sm:$0xf] %vm1559, %v1548
      %1567 = vst.msk [vmem:[#allocation2 + $0x1c] sm:$0xf] %vm1559, %v1550
      %s1568 = scalar_lea.vmem %s319, 8
      %v1569 = vld [vmem:[%s1568] sm:$0xf]
      %v1570 = vld [vmem:[%s1568 + $0x8] sm:$0xf]
      %v1571 = vld [vmem:[%s1568 + $0x10] sm:$0xf]
      %v1572 = vld [vmem:[%s1568 + $0x18] sm:$0xf]
      %v1573 = vld [vmem:[%s1568 + $0x20] sm:$0xf]
      %v1574 = vld [vmem:[%s1568 + $0x28] sm:$0xf]
      %v1575 = vld [vmem:[%s1568 + $0x30] sm:$0xf]
      %v1576 = vld [vmem:[%s1568 + $0x38] sm:$0xf]
      %1585 = vrot.lane.b32.xlu0 %v1569, 48
      %v1586 = vpop.permute.xlu0 %1585
      %1587 = vrot.lane.b32.xlu0 %v1570, 48
      %v1588 = vpop.permute.xlu0 %1587
      %1589 = vrot.lane.b32.xlu0 %v1571, 48
      %v1590 = vpop.permute.xlu0 %1589
      %1591 = vrot.lane.b32.xlu0 %v1572, 48
      %v1592 = vpop.permute.xlu0 %1591
      %1593 = vrot.lane.b32.xlu0 %v1573, 48
      %v1594 = vpop.permute.xlu0 %1593
      %1595 = vrot.lane.b32.xlu0 %v1574, 48
      %v1596 = vpop.permute.xlu0 %1595
      %1597 = vrot.lane.b32.xlu0 %v1575, 48
      %v1598 = vpop.permute.xlu0 %1597
      %1599 = vrot.lane.b32.xlu0 %v1576, 48
      %v1600 = vpop.permute.xlu0 %1599
      %vm1609 = vcmask 421248
      %1610 = vst.msk [vmem:[#allocation2] sm:$0xf] %vm1609, %v1586
      %1611 = vst.msk [vmem:[#allocation2 + $0x4] sm:$0xf] %vm1609, %v1588
      %1612 = vst.msk [vmem:[#allocation2 + $0x8] sm:$0xf] %vm1609, %v1590
      %1613 = vst.msk [vmem:[#allocation2 + $0xc] sm:$0xf] %vm1609, %v1592
      %1614 = vst.msk [vmem:[#allocation2 + $0x10] sm:$0xf] %vm1609, %v1594
      %1615 = vst.msk [vmem:[#allocation2 + $0x14] sm:$0xf] %vm1609, %v1596
      %1616 = vst.msk [vmem:[#allocation2 + $0x18] sm:$0xf] %vm1609, %v1598
      %1617 = vst.msk [vmem:[#allocation2 + $0x1c] sm:$0xf] %vm1609, %v1600
      %v1618 = vld [vmem:[%s1568] sm:$0xf]
      %v1619 = vld [vmem:[%s1568 + $0x4] sm:$0x1]
      %v1620 = vld [vmem:[%s1568 + $0x8] sm:$0xf]
      %v1621 = vld [vmem:[%s1568 + $0xc] sm:$0x1]
      %v1622 = vld [vmem:[%s1568 + $0x10] sm:$0xf]
      %v1623 = vld [vmem:[%s1568 + $0x14] sm:$0x1]
      %v1624 = vld [vmem:[%s1568 + $0x18] sm:$0xf]
      %v1625 = vld [vmem:[%s1568 + $0x1c] sm:$0x1]
      %v1626 = vld [vmem:[%s1568 + $0x20] sm:$0xf]
      %v1627 = vld [vmem:[%s1568 + $0x24] sm:$0x1]
      %v1628 = vld [vmem:[%s1568 + $0x28] sm:$0xf]
      %v1629 = vld [vmem:[%s1568 + $0x2c] sm:$0x1]
      %v1630 = vld [vmem:[%s1568 + $0x30] sm:$0xf]
      %v1631 = vld [vmem:[%s1568 + $0x34] sm:$0x1]
      %v1632 = vld [vmem:[%s1568 + $0x38] sm:$0xf]
      %v1633 = vld [vmem:[%s1568 + $0x3c] sm:$0x1]
      %v1635 = vshrl.u32 %v1618, 16
      %v1637 = vrot.slane %v1635, 4
      %v1638 = vshll.u32 %v1618, 16
      %v1640 = vrot.slane %v1638, 5
      %v1641 = vor.u32 %v1637, %v1640
      %v1642 = vrot.slane %v1641, 4
      %v1644 = vshll.u32 %v1619, 16
      %v1646 = vrot.slane %v1644, 5
      %v1647 = vsel %vm399, %v1642, %v1646
      %v1649 = vshrl.u32 %v1620, 16
      %v1651 = vrot.slane %v1649, 4
      %v1652 = vshll.u32 %v1620, 16
      %v1654 = vrot.slane %v1652, 5
      %v1655 = vor.u32 %v1651, %v1654
      %v1656 = vrot.slane %v1655, 4
      %v1658 = vshll.u32 %v1621, 16
      %v1660 = vrot.slane %v1658, 5
      %v1661 = vsel %vm399, %v1656, %v1660
      %v1663 = vshrl.u32 %v1622, 16
      %v1665 = vrot.slane %v1663, 4
      %v1666 = vshll.u32 %v1622, 16
      %v1668 = vrot.slane %v1666, 5
      %v1669 = vor.u32 %v1665, %v1668
      %v1670 = vrot.slane %v1669, 4
      %v1672 = vshll.u32 %v1623, 16
      %v1674 = vrot.slane %v1672, 5
      %v1675 = vsel %vm399, %v1670, %v1674
      %v1677 = vshrl.u32 %v1624, 16
      %v1679 = vrot.slane %v1677, 4
      %v1680 = vshll.u32 %v1624, 16
      %v1682 = vrot.slane %v1680, 5
      %v1683 = vor.u32 %v1679, %v1682
      %v1684 = vrot.slane %v1683, 4
      %v1686 = vshll.u32 %v1625, 16
      %v1688 = vrot.slane %v1686, 5
      %v1689 = vsel %vm399, %v1684, %v1688
      %v1691 = vshrl.u32 %v1626, 16
      %v1693 = vrot.slane %v1691, 4
      %v1694 = vshll.u32 %v1626, 16
      %v1696 = vrot.slane %v1694, 5
      %v1697 = vor.u32 %v1693, %v1696
      %v1698 = vrot.slane %v1697, 4
      %v1700 = vshll.u32 %v1627, 16
      %v1702 = vrot.slane %v1700, 5
      %v1703 = vsel %vm399, %v1698, %v1702
      %v1705 = vshrl.u32 %v1628, 16
      %v1707 = vrot.slane %v1705, 4
      %v1708 = vshll.u32 %v1628, 16
      %v1710 = vrot.slane %v1708, 5
      %v1711 = vor.u32 %v1707, %v1710
      %v1712 = vrot.slane %v1711, 4
      %v1714 = vshll.u32 %v1629, 16
      %v1716 = vrot.slane %v1714, 5
      %v1717 = vsel %vm399, %v1712, %v1716
      %v1719 = vshrl.u32 %v1630, 16
      %v1721 = vrot.slane %v1719, 4
      %v1722 = vshll.u32 %v1630, 16
      %v1724 = vrot.slane %v1722, 5
      %v1725 = vor.u32 %v1721, %v1724
      %v1726 = vrot.slane %v1725, 4
      %v1728 = vshll.u32 %v1631, 16
      %v1730 = vrot.slane %v1728, 5
      %v1731 = vsel %vm399, %v1726, %v1730
      %v1733 = vshrl.u32 %v1632, 16
      %v1735 = vrot.slane %v1733, 4
      %v1736 = vshll.u32 %v1632, 16
      %v1738 = vrot.slane %v1736, 5
      %v1739 = vor.u32 %v1735, %v1738
      %v1740 = vrot.slane %v1739, 4
      %v1742 = vshll.u32 %v1633, 16
      %v1744 = vrot.slane %v1742, 5
      %v1745 = vsel %vm399, %v1740, %v1744
      %1746 = vrot.lane.b32.xlu0 %v1647, 52
      %v1747 = vpop.permute.xlu0 %1746
      %1748 = vrot.lane.b32.xlu0 %v1661, 52
      %v1749 = vpop.permute.xlu0 %1748
      %1750 = vrot.lane.b32.xlu0 %v1675, 52
      %v1751 = vpop.permute.xlu0 %1750
      %1752 = vrot.lane.b32.xlu0 %v1689, 52
      %v1753 = vpop.permute.xlu0 %1752
      %1754 = vrot.lane.b32.xlu0 %v1703, 52
      %v1755 = vpop.permute.xlu0 %1754
      %1756 = vrot.lane.b32.xlu0 %v1717, 52
      %v1757 = vpop.permute.xlu0 %1756
      %1758 = vrot.lane.b32.xlu0 %v1731, 52
      %v1759 = vpop.permute.xlu0 %1758
      %1760 = vrot.lane.b32.xlu0 %v1745, 52
      %v1761 = vpop.permute.xlu0 %1760
      %vm1770 = vcmask 454048
      %1771 = vst.msk [vmem:[#allocation2] sm:$0xf] %vm1770, %v1747
      %1772 = vst.msk [vmem:[#allocation2 + $0x4] sm:$0xf] %vm1770, %v1749
      %1773 = vst.msk [vmem:[#allocation2 + $0x8] sm:$0xf] %vm1770, %v1751
      %1774 = vst.msk [vmem:[#allocation2 + $0xc] sm:$0xf] %vm1770, %v1753
      %1775 = vst.msk [vmem:[#allocation2 + $0x10] sm:$0xf] %vm1770, %v1755
      %1776 = vst.msk [vmem:[#allocation2 + $0x14] sm:$0xf] %vm1770, %v1757
      %1777 = vst.msk [vmem:[#allocation2 + $0x18] sm:$0xf] %vm1770, %v1759
      %1778 = vst.msk [vmem:[#allocation2 + $0x1c] sm:$0xf] %vm1770, %v1761
      %v1779 = vld [vmem:[%s1568] sm:$0xe]
      %v1780 = vld [vmem:[%s1568 + $0x4] sm:$0x1]
      %v1781 = vld [vmem:[%s1568 + $0x8] sm:$0xe]
      %v1782 = vld [vmem:[%s1568 + $0xc] sm:$0x1]
      %v1783 = vld [vmem:[%s1568 + $0x10] sm:$0xe]
      %v1784 = vld [vmem:[%s1568 + $0x14] sm:$0x1]
      %v1785 = vld [vmem:[%s1568 + $0x18] sm:$0xe]
      %v1786 = vld [vmem:[%s1568 + $0x1c] sm:$0x1]
      %v1787 = vld [vmem:[%s1568 + $0x20] sm:$0xe]
      %v1788 = vld [vmem:[%s1568 + $0x24] sm:$0x1]
      %v1789 = vld [vmem:[%s1568 + $0x28] sm:$0xe]
      %v1790 = vld [vmem:[%s1568 + $0x2c] sm:$0x1]
      %v1791 = vld [vmem:[%s1568 + $0x30] sm:$0xe]
      %v1792 = vld [vmem:[%s1568 + $0x34] sm:$0x1]
      %v1793 = vld [vmem:[%s1568 + $0x38] sm:$0xe]
      %v1794 = vld [vmem:[%s1568 + $0x3c] sm:$0x1]
      %v1811 = vrot.slane %v1779, 5
      %v1812 = vrot.slane %v1811, 4
      %v1813 = vrot.slane %v1780, 5
      %v1814 = vsel %vm579, %v1812, %v1813
      %v1815 = vrot.slane %v1781, 5
      %v1816 = vrot.slane %v1815, 4
      %v1817 = vrot.slane %v1782, 5
      %v1818 = vsel %vm579, %v1816, %v1817
      %v1819 = vrot.slane %v1783, 5
      %v1820 = vrot.slane %v1819, 4
      %v1821 = vrot.slane %v1784, 5
      %v1822 = vsel %vm579, %v1820, %v1821
      %v1823 = vrot.slane %v1785, 5
      %v1824 = vrot.slane %v1823, 4
      %v1825 = vrot.slane %v1786, 5
      %v1826 = vsel %vm579, %v1824, %v1825
      %v1827 = vrot.slane %v1787, 5
      %v1828 = vrot.slane %v1827, 4
      %v1829 = vrot.slane %v1788, 5
      %v1830 = vsel %vm579, %v1828, %v1829
      %v1831 = vrot.slane %v1789, 5
      %v1832 = vrot.slane %v1831, 4
      %v1833 = vrot.slane %v1790, 5
      %v1834 = vsel %vm579, %v1832, %v1833
      %v1835 = vrot.slane %v1791, 5
      %v1836 = vrot.slane %v1835, 4
      %v1837 = vrot.slane %v1792, 5
      %v1838 = vsel %vm579, %v1836, %v1837
      %v1839 = vrot.slane %v1793, 5
      %v1840 = vrot.slane %v1839, 4
      %v1841 = vrot.slane %v1794, 5
      %v1842 = vsel %vm579, %v1840, %v1841
      %1843 = vrot.lane.b32.xlu0 %v1814, 56
      %v1844 = vpop.permute.xlu0 %1843
      %1845 = vrot.lane.b32.xlu0 %v1818, 56
      %v1846 = vpop.permute.xlu0 %1845
      %1847 = vrot.lane.b32.xlu0 %v1822, 56
      %v1848 = vpop.permute.xlu0 %1847
      %1849 = vrot.lane.b32.xlu0 %v1826, 56
      %v1850 = vpop.permute.xlu0 %1849
      %1851 = vrot.lane.b32.xlu0 %v1830, 56
      %v1852 = vpop.permute.xlu0 %1851
      %1853 = vrot.lane.b32.xlu0 %v1834, 56
      %v1854 = vpop.permute.xlu0 %1853
      %1855 = vrot.lane.b32.xlu0 %v1838, 56
      %v1856 = vpop.permute.xlu0 %1855
      %1857 = vrot.lane.b32.xlu0 %v1842, 56
      %v1858 = vpop.permute.xlu0 %1857
      %vm1867 = vcmask 486848
      %1868 = vst.msk [vmem:[#allocation2] sm:$0xf] %vm1867, %v1844
      %1869 = vst.msk [vmem:[#allocation2 + $0x4] sm:$0xf] %vm1867, %v1846
      %1870 = vst.msk [vmem:[#allocation2 + $0x8] sm:$0xf] %vm1867, %v1848
      %1871 = vst.msk [vmem:[#allocation2 + $0xc] sm:$0xf] %vm1867, %v1850
      %1872 = vst.msk [vmem:[#allocation2 + $0x10] sm:$0xf] %vm1867, %v1852
      %1873 = vst.msk [vmem:[#allocation2 + $0x14] sm:$0xf] %vm1867, %v1854
      %1874 = vst.msk [vmem:[#allocation2 + $0x18] sm:$0xf] %vm1867, %v1856
      %1875 = vst.msk [vmem:[#allocation2 + $0x1c] sm:$0xf] %vm1867, %v1858
      %s1876 = scalar_lea.vmem %s319, 16
      %v1877 = vld [vmem:[%s1876] sm:$0xf]
      %v1878 = vld [vmem:[%s1876 + $0x8] sm:$0xf]
      %v1879 = vld [vmem:[%s1876 + $0x10] sm:$0xf]
      %v1880 = vld [vmem:[%s1876 + $0x18] sm:$0xf]
      %v1881 = vld [vmem:[%s1876 + $0x20] sm:$0xf]
      %v1882 = vld [vmem:[%s1876 + $0x28] sm:$0xf]
      %v1883 = vld [vmem:[%s1876 + $0x30] sm:$0xf]
      %v1884 = vld [vmem:[%s1876 + $0x38] sm:$0xf]
      %1893 = vrot.lane.b32.xlu0 %v1877, 60
      %v1894 = vpop.permute.xlu0 %1893
      %1895 = vrot.lane.b32.xlu0 %v1878, 60
      %v1896 = vpop.permute.xlu0 %1895
      %1897 = vrot.lane.b32.xlu0 %v1879, 60
      %v1898 = vpop.permute.xlu0 %1897
      %1899 = vrot.lane.b32.xlu0 %v1880, 60
      %v1900 = vpop.permute.xlu0 %1899
      %1901 = vrot.lane.b32.xlu0 %v1881, 60
      %v1902 = vpop.permute.xlu0 %1901
      %1903 = vrot.lane.b32.xlu0 %v1882, 60
      %v1904 = vpop.permute.xlu0 %1903
      %1905 = vrot.lane.b32.xlu0 %v1883, 60
      %v1906 = vpop.permute.xlu0 %1905
      %1907 = vrot.lane.b32.xlu0 %v1884, 60
      %v1908 = vpop.permute.xlu0 %1907
      %vm1917 = vcmask 519648
      %1918 = vst.msk [vmem:[#allocation2] sm:$0xf] %vm1917, %v1894
      %1919 = vst.msk [vmem:[#allocation2 + $0x4] sm:$0xf] %vm1917, %v1896
      %1920 = vst.msk [vmem:[#allocation2 + $0x8] sm:$0xf] %vm1917, %v1898
      %1921 = vst.msk [vmem:[#allocation2 + $0xc] sm:$0xf] %vm1917, %v1900
      %1922 = vst.msk [vmem:[#allocation2 + $0x10] sm:$0xf] %vm1917, %v1902
      %1923 = vst.msk [vmem:[#allocation2 + $0x14] sm:$0xf] %vm1917, %v1904
      %1924 = vst.msk [vmem:[#allocation2 + $0x18] sm:$0xf] %vm1917, %v1906
      %1925 = vst.msk [vmem:[#allocation2 + $0x1c] sm:$0xf] %vm1917, %v1908
      %v1926 = vld [vmem:[%s1876] sm:$0xf]
      %v1927 = vld [vmem:[%s1876 + $0x4] sm:$0x1]
      %v1928 = vld [vmem:[%s1876 + $0x8] sm:$0xf]
      %v1929 = vld [vmem:[%s1876 + $0xc] sm:$0x1]
      %v1930 = vld [vmem:[%s1876 + $0x10] sm:$0xf]
      %v1931 = vld [vmem:[%s1876 + $0x14] sm:$0x1]
      %v1932 = vld [vmem:[%s1876 + $0x18] sm:$0xf]
      %v1933 = vld [vmem:[%s1876 + $0x1c] sm:$0x1]
      %v1934 = vld [vmem:[%s1876 + $0x20] sm:$0xf]
      %v1935 = vld [vmem:[%s1876 + $0x24] sm:$0x1]
      %v1936 = vld [vmem:[%s1876 + $0x28] sm:$0xf]
      %v1937 = vld [vmem:[%s1876 + $0x2c] sm:$0x1]
      %v1938 = vld [vmem:[%s1876 + $0x30] sm:$0xf]
      %v1939 = vld [vmem:[%s1876 + $0x34] sm:$0x1]
      %v1940 = vld [vmem:[%s1876 + $0x38] sm:$0xf]
      %v1941 = vld [vmem:[%s1876 + $0x3c] sm:$0x1]
      %v1943 = vshrl.u32 %v1926, 16
      %v1945 = vrot.slane %v1943, 4
      %v1946 = vshll.u32 %v1926, 16
      %v1948 = vrot.slane %v1946, 5
      %v1949 = vor.u32 %v1945, %v1948
      %v1950 = vrot.slane %v1949, 4
      %v1952 = vshll.u32 %v1927, 16
      %v1954 = vrot.slane %v1952, 5
      %v1955 = vsel %vm399, %v1950, %v1954
      %v1957 = vshrl.u32 %v1928, 16
      %v1959 = vrot.slane %v1957, 4
      %v1960 = vshll.u32 %v1928, 16
      %v1962 = vrot.slane %v1960, 5
      %v1963 = vor.u32 %v1959, %v1962
      %v1964 = vrot.slane %v1963, 4
      %v1966 = vshll.u32 %v1929, 16
      %v1968 = vrot.slane %v1966, 5
      %v1969 = vsel %vm399, %v1964, %v1968
      %v1971 = vshrl.u32 %v1930, 16
      %v1973 = vrot.slane %v1971, 4
      %v1974 = vshll.u32 %v1930, 16
      %v1976 = vrot.slane %v1974, 5
      %v1977 = vor.u32 %v1973, %v1976
      %v1978 = vrot.slane %v1977, 4
      %v1980 = vshll.u32 %v1931, 16
      %v1982 = vrot.slane %v1980, 5
      %v1983 = vsel %vm399, %v1978, %v1982
      %v1985 = vshrl.u32 %v1932, 16
      %v1987 = vrot.slane %v1985, 4
      %v1988 = vshll.u32 %v1932, 16
      %v1990 = vrot.slane %v1988, 5
      %v1991 = vor.u32 %v1987, %v1990
      %v1992 = vrot.slane %v1991, 4
      %v1994 = vshll.u32 %v1933, 16
      %v1996 = vrot.slane %v1994, 5
      %v1997 = vsel %vm399, %v1992, %v1996
      %v1999 = vshrl.u32 %v1934, 16
      %v2001 = vrot.slane %v1999, 4
      %v2002 = vshll.u32 %v1934, 16
      %v2004 = vrot.slane %v2002, 5
      %v2005 = vor.u32 %v2001, %v2004
      %v2006 = vrot.slane %v2005, 4
      %v2008 = vshll.u32 %v1935, 16
      %v2010 = vrot.slane %v2008, 5
      %v2011 = vsel %vm399, %v2006, %v2010
      %v2013 = vshrl.u32 %v1936, 16
      %v2015 = vrot.slane %v2013, 4
      %v2016 = vshll.u32 %v1936, 16
      %v2018 = vrot.slane %v2016, 5
      %v2019 = vor.u32 %v2015, %v2018
      %v2020 = vrot.slane %v2019, 4
      %v2022 = vshll.u32 %v1937, 16
      %v2024 = vrot.slane %v2022, 5
      %v2025 = vsel %vm399, %v2020, %v2024
      %v2027 = vshrl.u32 %v1938, 16
      %v2029 = vrot.slane %v2027, 4
      %v2030 = vshll.u32 %v1938, 16
      %v2032 = vrot.slane %v2030, 5
      %v2033 = vor.u32 %v2029, %v2032
      %v2034 = vrot.slane %v2033, 4
      %v2036 = vshll.u32 %v1939, 16
      %v2038 = vrot.slane %v2036, 5
      %v2039 = vsel %vm399, %v2034, %v2038
      %v2041 = vshrl.u32 %v1940, 16
      %v2043 = vrot.slane %v2041, 4
      %v2044 = vshll.u32 %v1940, 16
      %v2046 = vrot.slane %v2044, 5
      %v2047 = vor.u32 %v2043, %v2046
      %v2048 = vrot.slane %v2047, 4
      %v2050 = vshll.u32 %v1941, 16
      %v2052 = vrot.slane %v2050, 5
      %v2053 = vsel %vm399, %v2048, %v2052
      %2054 = vrot.lane.b32.xlu0 %v1955, 64
      %v2055 = vpop.permute.xlu0 %2054
      %2056 = vrot.lane.b32.xlu0 %v1969, 64
      %v2057 = vpop.permute.xlu0 %2056
      %2058 = vrot.lane.b32.xlu0 %v1983, 64
      %v2059 = vpop.permute.xlu0 %2058
      %2060 = vrot.lane.b32.xlu0 %v1997, 64
      %v2061 = vpop.permute.xlu0 %2060
      %2062 = vrot.lane.b32.xlu0 %v2011, 64
      %v2063 = vpop.permute.xlu0 %2062
      %2064 = vrot.lane.b32.xlu0 %v2025, 64
      %v2065 = vpop.permute.xlu0 %2064
      %2066 = vrot.lane.b32.xlu0 %v2039, 64
      %v2067 = vpop.permute.xlu0 %2066
      %2068 = vrot.lane.b32.xlu0 %v2053, 64
      %v2069 = vpop.permute.xlu0 %2068
      %vm2078 = vcmask 552448
      %2079 = vst.msk [vmem:[#allocation2] sm:$0xf] %vm2078, %v2055
      %2080 = vst.msk [vmem:[#allocation2 + $0x4] sm:$0xf] %vm2078, %v2057
      %2081 = vst.msk [vmem:[#allocation2 + $0x8] sm:$0xf] %vm2078, %v2059
      %2082 = vst.msk [vmem:[#allocation2 + $0xc] sm:$0xf] %vm2078, %v2061
      %2083 = vst.msk [vmem:[#allocation2 + $0x10] sm:$0xf] %vm2078, %v2063
      %2084 = vst.msk [vmem:[#allocation2 + $0x14] sm:$0xf] %vm2078, %v2065
      %2085 = vst.msk [vmem:[#allocation2 + $0x18] sm:$0xf] %vm2078, %v2067
      %2086 = vst.msk [vmem:[#allocation2 + $0x1c] sm:$0xf] %vm2078, %v2069
      %v2087 = vld [vmem:[%s1876] sm:$0xe]
      %v2088 = vld [vmem:[%s1876 + $0x4] sm:$0x1]
      %v2089 = vld [vmem:[%s1876 + $0x8] sm:$0xe]
      %v2090 = vld [vmem:[%s1876 + $0xc] sm:$0x1]
      %v2091 = vld [vmem:[%s1876 + $0x10] sm:$0xe]
      %v2092 = vld [vmem:[%s1876 + $0x14] sm:$0x1]
      %v2093 = vld [vmem:[%s1876 + $0x18] sm:$0xe]
      %v2094 = vld [vmem:[%s1876 + $0x1c] sm:$0x1]
      %v2095 = vld [vmem:[%s1876 + $0x20] sm:$0xe]
      %v2096 = vld [vmem:[%s1876 + $0x24] sm:$0x1]
      %v2097 = vld [vmem:[%s1876 + $0x28] sm:$0xe]
      %v2098 = vld [vmem:[%s1876 + $0x2c] sm:$0x1]
      %v2099 = vld [vmem:[%s1876 + $0x30] sm:$0xe]
      %v2100 = vld [vmem:[%s1876 + $0x34] sm:$0x1]
      %v2101 = vld [vmem:[%s1876 + $0x38] sm:$0xe]
      %v2102 = vld [vmem:[%s1876 + $0x3c] sm:$0x1]
      %v2119 = vrot.slane %v2087, 5
      %v2120 = vrot.slane %v2119, 4
      %v2121 = vrot.slane %v2088, 5
      %v2122 = vsel %vm579, %v2120, %v2121
      %v2123 = vrot.slane %v2089, 5
      %v2124 = vrot.slane %v2123, 4
      %v2125 = vrot.slane %v2090, 5
      %v2126 = vsel %vm579, %v2124, %v2125
      %v2127 = vrot.slane %v2091, 5
      %v2128 = vrot.slane %v2127, 4
      %v2129 = vrot.slane %v2092, 5
      %v2130 = vsel %vm579, %v2128, %v2129
      %v2131 = vrot.slane %v2093, 5
      %v2132 = vrot.slane %v2131, 4
      %v2133 = vrot.slane %v2094, 5
      %v2134 = vsel %vm579, %v2132, %v2133
      %v2135 = vrot.slane %v2095, 5
      %v2136 = vrot.slane %v2135, 4
      %v2137 = vrot.slane %v2096, 5
      %v2138 = vsel %vm579, %v2136, %v2137
      %v2139 = vrot.slane %v2097, 5
      %v2140 = vrot.slane %v2139, 4
      %v2141 = vrot.slane %v2098, 5
      %v2142 = vsel %vm579, %v2140, %v2141
      %v2143 = vrot.slane %v2099, 5
      %v2144 = vrot.slane %v2143, 4
      %v2145 = vrot.slane %v2100, 5
      %v2146 = vsel %vm579, %v2144, %v2145
      %v2147 = vrot.slane %v2101, 5
      %v2148 = vrot.slane %v2147, 4
      %v2149 = vrot.slane %v2102, 5
      %v2150 = vsel %vm579, %v2148, %v2149
      %2151 = vrot.lane.b32.xlu0 %v2122, 68
      %v2152 = vpop.permute.xlu0 %2151
      %2153 = vrot.lane.b32.xlu0 %v2126, 68
      %v2154 = vpop.permute.xlu0 %2153
      %2155 = vrot.lane.b32.xlu0 %v2130, 68
      %v2156 = vpop.permute.xlu0 %2155
      %2157 = vrot.lane.b32.xlu0 %v2134, 68
      %v2158 = vpop.permute.xlu0 %2157
      %2159 = vrot.lane.b32.xlu0 %v2138, 68
      %v2160 = vpop.permute.xlu0 %2159
      %2161 = vrot.lane.b32.xlu0 %v2142, 68
      %v2162 = vpop.permute.xlu0 %2161
      %2163 = vrot.lane.b32.xlu0 %v2146, 68
      %v2164 = vpop.permute.xlu0 %2163
      %2165 = vrot.lane.b32.xlu0 %v2150, 68
      %v2166 = vpop.permute.xlu0 %2165
      %vm2175 = vcmask 585248
      %2176 = vst.msk [vmem:[#allocation2] sm:$0xf] %vm2175, %v2152
      %2177 = vst.msk [vmem:[#allocation2 + $0x4] sm:$0xf] %vm2175, %v2154
      %2178 = vst.msk [vmem:[#allocation2 + $0x8] sm:$0xf] %vm2175, %v2156
      %2179 = vst.msk [vmem:[#allocation2 + $0xc] sm:$0xf] %vm2175, %v2158
      %2180 = vst.msk [vmem:[#allocation2 + $0x10] sm:$0xf] %vm2175, %v2160
      %2181 = vst.msk [vmem:[#allocation2 + $0x14] sm:$0xf] %vm2175, %v2162
      %2182 = vst.msk [vmem:[#allocation2 + $0x18] sm:$0xf] %vm2175, %v2164
      %2183 = vst.msk [vmem:[#allocation2 + $0x1c] sm:$0xf] %vm2175, %v2166
      %v2184 = vld [vmem:[%s330] sm:$0xf]
      %v2185 = vld [vmem:[%s330 + $0x8] sm:$0xf]
      %v2186 = vld [vmem:[%s330 + $0x10] sm:$0xf]
      %v2187 = vld [vmem:[%s330 + $0x18] sm:$0xf]
      %v2188 = vld [vmem:[%s330 + $0x20] sm:$0xf]
      %v2189 = vld [vmem:[%s330 + $0x28] sm:$0xf]
      %v2190 = vld [vmem:[%s330 + $0x30] sm:$0xf]
      %v2191 = vld [vmem:[%s330 + $0x38] sm:$0xf]
      %2200 = vrot.lane.b32.xlu0 %v2184, 72
      %v2201 = vpop.permute.xlu0 %2200
      %2202 = vrot.lane.b32.xlu0 %v2185, 72
      %v2203 = vpop.permute.xlu0 %2202
      %2204 = vrot.lane.b32.xlu0 %v2186, 72
      %v2205 = vpop.permute.xlu0 %2204
      %2206 = vrot.lane.b32.xlu0 %v2187, 72
      %v2207 = vpop.permute.xlu0 %2206
      %2208 = vrot.lane.b32.xlu0 %v2188, 72
      %v2209 = vpop.permute.xlu0 %2208
      %2210 = vrot.lane.b32.xlu0 %v2189, 72
      %v2211 = vpop.permute.xlu0 %2210
      %2212 = vrot.lane.b32.xlu0 %v2190, 72
      %v2213 = vpop.permute.xlu0 %2212
      %2214 = vrot.lane.b32.xlu0 %v2191, 72
      %v2215 = vpop.permute.xlu0 %2214
      %vm2224 = vcmask 618048
      %2225 = vst.msk [vmem:[#allocation2] sm:$0xf] %vm2224, %v2201
      %2226 = vst.msk [vmem:[#allocation2 + $0x4] sm:$0xf] %vm2224, %v2203
      %2227 = vst.msk [vmem:[#allocation2 + $0x8] sm:$0xf] %vm2224, %v2205
      %2228 = vst.msk [vmem:[#allocation2 + $0xc] sm:$0xf] %vm2224, %v2207
      %2229 = vst.msk [vmem:[#allocation2 + $0x10] sm:$0xf] %vm2224, %v2209
      %2230 = vst.msk [vmem:[#allocation2 + $0x14] sm:$0xf] %vm2224, %v2211
      %2231 = vst.msk [vmem:[#allocation2 + $0x18] sm:$0xf] %vm2224, %v2213
      %2232 = vst.msk [vmem:[#allocation2 + $0x1c] sm:$0xf] %vm2224, %v2215
      %v2233 = vld [vmem:[%s330] sm:$0xf]
      %v2234 = vld [vmem:[%s330 + $0x4] sm:$0x1]
      %v2235 = vld [vmem:[%s330 + $0x8] sm:$0xf]
      %v2236 = vld [vmem:[%s330 + $0xc] sm:$0x1]
      %v2237 = vld [vmem:[%s330 + $0x10] sm:$0xf]
      %v2238 = vld [vmem:[%s330 + $0x14] sm:$0x1]
      %v2239 = vld [vmem:[%s330 + $0x18] sm:$0xf]
      %v2240 = vld [vmem:[%s330 + $0x1c] sm:$0x1]
      %v2241 = vld [vmem:[%s330 + $0x20] sm:$0xf]
      %v2242 = vld [vmem:[%s330 + $0x24] sm:$0x1]
      %v2243 = vld [vmem:[%s330 + $0x28] sm:$0xf]
      %v2244 = vld [vmem:[%s330 + $0x2c] sm:$0x1]
      %v2245 = vld [vmem:[%s330 + $0x30] sm:$0xf]
      %v2246 = vld [vmem:[%s330 + $0x34] sm:$0x1]
      %v2247 = vld [vmem:[%s330 + $0x38] sm:$0xf]
      %v2248 = vld [vmem:[%s330 + $0x3c] sm:$0x1]
      %v2250 = vshrl.u32 %v2233, 16
      %v2252 = vrot.slane %v2250, 4
      %v2253 = vshll.u32 %v2233, 16
      %v2255 = vrot.slane %v2253, 5
      %v2256 = vor.u32 %v2252, %v2255
      %v2257 = vrot.slane %v2256, 4
      %v2259 = vshll.u32 %v2234, 16
      %v2261 = vrot.slane %v2259, 5
      %v2262 = vsel %vm399, %v2257, %v2261
      %v2264 = vshrl.u32 %v2235, 16
      %v2266 = vrot.slane %v2264, 4
      %v2267 = vshll.u32 %v2235, 16
      %v2269 = vrot.slane %v2267, 5
      %v2270 = vor.u32 %v2266, %v2269
      %v2271 = vrot.slane %v2270, 4
      %v2273 = vshll.u32 %v2236, 16
      %v2275 = vrot.slane %v2273, 5
      %v2276 = vsel %vm399, %v2271, %v2275
      %v2278 = vshrl.u32 %v2237, 16
      %v2280 = vrot.slane %v2278, 4
      %v2281 = vshll.u32 %v2237, 16
      %v2283 = vrot.slane %v2281, 5
      %v2284 = vor.u32 %v2280, %v2283
      %v2285 = vrot.slane %v2284, 4
      %v2287 = vshll.u32 %v2238, 16
      %v2289 = vrot.slane %v2287, 5
      %v2290 = vsel %vm399, %v2285, %v2289
      %v2292 = vshrl.u32 %v2239, 16
      %v2294 = vrot.slane %v2292, 4
      %v2295 = vshll.u32 %v2239, 16
      %v2297 = vrot.slane %v2295, 5
      %v2298 = vor.u32 %v2294, %v2297
      %v2299 = vrot.slane %v2298, 4
      %v2301 = vshll.u32 %v2240, 16
      %v2303 = vrot.slane %v2301, 5
      %v2304 = vsel %vm399, %v2299, %v2303
      %v2306 = vshrl.u32 %v2241, 16
      %v2308 = vrot.slane %v2306, 4
      %v2309 = vshll.u32 %v2241, 16
      %v2311 = vrot.slane %v2309, 5
      %v2312 = vor.u32 %v2308, %v2311
      %v2313 = vrot.slane %v2312, 4
      %v2315 = vshll.u32 %v2242, 16
      %v2317 = vrot.slane %v2315, 5
      %v2318 = vsel %vm399, %v2313, %v2317
      %v2320 = vshrl.u32 %v2243, 16
      %v2322 = vrot.slane %v2320, 4
      %v2323 = vshll.u32 %v2243, 16
      %v2325 = vrot.slane %v2323, 5
      %v2326 = vor.u32 %v2322, %v2325
      %v2327 = vrot.slane %v2326, 4
      %v2329 = vshll.u32 %v2244, 16
      %v2331 = vrot.slane %v2329, 5
      %v2332 = vsel %vm399, %v2327, %v2331
      %v2334 = vshrl.u32 %v2245, 16
      %v2336 = vrot.slane %v2334, 4
      %v2337 = vshll.u32 %v2245, 16
      %v2339 = vrot.slane %v2337, 5
      %v2340 = vor.u32 %v2336, %v2339
      %v2341 = vrot.slane %v2340, 4
      %v2343 = vshll.u32 %v2246, 16
      %v2345 = vrot.slane %v2343, 5
      %v2346 = vsel %vm399, %v2341, %v2345
      %v2348 = vshrl.u32 %v2247, 16
      %v2350 = vrot.slane %v2348, 4
      %v2351 = vshll.u32 %v2247, 16
      %v2353 = vrot.slane %v2351, 5
      %v2354 = vor.u32 %v2350, %v2353
      %v2355 = vrot.slane %v2354, 4
      %v2357 = vshll.u32 %v2248, 16
      %v2359 = vrot.slane %v2357, 5
      %v2360 = vsel %vm399, %v2355, %v2359
      %2361 = vrot.lane.b32.xlu0 %v2262, 76
      %v2362 = vpop.permute.xlu0 %2361
      %2363 = vrot.lane.b32.xlu0 %v2276, 76
      %v2364 = vpop.permute.xlu0 %2363
      %2365 = vrot.lane.b32.xlu0 %v2290, 76
      %v2366 = vpop.permute.xlu0 %2365
      %2367 = vrot.lane.b32.xlu0 %v2304, 76
      %v2368 = vpop.permute.xlu0 %2367
      %2369 = vrot.lane.b32.xlu0 %v2318, 76
      %v2370 = vpop.permute.xlu0 %2369
      %2371 = vrot.lane.b32.xlu0 %v2332, 76
      %v2372 = vpop.permute.xlu0 %2371
      %2373 = vrot.lane.b32.xlu0 %v2346, 76
      %v2374 = vpop.permute.xlu0 %2373
      %2375 = vrot.lane.b32.xlu0 %v2360, 76
      %v2376 = vpop.permute.xlu0 %2375
      %vm2385 = vcmask 650848
      %2386 = vst.msk [vmem:[#allocation2] sm:$0xf] %vm2385, %v2362
      %2387 = vst.msk [vmem:[#allocation2 + $0x4] sm:$0xf] %vm2385, %v2364
      %2388 = vst.msk [vmem:[#allocation2 + $0x8] sm:$0xf] %vm2385, %v2366
      %2389 = vst.msk [vmem:[#allocation2 + $0xc] sm:$0xf] %vm2385, %v2368
      %2390 = vst.msk [vmem:[#allocation2 + $0x10] sm:$0xf] %vm2385, %v2370
      %2391 = vst.msk [vmem:[#allocation2 + $0x14] sm:$0xf] %vm2385, %v2372
      %2392 = vst.msk [vmem:[#allocation2 + $0x18] sm:$0xf] %vm2385, %v2374
      %2393 = vst.msk [vmem:[#allocation2 + $0x1c] sm:$0xf] %vm2385, %v2376
      %v2394 = vld [vmem:[%s330] sm:$0xe]
      %v2395 = vld [vmem:[%s330 + $0x4] sm:$0x1]
      %v2396 = vld [vmem:[%s330 + $0x8] sm:$0xe]
      %v2397 = vld [vmem:[%s330 + $0xc] sm:$0x1]
      %v2398 = vld [vmem:[%s330 + $0x10] sm:$0xe]
      %v2399 = vld [vmem:[%s330 + $0x14] sm:$0x1]
      %v2400 = vld [vmem:[%s330 + $0x18] sm:$0xe]
      %v2401 = vld [vmem:[%s330 + $0x1c] sm:$0x1]
      %v2402 = vld [vmem:[%s330 + $0x20] sm:$0xe]
      %v2403 = vld [vmem:[%s330 + $0x24] sm:$0x1]
      %v2404 = vld [vmem:[%s330 + $0x28] sm:$0xe]
      %v2405 = vld [vmem:[%s330 + $0x2c] sm:$0x1]
      %v2406 = vld [vmem:[%s330 + $0x30] sm:$0xe]
      %v2407 = vld [vmem:[%s330 + $0x34] sm:$0x1]
      %v2408 = vld [vmem:[%s330 + $0x38] sm:$0xe]
      %v2409 = vld [vmem:[%s330 + $0x3c] sm:$0x1]
      %v2426 = vrot.slane %v2394, 5
      %v2427 = vrot.slane %v2426, 4
      %v2428 = vrot.slane %v2395, 5
      %v2429 = vsel %vm579, %v2427, %v2428
      %v2430 = vrot.slane %v2396, 5
      %v2431 = vrot.slane %v2430, 4
      %v2432 = vrot.slane %v2397, 5
      %v2433 = vsel %vm579, %v2431, %v2432
      %v2434 = vrot.slane %v2398, 5
      %v2435 = vrot.slane %v2434, 4
      %v2436 = vrot.slane %v2399, 5
      %v2437 = vsel %vm579, %v2435, %v2436
      %v2438 = vrot.slane %v2400, 5
      %v2439 = vrot.slane %v2438, 4
      %v2440 = vrot.slane %v2401, 5
      %v2441 = vsel %vm579, %v2439, %v2440
      %v2442 = vrot.slane %v2402, 5
      %v2443 = vrot.slane %v2442, 4
      %v2444 = vrot.slane %v2403, 5
      %v2445 = vsel %vm579, %v2443, %v2444
      %v2446 = vrot.slane %v2404, 5
      %v2447 = vrot.slane %v2446, 4
      %v2448 = vrot.slane %v2405, 5
      %v2449 = vsel %vm579, %v2447, %v2448
      %v2450 = vrot.slane %v2406, 5
      %v2451 = vrot.slane %v2450, 4
      %v2452 = vrot.slane %v2407, 5
      %v2453 = vsel %vm579, %v2451, %v2452
      %v2454 = vrot.slane %v2408, 5
      %v2455 = vrot.slane %v2454, 4
      %v2456 = vrot.slane %v2409, 5
      %v2457 = vsel %vm579, %v2455, %v2456
      %2458 = vrot.lane.b32.xlu0 %v2429, 80
      %v2459 = vpop.permute.xlu0 %2458
      %2460 = vrot.lane.b32.xlu0 %v2433, 80
      %v2461 = vpop.permute.xlu0 %2460
      %2462 = vrot.lane.b32.xlu0 %v2437, 80
      %v2463 = vpop.permute.xlu0 %2462
      %2464 = vrot.lane.b32.xlu0 %v2441, 80
      %v2465 = vpop.permute.xlu0 %2464
      %2466 = vrot.lane.b32.xlu0 %v2445, 80
      %v2467 = vpop.permute.xlu0 %2466
      %2468 = vrot.lane.b32.xlu0 %v2449, 80
      %v2469 = vpop.permute.xlu0 %2468
      %2470 = vrot.lane.b32.xlu0 %v2453, 80
      %v2471 = vpop.permute.xlu0 %2470
      %2472 = vrot.lane.b32.xlu0 %v2457, 80
      %v2473 = vpop.permute.xlu0 %2472
      %vm2482 = vcmask 683648
      %2483 = vst.msk [vmem:[#allocation2] sm:$0xf] %vm2482, %v2459
      %2484 = vst.msk [vmem:[#allocation2 + $0x4] sm:$0xf] %vm2482, %v2461
      %2485 = vst.msk [vmem:[#allocation2 + $0x8] sm:$0xf] %vm2482, %v2463
      %2486 = vst.msk [vmem:[#allocation2 + $0xc] sm:$0xf] %vm2482, %v2465
      %2487 = vst.msk [vmem:[#allocation2 + $0x10] sm:$0xf] %vm2482, %v2467
      %2488 = vst.msk [vmem:[#allocation2 + $0x14] sm:$0xf] %vm2482, %v2469
      %2489 = vst.msk [vmem:[#allocation2 + $0x18] sm:$0xf] %vm2482, %v2471
      %2490 = vst.msk [vmem:[#allocation2 + $0x1c] sm:$0xf] %vm2482, %v2473
      %s2491 = scalar_lea.vmem %s330, 8
      %v2492 = vld [vmem:[%s2491] sm:$0xf]
      %v2493 = vld [vmem:[%s2491 + $0x8] sm:$0xf]
      %v2494 = vld [vmem:[%s2491 + $0x10] sm:$0xf]
      %v2495 = vld [vmem:[%s2491 + $0x18] sm:$0xf]
      %v2496 = vld [vmem:[%s2491 + $0x20] sm:$0xf]
      %v2497 = vld [vmem:[%s2491 + $0x28] sm:$0xf]
      %v2498 = vld [vmem:[%s2491 + $0x30] sm:$0xf]
      %v2499 = vld [vmem:[%s2491 + $0x38] sm:$0xf]
      %2508 = vrot.lane.b32.xlu0 %v2492, 84
      %v2509 = vpop.permute.xlu0 %2508
      %2510 = vrot.lane.b32.xlu0 %v2493, 84
      %v2511 = vpop.permute.xlu0 %2510
      %2512 = vrot.lane.b32.xlu0 %v2494, 84
      %v2513 = vpop.permute.xlu0 %2512
      %2514 = vrot.lane.b32.xlu0 %v2495, 84
      %v2515 = vpop.permute.xlu0 %2514
      %2516 = vrot.lane.b32.xlu0 %v2496, 84
      %v2517 = vpop.permute.xlu0 %2516
      %2518 = vrot.lane.b32.xlu0 %v2497, 84
      %v2519 = vpop.permute.xlu0 %2518
      %2520 = vrot.lane.b32.xlu0 %v2498, 84
      %v2521 = vpop.permute.xlu0 %2520
      %2522 = vrot.lane.b32.xlu0 %v2499, 84
      %v2523 = vpop.permute.xlu0 %2522
      %vm2532 = vcmask 716448
      %2533 = vst.msk [vmem:[#allocation2] sm:$0xf] %vm2532, %v2509
      %2534 = vst.msk [vmem:[#allocation2 + $0x4] sm:$0xf] %vm2532, %v2511
      %2535 = vst.msk [vmem:[#allocation2 + $0x8] sm:$0xf] %vm2532, %v2513
      %2536 = vst.msk [vmem:[#allocation2 + $0xc] sm:$0xf] %vm2532, %v2515
      %2537 = vst.msk [vmem:[#allocation2 + $0x10] sm:$0xf] %vm2532, %v2517
      %2538 = vst.msk [vmem:[#allocation2 + $0x14] sm:$0xf] %vm2532, %v2519
      %2539 = vst.msk [vmem:[#allocation2 + $0x18] sm:$0xf] %vm2532, %v2521
      %2540 = vst.msk [vmem:[#allocation2 + $0x1c] sm:$0xf] %vm2532, %v2523
      %v2541 = vld [vmem:[%s2491] sm:$0xf]
      %v2542 = vld [vmem:[%s2491 + $0x4] sm:$0x1]
      %v2543 = vld [vmem:[%s2491 + $0x8] sm:$0xf]
      %v2544 = vld [vmem:[%s2491 + $0xc] sm:$0x1]
      %v2545 = vld [vmem:[%s2491 + $0x10] sm:$0xf]
      %v2546 = vld [vmem:[%s2491 + $0x14] sm:$0x1]
      %v2547 = vld [vmem:[%s2491 + $0x18] sm:$0xf]
      %v2548 = vld [vmem:[%s2491 + $0x1c] sm:$0x1]
      %v2549 = vld [vmem:[%s2491 + $0x20] sm:$0xf]
      %v2550 = vld [vmem:[%s2491 + $0x24] sm:$0x1]
      %v2551 = vld [vmem:[%s2491 + $0x28] sm:$0xf]
      %v2552 = vld [vmem:[%s2491 + $0x2c] sm:$0x1]
      %v2553 = vld [vmem:[%s2491 + $0x30] sm:$0xf]
      %v2554 = vld [vmem:[%s2491 + $0x34] sm:$0x1]
      %v2555 = vld [vmem:[%s2491 + $0x38] sm:$0xf]
      %v2556 = vld [vmem:[%s2491 + $0x3c] sm:$0x1]
      %v2558 = vshrl.u32 %v2541, 16
      %v2560 = vrot.slane %v2558, 4
      %v2561 = vshll.u32 %v2541, 16
      %v2563 = vrot.slane %v2561, 5
      %v2564 = vor.u32 %v2560, %v2563
      %v2565 = vrot.slane %v2564, 4
      %v2567 = vshll.u32 %v2542, 16
      %v2569 = vrot.slane %v2567, 5
      %v2570 = vsel %vm399, %v2565, %v2569
      %v2572 = vshrl.u32 %v2543, 16
      %v2574 = vrot.slane %v2572, 4
      %v2575 = vshll.u32 %v2543, 16
      %v2577 = vrot.slane %v2575, 5
      %v2578 = vor.u32 %v2574, %v2577
      %v2579 = vrot.slane %v2578, 4
      %v2581 = vshll.u32 %v2544, 16
      %v2583 = vrot.slane %v2581, 5
      %v2584 = vsel %vm399, %v2579, %v2583
      %v2586 = vshrl.u32 %v2545, 16
      %v2588 = vrot.slane %v2586, 4
      %v2589 = vshll.u32 %v2545, 16
      %v2591 = vrot.slane %v2589, 5
      %v2592 = vor.u32 %v2588, %v2591
      %v2593 = vrot.slane %v2592, 4
      %v2595 = vshll.u32 %v2546, 16
      %v2597 = vrot.slane %v2595, 5
      %v2598 = vsel %vm399, %v2593, %v2597
      %v2600 = vshrl.u32 %v2547, 16
      %v2602 = vrot.slane %v2600, 4
      %v2603 = vshll.u32 %v2547, 16
      %v2605 = vrot.slane %v2603, 5
      %v2606 = vor.u32 %v2602, %v2605
      %v2607 = vrot.slane %v2606, 4
      %v2609 = vshll.u32 %v2548, 16
      %v2611 = vrot.slane %v2609, 5
      %v2612 = vsel %vm399, %v2607, %v2611
      %v2614 = vshrl.u32 %v2549, 16
      %v2616 = vrot.slane %v2614, 4
      %v2617 = vshll.u32 %v2549, 16
      %v2619 = vrot.slane %v2617, 5
      %v2620 = vor.u32 %v2616, %v2619
      %v2621 = vrot.slane %v2620, 4
      %v2623 = vshll.u32 %v2550, 16
      %v2625 = vrot.slane %v2623, 5
      %v2626 = vsel %vm399, %v2621, %v2625
      %v2628 = vshrl.u32 %v2551, 16
      %v2630 = vrot.slane %v2628, 4
      %v2631 = vshll.u32 %v2551, 16
      %v2633 = vrot.slane %v2631, 5
      %v2634 = vor.u32 %v2630, %v2633
      %v2635 = vrot.slane %v2634, 4
      %v2637 = vshll.u32 %v2552, 16
      %v2639 = vrot.slane %v2637, 5
      %v2640 = vsel %vm399, %v2635, %v2639
      %v2642 = vshrl.u32 %v2553, 16
      %v2644 = vrot.slane %v2642, 4
      %v2645 = vshll.u32 %v2553, 16
      %v2647 = vrot.slane %v2645, 5
      %v2648 = vor.u32 %v2644, %v2647
      %v2649 = vrot.slane %v2648, 4
      %v2651 = vshll.u32 %v2554, 16
      %v2653 = vrot.slane %v2651, 5
      %v2654 = vsel %vm399, %v2649, %v2653
      %v2656 = vshrl.u32 %v2555, 16
      %v2658 = vrot.slane %v2656, 4
      %v2659 = vshll.u32 %v2555, 16
      %v2661 = vrot.slane %v2659, 5
      %v2662 = vor.u32 %v2658, %v2661
      %v2663 = vrot.slane %v2662, 4
      %v2665 = vshll.u32 %v2556, 16
      %v2667 = vrot.slane %v2665, 5
      %v2668 = vsel %vm399, %v2663, %v2667
      %2669 = vrot.lane.b32.xlu0 %v2570, 88
      %v2670 = vpop.permute.xlu0 %2669
      %2671 = vrot.lane.b32.xlu0 %v2584, 88
      %v2672 = vpop.permute.xlu0 %2671
      %2673 = vrot.lane.b32.xlu0 %v2598, 88
      %v2674 = vpop.permute.xlu0 %2673
      %2675 = vrot.lane.b32.xlu0 %v2612, 88
      %v2676 = vpop.permute.xlu0 %2675
      %2677 = vrot.lane.b32.xlu0 %v2626, 88
      %v2678 = vpop.permute.xlu0 %2677
      %2679 = vrot.lane.b32.xlu0 %v2640, 88
      %v2680 = vpop.permute.xlu0 %2679
      %2681 = vrot.lane.b32.xlu0 %v2654, 88
      %v2682 = vpop.permute.xlu0 %2681
      %2683 = vrot.lane.b32.xlu0 %v2668, 88
      %v2684 = vpop.permute.xlu0 %2683
      %vm2693 = vcmask 749248
      %2694 = vst.msk [vmem:[#allocation2] sm:$0xf] %vm2693, %v2670
      %2695 = vst.msk [vmem:[#allocation2 + $0x4] sm:$0xf] %vm2693, %v2672
      %2696 = vst.msk [vmem:[#allocation2 + $0x8] sm:$0xf] %vm2693, %v2674
      %2697 = vst.msk [vmem:[#allocation2 + $0xc] sm:$0xf] %vm2693, %v2676
      %2698 = vst.msk [vmem:[#allocation2 + $0x10] sm:$0xf] %vm2693, %v2678
      %2699 = vst.msk [vmem:[#allocation2 + $0x14] sm:$0xf] %vm2693, %v2680
      %2700 = vst.msk [vmem:[#allocation2 + $0x18] sm:$0xf] %vm2693, %v2682
      %2701 = vst.msk [vmem:[#allocation2 + $0x1c] sm:$0xf] %vm2693, %v2684
      %v2702 = vld [vmem:[%s2491] sm:$0xe]
      %v2703 = vld [vmem:[%s2491 + $0x4] sm:$0x1]
      %v2704 = vld [vmem:[%s2491 + $0x8] sm:$0xe]
      %v2705 = vld [vmem:[%s2491 + $0xc] sm:$0x1]
      %v2706 = vld [vmem:[%s2491 + $0x10] sm:$0xe]
      %v2707 = vld [vmem:[%s2491 + $0x14] sm:$0x1]
      %v2708 = vld [vmem:[%s2491 + $0x18] sm:$0xe]
      %v2709 = vld [vmem:[%s2491 + $0x1c] sm:$0x1]
      %v2710 = vld [vmem:[%s2491 + $0x20] sm:$0xe]
      %v2711 = vld [vmem:[%s2491 + $0x24] sm:$0x1]
      %v2712 = vld [vmem:[%s2491 + $0x28] sm:$0xe]
      %v2713 = vld [vmem:[%s2491 + $0x2c] sm:$0x1]
      %v2714 = vld [vmem:[%s2491 + $0x30] sm:$0xe]
      %v2715 = vld [vmem:[%s2491 + $0x34] sm:$0x1]
      %v2716 = vld [vmem:[%s2491 + $0x38] sm:$0xe]
      %v2717 = vld [vmem:[%s2491 + $0x3c] sm:$0x1]
      %v2734 = vrot.slane %v2702, 5
      %v2735 = vrot.slane %v2734, 4
      %v2736 = vrot.slane %v2703, 5
      %v2737 = vsel %vm579, %v2735, %v2736
      %v2738 = vrot.slane %v2704, 5
      %v2739 = vrot.slane %v2738, 4
      %v2740 = vrot.slane %v2705, 5
      %v2741 = vsel %vm579, %v2739, %v2740
      %v2742 = vrot.slane %v2706, 5
      %v2743 = vrot.slane %v2742, 4
      %v2744 = vrot.slane %v2707, 5
      %v2745 = vsel %vm579, %v2743, %v2744
      %v2746 = vrot.slane %v2708, 5
      %v2747 = vrot.slane %v2746, 4
      %v2748 = vrot.slane %v2709, 5
      %v2749 = vsel %vm579, %v2747, %v2748
      %v2750 = vrot.slane %v2710, 5
      %v2751 = vrot.slane %v2750, 4
      %v2752 = vrot.slane %v2711, 5
      %v2753 = vsel %vm579, %v2751, %v2752
      %v2754 = vrot.slane %v2712, 5
      %v2755 = vrot.slane %v2754, 4
      %v2756 = vrot.slane %v2713, 5
      %v2757 = vsel %vm579, %v2755, %v2756
      %v2758 = vrot.slane %v2714, 5
      %v2759 = vrot.slane %v2758, 4
      %v2760 = vrot.slane %v2715, 5
      %v2761 = vsel %vm579, %v2759, %v2760
      %v2762 = vrot.slane %v2716, 5
      %v2763 = vrot.slane %v2762, 4
      %v2764 = vrot.slane %v2717, 5
      %v2765 = vsel %vm579, %v2763, %v2764
      %2766 = vrot.lane.b32.xlu0 %v2737, 92
      %v2767 = vpop.permute.xlu0 %2766
      %2768 = vrot.lane.b32.xlu0 %v2741, 92
      %v2769 = vpop.permute.xlu0 %2768
      %2770 = vrot.lane.b32.xlu0 %v2745, 92
      %v2771 = vpop.permute.xlu0 %2770
      %2772 = vrot.lane.b32.xlu0 %v2749, 92
      %v2773 = vpop.permute.xlu0 %2772
      %2774 = vrot.lane.b32.xlu0 %v2753, 92
      %v2775 = vpop.permute.xlu0 %2774
      %2776 = vrot.lane.b32.xlu0 %v2757, 92
      %v2777 = vpop.permute.xlu0 %2776
      %2778 = vrot.lane.b32.xlu0 %v2761, 92
      %v2779 = vpop.permute.xlu0 %2778
      %2780 = vrot.lane.b32.xlu0 %v2765, 92
      %v2781 = vpop.permute.xlu0 %2780
      %vm2790 = vcmask 782048
      %2791 = vst.msk [vmem:[#allocation2] sm:$0xf] %vm2790, %v2767
      %2792 = vst.msk [vmem:[#allocation2 + $0x4] sm:$0xf] %vm2790, %v2769
      %2793 = vst.msk [vmem:[#allocation2 + $0x8] sm:$0xf] %vm2790, %v2771
      %2794 = vst.msk [vmem:[#allocation2 + $0xc] sm:$0xf] %vm2790, %v2773
      %2795 = vst.msk [vmem:[#allocation2 + $0x10] sm:$0xf] %vm2790, %v2775
      %2796 = vst.msk [vmem:[#allocation2 + $0x14] sm:$0xf] %vm2790, %v2777
      %2797 = vst.msk [vmem:[#allocation2 + $0x18] sm:$0xf] %vm2790, %v2779
      %2798 = vst.msk [vmem:[#allocation2 + $0x1c] sm:$0xf] %vm2790, %v2781
      %s2799 = scalar_lea.vmem %s330, 16
      %v2800 = vld [vmem:[%s2799] sm:$0xf]
      %v2801 = vld [vmem:[%s2799 + $0x8] sm:$0xf]
      %v2802 = vld [vmem:[%s2799 + $0x10] sm:$0xf]
      %v2803 = vld [vmem:[%s2799 + $0x18] sm:$0xf]
      %v2804 = vld [vmem:[%s2799 + $0x20] sm:$0xf]
      %v2805 = vld [vmem:[%s2799 + $0x28] sm:$0xf]
      %v2806 = vld [vmem:[%s2799 + $0x30] sm:$0xf]
      %v2807 = vld [vmem:[%s2799 + $0x38] sm:$0xf]
      %2816 = vrot.lane.b32.xlu0 %v2800, 96
      %v2817 = vpop.permute.xlu0 %2816
      %2818 = vrot.lane.b32.xlu0 %v2801, 96
      %v2819 = vpop.permute.xlu0 %2818
      %2820 = vrot.lane.b32.xlu0 %v2802, 96
      %v2821 = vpop.permute.xlu0 %2820
      %2822 = vrot.lane.b32.xlu0 %v2803, 96
      %v2823 = vpop.permute.xlu0 %2822
      %2824 = vrot.lane.b32.xlu0 %v2804, 96
      %v2825 = vpop.permute.xlu0 %2824
      %2826 = vrot.lane.b32.xlu0 %v2805, 96
      %v2827 = vpop.permute.xlu0 %2826
      %2828 = vrot.lane.b32.xlu0 %v2806, 96
      %v2829 = vpop.permute.xlu0 %2828
      %2830 = vrot.lane.b32.xlu0 %v2807, 96
      %v2831 = vpop.permute.xlu0 %2830
      %vm2840 = vcmask 814848
      %2841 = vst.msk [vmem:[#allocation2] sm:$0xf] %vm2840, %v2817
      %2842 = vst.msk [vmem:[#allocation2 + $0x4] sm:$0xf] %vm2840, %v2819
      %2843 = vst.msk [vmem:[#allocation2 + $0x8] sm:$0xf] %vm2840, %v2821
      %2844 = vst.msk [vmem:[#allocation2 + $0xc] sm:$0xf] %vm2840, %v2823
      %2845 = vst.msk [vmem:[#allocation2 + $0x10] sm:$0xf] %vm2840, %v2825
      %2846 = vst.msk [vmem:[#allocation2 + $0x14] sm:$0xf] %vm2840, %v2827
      %2847 = vst.msk [vmem:[#allocation2 + $0x18] sm:$0xf] %vm2840, %v2829
      %2848 = vst.msk [vmem:[#allocation2 + $0x1c] sm:$0xf] %vm2840, %v2831
      %v2849 = vld [vmem:[%s2799] sm:$0xf]
      %v2850 = vld [vmem:[%s2799 + $0x4] sm:$0x1]
      %v2851 = vld [vmem:[%s2799 + $0x8] sm:$0xf]
      %v2852 = vld [vmem:[%s2799 + $0xc] sm:$0x1]
      %v2853 = vld [vmem:[%s2799 + $0x10] sm:$0xf]
      %v2854 = vld [vmem:[%s2799 + $0x14] sm:$0x1]
      %v2855 = vld [vmem:[%s2799 + $0x18] sm:$0xf]
      %v2856 = vld [vmem:[%s2799 + $0x1c] sm:$0x1]
      %v2857 = vld [vmem:[%s2799 + $0x20] sm:$0xf]
      %v2858 = vld [vmem:[%s2799 + $0x24] sm:$0x1]
      %v2859 = vld [vmem:[%s2799 + $0x28] sm:$0xf]
      %v2860 = vld [vmem:[%s2799 + $0x2c] sm:$0x1]
      %v2861 = vld [vmem:[%s2799 + $0x30] sm:$0xf]
      %v2862 = vld [vmem:[%s2799 + $0x34] sm:$0x1]
      %v2863 = vld [vmem:[%s2799 + $0x38] sm:$0xf]
      %v2864 = vld [vmem:[%s2799 + $0x3c] sm:$0x1]
      %v2866 = vshrl.u32 %v2849, 16
      %v2868 = vrot.slane %v2866, 4
      %v2869 = vshll.u32 %v2849, 16
      %v2871 = vrot.slane %v2869, 5
      %v2872 = vor.u32 %v2868, %v2871
      %v2873 = vrot.slane %v2872, 4
      %v2875 = vshll.u32 %v2850, 16
      %v2877 = vrot.slane %v2875, 5
      %v2878 = vsel %vm399, %v2873, %v2877
      %v2880 = vshrl.u32 %v2851, 16
      %v2882 = vrot.slane %v2880, 4
      %v2883 = vshll.u32 %v2851, 16
      %v2885 = vrot.slane %v2883, 5
      %v2886 = vor.u32 %v2882, %v2885
      %v2887 = vrot.slane %v2886, 4
      %v2889 = vshll.u32 %v2852, 16
      %v2891 = vrot.slane %v2889, 5
      %v2892 = vsel %vm399, %v2887, %v2891
      %v2894 = vshrl.u32 %v2853, 16
      %v2896 = vrot.slane %v2894, 4
      %v2897 = vshll.u32 %v2853, 16
      %v2899 = vrot.slane %v2897, 5
      %v2900 = vor.u32 %v2896, %v2899
      %v2901 = vrot.slane %v2900, 4
      %v2903 = vshll.u32 %v2854, 16
      %v2905 = vrot.slane %v2903, 5
      %v2906 = vsel %vm399, %v2901, %v2905
      %v2908 = vshrl.u32 %v2855, 16
      %v2910 = vrot.slane %v2908, 4
      %v2911 = vshll.u32 %v2855, 16
      %v2913 = vrot.slane %v2911, 5
      %v2914 = vor.u32 %v2910, %v2913
      %v2915 = vrot.slane %v2914, 4
      %v2917 = vshll.u32 %v2856, 16
      %v2919 = vrot.slane %v2917, 5
      %v2920 = vsel %vm399, %v2915, %v2919
      %v2922 = vshrl.u32 %v2857, 16
      %v2924 = vrot.slane %v2922, 4
      %v2925 = vshll.u32 %v2857, 16
      %v2927 = vrot.slane %v2925, 5
      %v2928 = vor.u32 %v2924, %v2927
      %v2929 = vrot.slane %v2928, 4
      %v2931 = vshll.u32 %v2858, 16
      %v2933 = vrot.slane %v2931, 5
      %v2934 = vsel %vm399, %v2929, %v2933
      %v2936 = vshrl.u32 %v2859, 16
      %v2938 = vrot.slane %v2936, 4
      %v2939 = vshll.u32 %v2859, 16
      %v2941 = vrot.slane %v2939, 5
      %v2942 = vor.u32 %v2938, %v2941
      %v2943 = vrot.slane %v2942, 4
      %v2945 = vshll.u32 %v2860, 16
      %v2947 = vrot.slane %v2945, 5
      %v2948 = vsel %vm399, %v2943, %v2947
      %v2950 = vshrl.u32 %v2861, 16
      %v2952 = vrot.slane %v2950, 4
      %v2953 = vshll.u32 %v2861, 16
      %v2955 = vrot.slane %v2953, 5
      %v2956 = vor.u32 %v2952, %v2955
      %v2957 = vrot.slane %v2956, 4
      %v2959 = vshll.u32 %v2862, 16
      %v2961 = vrot.slane %v2959, 5
      %v2962 = vsel %vm399, %v2957, %v2961
      %v2964 = vshrl.u32 %v2863, 16
      %v2966 = vrot.slane %v2964, 4
      %v2967 = vshll.u32 %v2863, 16
      %v2969 = vrot.slane %v2967, 5
      %v2970 = vor.u32 %v2966, %v2969
      %v2971 = vrot.slane %v2970, 4
      %v2973 = vshll.u32 %v2864, 16
      %v2975 = vrot.slane %v2973, 5
      %v2976 = vsel %vm399, %v2971, %v2975
      %2977 = vrot.lane.b32.xlu0 %v2878, 100
      %v2978 = vpop.permute.xlu0 %2977
      %2979 = vrot.lane.b32.xlu0 %v2892, 100
      %v2980 = vpop.permute.xlu0 %2979
      %2981 = vrot.lane.b32.xlu0 %v2906, 100
      %v2982 = vpop.permute.xlu0 %2981
      %2983 = vrot.lane.b32.xlu0 %v2920, 100
      %v2984 = vpop.permute.xlu0 %2983
      %2985 = vrot.lane.b32.xlu0 %v2934, 100
      %v2986 = vpop.permute.xlu0 %2985
      %2987 = vrot.lane.b32.xlu0 %v2948, 100
      %v2988 = vpop.permute.xlu0 %2987
      %2989 = vrot.lane.b32.xlu0 %v2962, 100
      %v2990 = vpop.permute.xlu0 %2989
      %2991 = vrot.lane.b32.xlu0 %v2976, 100
      %v2992 = vpop.permute.xlu0 %2991
      %vm3001 = vcmask 847648
      %3002 = vst.msk [vmem:[#allocation2] sm:$0xf] %vm3001, %v2978
      %3003 = vst.msk [vmem:[#allocation2 + $0x4] sm:$0xf] %vm3001, %v2980
      %3004 = vst.msk [vmem:[#allocation2 + $0x8] sm:$0xf] %vm3001, %v2982
      %3005 = vst.msk [vmem:[#allocation2 + $0xc] sm:$0xf] %vm3001, %v2984
      %3006 = vst.msk [vmem:[#allocation2 + $0x10] sm:$0xf] %vm3001, %v2986
      %3007 = vst.msk [vmem:[#allocation2 + $0x14] sm:$0xf] %vm3001, %v2988
      %3008 = vst.msk [vmem:[#allocation2 + $0x18] sm:$0xf] %vm3001, %v2990
      %3009 = vst.msk [vmem:[#allocation2 + $0x1c] sm:$0xf] %vm3001, %v2992
      %v3010 = vld [vmem:[%s2799] sm:$0xe]
      %v3011 = vld [vmem:[%s2799 + $0x4] sm:$0x1]
      %v3012 = vld [vmem:[%s2799 + $0x8] sm:$0xe]
      %v3013 = vld [vmem:[%s2799 + $0xc] sm:$0x1]
      %v3014 = vld [vmem:[%s2799 + $0x10] sm:$0xe]
      %v3015 = vld [vmem:[%s2799 + $0x14] sm:$0x1]
      %v3016 = vld [vmem:[%s2799 + $0x18] sm:$0xe]
      %v3017 = vld [vmem:[%s2799 + $0x1c] sm:$0x1]
      %v3018 = vld [vmem:[%s2799 + $0x20] sm:$0xe]
      %v3019 = vld [vmem:[%s2799 + $0x24] sm:$0x1]
      %v3020 = vld [vmem:[%s2799 + $0x28] sm:$0xe]
      %v3021 = vld [vmem:[%s2799 + $0x2c] sm:$0x1]
      %v3022 = vld [vmem:[%s2799 + $0x30] sm:$0xe]
      %v3023 = vld [vmem:[%s2799 + $0x34] sm:$0x1]
      %v3024 = vld [vmem:[%s2799 + $0x38] sm:$0xe]
      %v3025 = vld [vmem:[%s2799 + $0x3c] sm:$0x1]
      %v3042 = vrot.slane %v3010, 5
      %v3043 = vrot.slane %v3042, 4
      %v3044 = vrot.slane %v3011, 5
      %v3045 = vsel %vm579, %v3043, %v3044
      %v3046 = vrot.slane %v3012, 5
      %v3047 = vrot.slane %v3046, 4
      %v3048 = vrot.slane %v3013, 5
      %v3049 = vsel %vm579, %v3047, %v3048
      %v3050 = vrot.slane %v3014, 5
      %v3051 = vrot.slane %v3050, 4
      %v3052 = vrot.slane %v3015, 5
      %v3053 = vsel %vm579, %v3051, %v3052
      %v3054 = vrot.slane %v3016, 5
      %v3055 = vrot.slane %v3054, 4
      %v3056 = vrot.slane %v3017, 5
      %v3057 = vsel %vm579, %v3055, %v3056
      %v3058 = vrot.slane %v3018, 5
      %v3059 = vrot.slane %v3058, 4
      %v3060 = vrot.slane %v3019, 5
      %v3061 = vsel %vm579, %v3059, %v3060
      %v3062 = vrot.slane %v3020, 5
      %v3063 = vrot.slane %v3062, 4
      %v3064 = vrot.slane %v3021, 5
      %v3065 = vsel %vm579, %v3063, %v3064
      %v3066 = vrot.slane %v3022, 5
      %v3067 = vrot.slane %v3066, 4
      %v3068 = vrot.slane %v3023, 5
      %v3069 = vsel %vm579, %v3067, %v3068
      %v3070 = vrot.slane %v3024, 5
      %v3071 = vrot.slane %v3070, 4
      %v3072 = vrot.slane %v3025, 5
      %v3073 = vsel %vm579, %v3071, %v3072
      %3074 = vrot.lane.b32.xlu0 %v3045, 104
      %v3075 = vpop.permute.xlu0 %3074
      %3076 = vrot.lane.b32.xlu0 %v3049, 104
      %v3077 = vpop.permute.xlu0 %3076
      %3078 = vrot.lane.b32.xlu0 %v3053, 104
      %v3079 = vpop.permute.xlu0 %3078
      %3080 = vrot.lane.b32.xlu0 %v3057, 104
      %v3081 = vpop.permute.xlu0 %3080
      %3082 = vrot.lane.b32.xlu0 %v3061, 104
      %v3083 = vpop.permute.xlu0 %3082
      %3084 = vrot.lane.b32.xlu0 %v3065, 104
      %v3085 = vpop.permute.xlu0 %3084
      %3086 = vrot.lane.b32.xlu0 %v3069, 104
      %v3087 = vpop.permute.xlu0 %3086
      %3088 = vrot.lane.b32.xlu0 %v3073, 104
      %v3089 = vpop.permute.xlu0 %3088
      %vm3098 = vcmask 880448
      %3099 = vst.msk [vmem:[#allocation2] sm:$0xf] %vm3098, %v3075
      %3100 = vst.msk [vmem:[#allocation2 + $0x4] sm:$0xf] %vm3098, %v3077
      %3101 = vst.msk [vmem:[#allocation2 + $0x8] sm:$0xf] %vm3098, %v3079
      %3102 = vst.msk [vmem:[#allocation2 + $0xc] sm:$0xf] %vm3098, %v3081
      %3103 = vst.msk [vmem:[#allocation2 + $0x10] sm:$0xf] %vm3098, %v3083
      %3104 = vst.msk [vmem:[#allocation2 + $0x14] sm:$0xf] %vm3098, %v3085
      %3105 = vst.msk [vmem:[#allocation2 + $0x18] sm:$0xf] %vm3098, %v3087
      %3106 = vst.msk [vmem:[#allocation2 + $0x1c] sm:$0xf] %vm3098, %v3089
      %v3107 = vld [vmem:[#allocation2] sm:$0xf]
      %v3108 = vld [vmem:[#allocation2 + $0x4] sm:$0xf]
      %v3109 = vld [vmem:[#allocation2 + $0x8] sm:$0xf]
      %v3110 = vld [vmem:[#allocation2 + $0xc] sm:$0xf]
      %v3111 = vld [vmem:[#allocation2 + $0x10] sm:$0xf]
      %v3112 = vld [vmem:[#allocation2 + $0x14] sm:$0xf]
      %v3113 = vld [vmem:[#allocation2 + $0x18] sm:$0xf]
      %v3114 = vld [vmem:[#allocation2 + $0x1c] sm:$0xf]
      %v3123 = vunpack.c.l.b16 %v3107
      %v3124 = vunpack.c.l.b16 %v3108
      %v3125 = vunpack.c.l.b16 %v3109
      %v3126 = vunpack.c.l.b16 %v3110
      %v3127 = vunpack.c.l.b16 %v3111
      %v3128 = vunpack.c.l.b16 %v3112
      %v3129 = vunpack.c.l.b16 %v3113
      %v3130 = vunpack.c.l.b16 %v3114
      %v3131 = vpack.c.b16 %v3124, %v3123
      %v3132 = vpack.c.b16 %v3126, %v3125
      %v3133 = vpack.c.b16 %v3128, %v3127
      %v3134 = vpack.c.b16 %v3130, %v3129
      %v3149 = vunpack.c.l.b16 %v350
      %v3150 = vunpack.c.l.b16 %v351
      %v3151 = vunpack.c.l.b16 %v352
      %v3152 = vunpack.c.l.b16 %v353
      %v3153 = vunpack.c.l.b16 %v354
      %v3154 = vunpack.c.l.b16 %v355
      %v3155 = vunpack.c.l.b16 %v356
      %v3156 = vunpack.c.l.b16 %v357
      %v3157 = vunpack.c.l.b16 %v358
      %v3158 = vunpack.c.l.b16 %v359
      %v3159 = vunpack.c.l.b16 %v360
      %v3160 = vunpack.c.l.b16 %v361
      %v3161 = vunpack.c.l.b16 %v362
      %v3162 = vunpack.c.l.b16 %v363
      %v3163 = vpack.c.b16 %v3150, %v3149
      %v3164 = vpack.c.b16 %v3152, %v3151
      %v3165 = vpack.c.b16 %v3154, %v3153
      %v3166 = vpack.c.b16 %v3156, %v3155
      %v3167 = vpack.c.b16 %v3158, %v3157
      %v3168 = vpack.c.b16 %v3160, %v3159
      %v3169 = vpack.c.b16 %v3162, %v3161
      %vm3176 = vcmask 883712
      %v3178 = vsel %vm3176, %v3131, 0
      %v3181 = vsel %vm3176, %v3132, 0
      %v3184 = vsel %vm3176, %v3133, 0
      %v3187 = vsel %vm3176, %v3134, 0
      %vm3189 = vcmask 1045504
      %v3191 = vsel %vm3189, %v3169, 0
      %3193 = vmatprep.subr.bf16.mxu0 0
      %3194 = vmatpush1.bf16.msra.mxu0 %v3163
      %3195 = vmatprep.subr.bf16.mxu0 0
      %3196 = vmatpush1.bf16.msra.mxu0 %v3164
      %3197 = vmatprep.subr.bf16.mxu0 0
      %3198 = vmatpush1.bf16.msra.mxu0 %v3165
      %3199 = vmatprep.subr.bf16.mxu0 0
      %3200 = vmatpush1.bf16.msra.mxu0 %v3166
      %3201 = vmatprep.subr.bf16.mxu0 0
      %3202 = vmatpush1.bf16.msra.mxu0 %v3167
      %3203 = vmatprep.subr.bf16.mxu0 0
      %3204 = vmatpush1.bf16.msra.mxu0 %v3168
      %3205 = vmatprep.subr.bf16.mxu0 0
      %3206 = vmatpush1.bf16.msra.mxu0 %v3191
      %3207 = vmatprep.subr.bf16.mxu0 0
      %3208 = vmatpush1.bf16.msra.mxu0 0
      %3209 = vmatprep.subr.bf16.mxu0 0
      %3210 = vmatpush1.bf16.msra.mxu0 0
      %3211 = vmatprep.subr.bf16.mxu0 0
      %3212 = vmatpush1.bf16.msra.mxu0 0
      %3213 = vmatprep.subr.bf16.mxu0 0
      %3214 = vmatpush1.bf16.msra.mxu0 0
      %3215 = vmatprep.subr.bf16.mxu0 0
      %3216 = vmatpush1.bf16.msra.mxu0 0
      %3217 = vmatprep.subr.bf16.mxu0 0
      %3218 = vmatpush1.bf16.msra.mxu0 0
      %3219 = vmatprep.subr.bf16.mxu0 0
      %3220 = vmatpush1.bf16.msra.mxu0 0
      %3221 = vmatprep.subr.bf16.mxu0 0
      %3222 = vmatpush1.bf16.msra.mxu0 0
      %3223 = vmatprep.subr.bf16.mxu0 0
      %3224 = vmatpush1.bf16.msra.mxu0 0
      %3225 = vmatprep.mubr.bf16.mxu0 0
      %3226 = vmatmul.mubr.bf16.gmra.mrb[0].mxu0 %v3178
      %v3227 = vpop.f32.mrb[0].mxu0
      %v3228 = vadd.f32 0.0, %v3227
      %v3229 = vpop.f32.mrb[0].mxu0
      %v3230 = vpop.f32.mrb[0].mxu0
      %v3231 = vadd.f32 0.0, %v3230
      %v3232 = vpop.f32.mrb[0].mxu0
      %3233 = vmatprep.mubr.bf16.mxu0 0
      %3234 = vmatmul.mubr.bf16.gmra.mrb[0].mxu0 %v3181
      %v3235 = vpop.f32.mrb[0].mxu0
      %v3236 = vadd.f32 0.0, %v3235
      %v3237 = vpop.f32.mrb[0].mxu0
      %v3238 = vpop.f32.mrb[0].mxu0
      %v3239 = vadd.f32 0.0, %v3238
      %v3240 = vpop.f32.mrb[0].mxu0
      %3241 = vmatprep.mubr.bf16.mxu0 0
      %3242 = vmatmul.mubr.bf16.gmra.mrb[0].mxu0 %v3184
      %v3243 = vpop.f32.mrb[0].mxu0
      %v3244 = vadd.f32 0.0, %v3243
      %v3245 = vpop.f32.mrb[0].mxu0
      %v3246 = vpop.f32.mrb[0].mxu0
      %v3247 = vadd.f32 0.0, %v3246
      %v3248 = vpop.f32.mrb[0].mxu0
      %3249 = vmatprep.mubr.bf16.mxu0 0
      %3250 = vmatmul.mubr.bf16.gmra.mrb[0].mxu0 %v3187
      %v3251 = vpop.f32.mrb[0].mxu0
      %v3252 = vadd.f32 0.0, %v3251
      %v3253 = vpop.f32.mrb[0].mxu0
      %v3254 = vpop.f32.mrb[0].mxu0
      %v3255 = vadd.f32 0.0, %v3254
      %v3256 = vpop.f32.mrb[0].mxu0
      %3257 = vdwg.mxu0
      %v3258 = vpack.c.bf16 %v3231, %v3228
      %v3259 = vpack.c.bf16 %v3239, %v3236
      %v3260 = vpack.c.bf16 %v3247, %v3244
      %v3261 = vpack.c.bf16 %v3255, %v3252
      %v3266 = vunpack.c.l.b16 %v3258
      %v3267 = vunpack.c.h.b16 %v3258
      %v3268 = vunpack.c.l.b16 %v3259
      %v3269 = vunpack.c.h.b16 %v3259
      %v3270 = vunpack.c.l.b16 %v3260
      %v3271 = vunpack.c.h.b16 %v3260
      %v3272 = vunpack.c.l.b16 %v3261
      %v3273 = vunpack.c.h.b16 %v3261
      %v3274 = vpack.c.b16 %v3266, %v3266
      %v3275 = vpack.c.b16 %v3267, %v3267
      %v3276 = vpack.c.b16 %v3268, %v3268
      %v3277 = vpack.c.b16 %v3269, %v3269
      %v3278 = vpack.c.b16 %v3270, %v3270
      %v3279 = vpack.c.b16 %v3271, %v3271
      %v3280 = vpack.c.b16 %v3272, %v3272
      %v3281 = vpack.c.b16 %v3273, %v3273
      %vm3290 = vcmask 60416
      %3291 = vst.msk [vmem:[%s340] sm:$0xf] %vm3290, %v3274
      %3292 = vst.msk [vmem:[%s340 + $0x4] sm:$0xf] %vm3290, %v3275
      %3293 = vst.msk [vmem:[%s340 + $0x8] sm:$0xf] %vm3290, %v3276
      %3294 = vst.msk [vmem:[%s340 + $0xc] sm:$0xf] %vm3290, %v3277
      %3295 = vst.msk [vmem:[%s340 + $0x10] sm:$0xf] %vm3290, %v3278
      %3296 = vst.msk [vmem:[%s340 + $0x14] sm:$0xf] %vm3290, %v3279
      %3297 = vst.msk [vmem:[%s340 + $0x18] sm:$0xf] %vm3290, %v3280
      %3298 = vst.msk [vmem:[%s340 + $0x1c] sm:$0xf] %vm3290, %v3281
      %v3299 = vunpack.c.l.bf16 %v3258
      %v3300 = vunpack.c.h.bf16 %v3258
      %v3301 = vunpack.c.l.bf16 %v3259
      %v3302 = vunpack.c.h.bf16 %v3259
      %v3303 = vunpack.c.l.bf16 %v3260
      %v3304 = vunpack.c.h.bf16 %v3260
      %v3305 = vunpack.c.l.bf16 %v3261
      %v3306 = vunpack.c.h.bf16 %v3261
      %vm3307 = vcmask 64512
      %v3308 = vsel %vm3307, %v3299, 0.0
      %v3309 = vsel %vm3307, %v3300, 0.0
      %v3310 = vadd.f32 %v3308, %v3309
      %v3311 = vsel %vm3307, %v3301, 0.0
      %v3312 = vadd.f32 %v3310, %v3311
      %v3313 = vsel %vm3307, %v3302, 0.0
      %v3314 = vadd.f32 %v3312, %v3313
      %v3315 = vsel %vm3307, %v3303, 0.0
      %v3316 = vadd.f32 %v3314, %v3315
      %v3317 = vsel %vm3307, %v3304, 0.0
      %v3318 = vadd.f32 %v3316, %v3317
      %v3319 = vsel %vm3307, %v3305, 0.0
      %v3320 = vadd.f32 %v3318, %v3319
      %v3321 = vsel %vm3307, %v3306, 0.0
      %v3322 = vadd.f32 %v3320, %v3321
      %v3323 = vrot.slane %v3322, 4
      %v3324 = vadd.f32 %v3322, %v3323
      %v3325 = vrot.slane %v3324, 2
      %v3326 = vadd.f32 %v3324, %v3325
      %v3327 = vrot.slane %v3326, 1
      %v3328 = vadd.f32 %v3326, %v3327
      %v3329 = vadd.f32 %v3328, 0.0
      %v3330 = vmul.f32 %v3299, %v3299
      %v3331 = vmul.f32 %v3300, %v3300
      %v3332 = vmul.f32 %v3301, %v3301
      %v3333 = vmul.f32 %v3302, %v3302
      %v3334 = vmul.f32 %v3303, %v3303
      %v3335 = vmul.f32 %v3304, %v3304
      %v3336 = vmul.f32 %v3305, %v3305
      %v3337 = vmul.f32 %v3306, %v3306
      %v3338 = vsel %vm3307, %v3330, 0.0
      %v3339 = vsel %vm3307, %v3331, 0.0
      %v3340 = vadd.f32 %v3338, %v3339
      %v3341 = vsel %vm3307, %v3332, 0.0
      %v3342 = vadd.f32 %v3340, %v3341
      %v3343 = vsel %vm3307, %v3333, 0.0
      %v3344 = vadd.f32 %v3342, %v3343
      %v3345 = vsel %vm3307, %v3334, 0.0
      %v3346 = vadd.f32 %v3344, %v3345
      %v3347 = vsel %vm3307, %v3335, 0.0
      %v3348 = vadd.f32 %v3346, %v3347
      %v3349 = vsel %vm3307, %v3336, 0.0
      %v3350 = vadd.f32 %v3348, %v3349
      %v3351 = vsel %vm3307, %v3337, 0.0
      %v3352 = vadd.f32 %v3350, %v3351
      %v3353 = vrot.slane %v3352, 4
      %v3354 = vadd.f32 %v3352, %v3353
      %v3355 = vrot.slane %v3354, 2
      %v3356 = vadd.f32 %v3354, %v3355
      %v3357 = vrot.slane %v3356, 1
      %v3358 = vadd.f32 %v3356, %v3357
      %v3359 = vadd.f32 %v3358, 0.0
      %v3360 = vld [vmem:[%s5] sm:$0x3]
      %vm3361 = vcmask 1040384
      %v3362 = vsel %vm3361, %v3329, %v3359
      %v3363 = vadd.f32 %v3360, %v3362
      %vm3364 = vcmask 58368
      %3365 = vst.msk [vmem:[%s5] sm:$0x3] %vm3364, %v3363
      %p3366 = scmp.lt.s32.totalorder %s21, 1
      %s3367 = scalar_select %p3366, %s21, 1
      %p3368 = scmp.lt.s32.totalorder %s22, 7
      %s3369 = scalar_select %p3368, %s22, 7
      %s3370 = smul.addr %s3369, 8
      %s3371 = smul.addr %s3367, 64
      %s3372 = sadd.s32 %s3370, %s3371
      %s3373 = smul.addr %s3372, 4
      %s3374 = scalar_lea.vmem %s4, %s3373
      // Predicated region
      $region41: #{double_conv_forward.6} parent=35 // pred_check
        %p3375 = pneg %p158
      $region42: #{double_conv_forward.6} parent=35 // pred_check_branch
        %3377 = sbr.rel (%p3375) target = $region44
      $region43: #{double_conv_forward.6} parent=35 // pred_region
        _
      $region44: #{double_conv_forward.6} parent=35 // pred_fallthru
        _
      // Predicated region
      $region45: #{double_conv_forward.6} parent=35 // pred_check
        %p3378 = pneg %p179
      $region46: #{double_conv_forward.6} parent=35 // pred_check_branch
        %3380 = sbr.rel (%p3378) target = $region48
      $region47: #{double_conv_forward.6} parent=35 // pred_region
        _
      $region48: #{double_conv_forward.6} parent=35 // pred_fallthru
        _
      // Predicated region
      $region49: #{double_conv_forward.6} parent=35 // pred_check
        %p3381 = pneg %p179
      $region50: #{double_conv_forward.6} parent=35 // pred_check_branch
        %3383 = sbr.rel (%p3381) target = $region52
      $region51: #{double_conv_forward.6} parent=35 // pred_region
        _
      $region52: #{double_conv_forward.6} parent=35 // pred_fallthru
        _
    $region36: #{double_conv_forward.6} parent=5 // pred_fallthru
      _
    %p3384 = scmp.le.s32.totalorder 2, %s12
    // Predicated region
    $region53: #{double_conv_forward.6} parent=5 // pred_check
      %p3385 = pneg %p3384
    $region54: #{double_conv_forward.6} parent=5 // pred_check_branch
      %3387 = sbr.rel (%p3385) target = $region56
    $region55: #{double_conv_forward.6} parent=5 // pred_region
      %s3388 = ssub.s32 %s12, 2
      // Predicated region
      $region57: #{double_conv_forward.6} parent=55 // pred_check
        %p3389 = pneg %p164
      $region58: #{double_conv_forward.6} parent=55 // pred_check_branch
        %3391 = sbr.rel (%p3389) target = $region60
      $region59: #{double_conv_forward.6} parent=55 // pred_region
        %p3392 = scmp.lt.s32.totalorder %s23, 1
        %s3393 = scalar_select %p3392, %s23, 1
        %p3394 = scmp.lt.s32.totalorder %s24, 7
        %s3395 = scalar_select %p3394, %s24, 7
        %s3396 = smul.addr %s3395, 8
        %s3397 = smul.addr %s3393, 64
        %s3398 = sadd.s32 %s3396, %s3397
        %s3399 = smul.addr %s3398, 4
        %s3400 = scalar_lea.vmem %s4, %s3399
      $region60: #{double_conv_forward.6} parent=55 // pred_fallthru
        _
    $region56: #{double_conv_forward.6} parent=5 // pred_fallthru
      _
  $region6: #{double_conv_forward.6} parent=0 // loop_footer
    %s16 = sadd.s32 1, %s12
  $region7: #{double_conv_forward.6} parent=0 // loop_footer_branch
    %11 = sbr.rel target = $region3
  $region8: #{double_conv_forward.6} parent=0 // loop_exit
    _

// kernel: double_conv_forward.8
$region0: #{double_conv_forward.8}
  #allocation0 [shape = 'u32[]', space=smem, size = 0x4, offset = 0x4, fixed_abs, tag = 'smem constant byte address 0x4 - core index']
  #allocation1 [shape = 'u32[144,128]{1,0:T(1,128)}', space=vmem, size = 0x12000, scoped, tag = 'internal scratch']
  #allocation2 [shape = 'bf16[8,8,216]{2,1,0:T(8,128)(2,1)}', space=vmem, size = 0x8000, scoped, tag = 'scratch operand']
  %s0 = inlined_call_operand.vmem [shape: bf16[2,10,10,10,8], index: 0, kind: input, shape index: {}, may-alias: {0,1,2}]
  %s1 = inlined_call_operand.vmem [shape: bf16[2,10,10,10,8], index: 1, kind: input, shape index: {}, may-alias: {0,1,2}]
  %s2 = inlined_call_operand.vmem [shape: bf16[2,10,10,10,8], index: 2, kind: input, shape index: {}, may-alias: {0,1,2}]
  %s3 = inlined_call_operand.vmem [shape: bf16[216,8], index: 3, kind: input, shape index: {}]
  %s4 = inlined_call_operand.vmem [shape: bf16[2,8,8,8,8], index: 4, kind: output, shape index: {0}]
  %s5 = inlined_call_operand.vmem [shape: f32[2,8], index: 5, kind: output, shape index: {1}]
  %6 = xla_tuple %s4, %s5
  %s7 = sld [smem:[#allocation0]]
  $region61: #{double_conv_forward.8} parent=0
    _
  %s9 = ssub.s32 1, %s7
  %s10 = scalar_select 0, %s9, %s7
  loop: start=0, step=1, limit=18
  $region2: #{double_conv_forward.8} parent=0 // loop_pre_header
    _
  $region3: #{double_conv_forward.8} parent=0 // loop_header
    %s12 = sphi 0, %s16
    %p13 = scmp.ge.s32.totalorder %s12, 18
    %s19 = sphi 0, %s31
    %s20 = sphi 0, %s27
    %s21 = sphi 0, %s19
    %s22 = sphi 0, %s20
    %s23 = sphi 0, %s21
    %s24 = sphi 0, %s22
    %s36 = sphi 0, %s38
    %s39 = sphi 0, %s36
    %s40 = sphi 0, %s39
    %s56 = sphi 0, %s40
    %s66 = sphi 0, %s68
    %s69 = sphi 0, %s66
    %s70 = sphi 0, %s69
    %s86 = sphi 0, %s70
    %s96 = sphi 0, %s98
    %s99 = sphi 0, %s96
    %s100 = sphi 0, %s99
    %s116 = sphi 0, %s100
    %s120 = sphi 0, %s120
    %s122 = sphi 0, %s120
    %s123 = sphi 0, %s122
    %s137 = sphi 0, %s123
    %s145 = sphi 0, %s147
    %s148 = sphi 0, %s145
    %s149 = sphi 0, %s148
    %s165 = sphi 0, %s149
    %s169 = sphi 0, %s169
    %s171 = sphi 0, %s169
    %s172 = sphi 0, %s171
    %s186 = sphi 0, %s172
  $region4: #{double_conv_forward.8} parent=0 // loop_header_branch
    %15 = sbr.rel (%p13) target = $region8
  $region5: #{double_conv_forward.8} parent=0 // loop_body
    %s17 = ssub.s32 %s12, 1
    %s18 = ssub.s32 %s12, 2
    %s25 = sadd.s32 1, %s20
    %p26 = scmp.ge.s32.totalorder %s25, 8
    %s27 = scalar_select %p26, 0, %s25
    %s28 = sadd.s32 1, %s19
    %s29 = scalar_select %p26, %s28, %s19
    %p30 = scmp.ge.s32.totalorder %s29, 2
    %s31 = scalar_select %p30, 0, %s29
    %s32 = ssub.s32 %s19, %s31
    %s33 = ssub.s32 %s20, %s27
    %s34 = sor.u32 %s32, %s33
    %p35 = scmp.eq.s32.totalorder %s34, 0
    %s37 = sadd.s32 %s36, 1
    %s38 = scalar_select %p35, %s36, %s37
    %p41 = pneg %p35
    %p42 = scmp.eq.s32.totalorder %s12, 15
    %p43 = por %p41, %p42
    %p44 = scmp.ne.s32.totalorder %s36, %s39
    %p45 = scmp.eq.s32.totalorder %s12, 0
    %p46 = por %p44, %p45
    %p47 = scmp.ne.s32.totalorder %s36, %s39
    %p48 = scmp.eq.s32.totalorder %s17, 15
    %p49 = por %p47, %p48
    %p50 = scmp.ne.s32.totalorder %s39, %s40
    %p51 = scmp.eq.s32.totalorder %s17, 0
    %p52 = por %p50, %p51
    %p53 = scmp.ne.s32.totalorder %s39, %s40
    %p54 = scmp.eq.s32.totalorder %s18, 15
    %p55 = por %p53, %p54
    %p57 = scmp.ne.s32.totalorder %s40, %s56
    %p58 = scmp.eq.s32.totalorder %s18, 0
    %p59 = por %p57, %p58
    %s60 = sadd.s32 %s20, 1
    %s61 = sadd.s32 %s27, 1
    %s62 = ssub.s32 %s19, %s31
    %s63 = ssub.s32 %s60, %s61
    %s64 = sor.u32 %s62, %s63
    %p65 = scmp.eq.s32.totalorder %s64, 0
    %s67 = sadd.s32 %s66, 1
    %s68 = scalar_select %p65, %s66, %s67
    %p71 = pneg %p65
    %p72 = scmp.eq.s32.totalorder %s12, 15
    %p73 = por %p71, %p72
    %p74 = scmp.ne.s32.totalorder %s66, %s69
    %p75 = scmp.eq.s32.totalorder %s12, 0
    %p76 = por %p74, %p75
    %p77 = scmp.ne.s32.totalorder %s66, %s69
    %p78 = scmp.eq.s32.totalorder %s17, 15
    %p79 = por %p77, %p78
    %p80 = scmp.ne.s32.totalorder %s69, %s70
    %p81 = scmp.eq.s32.totalorder %s17, 0
    %p82 = por %p80, %p81
    %p83 = scmp.ne.s32.totalorder %s69, %s70
    %p84 = scmp.eq.s32.totalorder %s18, 15
    %p85 = por %p83, %p84
    %p87 = scmp.ne.s32.totalorder %s70, %s86
    %p88 = scmp.eq.s32.totalorder %s18, 0
    %p89 = por %p87, %p88
    %s90 = sadd.s32 %s20, 2
    %s91 = sadd.s32 %s27, 2
    %s92 = ssub.s32 %s19, %s31
    %s93 = ssub.s32 %s90, %s91
    %s94 = sor.u32 %s92, %s93
    %p95 = scmp.eq.s32.totalorder %s94, 0
    %s97 = sadd.s32 %s96, 1
    %s98 = scalar_select %p95, %s96, %s97
    %p101 = pneg %p95
    %p102 = scmp.eq.s32.totalorder %s12, 15
    %p103 = por %p101, %p102
    %p104 = scmp.ne.s32.totalorder %s96, %s99
    %p105 = scmp.eq.s32.totalorder %s12, 0
    %p106 = por %p104, %p105
    %p107 = scmp.ne.s32.totalorder %s96, %s99
    %p108 = scmp.eq.s32.totalorder %s17, 15
    %p109 = por %p107, %p108
    %p110 = scmp.ne.s32.totalorder %s99, %s100
    %p111 = scmp.eq.s32.totalorder %s17, 0
    %p112 = por %p110, %p111
    %p113 = scmp.ne.s32.totalorder %s99, %s100
    %p114 = scmp.eq.s32.totalorder %s18, 15
    %p115 = por %p113, %p114
    %p117 = scmp.ne.s32.totalorder %s100, %s116
    %p118 = scmp.eq.s32.totalorder %s18, 0
    %p119 = por %p117, %p118
    %s121 = sadd.s32 %s120, 1
    %p124 = scmp.eq.s32.totalorder %s12, 15
    %p125 = scmp.ne.s32.totalorder %s120, %s122
    %p126 = scmp.eq.s32.totalorder %s12, 0
    %p127 = por %p125, %p126
    %p128 = scmp.ne.s32.totalorder %s120, %s122
    %p129 = scmp.eq.s32.totalorder %s17, 15
    %p130 = por %p128, %p129
    %p131 = scmp.ne.s32.totalorder %s122, %s123
    %p132 = scmp.eq.s32.totalorder %s17, 0
    %p133 = por %p131, %p132
    %p134 = scmp.ne.s32.totalorder %s122, %s123
    %p135 = scmp.eq.s32.totalorder %s18, 15
    %p136 = por %p134, %p135
    %p138 = scmp.ne.s32.totalorder %s123, %s137
    %p139 = scmp.eq.s32.totalorder %s18, 0
    %p140 = por %p138, %p139
    %s141 = ssub.s32 %s19, %s31
    %s142 = ssub.s32 %s20, %s27
    %s143 = sor.u32 %s141, %s142
    %p144 = scmp.eq.s32.totalorder %s143, 0
    %s146 = sadd.s32 %s145, 1
    %s147 = scalar_select %p144, %s145, %s146
    %p150 = pneg %p144
    %p151 = scmp.eq.s32.totalorder %s12, 15
    %p152 = por %p150, %p151
    %p153 = scmp.ne.s32.totalorder %s145, %s148
    %p154 = scmp.eq.s32.totalorder %s12, 0
    %p155 = por %p153, %p154
    %p156 = scmp.ne.s32.totalorder %s145, %s148
    %p157 = scmp.eq.s32.totalorder %s17, 15
    %p158 = por %p156, %p157
    %p159 = scmp.ne.s32.totalorder %s148, %s149
    %p160 = scmp.eq.s32.totalorder %s17, 0
    %p161 = por %p159, %p160
    %p162 = scmp.ne.s32.totalorder %s148, %s149
    %p163 = scmp.eq.s32.totalorder %s18, 15
    %p164 = por %p162, %p163
    %p166 = scmp.ne.s32.totalorder %s149, %s165
    %p167 = scmp.eq.s32.totalorder %s18, 0
    %p168 = por %p166, %p167
    %s170 = sadd.s32 %s169, 1
    %p173 = scmp.eq.s32.totalorder %s12, 15
    %p174 = scmp.ne.s32.totalorder %s169, %s171
    %p175 = scmp.eq.s32.totalorder %s12, 0
    %p176 = por %p174, %p175
    %p177 = scmp.ne.s32.totalorder %s169, %s171
    %p178 = scmp.eq.s32.totalorder %s17, 15
    %p179 = por %p177, %p178
    %p180 = scmp.ne.s32.totalorder %s171, %s172
    %p181 = scmp.eq.s32.totalorder %s17, 0
    %p182 = por %p180, %p181
    %p183 = scmp.ne.s32.totalorder %s171, %s172
    %p184 = scmp.eq.s32.totalorder %s18, 15
    %p185 = por %p183, %p184
    %p187 = scmp.ne.s32.totalorder %s172, %s186
    %p188 = scmp.eq.s32.totalorder %s18, 0
    %p189 = por %p187, %p188
    %p190 = scmp.le.s32.totalorder 1, %s12
    %p191 = scmp.lt.s32.totalorder %s12, 17
    %p192 = pnand %p190, %p191
    %p193 = pneg %p192
    // Predicated region
    $region9: #{double_conv_forward.8} parent=5 // pred_check
      _
    $region10: #{double_conv_forward.8} parent=5 // pred_check_branch
      %195 = sbr.rel (%p192) target = $region12
    $region11: #{double_conv_forward.8} parent=5 // pred_region
      %s196 = ssub.s32 %s12, 1
      // Predicated region
      $region13: #{double_conv_forward.8} parent=11 // pred_check
        %p197 = pneg %p133
      $region14: #{double_conv_forward.8} parent=11 // pred_check_branch
        %199 = sbr.rel (%p197) target = $region16
      $region15: #{double_conv_forward.8} parent=11 // pred_region
        _
      $region16: #{double_conv_forward.8} parent=11 // pred_fallthru
        _
    $region12: #{double_conv_forward.8} parent=5 // pred_fallthru
      _
    %p200 = scmp.lt.s32.totalorder %s12, 16
    // Predicated region
    $region17: #{double_conv_forward.8} parent=5 // pred_check
      %p201 = pneg %p200
    $region18: #{double_conv_forward.8} parent=5 // pred_check_branch
      %203 = sbr.rel (%p201) target = $region20
    $region19: #{double_conv_forward.8} parent=5 // pred_region
      // Predicated region
      $region21: #{double_conv_forward.8} parent=19 // pred_check
        %p204 = pneg %p46
      $region22: #{double_conv_forward.8} parent=19 // pred_check_branch
        %206 = sbr.rel (%p204) target = $region24
      $region23: #{double_conv_forward.8} parent=19 // pred_region
        %p207 = scmp.lt.s32.totalorder %s19, 1
        %s208 = scalar_select %p207, %s19, 1
        %p209 = scmp.lt.s32.totalorder %s20, 9
        %s210 = scalar_select %p209, %s20, 9
        %s211 = smul.addr %s210, 20
        %s212 = smul.addr %s208, 200
        %s213 = sadd.s32 %s211, %s212
        %s214 = smul.addr %s213, 4
        %s215 = scalar_lea.vmem %s0, %s214
      $region24: #{double_conv_forward.8} parent=19 // pred_fallthru
        _
      // Predicated region
      $region25: #{double_conv_forward.8} parent=19 // pred_check
        %p216 = pneg %p76
      $region26: #{double_conv_forward.8} parent=19 // pred_check_branch
        %218 = sbr.rel (%p216) target = $region28
      $region27: #{double_conv_forward.8} parent=19 // pred_region
        %s219 = sadd.s32 %s20, 1
        %p220 = scmp.lt.s32.totalorder %s19, 1
        %s221 = scalar_select %p220, %s19, 1
        %p222 = scmp.lt.s32.totalorder %s219, 9
        %s223 = scalar_select %p222, %s219, 9
        %s224 = smul.addr %s223, 20
        %s225 = smul.addr %s221, 200
        %s226 = sadd.s32 %s224, %s225
        %s227 = smul.addr %s226, 4
        %s228 = scalar_lea.vmem %s1, %s227
        %s229 = sadd.s32 %s20, 1
      $region28: #{double_conv_forward.8} parent=19 // pred_fallthru
        _
      // Predicated region
      $region29: #{double_conv_forward.8} parent=19 // pred_check
        %p230 = pneg %p106
      $region30: #{double_conv_forward.8} parent=19 // pred_check_branch
        %232 = sbr.rel (%p230) target = $region32
      $region31: #{double_conv_forward.8} parent=19 // pred_region
        %s233 = sadd.s32 %s20, 2
        %p234 = scmp.lt.s32.totalorder %s19, 1
        %s235 = scalar_select %p234, %s19, 1
        %p236 = scmp.lt.s32.totalorder %s233, 9
        %s237 = scalar_select %p236, %s233, 9
        %s238 = smul.addr %s237, 20
        %s239 = smul.addr %s235, 200
        %s240 = sadd.s32 %s238, %s239
        %s241 = smul.addr %s240, 4
        %s242 = scalar_lea.vmem %s2, %s241
        %s243 = sadd.s32 %s20, 2
      $region32: #{double_conv_forward.8} parent=19 // pred_fallthru
        _
    $region20: #{double_conv_forward.8} parent=5 // pred_fallthru
      _
    %p244 = scmp.le.s32.totalorder 1, %s12
    %p245 = scmp.lt.s32.totalorder %s12, 17
    %p246 = pnand %p244, %p245
    %p247 = pneg %p246
    // Predicated region
    $region33: #{double_conv_forward.8} parent=5 // pred_check
      _
    $region34: #{double_conv_forward.8} parent=5 // pred_check_branch
      %249 = sbr.rel (%p246) target = $region36
    $region35: #{double_conv_forward.8} parent=5 // pred_region
      %s250 = ssub.s32 %s12, 1
      %p251 = scmp.lt.s32.totalorder %s21, 1
      %s252 = scalar_select %p251, %s21, 1
      %p253 = scmp.lt.s32.totalorder %s22, 9
      %s254 = scalar_select %p253, %s22, 9
      %s255 = smul.addr %s254, 20
      %s256 = smul.addr %s252, 200
      %s257 = sadd.s32 %s255, %s256
      %s258 = smul.addr %s257, 4
      %s259 = scalar_lea.vmem %s0, %s258
      %p260 = pneg %p52
      %p261 = pneg %p49
      %s262 = sadd.s32 %s22, 1
      %p263 = scmp.lt.s32.totalorder %s21, 1
      %s264 = scalar_select %p263, %s21, 1
      %p265 = scmp.lt.s32.totalorder %s262, 9
      %s266 = scalar_select %p265, %s262, 9
      %s267 = smul.addr %s266, 20
      %s268 = smul.addr %s264, 200
      %s269 = sadd.s32 %s267, %s268
      %s270 = smul.addr %s269, 4
      %s271 = scalar_lea.vmem %s1, %s270
      %p272 = pneg %p82
      %p273 = pneg %p79
      %s274 = sadd.s32 %s22, 2
      %p275 = scmp.lt.s32.totalorder %s21, 1
      %s276 = scalar_select %p275, %s21, 1
      %p277 = scmp.lt.s32.totalorder %s274, 9
      %s278 = scalar_select %p277, %s274, 9
      %s279 = smul.addr %s278, 20
      %s280 = smul.addr %s276, 200
      %s281 = sadd.s32 %s279, %s280
      %s282 = smul.addr %s281, 4
      %s283 = scalar_lea.vmem %s2, %s282
      %p284 = pneg %p112
      %p285 = pneg %p109
      %p286 = pneg %p133
      %p287 = pneg %p130
      %p288 = pneg %p161
      %p289 = pneg %p158
      %p290 = scmp.lt.s32.totalorder %s21, 1
      %s291 = scalar_select %p290, %s21, 1
      %p292 = scmp.lt.s32.totalorder %s22, 7
      %s293 = scalar_select %p292, %s22, 7
      %s294 = smul.addr %s293, 8
      %s295 = smul.addr %s291, 64
      %s296 = sadd.s32 %s294, %s295
      %s297 = smul.addr %s296, 4
      %s298 = scalar_lea.vmem %s4, %s297
      %p299 = pneg %p182
      %p300 = pneg %p179
      %p301 = scmp.lt.s32.totalorder %s21, 1
      %s302 = scalar_select %p301, %s21, 1
      %p303 = scmp.lt.s32.totalorder %s22, 9
      %s304 = scalar_select %p303, %s22, 9
      %s305 = smul.addr %s304, 20
      %s306 = smul.addr %s302, 200
      %s307 = sadd.s32 %s305, %s306
      %s308 = smul.addr %s307, 4
      %s309 = scalar_lea.vmem %s0, %s308
      %s310 = sadd.s32 %s22, 1
      %p311 = scmp.lt.s32.totalorder %s21, 1
      %s312 = scalar_select %p311, %s21, 1
      %p313 = scmp.lt.s32.totalorder %s310, 9
      %s314 = scalar_select %p313, %s310, 9
      %s315 = smul.addr %s314, 20
      %s316 = smul.addr %s312, 200
      %s317 = sadd.s32 %s315, %s316
      %s318 = smul.addr %s317, 4
      %s319 = scalar_lea.vmem %s1, %s318
      %s320 = sadd.s32 %s22, 1
      %s321 = sadd.s32 %s22, 2
      %p322 = scmp.lt.s32.totalorder %s21, 1
      %s323 = scalar_select %p322, %s21, 1
      %p324 = scmp.lt.s32.totalorder %s321, 9
      %s325 = scalar_select %p324, %s321, 9
      %s326 = smul.addr %s325, 20
      %s327 = smul.addr %s323, 200
      %s328 = sadd.s32 %s326, %s327
      %s329 = smul.addr %s328, 4
      %s330 = scalar_lea.vmem %s2, %s329
      %s331 = sadd.s32 %s22, 2
      %p332 = scmp.lt.s32.totalorder %s21, 1
      %s333 = scalar_select %p332, %s21, 1
      %p334 = scmp.lt.s32.totalorder %s22, 7
      %s335 = scalar_select %p334, %s22, 7
      %s336 = smul.addr %s335, 8
      %s337 = smul.addr %s333, 64
      %s338 = sadd.s32 %s336, %s337
      %s339 = smul.addr %s338, 4
      %s340 = scalar_lea.vmem %s4, %s339
      %p342 = scmp.eq.s32.totalorder %s21, 0
      %p343 = scmp.eq.s32.totalorder %s22, 0
      %p344 = pnand %p342, %p343
      %p345 = pneg %p344
      // Predicated region
      $region37: #{double_conv_forward.8} parent=35 // pred_check
        _
      $region38: #{double_conv_forward.8} parent=35 // pred_check_branch
        %347 = sbr.rel (%p344) target = $region40
      $region39: #{double_conv_forward.8} parent=35 // pred_region
        %vm348 = vcmask 58368
        %349 = vst.msk [vmem:[%s5] sm:$0x3] %vm348, 0.0
      $region40: #{double_conv_forward.8} parent=35 // pred_fallthru
        _
      %v350 = vld [vmem:[%s3] sm:$0xf]
      %v351 = vld [vmem:[%s3 + $0x4] sm:$0xf]
      %v352 = vld [vmem:[%s3 + $0x8] sm:$0xf]
      %v353 = vld [vmem:[%s3 + $0xc] sm:$0xf]
      %v354 = vld [vmem:[%s3 + $0x10] sm:$0xf]
      %v355 = vld [vmem:[%s3 + $0x14] sm:$0xf]
      %v356 = vld [vmem:[%s3 + $0x18] sm:$0xf]
      %v357 = vld [vmem:[%s3 + $0x1c] sm:$0xf]
      %v358 = vld [vmem:[%s3 + $0x20] sm:$0xf]
      %v359 = vld [vmem:[%s3 + $0x24] sm:$0xf]
      %v360 = vld [vmem:[%s3 + $0x28] sm:$0xf]
      %v361 = vld [vmem:[%s3 + $0x2c] sm:$0xf]
      %v362 = vld [vmem:[%s3 + $0x30] sm:$0xf]
      %v363 = vld [vmem:[%s3 + $0x34] sm:$0xf]
      %v364 = vld [vmem:[%s3 + $0x38] sm:$0xf]
      %v365 = vld [vmem:[%s3 + $0x3c] sm:$0xf]
      %v366 = vld [vmem:[%s3 + $0x40] sm:$0xf]
      %v367 = vld [vmem:[%s3 + $0x44] sm:$0xf]
      %v368 = vld [vmem:[%s3 + $0x48] sm:$0xf]
      %v369 = vld [vmem:[%s3 + $0x4c] sm:$0xf]
      %v370 = vld [vmem:[%s3 + $0x50] sm:$0xf]
      %v371 = vld [vmem:[%s3 + $0x54] sm:$0xf]
      %v372 = vld [vmem:[%s3 + $0x58] sm:$0xf]
      %v373 = vld [vmem:[%s3 + $0x5c] sm:$0xf]
      %v374 = vld [vmem:[%s3 + $0x60] sm:$0xf]
      %v375 = vld [vmem:[%s3 + $0x64] sm:$0xf]
      %v376 = vld [vmem:[%s3 + $0x68] sm:$0xf]
      %v377 = vld [vmem:[%s309] sm:$0xf]
      %v378 = vld [vmem:[%s309 + $0x8] sm:$0xf]
      %v379 = vld [vmem:[%s309 + $0x10] sm:$0xf]
      %v380 = vld [vmem:[%s309 + $0x18] sm:$0xf]
      %v381 = vld [vmem:[%s309 + $0x20] sm:$0xf]
      %v382 = vld [vmem:[%s309 + $0x28] sm:$0xf]
      %v383 = vld [vmem:[%s309 + $0x30] sm:$0xf]
      %v384 = vld [vmem:[%s309 + $0x38] sm:$0xf]
      %vm385 = vcmask 60416
      %386 = vst.msk [vmem:[#allocation2] sm:$0xf] %vm385, %v377
      %387 = vst.msk [vmem:[#allocation2 + $0x8] sm:$0xf] %vm385, %v378
      %388 = vst.msk [vmem:[#allocation2 + $0x10] sm:$0xf] %vm385, %v379
      %389 = vst.msk [vmem:[#allocation2 + $0x18] sm:$0xf] %vm385, %v380
      %390 = vst.msk [vmem:[#allocation2 + $0x20] sm:$0xf] %vm385, %v381
      %391 = vst.msk [vmem:[#allocation2 + $0x28] sm:$0xf] %vm385, %v382
      %392 = vst.msk [vmem:[#allocation2 + $0x30] sm:$0xf] %vm385, %v383
      %393 = vst.msk [vmem:[#allocation2 + $0x38] sm:$0xf] %vm385, %v384
      %v394 = vld [vmem:[%s309] sm:$0xf]
      %v395 = vld [vmem:[%s309 + $0x4] sm:$0x1]
      %v396 = vld [vmem:[%s309 + $0x8] sm:$0xf]
      %v397 = vld [vmem:[%s309 + $0xc] sm:$0x1]
      %v398 = vld [vmem:[%s309 + $0x10] sm:$0xf]
      %v399 = vld [vmem:[%s309 + $0x14] sm:$0x1]
      %v400 = vld [vmem:[%s309 + $0x18] sm:$0xf]
      %v401 = vld [vmem:[%s309 + $0x1c] sm:$0x1]
      %v402 = vld [vmem:[%s309 + $0x20] sm:$0xf]
      %v403 = vld [vmem:[%s309 + $0x24] sm:$0x1]
      %v404 = vld [vmem:[%s309 + $0x28] sm:$0xf]
      %v405 = vld [vmem:[%s309 + $0x2c] sm:$0x1]
      %v406 = vld [vmem:[%s309 + $0x30] sm:$0xf]
      %v407 = vld [vmem:[%s309 + $0x34] sm:$0x1]
      %v408 = vld [vmem:[%s309 + $0x38] sm:$0xf]
      %v409 = vld [vmem:[%s309 + $0x3c] sm:$0x1]
      %vm410 = vsmask.f32 3328
      %vm411 = vsmask.f32 7440
      %vm412 = vmor %vm410, %vm411
      %v414 = vshrl.u32 %v394, 16
      %v416 = vrot.slane %v414, 4
      %v417 = vshll.u32 %v394, 16
      %v419 = vrot.slane %v417, 5
      %v420 = vor.u32 %v416, %v419
      %v421 = vrot.slane %v420, 4
      %v423 = vshll.u32 %v395, 16
      %v425 = vrot.slane %v423, 5
      %v426 = vsel %vm412, %v421, %v425
      %v428 = vshrl.u32 %v396, 16
      %v430 = vrot.slane %v428, 4
      %v431 = vshll.u32 %v396, 16
      %v433 = vrot.slane %v431, 5
      %v434 = vor.u32 %v430, %v433
      %v435 = vrot.slane %v434, 4
      %v437 = vshll.u32 %v397, 16
      %v439 = vrot.slane %v437, 5
      %v440 = vsel %vm412, %v435, %v439
      %v442 = vshrl.u32 %v398, 16
      %v444 = vrot.slane %v442, 4
      %v445 = vshll.u32 %v398, 16
      %v447 = vrot.slane %v445, 5
      %v448 = vor.u32 %v444, %v447
      %v449 = vrot.slane %v448, 4
      %v451 = vshll.u32 %v399, 16
      %v453 = vrot.slane %v451, 5
      %v454 = vsel %vm412, %v449, %v453
      %v456 = vshrl.u32 %v400, 16
      %v458 = vrot.slane %v456, 4
      %v459 = vshll.u32 %v400, 16
      %v461 = vrot.slane %v459, 5
      %v462 = vor.u32 %v458, %v461
      %v463 = vrot.slane %v462, 4
      %v465 = vshll.u32 %v401, 16
      %v467 = vrot.slane %v465, 5
      %v468 = vsel %vm412, %v463, %v467
      %v470 = vshrl.u32 %v402, 16
      %v472 = vrot.slane %v470, 4
      %v473 = vshll.u32 %v402, 16
      %v475 = vrot.slane %v473, 5
      %v476 = vor.u32 %v472, %v475
      %v477 = vrot.slane %v476, 4
      %v479 = vshll.u32 %v403, 16
      %v481 = vrot.slane %v479, 5
      %v482 = vsel %vm412, %v477, %v481
      %v484 = vshrl.u32 %v404, 16
      %v486 = vrot.slane %v484, 4
      %v487 = vshll.u32 %v404, 16
      %v489 = vrot.slane %v487, 5
      %v490 = vor.u32 %v486, %v489
      %v491 = vrot.slane %v490, 4
      %v493 = vshll.u32 %v405, 16
      %v495 = vrot.slane %v493, 5
      %v496 = vsel %vm412, %v491, %v495
      %v498 = vshrl.u32 %v406, 16
      %v500 = vrot.slane %v498, 4
      %v501 = vshll.u32 %v406, 16
      %v503 = vrot.slane %v501, 5
      %v504 = vor.u32 %v500, %v503
      %v505 = vrot.slane %v504, 4
      %v507 = vshll.u32 %v407, 16
      %v509 = vrot.slane %v507, 5
      %v510 = vsel %vm412, %v505, %v509
      %v512 = vshrl.u32 %v408, 16
      %v514 = vrot.slane %v512, 4
      %v515 = vshll.u32 %v408, 16
      %v517 = vrot.slane %v515, 5
      %v518 = vor.u32 %v514, %v517
      %v519 = vrot.slane %v518, 4
      %v521 = vshll.u32 %v409, 16
      %v523 = vrot.slane %v521, 5
      %v524 = vsel %vm412, %v519, %v523
      %525 = vrot.lane.b32.xlu0 %v426, 8
      %v526 = vpop.permute.xlu0 %525
      %527 = vrot.lane.b32.xlu0 %v440, 8
      %v528 = vpop.permute.xlu0 %527
      %529 = vrot.lane.b32.xlu0 %v454, 8
      %v530 = vpop.permute.xlu0 %529
      %531 = vrot.lane.b32.xlu0 %v468, 8
      %v532 = vpop.permute.xlu0 %531
      %533 = vrot.lane.b32.xlu0 %v482, 8
      %v534 = vpop.permute.xlu0 %533
      %535 = vrot.lane.b32.xlu0 %v496, 8
      %v536 = vpop.permute.xlu0 %535
      %537 = vrot.lane.b32.xlu0 %v510, 8
      %v538 = vpop.permute.xlu0 %537
      %539 = vrot.lane.b32.xlu0 %v524, 8
      %v540 = vpop.permute.xlu0 %539
      %vm549 = vcmask 126016
      %550 = vst.msk [vmem:[#allocation2] sm:$0xf] %vm549, %v526
      %551 = vst.msk [vmem:[#allocation2 + $0x8] sm:$0xf] %vm549, %v528
      %552 = vst.msk [vmem:[#allocation2 + $0x10] sm:$0xf] %vm549, %v530
      %553 = vst.msk [vmem:[#allocation2 + $0x18] sm:$0xf] %vm549, %v532
      %554 = vst.msk [vmem:[#allocation2 + $0x20] sm:$0xf] %vm549, %v534
      %555 = vst.msk [vmem:[#allocation2 + $0x28] sm:$0xf] %vm549, %v536
      %556 = vst.msk [vmem:[#allocation2 + $0x30] sm:$0xf] %vm549, %v538
      %557 = vst.msk [vmem:[#allocation2 + $0x38] sm:$0xf] %vm549, %v540
      %v558 = vld [vmem:[%s309] sm:$0xe]
      %v559 = vld [vmem:[%s309 + $0x4] sm:$0x1]
      %v560 = vld [vmem:[%s309 + $0x8] sm:$0xe]
      %v561 = vld [vmem:[%s309 + $0xc] sm:$0x1]
      %v562 = vld [vmem:[%s309 + $0x10] sm:$0xe]
      %v563 = vld [vmem:[%s309 + $0x14] sm:$0x1]
      %v564 = vld [vmem:[%s309 + $0x18] sm:$0xe]
      %v565 = vld [vmem:[%s309 + $0x1c] sm:$0x1]
      %v566 = vld [vmem:[%s309 + $0x20] sm:$0xe]
      %v567 = vld [vmem:[%s309 + $0x24] sm:$0x1]
      %v568 = vld [vmem:[%s309 + $0x28] sm:$0xe]
      %v569 = vld [vmem:[%s309 + $0x2c] sm:$0x1]
      %v570 = vld [vmem:[%s309 + $0x30] sm:$0xe]
      %v571 = vld [vmem:[%s309 + $0x34] sm:$0x1]
      %v572 = vld [vmem:[%s309 + $0x38] sm:$0xe]
      %v573 = vld [vmem:[%s309 + $0x3c] sm:$0x1]
      %vm590 = vcmask 1042432
      %vm591 = vcmask 1046532
      %vm592 = vmor %vm590, %vm591
      %v593 = vrot.slane %v558, 5
      %v594 = vrot.slane %v593, 4
      %v595 = vrot.slane %v559, 5
      %v596 = vsel %vm592, %v594, %v595
      %v597 = vrot.slane %v560, 5
      %v598 = vrot.slane %v597, 4
      %v599 = vrot.slane %v561, 5
      %v600 = vsel %vm592, %v598, %v599
      %v601 = vrot.slane %v562, 5
      %v602 = vrot.slane %v601, 4
      %v603 = vrot.slane %v563, 5
      %v604 = vsel %vm592, %v602, %v603
      %v605 = vrot.slane %v564, 5
      %v606 = vrot.slane %v605, 4
      %v607 = vrot.slane %v565, 5
      %v608 = vsel %vm592, %v606, %v607
      %v609 = vrot.slane %v566, 5
      %v610 = vrot.slane %v609, 4
      %v611 = vrot.slane %v567, 5
      %v612 = vsel %vm592, %v610, %v611
      %v613 = vrot.slane %v568, 5
      %v614 = vrot.slane %v613, 4
      %v615 = vrot.slane %v569, 5
      %v616 = vsel %vm592, %v614, %v615
      %v617 = vrot.slane %v570, 5
      %v618 = vrot.slane %v617, 4
      %v619 = vrot.slane %v571, 5
      %v620 = vsel %vm592, %v618, %v619
      %v621 = vrot.slane %v572, 5
      %v622 = vrot.slane %v621, 4
      %v623 = vrot.slane %v573, 5
      %v624 = vsel %vm592, %v622, %v623
      %625 = vrot.lane.b32.xlu0 %v596, 16
      %v626 = vpop.permute.xlu0 %625
      %627 = vrot.lane.b32.xlu0 %v600, 16
      %v628 = vpop.permute.xlu0 %627
      %629 = vrot.lane.b32.xlu0 %v604, 16
      %v630 = vpop.permute.xlu0 %629
      %631 = vrot.lane.b32.xlu0 %v608, 16
      %v632 = vpop.permute.xlu0 %631
      %633 = vrot.lane.b32.xlu0 %v612, 16
      %v634 = vpop.permute.xlu0 %633
      %635 = vrot.lane.b32.xlu0 %v616, 16
      %v636 = vpop.permute.xlu0 %635
      %637 = vrot.lane.b32.xlu0 %v620, 16
      %v638 = vpop.permute.xlu0 %637
      %639 = vrot.lane.b32.xlu0 %v624, 16
      %v640 = vpop.permute.xlu0 %639
      %vm649 = vcmask 191616
      %650 = vst.msk [vmem:[#allocation2] sm:$0xf] %vm649, %v626
      %651 = vst.msk [vmem:[#allocation2 + $0x8] sm:$0xf] %vm649, %v628
      %652 = vst.msk [vmem:[#allocation2 + $0x10] sm:$0xf] %vm649, %v630
      %653 = vst.msk [vmem:[#allocation2 + $0x18] sm:$0xf] %vm649, %v632
      %654 = vst.msk [vmem:[#allocation2 + $0x20] sm:$0xf] %vm649, %v634
      %655 = vst.msk [vmem:[#allocation2 + $0x28] sm:$0xf] %vm649, %v636
      %656 = vst.msk [vmem:[#allocation2 + $0x30] sm:$0xf] %vm649, %v638
      %657 = vst.msk [vmem:[#allocation2 + $0x38] sm:$0xf] %vm649, %v640
      %s658 = scalar_lea.vmem %s309, 8
      %v659 = vld [vmem:[%s658] sm:$0xf]
      %v660 = vld [vmem:[%s658 + $0x8] sm:$0xf]
      %v661 = vld [vmem:[%s658 + $0x10] sm:$0xf]
      %v662 = vld [vmem:[%s658 + $0x18] sm:$0xf]
      %v663 = vld [vmem:[%s658 + $0x20] sm:$0xf]
      %v664 = vld [vmem:[%s658 + $0x28] sm:$0xf]
      %v665 = vld [vmem:[%s658 + $0x30] sm:$0xf]
      %v666 = vld [vmem:[%s658 + $0x38] sm:$0xf]
      %675 = vrot.lane.b32.xlu0 %v659, 24
      %v676 = vpop.permute.xlu0 %675
      %677 = vrot.lane.b32.xlu0 %v660, 24
      %v678 = vpop.permute.xlu0 %677
      %679 = vrot.lane.b32.xlu0 %v661, 24
      %v680 = vpop.permute.xlu0 %679
      %681 = vrot.lane.b32.xlu0 %v662, 24
      %v682 = vpop.permute.xlu0 %681
      %683 = vrot.lane.b32.xlu0 %v663, 24
      %v684 = vpop.permute.xlu0 %683
      %685 = vrot.lane.b32.xlu0 %v664, 24
      %v686 = vpop.permute.xlu0 %685
      %687 = vrot.lane.b32.xlu0 %v665, 24
      %v688 = vpop.permute.xlu0 %687
      %689 = vrot.lane.b32.xlu0 %v666, 24
      %v690 = vpop.permute.xlu0 %689
      %vm699 = vcmask 257216
      %700 = vst.msk [vmem:[#allocation2] sm:$0xf] %vm699, %v676
      %701 = vst.msk [vmem:[#allocation2 + $0x8] sm:$0xf] %vm699, %v678
      %702 = vst.msk [vmem:[#allocation2 + $0x10] sm:$0xf] %vm699, %v680
      %703 = vst.msk [vmem:[#allocation2 + $0x18] sm:$0xf] %vm699, %v682
      %704 = vst.msk [vmem:[#allocation2 + $0x20] sm:$0xf] %vm699, %v684
      %705 = vst.msk [vmem:[#allocation2 + $0x28] sm:$0xf] %vm699, %v686
      %706 = vst.msk [vmem:[#allocation2 + $0x30] sm:$0xf] %vm699, %v688
      %707 = vst.msk [vmem:[#allocation2 + $0x38] sm:$0xf] %vm699, %v690
      %v708 = vld [vmem:[%s658] sm:$0xf]
      %v709 = vld [vmem:[%s658 + $0x4] sm:$0x1]
      %v710 = vld [vmem:[%s658 + $0x8] sm:$0xf]
      %v711 = vld [vmem:[%s658 + $0xc] sm:$0x1]
      %v712 = vld [vmem:[%s658 + $0x10] sm:$0xf]
      %v713 = vld [vmem:[%s658 + $0x14] sm:$0x1]
      %v714 = vld [vmem:[%s658 + $0x18] sm:$0xf]
      %v715 = vld [vmem:[%s658 + $0x1c] sm:$0x1]
      %v716 = vld [vmem:[%s658 + $0x20] sm:$0xf]
      %v717 = vld [vmem:[%s658 + $0x24] sm:$0x1]
      %v718 = vld [vmem:[%s658 + $0x28] sm:$0xf]
      %v719 = vld [vmem:[%s658 + $0x2c] sm:$0x1]
      %v720 = vld [vmem:[%s658 + $0x30] sm:$0xf]
      %v721 = vld [vmem:[%s658 + $0x34] sm:$0x1]
      %v722 = vld [vmem:[%s658 + $0x38] sm:$0xf]
      %v723 = vld [vmem:[%s658 + $0x3c] sm:$0x1]
      %v725 = vshrl.u32 %v708, 16
      %v727 = vrot.slane %v725, 4
      %v728 = vshll.u32 %v708, 16
      %v730 = vrot.slane %v728, 5
      %v731 = vor.u32 %v727, %v730
      %v732 = vrot.slane %v731, 4
      %v734 = vshll.u32 %v709, 16
      %v736 = vrot.slane %v734, 5
      %v737 = vsel %vm412, %v732, %v736
      %v739 = vshrl.u32 %v710, 16
      %v741 = vrot.slane %v739, 4
      %v742 = vshll.u32 %v710, 16
      %v744 = vrot.slane %v742, 5
      %v745 = vor.u32 %v741, %v744
      %v746 = vrot.slane %v745, 4
      %v748 = vshll.u32 %v711, 16
      %v750 = vrot.slane %v748, 5
      %v751 = vsel %vm412, %v746, %v750
      %v753 = vshrl.u32 %v712, 16
      %v755 = vrot.slane %v753, 4
      %v756 = vshll.u32 %v712, 16
      %v758 = vrot.slane %v756, 5
      %v759 = vor.u32 %v755, %v758
      %v760 = vrot.slane %v759, 4
      %v762 = vshll.u32 %v713, 16
      %v764 = vrot.slane %v762, 5
      %v765 = vsel %vm412, %v760, %v764
      %v767 = vshrl.u32 %v714, 16
      %v769 = vrot.slane %v767, 4
      %v770 = vshll.u32 %v714, 16
      %v772 = vrot.slane %v770, 5
      %v773 = vor.u32 %v769, %v772
      %v774 = vrot.slane %v773, 4
      %v776 = vshll.u32 %v715, 16
      %v778 = vrot.slane %v776, 5
      %v779 = vsel %vm412, %v774, %v778
      %v781 = vshrl.u32 %v716, 16
      %v783 = vrot.slane %v781, 4
      %v784 = vshll.u32 %v716, 16
      %v786 = vrot.slane %v784, 5
      %v787 = vor.u32 %v783, %v786
      %v788 = vrot.slane %v787, 4
      %v790 = vshll.u32 %v717, 16
      %v792 = vrot.slane %v790, 5
      %v793 = vsel %vm412, %v788, %v792
      %v795 = vshrl.u32 %v718, 16
      %v797 = vrot.slane %v795, 4
      %v798 = vshll.u32 %v718, 16
      %v800 = vrot.slane %v798, 5
      %v801 = vor.u32 %v797, %v800
      %v802 = vrot.slane %v801, 4
      %v804 = vshll.u32 %v719, 16
      %v806 = vrot.slane %v804, 5
      %v807 = vsel %vm412, %v802, %v806
      %v809 = vshrl.u32 %v720, 16
      %v811 = vrot.slane %v809, 4
      %v812 = vshll.u32 %v720, 16
      %v814 = vrot.slane %v812, 5
      %v815 = vor.u32 %v811, %v814
      %v816 = vrot.slane %v815, 4
      %v818 = vshll.u32 %v721, 16
      %v820 = vrot.slane %v818, 5
      %v821 = vsel %vm412, %v816, %v820
      %v823 = vshrl.u32 %v722, 16
      %v825 = vrot.slane %v823, 4
      %v826 = vshll.u32 %v722, 16
      %v828 = vrot.slane %v826, 5
      %v829 = vor.u32 %v825, %v828
      %v830 = vrot.slane %v829, 4
      %v832 = vshll.u32 %v723, 16
      %v834 = vrot.slane %v832, 5
      %v835 = vsel %vm412, %v830, %v834
      %836 = vrot.lane.b32.xlu0 %v737, 32
      %v837 = vpop.permute.xlu0 %836
      %838 = vrot.lane.b32.xlu0 %v751, 32
      %v839 = vpop.permute.xlu0 %838
      %840 = vrot.lane.b32.xlu0 %v765, 32
      %v841 = vpop.permute.xlu0 %840
      %842 = vrot.lane.b32.xlu0 %v779, 32
      %v843 = vpop.permute.xlu0 %842
      %844 = vrot.lane.b32.xlu0 %v793, 32
      %v845 = vpop.permute.xlu0 %844
      %846 = vrot.lane.b32.xlu0 %v807, 32
      %v847 = vpop.permute.xlu0 %846
      %848 = vrot.lane.b32.xlu0 %v821, 32
      %v849 = vpop.permute.xlu0 %848
      %850 = vrot.lane.b32.xlu0 %v835, 32
      %v851 = vpop.permute.xlu0 %850
      %vm860 = vcmask 322816
      %861 = vst.msk [vmem:[#allocation2] sm:$0xf] %vm860, %v837
      %862 = vst.msk [vmem:[#allocation2 + $0x8] sm:$0xf] %vm860, %v839
      %863 = vst.msk [vmem:[#allocation2 + $0x10] sm:$0xf] %vm860, %v841
      %864 = vst.msk [vmem:[#allocation2 + $0x18] sm:$0xf] %vm860, %v843
      %865 = vst.msk [vmem:[#allocation2 + $0x20] sm:$0xf] %vm860, %v845
      %866 = vst.msk [vmem:[#allocation2 + $0x28] sm:$0xf] %vm860, %v847
      %867 = vst.msk [vmem:[#allocation2 + $0x30] sm:$0xf] %vm860, %v849
      %868 = vst.msk [vmem:[#allocation2 + $0x38] sm:$0xf] %vm860, %v851
      %v869 = vld [vmem:[%s658] sm:$0xe]
      %v870 = vld [vmem:[%s658 + $0x4] sm:$0x1]
      %v871 = vld [vmem:[%s658 + $0x8] sm:$0xe]
      %v872 = vld [vmem:[%s658 + $0xc] sm:$0x1]
      %v873 = vld [vmem:[%s658 + $0x10] sm:$0xe]
      %v874 = vld [vmem:[%s658 + $0x14] sm:$0x1]
      %v875 = vld [vmem:[%s658 + $0x18] sm:$0xe]
      %v876 = vld [vmem:[%s658 + $0x1c] sm:$0x1]
      %v877 = vld [vmem:[%s658 + $0x20] sm:$0xe]
      %v878 = vld [vmem:[%s658 + $0x24] sm:$0x1]
      %v879 = vld [vmem:[%s658 + $0x28] sm:$0xe]
      %v880 = vld [vmem:[%s658 + $0x2c] sm:$0x1]
      %v881 = vld [vmem:[%s658 + $0x30] sm:$0xe]
      %v882 = vld [vmem:[%s658 + $0x34] sm:$0x1]
      %v883 = vld [vmem:[%s658 + $0x38] sm:$0xe]
      %v884 = vld [vmem:[%s658 + $0x3c] sm:$0x1]
      %v901 = vrot.slane %v869, 5
      %v902 = vrot.slane %v901, 4
      %v903 = vrot.slane %v870, 5
      %v904 = vsel %vm592, %v902, %v903
      %v905 = vrot.slane %v871, 5
      %v906 = vrot.slane %v905, 4
      %v907 = vrot.slane %v872, 5
      %v908 = vsel %vm592, %v906, %v907
      %v909 = vrot.slane %v873, 5
      %v910 = vrot.slane %v909, 4
      %v911 = vrot.slane %v874, 5
      %v912 = vsel %vm592, %v910, %v911
      %v913 = vrot.slane %v875, 5
      %v914 = vrot.slane %v913, 4
      %v915 = vrot.slane %v876, 5
      %v916 = vsel %vm592, %v914, %v915
      %v917 = vrot.slane %v877, 5
      %v918 = vrot.slane %v917, 4
      %v919 = vrot.slane %v878, 5
      %v920 = vsel %vm592, %v918, %v919
      %v921 = vrot.slane %v879, 5
      %v922 = vrot.slane %v921, 4
      %v923 = vrot.slane %v880, 5
      %v924 = vsel %vm592, %v922, %v923
      %v925 = vrot.slane %v881, 5
      %v926 = vrot.slane %v925, 4
      %v927 = vrot.slane %v882, 5
      %v928 = vsel %vm592, %v926, %v927
      %v929 = vrot.slane %v883, 5
      %v930 = vrot.slane %v929, 4
      %v931 = vrot.slane %v884, 5
      %v932 = vsel %vm592, %v930, %v931
      %933 = vrot.lane.b32.xlu0 %v904, 40
      %v934 = vpop.permute.xlu0 %933
      %935 = vrot.lane.b32.xlu0 %v908, 40
      %v936 = vpop.permute.xlu0 %935
      %937 = vrot.lane.b32.xlu0 %v912, 40
      %v938 = vpop.permute.xlu0 %937
      %939 = vrot.lane.b32.xlu0 %v916, 40
      %v940 = vpop.permute.xlu0 %939
      %941 = vrot.lane.b32.xlu0 %v920, 40
      %v942 = vpop.permute.xlu0 %941
      %943 = vrot.lane.b32.xlu0 %v924, 40
      %v944 = vpop.permute.xlu0 %943
      %945 = vrot.lane.b32.xlu0 %v928, 40
      %v946 = vpop.permute.xlu0 %945
      %947 = vrot.lane.b32.xlu0 %v932, 40
      %v948 = vpop.permute.xlu0 %947
      %vm957 = vcmask 388416
      %958 = vst.msk [vmem:[#allocation2] sm:$0xf] %vm957, %v934
      %959 = vst.msk [vmem:[#allocation2 + $0x8] sm:$0xf] %vm957, %v936
      %960 = vst.msk [vmem:[#allocation2 + $0x10] sm:$0xf] %vm957, %v938
      %961 = vst.msk [vmem:[#allocation2 + $0x18] sm:$0xf] %vm957, %v940
      %962 = vst.msk [vmem:[#allocation2 + $0x20] sm:$0xf] %vm957, %v942
      %963 = vst.msk [vmem:[#allocation2 + $0x28] sm:$0xf] %vm957, %v944
      %964 = vst.msk [vmem:[#allocation2 + $0x30] sm:$0xf] %vm957, %v946
      %965 = vst.msk [vmem:[#allocation2 + $0x38] sm:$0xf] %vm957, %v948
      %s966 = scalar_lea.vmem %s309, 16
      %v967 = vld [vmem:[%s966] sm:$0xf]
      %v968 = vld [vmem:[%s966 + $0x8] sm:$0xf]
      %v969 = vld [vmem:[%s966 + $0x10] sm:$0xf]
      %v970 = vld [vmem:[%s966 + $0x18] sm:$0xf]
      %v971 = vld [vmem:[%s966 + $0x20] sm:$0xf]
      %v972 = vld [vmem:[%s966 + $0x28] sm:$0xf]
      %v973 = vld [vmem:[%s966 + $0x30] sm:$0xf]
      %v974 = vld [vmem:[%s966 + $0x38] sm:$0xf]
      %983 = vrot.lane.b32.xlu0 %v967, 48
      %v984 = vpop.permute.xlu0 %983
      %985 = vrot.lane.b32.xlu0 %v968, 48
      %v986 = vpop.permute.xlu0 %985
      %987 = vrot.lane.b32.xlu0 %v969, 48
      %v988 = vpop.permute.xlu0 %987
      %989 = vrot.lane.b32.xlu0 %v970, 48
      %v990 = vpop.permute.xlu0 %989
      %991 = vrot.lane.b32.xlu0 %v971, 48
      %v992 = vpop.permute.xlu0 %991
      %993 = vrot.lane.b32.xlu0 %v972, 48
      %v994 = vpop.permute.xlu0 %993
      %995 = vrot.lane.b32.xlu0 %v973, 48
      %v996 = vpop.permute.xlu0 %995
      %997 = vrot.lane.b32.xlu0 %v974, 48
      %v998 = vpop.permute.xlu0 %997
      %vm1007 = vcmask 454016
      %1008 = vst.msk [vmem:[#allocation2] sm:$0xf] %vm1007, %v984
      %1009 = vst.msk [vmem:[#allocation2 + $0x8] sm:$0xf] %vm1007, %v986
      %1010 = vst.msk [vmem:[#allocation2 + $0x10] sm:$0xf] %vm1007, %v988
      %1011 = vst.msk [vmem:[#allocation2 + $0x18] sm:$0xf] %vm1007, %v990
      %1012 = vst.msk [vmem:[#allocation2 + $0x20] sm:$0xf] %vm1007, %v992
      %1013 = vst.msk [vmem:[#allocation2 + $0x28] sm:$0xf] %vm1007, %v994
      %1014 = vst.msk [vmem:[#allocation2 + $0x30] sm:$0xf] %vm1007, %v996
      %1015 = vst.msk [vmem:[#allocation2 + $0x38] sm:$0xf] %vm1007, %v998
      %v1016 = vld [vmem:[%s966] sm:$0xf]
      %v1017 = vld [vmem:[%s966 + $0x4] sm:$0x1]
      %v1018 = vld [vmem:[%s966 + $0x8] sm:$0xf]
      %v1019 = vld [vmem:[%s966 + $0xc] sm:$0x1]
      %v1020 = vld [vmem:[%s966 + $0x10] sm:$0xf]
      %v1021 = vld [vmem:[%s966 + $0x14] sm:$0x1]
      %v1022 = vld [vmem:[%s966 + $0x18] sm:$0xf]
      %v1023 = vld [vmem:[%s966 + $0x1c] sm:$0x1]
      %v1024 = vld [vmem:[%s966 + $0x20] sm:$0xf]
      %v1025 = vld [vmem:[%s966 + $0x24] sm:$0x1]
      %v1026 = vld [vmem:[%s966 + $0x28] sm:$0xf]
      %v1027 = vld [vmem:[%s966 + $0x2c] sm:$0x1]
      %v1028 = vld [vmem:[%s966 + $0x30] sm:$0xf]
      %v1029 = vld [vmem:[%s966 + $0x34] sm:$0x1]
      %v1030 = vld [vmem:[%s966 + $0x38] sm:$0xf]
      %v1031 = vld [vmem:[%s966 + $0x3c] sm:$0x1]
      %v1033 = vshrl.u32 %v1016, 16
      %v1035 = vrot.slane %v1033, 4
      %v1036 = vshll.u32 %v1016, 16
      %v1038 = vrot.slane %v1036, 5
      %v1039 = vor.u32 %v1035, %v1038
      %v1040 = vrot.slane %v1039, 4
      %v1042 = vshll.u32 %v1017, 16
      %v1044 = vrot.slane %v1042, 5
      %v1045 = vsel %vm412, %v1040, %v1044
      %v1047 = vshrl.u32 %v1018, 16
      %v1049 = vrot.slane %v1047, 4
      %v1050 = vshll.u32 %v1018, 16
      %v1052 = vrot.slane %v1050, 5
      %v1053 = vor.u32 %v1049, %v1052
      %v1054 = vrot.slane %v1053, 4
      %v1056 = vshll.u32 %v1019, 16
      %v1058 = vrot.slane %v1056, 5
      %v1059 = vsel %vm412, %v1054, %v1058
      %v1061 = vshrl.u32 %v1020, 16
      %v1063 = vrot.slane %v1061, 4
      %v1064 = vshll.u32 %v1020, 16
      %v1066 = vrot.slane %v1064, 5
      %v1067 = vor.u32 %v1063, %v1066
      %v1068 = vrot.slane %v1067, 4
      %v1070 = vshll.u32 %v1021, 16
      %v1072 = vrot.slane %v1070, 5
      %v1073 = vsel %vm412, %v1068, %v1072
      %v1075 = vshrl.u32 %v1022, 16
      %v1077 = vrot.slane %v1075, 4
      %v1078 = vshll.u32 %v1022, 16
      %v1080 = vrot.slane %v1078, 5
      %v1081 = vor.u32 %v1077, %v1080
      %v1082 = vrot.slane %v1081, 4
      %v1084 = vshll.u32 %v1023, 16
      %v1086 = vrot.slane %v1084, 5
      %v1087 = vsel %vm412, %v1082, %v1086
      %v1089 = vshrl.u32 %v1024, 16
      %v1091 = vrot.slane %v1089, 4
      %v1092 = vshll.u32 %v1024, 16
      %v1094 = vrot.slane %v1092, 5
      %v1095 = vor.u32 %v1091, %v1094
      %v1096 = vrot.slane %v1095, 4
      %v1098 = vshll.u32 %v1025, 16
      %v1100 = vrot.slane %v1098, 5
      %v1101 = vsel %vm412, %v1096, %v1100
      %v1103 = vshrl.u32 %v1026, 16
      %v1105 = vrot.slane %v1103, 4
      %v1106 = vshll.u32 %v1026, 16
      %v1108 = vrot.slane %v1106, 5
      %v1109 = vor.u32 %v1105, %v1108
      %v1110 = vrot.slane %v1109, 4
      %v1112 = vshll.u32 %v1027, 16
      %v1114 = vrot.slane %v1112, 5
      %v1115 = vsel %vm412, %v1110, %v1114
      %v1117 = vshrl.u32 %v1028, 16
      %v1119 = vrot.slane %v1117, 4
      %v1120 = vshll.u32 %v1028, 16
      %v1122 = vrot.slane %v1120, 5
      %v1123 = vor.u32 %v1119, %v1122
      %v1124 = vrot.slane %v1123, 4
      %v1126 = vshll.u32 %v1029, 16
      %v1128 = vrot.slane %v1126, 5
      %v1129 = vsel %vm412, %v1124, %v1128
      %v1131 = vshrl.u32 %v1030, 16
      %v1133 = vrot.slane %v1131, 4
      %v1134 = vshll.u32 %v1030, 16
      %v1136 = vrot.slane %v1134, 5
      %v1137 = vor.u32 %v1133, %v1136
      %v1138 = vrot.slane %v1137, 4
      %v1140 = vshll.u32 %v1031, 16
      %v1142 = vrot.slane %v1140, 5
      %v1143 = vsel %vm412, %v1138, %v1142
      %1144 = vrot.lane.b32.xlu0 %v1045, 56
      %v1145 = vpop.permute.xlu0 %1144
      %1146 = vrot.lane.b32.xlu0 %v1059, 56
      %v1147 = vpop.permute.xlu0 %1146
      %1148 = vrot.lane.b32.xlu0 %v1073, 56
      %v1149 = vpop.permute.xlu0 %1148
      %1150 = vrot.lane.b32.xlu0 %v1087, 56
      %v1151 = vpop.permute.xlu0 %1150
      %1152 = vrot.lane.b32.xlu0 %v1101, 56
      %v1153 = vpop.permute.xlu0 %1152
      %1154 = vrot.lane.b32.xlu0 %v1115, 56
      %v1155 = vpop.permute.xlu0 %1154
      %1156 = vrot.lane.b32.xlu0 %v1129, 56
      %v1157 = vpop.permute.xlu0 %1156
      %1158 = vrot.lane.b32.xlu0 %v1143, 56
      %v1159 = vpop.permute.xlu0 %1158
      %vm1168 = vcmask 519616
      %1169 = vst.msk [vmem:[#allocation2] sm:$0xf] %vm1168, %v1145
      %1170 = vst.msk [vmem:[#allocation2 + $0x8] sm:$0xf] %vm1168, %v1147
      %1171 = vst.msk [vmem:[#allocation2 + $0x10] sm:$0xf] %vm1168, %v1149
      %1172 = vst.msk [vmem:[#allocation2 + $0x18] sm:$0xf] %vm1168, %v1151
      %1173 = vst.msk [vmem:[#allocation2 + $0x20] sm:$0xf] %vm1168, %v1153
      %1174 = vst.msk [vmem:[#allocation2 + $0x28] sm:$0xf] %vm1168, %v1155
      %1175 = vst.msk [vmem:[#allocation2 + $0x30] sm:$0xf] %vm1168, %v1157
      %1176 = vst.msk [vmem:[#allocation2 + $0x38] sm:$0xf] %vm1168, %v1159
      %v1177 = vld [vmem:[%s966] sm:$0xe]
      %v1178 = vld [vmem:[%s966 + $0x4] sm:$0x1]
      %v1179 = vld [vmem:[%s966 + $0x8] sm:$0xe]
      %v1180 = vld [vmem:[%s966 + $0xc] sm:$0x1]
      %v1181 = vld [vmem:[%s966 + $0x10] sm:$0xe]
      %v1182 = vld [vmem:[%s966 + $0x14] sm:$0x1]
      %v1183 = vld [vmem:[%s966 + $0x18] sm:$0xe]
      %v1184 = vld [vmem:[%s966 + $0x1c] sm:$0x1]
      %v1185 = vld [vmem:[%s966 + $0x20] sm:$0xe]
      %v1186 = vld [vmem:[%s966 + $0x24] sm:$0x1]
      %v1187 = vld [vmem:[%s966 + $0x28] sm:$0xe]
      %v1188 = vld [vmem:[%s966 + $0x2c] sm:$0x1]
      %v1189 = vld [vmem:[%s966 + $0x30] sm:$0xe]
      %v1190 = vld [vmem:[%s966 + $0x34] sm:$0x1]
      %v1191 = vld [vmem:[%s966 + $0x38] sm:$0xe]
      %v1192 = vld [vmem:[%s966 + $0x3c] sm:$0x1]
      %v1209 = vrot.slane %v1177, 5
      %v1210 = vrot.slane %v1209, 4
      %v1211 = vrot.slane %v1178, 5
      %v1212 = vsel %vm592, %v1210, %v1211
      %v1213 = vrot.slane %v1179, 5
      %v1214 = vrot.slane %v1213, 4
      %v1215 = vrot.slane %v1180, 5
      %v1216 = vsel %vm592, %v1214, %v1215
      %v1217 = vrot.slane %v1181, 5
      %v1218 = vrot.slane %v1217, 4
      %v1219 = vrot.slane %v1182, 5
      %v1220 = vsel %vm592, %v1218, %v1219
      %v1221 = vrot.slane %v1183, 5
      %v1222 = vrot.slane %v1221, 4
      %v1223 = vrot.slane %v1184, 5
      %v1224 = vsel %vm592, %v1222, %v1223
      %v1225 = vrot.slane %v1185, 5
      %v1226 = vrot.slane %v1225, 4
      %v1227 = vrot.slane %v1186, 5
      %v1228 = vsel %vm592, %v1226, %v1227
      %v1229 = vrot.slane %v1187, 5
      %v1230 = vrot.slane %v1229, 4
      %v1231 = vrot.slane %v1188, 5
      %v1232 = vsel %vm592, %v1230, %v1231
      %v1233 = vrot.slane %v1189, 5
      %v1234 = vrot.slane %v1233, 4
      %v1235 = vrot.slane %v1190, 5
      %v1236 = vsel %vm592, %v1234, %v1235
      %v1237 = vrot.slane %v1191, 5
      %v1238 = vrot.slane %v1237, 4
      %v1239 = vrot.slane %v1192, 5
      %v1240 = vsel %vm592, %v1238, %v1239
      %1241 = vrot.lane.b32.xlu0 %v1212, 64
      %v1242 = vpop.permute.xlu0 %1241
      %1243 = vrot.lane.b32.xlu0 %v1216, 64
      %v1244 = vpop.permute.xlu0 %1243
      %1245 = vrot.lane.b32.xlu0 %v1220, 64
      %v1246 = vpop.permute.xlu0 %1245
      %1247 = vrot.lane.b32.xlu0 %v1224, 64
      %v1248 = vpop.permute.xlu0 %1247
      %1249 = vrot.lane.b32.xlu0 %v1228, 64
      %v1250 = vpop.permute.xlu0 %1249
      %1251 = vrot.lane.b32.xlu0 %v1232, 64
      %v1252 = vpop.permute.xlu0 %1251
      %1253 = vrot.lane.b32.xlu0 %v1236, 64
      %v1254 = vpop.permute.xlu0 %1253
      %1255 = vrot.lane.b32.xlu0 %v1240, 64
      %v1256 = vpop.permute.xlu0 %1255
      %vm1265 = vcmask 585216
      %1266 = vst.msk [vmem:[#allocation2] sm:$0xf] %vm1265, %v1242
      %1267 = vst.msk [vmem:[#allocation2 + $0x8] sm:$0xf] %vm1265, %v1244
      %1268 = vst.msk [vmem:[#allocation2 + $0x10] sm:$0xf] %vm1265, %v1246
      %1269 = vst.msk [vmem:[#allocation2 + $0x18] sm:$0xf] %vm1265, %v1248
      %1270 = vst.msk [vmem:[#allocation2 + $0x20] sm:$0xf] %vm1265, %v1250
      %1271 = vst.msk [vmem:[#allocation2 + $0x28] sm:$0xf] %vm1265, %v1252
      %1272 = vst.msk [vmem:[#allocation2 + $0x30] sm:$0xf] %vm1265, %v1254
      %1273 = vst.msk [vmem:[#allocation2 + $0x38] sm:$0xf] %vm1265, %v1256
      %v1274 = vld [vmem:[%s319] sm:$0xf]
      %v1275 = vld [vmem:[%s319 + $0x8] sm:$0xf]
      %v1276 = vld [vmem:[%s319 + $0x10] sm:$0xf]
      %v1277 = vld [vmem:[%s319 + $0x18] sm:$0xf]
      %v1278 = vld [vmem:[%s319 + $0x20] sm:$0xf]
      %v1279 = vld [vmem:[%s319 + $0x28] sm:$0xf]
      %v1280 = vld [vmem:[%s319 + $0x30] sm:$0xf]
      %v1281 = vld [vmem:[%s319 + $0x38] sm:$0xf]
      %1290 = vrot.lane.b32.xlu0 %v1274, 72
      %v1291 = vpop.permute.xlu0 %1290
      %1292 = vrot.lane.b32.xlu0 %v1275, 72
      %v1293 = vpop.permute.xlu0 %1292
      %1294 = vrot.lane.b32.xlu0 %v1276, 72
      %v1295 = vpop.permute.xlu0 %1294
      %1296 = vrot.lane.b32.xlu0 %v1277, 72
      %v1297 = vpop.permute.xlu0 %1296
      %1298 = vrot.lane.b32.xlu0 %v1278, 72
      %v1299 = vpop.permute.xlu0 %1298
      %1300 = vrot.lane.b32.xlu0 %v1279, 72
      %v1301 = vpop.permute.xlu0 %1300
      %1302 = vrot.lane.b32.xlu0 %v1280, 72
      %v1303 = vpop.permute.xlu0 %1302
      %1304 = vrot.lane.b32.xlu0 %v1281, 72
      %v1305 = vpop.permute.xlu0 %1304
      %vm1314 = vcmask 650816
      %1315 = vst.msk [vmem:[#allocation2] sm:$0xf] %vm1314, %v1291
      %1316 = vst.msk [vmem:[#allocation2 + $0x8] sm:$0xf] %vm1314, %v1293
      %1317 = vst.msk [vmem:[#allocation2 + $0x10] sm:$0xf] %vm1314, %v1295
      %1318 = vst.msk [vmem:[#allocation2 + $0x18] sm:$0xf] %vm1314, %v1297
      %1319 = vst.msk [vmem:[#allocation2 + $0x20] sm:$0xf] %vm1314, %v1299
      %1320 = vst.msk [vmem:[#allocation2 + $0x28] sm:$0xf] %vm1314, %v1301
      %1321 = vst.msk [vmem:[#allocation2 + $0x30] sm:$0xf] %vm1314, %v1303
      %1322 = vst.msk [vmem:[#allocation2 + $0x38] sm:$0xf] %vm1314, %v1305
      %v1323 = vld [vmem:[%s319] sm:$0xf]
      %v1324 = vld [vmem:[%s319 + $0x4] sm:$0x1]
      %v1325 = vld [vmem:[%s319 + $0x8] sm:$0xf]
      %v1326 = vld [vmem:[%s319 + $0xc] sm:$0x1]
      %v1327 = vld [vmem:[%s319 + $0x10] sm:$0xf]
      %v1328 = vld [vmem:[%s319 + $0x14] sm:$0x1]
      %v1329 = vld [vmem:[%s319 + $0x18] sm:$0xf]
      %v1330 = vld [vmem:[%s319 + $0x1c] sm:$0x1]
      %v1331 = vld [vmem:[%s319 + $0x20] sm:$0xf]
      %v1332 = vld [vmem:[%s319 + $0x24] sm:$0x1]
      %v1333 = vld [vmem:[%s319 + $0x28] sm:$0xf]
      %v1334 = vld [vmem:[%s319 + $0x2c] sm:$0x1]
      %v1335 = vld [vmem:[%s319 + $0x30] sm:$0xf]
      %v1336 = vld [vmem:[%s319 + $0x34] sm:$0x1]
      %v1337 = vld [vmem:[%s319 + $0x38] sm:$0xf]
      %v1338 = vld [vmem:[%s319 + $0x3c] sm:$0x1]
      %v1340 = vshrl.u32 %v1323, 16
      %v1342 = vrot.slane %v1340, 4
      %v1343 = vshll.u32 %v1323, 16
      %v1345 = vrot.slane %v1343, 5
      %v1346 = vor.u32 %v1342, %v1345
      %v1347 = vrot.slane %v1346, 4
      %v1349 = vshll.u32 %v1324, 16
      %v1351 = vrot.slane %v1349, 5
      %v1352 = vsel %vm412, %v1347, %v1351
      %v1354 = vshrl.u32 %v1325, 16
      %v1356 = vrot.slane %v1354, 4
      %v1357 = vshll.u32 %v1325, 16
      %v1359 = vrot.slane %v1357, 5
      %v1360 = vor.u32 %v1356, %v1359
      %v1361 = vrot.slane %v1360, 4
      %v1363 = vshll.u32 %v1326, 16
      %v1365 = vrot.slane %v1363, 5
      %v1366 = vsel %vm412, %v1361, %v1365
      %v1368 = vshrl.u32 %v1327, 16
      %v1370 = vrot.slane %v1368, 4
      %v1371 = vshll.u32 %v1327, 16
      %v1373 = vrot.slane %v1371, 5
      %v1374 = vor.u32 %v1370, %v1373
      %v1375 = vrot.slane %v1374, 4
      %v1377 = vshll.u32 %v1328, 16
      %v1379 = vrot.slane %v1377, 5
      %v1380 = vsel %vm412, %v1375, %v1379
      %v1382 = vshrl.u32 %v1329, 16
      %v1384 = vrot.slane %v1382, 4
      %v1385 = vshll.u32 %v1329, 16
      %v1387 = vrot.slane %v1385, 5
      %v1388 = vor.u32 %v1384, %v1387
      %v1389 = vrot.slane %v1388, 4
      %v1391 = vshll.u32 %v1330, 16
      %v1393 = vrot.slane %v1391, 5
      %v1394 = vsel %vm412, %v1389, %v1393
      %v1396 = vshrl.u32 %v1331, 16
      %v1398 = vrot.slane %v1396, 4
      %v1399 = vshll.u32 %v1331, 16
      %v1401 = vrot.slane %v1399, 5
      %v1402 = vor.u32 %v1398, %v1401
      %v1403 = vrot.slane %v1402, 4
      %v1405 = vshll.u32 %v1332, 16
      %v1407 = vrot.slane %v1405, 5
      %v1408 = vsel %vm412, %v1403, %v1407
      %v1410 = vshrl.u32 %v1333, 16
      %v1412 = vrot.slane %v1410, 4
      %v1413 = vshll.u32 %v1333, 16
      %v1415 = vrot.slane %v1413, 5
      %v1416 = vor.u32 %v1412, %v1415
      %v1417 = vrot.slane %v1416, 4
      %v1419 = vshll.u32 %v1334, 16
      %v1421 = vrot.slane %v1419, 5
      %v1422 = vsel %vm412, %v1417, %v1421
      %v1424 = vshrl.u32 %v1335, 16
      %v1426 = vrot.slane %v1424, 4
      %v1427 = vshll.u32 %v1335, 16
      %v1429 = vrot.slane %v1427, 5
      %v1430 = vor.u32 %v1426, %v1429
      %v1431 = vrot.slane %v1430, 4
      %v1433 = vshll.u32 %v1336, 16
      %v1435 = vrot.slane %v1433, 5
      %v1436 = vsel %vm412, %v1431, %v1435
      %v1438 = vshrl.u32 %v1337, 16
      %v1440 = vrot.slane %v1438, 4
      %v1441 = vshll.u32 %v1337, 16
      %v1443 = vrot.slane %v1441, 5
      %v1444 = vor.u32 %v1440, %v1443
      %v1445 = vrot.slane %v1444, 4
      %v1447 = vshll.u32 %v1338, 16
      %v1449 = vrot.slane %v1447, 5
      %v1450 = vsel %vm412, %v1445, %v1449
      %1451 = vrot.lane.b32.xlu0 %v1352, 80
      %v1452 = vpop.permute.xlu0 %1451
      %1453 = vrot.lane.b32.xlu0 %v1366, 80
      %v1454 = vpop.permute.xlu0 %1453
      %1455 = vrot.lane.b32.xlu0 %v1380, 80
      %v1456 = vpop.permute.xlu0 %1455
      %1457 = vrot.lane.b32.xlu0 %v1394, 80
      %v1458 = vpop.permute.xlu0 %1457
      %1459 = vrot.lane.b32.xlu0 %v1408, 80
      %v1460 = vpop.permute.xlu0 %1459
      %1461 = vrot.lane.b32.xlu0 %v1422, 80
      %v1462 = vpop.permute.xlu0 %1461
      %1463 = vrot.lane.b32.xlu0 %v1436, 80
      %v1464 = vpop.permute.xlu0 %1463
      %1465 = vrot.lane.b32.xlu0 %v1450, 80
      %v1466 = vpop.permute.xlu0 %1465
      %vm1475 = vcmask 716416
      %1476 = vst.msk [vmem:[#allocation2] sm:$0xf] %vm1475, %v1452
      %1477 = vst.msk [vmem:[#allocation2 + $0x8] sm:$0xf] %vm1475, %v1454
      %1478 = vst.msk [vmem:[#allocation2 + $0x10] sm:$0xf] %vm1475, %v1456
      %1479 = vst.msk [vmem:[#allocation2 + $0x18] sm:$0xf] %vm1475, %v1458
      %1480 = vst.msk [vmem:[#allocation2 + $0x20] sm:$0xf] %vm1475, %v1460
      %1481 = vst.msk [vmem:[#allocation2 + $0x28] sm:$0xf] %vm1475, %v1462
      %1482 = vst.msk [vmem:[#allocation2 + $0x30] sm:$0xf] %vm1475, %v1464
      %1483 = vst.msk [vmem:[#allocation2 + $0x38] sm:$0xf] %vm1475, %v1466
      %v1484 = vld [vmem:[%s319] sm:$0xe]
      %v1485 = vld [vmem:[%s319 + $0x4] sm:$0x1]
      %v1486 = vld [vmem:[%s319 + $0x8] sm:$0xe]
      %v1487 = vld [vmem:[%s319 + $0xc] sm:$0x1]
      %v1488 = vld [vmem:[%s319 + $0x10] sm:$0xe]
      %v1489 = vld [vmem:[%s319 + $0x14] sm:$0x1]
      %v1490 = vld [vmem:[%s319 + $0x18] sm:$0xe]
      %v1491 = vld [vmem:[%s319 + $0x1c] sm:$0x1]
      %v1492 = vld [vmem:[%s319 + $0x20] sm:$0xe]
      %v1493 = vld [vmem:[%s319 + $0x24] sm:$0x1]
      %v1494 = vld [vmem:[%s319 + $0x28] sm:$0xe]
      %v1495 = vld [vmem:[%s319 + $0x2c] sm:$0x1]
      %v1496 = vld [vmem:[%s319 + $0x30] sm:$0xe]
      %v1497 = vld [vmem:[%s319 + $0x34] sm:$0x1]
      %v1498 = vld [vmem:[%s319 + $0x38] sm:$0xe]
      %v1499 = vld [vmem:[%s319 + $0x3c] sm:$0x1]
      %v1516 = vrot.slane %v1484, 5
      %v1517 = vrot.slane %v1516, 4
      %v1518 = vrot.slane %v1485, 5
      %v1519 = vsel %vm592, %v1517, %v1518
      %v1520 = vrot.slane %v1486, 5
      %v1521 = vrot.slane %v1520, 4
      %v1522 = vrot.slane %v1487, 5
      %v1523 = vsel %vm592, %v1521, %v1522
      %v1524 = vrot.slane %v1488, 5
      %v1525 = vrot.slane %v1524, 4
      %v1526 = vrot.slane %v1489, 5
      %v1527 = vsel %vm592, %v1525, %v1526
      %v1528 = vrot.slane %v1490, 5
      %v1529 = vrot.slane %v1528, 4
      %v1530 = vrot.slane %v1491, 5
      %v1531 = vsel %vm592, %v1529, %v1530
      %v1532 = vrot.slane %v1492, 5
      %v1533 = vrot.slane %v1532, 4
      %v1534 = vrot.slane %v1493, 5
      %v1535 = vsel %vm592, %v1533, %v1534
      %v1536 = vrot.slane %v1494, 5
      %v1537 = vrot.slane %v1536, 4
      %v1538 = vrot.slane %v1495, 5
      %v1539 = vsel %vm592, %v1537, %v1538
      %v1540 = vrot.slane %v1496, 5
      %v1541 = vrot.slane %v1540, 4
      %v1542 = vrot.slane %v1497, 5
      %v1543 = vsel %vm592, %v1541, %v1542
      %v1544 = vrot.slane %v1498, 5
      %v1545 = vrot.slane %v1544, 4
      %v1546 = vrot.slane %v1499, 5
      %v1547 = vsel %vm592, %v1545, %v1546
      %1548 = vrot.lane.b32.xlu0 %v1519, 88
      %v1549 = vpop.permute.xlu0 %1548
      %1550 = vrot.lane.b32.xlu0 %v1523, 88
      %v1551 = vpop.permute.xlu0 %1550
      %1552 = vrot.lane.b32.xlu0 %v1527, 88
      %v1553 = vpop.permute.xlu0 %1552
      %1554 = vrot.lane.b32.xlu0 %v1531, 88
      %v1555 = vpop.permute.xlu0 %1554
      %1556 = vrot.lane.b32.xlu0 %v1535, 88
      %v1557 = vpop.permute.xlu0 %1556
      %1558 = vrot.lane.b32.xlu0 %v1539, 88
      %v1559 = vpop.permute.xlu0 %1558
      %1560 = vrot.lane.b32.xlu0 %v1543, 88
      %v1561 = vpop.permute.xlu0 %1560
      %1562 = vrot.lane.b32.xlu0 %v1547, 88
      %v1563 = vpop.permute.xlu0 %1562
      %vm1572 = vcmask 782016
      %1573 = vst.msk [vmem:[#allocation2] sm:$0xf] %vm1572, %v1549
      %1574 = vst.msk [vmem:[#allocation2 + $0x8] sm:$0xf] %vm1572, %v1551
      %1575 = vst.msk [vmem:[#allocation2 + $0x10] sm:$0xf] %vm1572, %v1553
      %1576 = vst.msk [vmem:[#allocation2 + $0x18] sm:$0xf] %vm1572, %v1555
      %1577 = vst.msk [vmem:[#allocation2 + $0x20] sm:$0xf] %vm1572, %v1557
      %1578 = vst.msk [vmem:[#allocation2 + $0x28] sm:$0xf] %vm1572, %v1559
      %1579 = vst.msk [vmem:[#allocation2 + $0x30] sm:$0xf] %vm1572, %v1561
      %1580 = vst.msk [vmem:[#allocation2 + $0x38] sm:$0xf] %vm1572, %v1563
      %s1581 = scalar_lea.vmem %s319, 8
      %v1582 = vld [vmem:[%s1581] sm:$0xf]
      %v1583 = vld [vmem:[%s1581 + $0x8] sm:$0xf]
      %v1584 = vld [vmem:[%s1581 + $0x10] sm:$0xf]
      %v1585 = vld [vmem:[%s1581 + $0x18] sm:$0xf]
      %v1586 = vld [vmem:[%s1581 + $0x20] sm:$0xf]
      %v1587 = vld [vmem:[%s1581 + $0x28] sm:$0xf]
      %v1588 = vld [vmem:[%s1581 + $0x30] sm:$0xf]
      %v1589 = vld [vmem:[%s1581 + $0x38] sm:$0xf]
      %1598 = vrot.lane.b32.xlu0 %v1582, 96
      %v1599 = vpop.permute.xlu0 %1598
      %1600 = vrot.lane.b32.xlu0 %v1583, 96
      %v1601 = vpop.permute.xlu0 %1600
      %1602 = vrot.lane.b32.xlu0 %v1584, 96
      %v1603 = vpop.permute.xlu0 %1602
      %1604 = vrot.lane.b32.xlu0 %v1585, 96
      %v1605 = vpop.permute.xlu0 %1604
      %1606 = vrot.lane.b32.xlu0 %v1586, 96
      %v1607 = vpop.permute.xlu0 %1606
      %1608 = vrot.lane.b32.xlu0 %v1587, 96
      %v1609 = vpop.permute.xlu0 %1608
      %1610 = vrot.lane.b32.xlu0 %v1588, 96
      %v1611 = vpop.permute.xlu0 %1610
      %1612 = vrot.lane.b32.xlu0 %v1589, 96
      %v1613 = vpop.permute.xlu0 %1612
      %vm1622 = vcmask 847616
      %1623 = vst.msk [vmem:[#allocation2] sm:$0xf] %vm1622, %v1599
      %1624 = vst.msk [vmem:[#allocation2 + $0x8] sm:$0xf] %vm1622, %v1601
      %1625 = vst.msk [vmem:[#allocation2 + $0x10] sm:$0xf] %vm1622, %v1603
      %1626 = vst.msk [vmem:[#allocation2 + $0x18] sm:$0xf] %vm1622, %v1605
      %1627 = vst.msk [vmem:[#allocation2 + $0x20] sm:$0xf] %vm1622, %v1607
      %1628 = vst.msk [vmem:[#allocation2 + $0x28] sm:$0xf] %vm1622, %v1609
      %1629 = vst.msk [vmem:[#allocation2 + $0x30] sm:$0xf] %vm1622, %v1611
      %1630 = vst.msk [vmem:[#allocation2 + $0x38] sm:$0xf] %vm1622, %v1613
      %v1631 = vld [vmem:[%s1581] sm:$0xf]
      %v1632 = vld [vmem:[%s1581 + $0x4] sm:$0x1]
      %v1633 = vld [vmem:[%s1581 + $0x8] sm:$0xf]
      %v1634 = vld [vmem:[%s1581 + $0xc] sm:$0x1]
      %v1635 = vld [vmem:[%s1581 + $0x10] sm:$0xf]
      %v1636 = vld [vmem:[%s1581 + $0x14] sm:$0x1]
      %v1637 = vld [vmem:[%s1581 + $0x18] sm:$0xf]
      %v1638 = vld [vmem:[%s1581 + $0x1c] sm:$0x1]
      %v1639 = vld [vmem:[%s1581 + $0x20] sm:$0xf]
      %v1640 = vld [vmem:[%s1581 + $0x24] sm:$0x1]
      %v1641 = vld [vmem:[%s1581 + $0x28] sm:$0xf]
      %v1642 = vld [vmem:[%s1581 + $0x2c] sm:$0x1]
      %v1643 = vld [vmem:[%s1581 + $0x30] sm:$0xf]
      %v1644 = vld [vmem:[%s1581 + $0x34] sm:$0x1]
      %v1645 = vld [vmem:[%s1581 + $0x38] sm:$0xf]
      %v1646 = vld [vmem:[%s1581 + $0x3c] sm:$0x1]
      %v1648 = vshrl.u32 %v1631, 16
      %v1650 = vrot.slane %v1648, 4
      %v1651 = vshll.u32 %v1631, 16
      %v1653 = vrot.slane %v1651, 5
      %v1654 = vor.u32 %v1650, %v1653
      %v1655 = vrot.slane %v1654, 4
      %v1657 = vshll.u32 %v1632, 16
      %v1659 = vrot.slane %v1657, 5
      %v1660 = vsel %vm412, %v1655, %v1659
      %v1662 = vshrl.u32 %v1633, 16
      %v1664 = vrot.slane %v1662, 4
      %v1665 = vshll.u32 %v1633, 16
      %v1667 = vrot.slane %v1665, 5
      %v1668 = vor.u32 %v1664, %v1667
      %v1669 = vrot.slane %v1668, 4
      %v1671 = vshll.u32 %v1634, 16
      %v1673 = vrot.slane %v1671, 5
      %v1674 = vsel %vm412, %v1669, %v1673
      %v1676 = vshrl.u32 %v1635, 16
      %v1678 = vrot.slane %v1676, 4
      %v1679 = vshll.u32 %v1635, 16
      %v1681 = vrot.slane %v1679, 5
      %v1682 = vor.u32 %v1678, %v1681
      %v1683 = vrot.slane %v1682, 4
      %v1685 = vshll.u32 %v1636, 16
      %v1687 = vrot.slane %v1685, 5
      %v1688 = vsel %vm412, %v1683, %v1687
      %v1690 = vshrl.u32 %v1637, 16
      %v1692 = vrot.slane %v1690, 4
      %v1693 = vshll.u32 %v1637, 16
      %v1695 = vrot.slane %v1693, 5
      %v1696 = vor.u32 %v1692, %v1695
      %v1697 = vrot.slane %v1696, 4
      %v1699 = vshll.u32 %v1638, 16
      %v1701 = vrot.slane %v1699, 5
      %v1702 = vsel %vm412, %v1697, %v1701
      %v1704 = vshrl.u32 %v1639, 16
      %v1706 = vrot.slane %v1704, 4
      %v1707 = vshll.u32 %v1639, 16
      %v1709 = vrot.slane %v1707, 5
      %v1710 = vor.u32 %v1706, %v1709
      %v1711 = vrot.slane %v1710, 4
      %v1713 = vshll.u32 %v1640, 16
      %v1715 = vrot.slane %v1713, 5
      %v1716 = vsel %vm412, %v1711, %v1715
      %v1718 = vshrl.u32 %v1641, 16
      %v1720 = vrot.slane %v1718, 4
      %v1721 = vshll.u32 %v1641, 16
      %v1723 = vrot.slane %v1721, 5
      %v1724 = vor.u32 %v1720, %v1723
      %v1725 = vrot.slane %v1724, 4
      %v1727 = vshll.u32 %v1642, 16
      %v1729 = vrot.slane %v1727, 5
      %v1730 = vsel %vm412, %v1725, %v1729
      %v1732 = vshrl.u32 %v1643, 16
      %v1734 = vrot.slane %v1732, 4
      %v1735 = vshll.u32 %v1643, 16
      %v1737 = vrot.slane %v1735, 5
      %v1738 = vor.u32 %v1734, %v1737
      %v1739 = vrot.slane %v1738, 4
      %v1741 = vshll.u32 %v1644, 16
      %v1743 = vrot.slane %v1741, 5
      %v1744 = vsel %vm412, %v1739, %v1743
      %v1746 = vshrl.u32 %v1645, 16
      %v1748 = vrot.slane %v1746, 4
      %v1749 = vshll.u32 %v1645, 16
      %v1751 = vrot.slane %v1749, 5
      %v1752 = vor.u32 %v1748, %v1751
      %v1753 = vrot.slane %v1752, 4
      %v1755 = vshll.u32 %v1646, 16
      %v1757 = vrot.slane %v1755, 5
      %v1758 = vsel %vm412, %v1753, %v1757
      %1759 = vrot.lane.b32.xlu0 %v1660, 104
      %v1760 = vpop.permute.xlu0 %1759
      %1761 = vrot.lane.b32.xlu0 %v1674, 104
      %v1762 = vpop.permute.xlu0 %1761
      %1763 = vrot.lane.b32.xlu0 %v1688, 104
      %v1764 = vpop.permute.xlu0 %1763
      %1765 = vrot.lane.b32.xlu0 %v1702, 104
      %v1766 = vpop.permute.xlu0 %1765
      %1767 = vrot.lane.b32.xlu0 %v1716, 104
      %v1768 = vpop.permute.xlu0 %1767
      %1769 = vrot.lane.b32.xlu0 %v1730, 104
      %v1770 = vpop.permute.xlu0 %1769
      %1771 = vrot.lane.b32.xlu0 %v1744, 104
      %v1772 = vpop.permute.xlu0 %1771
      %1773 = vrot.lane.b32.xlu0 %v1758, 104
      %v1774 = vpop.permute.xlu0 %1773
      %vm1783 = vcmask 913216
      %1784 = vst.msk [vmem:[#allocation2] sm:$0xf] %vm1783, %v1760
      %1785 = vst.msk [vmem:[#allocation2 + $0x8] sm:$0xf] %vm1783, %v1762
      %1786 = vst.msk [vmem:[#allocation2 + $0x10] sm:$0xf] %vm1783, %v1764
      %1787 = vst.msk [vmem:[#allocation2 + $0x18] sm:$0xf] %vm1783, %v1766
      %1788 = vst.msk [vmem:[#allocation2 + $0x20] sm:$0xf] %vm1783, %v1768
      %1789 = vst.msk [vmem:[#allocation2 + $0x28] sm:$0xf] %vm1783, %v1770
      %1790 = vst.msk [vmem:[#allocation2 + $0x30] sm:$0xf] %vm1783, %v1772
      %1791 = vst.msk [vmem:[#allocation2 + $0x38] sm:$0xf] %vm1783, %v1774
      %v1792 = vld [vmem:[%s1581] sm:$0xe]
      %v1793 = vld [vmem:[%s1581 + $0x4] sm:$0x1]
      %v1794 = vld [vmem:[%s1581 + $0x8] sm:$0xe]
      %v1795 = vld [vmem:[%s1581 + $0xc] sm:$0x1]
      %v1796 = vld [vmem:[%s1581 + $0x10] sm:$0xe]
      %v1797 = vld [vmem:[%s1581 + $0x14] sm:$0x1]
      %v1798 = vld [vmem:[%s1581 + $0x18] sm:$0xe]
      %v1799 = vld [vmem:[%s1581 + $0x1c] sm:$0x1]
      %v1800 = vld [vmem:[%s1581 + $0x20] sm:$0xe]
      %v1801 = vld [vmem:[%s1581 + $0x24] sm:$0x1]
      %v1802 = vld [vmem:[%s1581 + $0x28] sm:$0xe]
      %v1803 = vld [vmem:[%s1581 + $0x2c] sm:$0x1]
      %v1804 = vld [vmem:[%s1581 + $0x30] sm:$0xe]
      %v1805 = vld [vmem:[%s1581 + $0x34] sm:$0x1]
      %v1806 = vld [vmem:[%s1581 + $0x38] sm:$0xe]
      %v1807 = vld [vmem:[%s1581 + $0x3c] sm:$0x1]
      %v1824 = vrot.slane %v1792, 5
      %v1825 = vrot.slane %v1824, 4
      %v1826 = vrot.slane %v1793, 5
      %v1827 = vsel %vm592, %v1825, %v1826
      %v1828 = vrot.slane %v1794, 5
      %v1829 = vrot.slane %v1828, 4
      %v1830 = vrot.slane %v1795, 5
      %v1831 = vsel %vm592, %v1829, %v1830
      %v1832 = vrot.slane %v1796, 5
      %v1833 = vrot.slane %v1832, 4
      %v1834 = vrot.slane %v1797, 5
      %v1835 = vsel %vm592, %v1833, %v1834
      %v1836 = vrot.slane %v1798, 5
      %v1837 = vrot.slane %v1836, 4
      %v1838 = vrot.slane %v1799, 5
      %v1839 = vsel %vm592, %v1837, %v1838
      %v1840 = vrot.slane %v1800, 5
      %v1841 = vrot.slane %v1840, 4
      %v1842 = vrot.slane %v1801, 5
      %v1843 = vsel %vm592, %v1841, %v1842
      %v1844 = vrot.slane %v1802, 5
      %v1845 = vrot.slane %v1844, 4
      %v1846 = vrot.slane %v1803, 5
      %v1847 = vsel %vm592, %v1845, %v1846
      %v1848 = vrot.slane %v1804, 5
      %v1849 = vrot.slane %v1848, 4
      %v1850 = vrot.slane %v1805, 5
      %v1851 = vsel %vm592, %v1849, %v1850
      %v1852 = vrot.slane %v1806, 5
      %v1853 = vrot.slane %v1852, 4
      %v1854 = vrot.slane %v1807, 5
      %v1855 = vsel %vm592, %v1853, %v1854
      %1856 = vrot.lane.b32.xlu0 %v1827, 112
      %v1857 = vpop.permute.xlu0 %1856
      %1858 = vrot.lane.b32.xlu0 %v1831, 112
      %v1859 = vpop.permute.xlu0 %1858
      %1860 = vrot.lane.b32.xlu0 %v1835, 112
      %v1861 = vpop.permute.xlu0 %1860
      %1862 = vrot.lane.b32.xlu0 %v1839, 112
      %v1863 = vpop.permute.xlu0 %1862
      %1864 = vrot.lane.b32.xlu0 %v1843, 112
      %v1865 = vpop.permute.xlu0 %1864
      %1866 = vrot.lane.b32.xlu0 %v1847, 112
      %v1867 = vpop.permute.xlu0 %1866
      %1868 = vrot.lane.b32.xlu0 %v1851, 112
      %v1869 = vpop.permute.xlu0 %1868
      %1870 = vrot.lane.b32.xlu0 %v1855, 112
      %v1871 = vpop.permute.xlu0 %1870
      %vm1880 = vcmask 978816
      %1881 = vst.msk [vmem:[#allocation2] sm:$0xf] %vm1880, %v1857
      %1882 = vst.msk [vmem:[#allocation2 + $0x8] sm:$0xf] %vm1880, %v1859
      %1883 = vst.msk [vmem:[#allocation2 + $0x10] sm:$0xf] %vm1880, %v1861
      %1884 = vst.msk [vmem:[#allocation2 + $0x18] sm:$0xf] %vm1880, %v1863
      %1885 = vst.msk [vmem:[#allocation2 + $0x20] sm:$0xf] %vm1880, %v1865
      %1886 = vst.msk [vmem:[#allocation2 + $0x28] sm:$0xf] %vm1880, %v1867
      %1887 = vst.msk [vmem:[#allocation2 + $0x30] sm:$0xf] %vm1880, %v1869
      %1888 = vst.msk [vmem:[#allocation2 + $0x38] sm:$0xf] %vm1880, %v1871
      %s1889 = scalar_lea.vmem %s319, 16
      %v1890 = vld [vmem:[%s1889] sm:$0xf]
      %v1891 = vld [vmem:[%s1889 + $0x8] sm:$0xf]
      %v1892 = vld [vmem:[%s1889 + $0x10] sm:$0xf]
      %v1893 = vld [vmem:[%s1889 + $0x18] sm:$0xf]
      %v1894 = vld [vmem:[%s1889 + $0x20] sm:$0xf]
      %v1895 = vld [vmem:[%s1889 + $0x28] sm:$0xf]
      %v1896 = vld [vmem:[%s1889 + $0x30] sm:$0xf]
      %v1897 = vld [vmem:[%s1889 + $0x38] sm:$0xf]
      %1906 = vrot.lane.b32.xlu0 %v1890, 120
      %v1907 = vpop.permute.xlu0 %1906
      %1908 = vrot.lane.b32.xlu0 %v1891, 120
      %v1909 = vpop.permute.xlu0 %1908
      %1910 = vrot.lane.b32.xlu0 %v1892, 120
      %v1911 = vpop.permute.xlu0 %1910
      %1912 = vrot.lane.b32.xlu0 %v1893, 120
      %v1913 = vpop.permute.xlu0 %1912
      %1914 = vrot.lane.b32.xlu0 %v1894, 120
      %v1915 = vpop.permute.xlu0 %1914
      %1916 = vrot.lane.b32.xlu0 %v1895, 120
      %v1917 = vpop.permute.xlu0 %1916
      %1918 = vrot.lane.b32.xlu0 %v1896, 120
      %v1919 = vpop.permute.xlu0 %1918
      %1920 = vrot.lane.b32.xlu0 %v1897, 120
      %v1921 = vpop.permute.xlu0 %1920
      %vm1930 = vcmask 1044416
      %1931 = vst.msk [vmem:[#allocation2] sm:$0xf] %vm1930, %v1907
      %1932 = vst.msk [vmem:[#allocation2 + $0x8] sm:$0xf] %vm1930, %v1909
      %1933 = vst.msk [vmem:[#allocation2 + $0x10] sm:$0xf] %vm1930, %v1911
      %1934 = vst.msk [vmem:[#allocation2 + $0x18] sm:$0xf] %vm1930, %v1913
      %1935 = vst.msk [vmem:[#allocation2 + $0x20] sm:$0xf] %vm1930, %v1915
      %1936 = vst.msk [vmem:[#allocation2 + $0x28] sm:$0xf] %vm1930, %v1917
      %1937 = vst.msk [vmem:[#allocation2 + $0x30] sm:$0xf] %vm1930, %v1919
      %1938 = vst.msk [vmem:[#allocation2 + $0x38] sm:$0xf] %vm1930, %v1921
      %v1939 = vld [vmem:[%s1889] sm:$0xf]
      %v1940 = vld [vmem:[%s1889 + $0x4] sm:$0x1]
      %v1941 = vld [vmem:[%s1889 + $0x8] sm:$0xf]
      %v1942 = vld [vmem:[%s1889 + $0xc] sm:$0x1]
      %v1943 = vld [vmem:[%s1889 + $0x10] sm:$0xf]
      %v1944 = vld [vmem:[%s1889 + $0x14] sm:$0x1]
      %v1945 = vld [vmem:[%s1889 + $0x18] sm:$0xf]
      %v1946 = vld [vmem:[%s1889 + $0x1c] sm:$0x1]
      %v1947 = vld [vmem:[%s1889 + $0x20] sm:$0xf]
      %v1948 = vld [vmem:[%s1889 + $0x24] sm:$0x1]
      %v1949 = vld [vmem:[%s1889 + $0x28] sm:$0xf]
      %v1950 = vld [vmem:[%s1889 + $0x2c] sm:$0x1]
      %v1951 = vld [vmem:[%s1889 + $0x30] sm:$0xf]
      %v1952 = vld [vmem:[%s1889 + $0x34] sm:$0x1]
      %v1953 = vld [vmem:[%s1889 + $0x38] sm:$0xf]
      %v1954 = vld [vmem:[%s1889 + $0x3c] sm:$0x1]
      %v1956 = vshrl.u32 %v1939, 16
      %v1958 = vrot.slane %v1956, 4
      %v1959 = vshll.u32 %v1939, 16
      %v1961 = vrot.slane %v1959, 5
      %v1962 = vor.u32 %v1958, %v1961
      %v1963 = vrot.slane %v1962, 4
      %v1965 = vshll.u32 %v1940, 16
      %v1967 = vrot.slane %v1965, 5
      %v1968 = vsel %vm412, %v1963, %v1967
      %v1970 = vshrl.u32 %v1941, 16
      %v1972 = vrot.slane %v1970, 4
      %v1973 = vshll.u32 %v1941, 16
      %v1975 = vrot.slane %v1973, 5
      %v1976 = vor.u32 %v1972, %v1975
      %v1977 = vrot.slane %v1976, 4
      %v1979 = vshll.u32 %v1942, 16
      %v1981 = vrot.slane %v1979, 5
      %v1982 = vsel %vm412, %v1977, %v1981
      %v1984 = vshrl.u32 %v1943, 16
      %v1986 = vrot.slane %v1984, 4
      %v1987 = vshll.u32 %v1943, 16
      %v1989 = vrot.slane %v1987, 5
      %v1990 = vor.u32 %v1986, %v1989
      %v1991 = vrot.slane %v1990, 4
      %v1993 = vshll.u32 %v1944, 16
      %v1995 = vrot.slane %v1993, 5
      %v1996 = vsel %vm412, %v1991, %v1995
      %v1998 = vshrl.u32 %v1945, 16
      %v2000 = vrot.slane %v1998, 4
      %v2001 = vshll.u32 %v1945, 16
      %v2003 = vrot.slane %v2001, 5
      %v2004 = vor.u32 %v2000, %v2003
      %v2005 = vrot.slane %v2004, 4
      %v2007 = vshll.u32 %v1946, 16
      %v2009 = vrot.slane %v2007, 5
      %v2010 = vsel %vm412, %v2005, %v2009
      %v2012 = vshrl.u32 %v1947, 16
      %v2014 = vrot.slane %v2012, 4
      %v2015 = vshll.u32 %v1947, 16
      %v2017 = vrot.slane %v2015, 5
      %v2018 = vor.u32 %v2014, %v2017
      %v2019 = vrot.slane %v2018, 4
      %v2021 = vshll.u32 %v1948, 16
      %v2023 = vrot.slane %v2021, 5
      %v2024 = vsel %vm412, %v2019, %v2023
      %v2026 = vshrl.u32 %v1949, 16
      %v2028 = vrot.slane %v2026, 4
      %v2029 = vshll.u32 %v1949, 16
      %v2031 = vrot.slane %v2029, 5
      %v2032 = vor.u32 %v2028, %v2031
      %v2033 = vrot.slane %v2032, 4
      %v2035 = vshll.u32 %v1950, 16
      %v2037 = vrot.slane %v2035, 5
      %v2038 = vsel %vm412, %v2033, %v2037
      %v2040 = vshrl.u32 %v1951, 16
      %v2042 = vrot.slane %v2040, 4
      %v2043 = vshll.u32 %v1951, 16
      %v2045 = vrot.slane %v2043, 5
      %v2046 = vor.u32 %v2042, %v2045
      %v2047 = vrot.slane %v2046, 4
      %v2049 = vshll.u32 %v1952, 16
      %v2051 = vrot.slane %v2049, 5
      %v2052 = vsel %vm412, %v2047, %v2051
      %v2054 = vshrl.u32 %v1953, 16
      %v2056 = vrot.slane %v2054, 4
      %v2057 = vshll.u32 %v1953, 16
      %v2059 = vrot.slane %v2057, 5
      %v2060 = vor.u32 %v2056, %v2059
      %v2061 = vrot.slane %v2060, 4
      %v2063 = vshll.u32 %v1954, 16
      %v2065 = vrot.slane %v2063, 5
      %v2066 = vsel %vm412, %v2061, %v2065
      %2075 = vst.msk [vmem:[#allocation2 + $0x4] sm:$0xf] %vm385, %v1968
      %2076 = vst.msk [vmem:[#allocation2 + $0xc] sm:$0xf] %vm385, %v1982
      %2077 = vst.msk [vmem:[#allocation2 + $0x14] sm:$0xf] %vm385, %v1996
      %2078 = vst.msk [vmem:[#allocation2 + $0x1c] sm:$0xf] %vm385, %v2010
      %2079 = vst.msk [vmem:[#allocation2 + $0x24] sm:$0xf] %vm385, %v2024
      %2080 = vst.msk [vmem:[#allocation2 + $0x2c] sm:$0xf] %vm385, %v2038
      %2081 = vst.msk [vmem:[#allocation2 + $0x34] sm:$0xf] %vm385, %v2052
      %2082 = vst.msk [vmem:[#allocation2 + $0x3c] sm:$0xf] %vm385, %v2066
      %v2083 = vld [vmem:[%s1889] sm:$0xe]
      %v2084 = vld [vmem:[%s1889 + $0x4] sm:$0x1]
      %v2085 = vld [vmem:[%s1889 + $0x8] sm:$0xe]
      %v2086 = vld [vmem:[%s1889 + $0xc] sm:$0x1]
      %v2087 = vld [vmem:[%s1889 + $0x10] sm:$0xe]
      %v2088 = vld [vmem:[%s1889 + $0x14] sm:$0x1]
      %v2089 = vld [vmem:[%s1889 + $0x18] sm:$0xe]
      %v2090 = vld [vmem:[%s1889 + $0x1c] sm:$0x1]
      %v2091 = vld [vmem:[%s1889 + $0x20] sm:$0xe]
      %v2092 = vld [vmem:[%s1889 + $0x24] sm:$0x1]
      %v2093 = vld [vmem:[%s1889 + $0x28] sm:$0xe]
      %v2094 = vld [vmem:[%s1889 + $0x2c] sm:$0x1]
      %v2095 = vld [vmem:[%s1889 + $0x30] sm:$0xe]
      %v2096 = vld [vmem:[%s1889 + $0x34] sm:$0x1]
      %v2097 = vld [vmem:[%s1889 + $0x38] sm:$0xe]
      %v2098 = vld [vmem:[%s1889 + $0x3c] sm:$0x1]
      %v2115 = vrot.slane %v2083, 5
      %v2116 = vrot.slane %v2115, 4
      %v2117 = vrot.slane %v2084, 5
      %v2118 = vsel %vm592, %v2116, %v2117
      %v2119 = vrot.slane %v2085, 5
      %v2120 = vrot.slane %v2119, 4
      %v2121 = vrot.slane %v2086, 5
      %v2122 = vsel %vm592, %v2120, %v2121
      %v2123 = vrot.slane %v2087, 5
      %v2124 = vrot.slane %v2123, 4
      %v2125 = vrot.slane %v2088, 5
      %v2126 = vsel %vm592, %v2124, %v2125
      %v2127 = vrot.slane %v2089, 5
      %v2128 = vrot.slane %v2127, 4
      %v2129 = vrot.slane %v2090, 5
      %v2130 = vsel %vm592, %v2128, %v2129
      %v2131 = vrot.slane %v2091, 5
      %v2132 = vrot.slane %v2131, 4
      %v2133 = vrot.slane %v2092, 5
      %v2134 = vsel %vm592, %v2132, %v2133
      %v2135 = vrot.slane %v2093, 5
      %v2136 = vrot.slane %v2135, 4
      %v2137 = vrot.slane %v2094, 5
      %v2138 = vsel %vm592, %v2136, %v2137
      %v2139 = vrot.slane %v2095, 5
      %v2140 = vrot.slane %v2139, 4
      %v2141 = vrot.slane %v2096, 5
      %v2142 = vsel %vm592, %v2140, %v2141
      %v2143 = vrot.slane %v2097, 5
      %v2144 = vrot.slane %v2143, 4
      %v2145 = vrot.slane %v2098, 5
      %v2146 = vsel %vm592, %v2144, %v2145
      %2147 = vrot.lane.b32.xlu0 %v2118, 8
      %v2148 = vpop.permute.xlu0 %2147
      %2149 = vrot.lane.b32.xlu0 %v2122, 8
      %v2150 = vpop.permute.xlu0 %2149
      %2151 = vrot.lane.b32.xlu0 %v2126, 8
      %v2152 = vpop.permute.xlu0 %2151
      %2153 = vrot.lane.b32.xlu0 %v2130, 8
      %v2154 = vpop.permute.xlu0 %2153
      %2155 = vrot.lane.b32.xlu0 %v2134, 8
      %v2156 = vpop.permute.xlu0 %2155
      %2157 = vrot.lane.b32.xlu0 %v2138, 8
      %v2158 = vpop.permute.xlu0 %2157
      %2159 = vrot.lane.b32.xlu0 %v2142, 8
      %v2160 = vpop.permute.xlu0 %2159
      %2161 = vrot.lane.b32.xlu0 %v2146, 8
      %v2162 = vpop.permute.xlu0 %2161
      %2171 = vst.msk [vmem:[#allocation2 + $0x4] sm:$0xf] %vm549, %v2148
      %2172 = vst.msk [vmem:[#allocation2 + $0xc] sm:$0xf] %vm549, %v2150
      %2173 = vst.msk [vmem:[#allocation2 + $0x14] sm:$0xf] %vm549, %v2152
      %2174 = vst.msk [vmem:[#allocation2 + $0x1c] sm:$0xf] %vm549, %v2154
      %2175 = vst.msk [vmem:[#allocation2 + $0x24] sm:$0xf] %vm549, %v2156
      %2176 = vst.msk [vmem:[#allocation2 + $0x2c] sm:$0xf] %vm549, %v2158
      %2177 = vst.msk [vmem:[#allocation2 + $0x34] sm:$0xf] %vm549, %v2160
      %2178 = vst.msk [vmem:[#allocation2 + $0x3c] sm:$0xf] %vm549, %v2162
      %v2179 = vld [vmem:[%s330] sm:$0xf]
      %v2180 = vld [vmem:[%s330 + $0x8] sm:$0xf]
      %v2181 = vld [vmem:[%s330 + $0x10] sm:$0xf]
      %v2182 = vld [vmem:[%s330 + $0x18] sm:$0xf]
      %v2183 = vld [vmem:[%s330 + $0x20] sm:$0xf]
      %v2184 = vld [vmem:[%s330 + $0x28] sm:$0xf]
      %v2185 = vld [vmem:[%s330 + $0x30] sm:$0xf]
      %v2186 = vld [vmem:[%s330 + $0x38] sm:$0xf]
      %2195 = vrot.lane.b32.xlu0 %v2179, 16
      %v2196 = vpop.permute.xlu0 %2195
      %2197 = vrot.lane.b32.xlu0 %v2180, 16
      %v2198 = vpop.permute.xlu0 %2197
      %2199 = vrot.lane.b32.xlu0 %v2181, 16
      %v2200 = vpop.permute.xlu0 %2199
      %2201 = vrot.lane.b32.xlu0 %v2182, 16
      %v2202 = vpop.permute.xlu0 %2201
      %2203 = vrot.lane.b32.xlu0 %v2183, 16
      %v2204 = vpop.permute.xlu0 %2203
      %2205 = vrot.lane.b32.xlu0 %v2184, 16
      %v2206 = vpop.permute.xlu0 %2205
      %2207 = vrot.lane.b32.xlu0 %v2185, 16
      %v2208 = vpop.permute.xlu0 %2207
      %2209 = vrot.lane.b32.xlu0 %v2186, 16
      %v2210 = vpop.permute.xlu0 %2209
      %2219 = vst.msk [vmem:[#allocation2 + $0x4] sm:$0xf] %vm649, %v2196
      %2220 = vst.msk [vmem:[#allocation2 + $0xc] sm:$0xf] %vm649, %v2198
      %2221 = vst.msk [vmem:[#allocation2 + $0x14] sm:$0xf] %vm649, %v2200
      %2222 = vst.msk [vmem:[#allocation2 + $0x1c] sm:$0xf] %vm649, %v2202
      %2223 = vst.msk [vmem:[#allocation2 + $0x24] sm:$0xf] %vm649, %v2204
      %2224 = vst.msk [vmem:[#allocation2 + $0x2c] sm:$0xf] %vm649, %v2206
      %2225 = vst.msk [vmem:[#allocation2 + $0x34] sm:$0xf] %vm649, %v2208
      %2226 = vst.msk [vmem:[#allocation2 + $0x3c] sm:$0xf] %vm649, %v2210
      %v2227 = vld [vmem:[%s330] sm:$0xf]
      %v2228 = vld [vmem:[%s330 + $0x4] sm:$0x1]
      %v2229 = vld [vmem:[%s330 + $0x8] sm:$0xf]
      %v2230 = vld [vmem:[%s330 + $0xc] sm:$0x1]
      %v2231 = vld [vmem:[%s330 + $0x10] sm:$0xf]
      %v2232 = vld [vmem:[%s330 + $0x14] sm:$0x1]
      %v2233 = vld [vmem:[%s330 + $0x18] sm:$0xf]
      %v2234 = vld [vmem:[%s330 + $0x1c] sm:$0x1]
      %v2235 = vld [vmem:[%s330 + $0x20] sm:$0xf]
      %v2236 = vld [vmem:[%s330 + $0x24] sm:$0x1]
      %v2237 = vld [vmem:[%s330 + $0x28] sm:$0xf]
      %v2238 = vld [vmem:[%s330 + $0x2c] sm:$0x1]
      %v2239 = vld [vmem:[%s330 + $0x30] sm:$0xf]
      %v2240 = vld [vmem:[%s330 + $0x34] sm:$0x1]
      %v2241 = vld [vmem:[%s330 + $0x38] sm:$0xf]
      %v2242 = vld [vmem:[%s330 + $0x3c] sm:$0x1]
      %v2244 = vshrl.u32 %v2227, 16
      %v2246 = vrot.slane %v2244, 4
      %v2247 = vshll.u32 %v2227, 16
      %v2249 = vrot.slane %v2247, 5
      %v2250 = vor.u32 %v2246, %v2249
      %v2251 = vrot.slane %v2250, 4
      %v2253 = vshll.u32 %v2228, 16
      %v2255 = vrot.slane %v2253, 5
      %v2256 = vsel %vm412, %v2251, %v2255
      %v2258 = vshrl.u32 %v2229, 16
      %v2260 = vrot.slane %v2258, 4
      %v2261 = vshll.u32 %v2229, 16
      %v2263 = vrot.slane %v2261, 5
      %v2264 = vor.u32 %v2260, %v2263
      %v2265 = vrot.slane %v2264, 4
      %v2267 = vshll.u32 %v2230, 16
      %v2269 = vrot.slane %v2267, 5
      %v2270 = vsel %vm412, %v2265, %v2269
      %v2272 = vshrl.u32 %v2231, 16
      %v2274 = vrot.slane %v2272, 4
      %v2275 = vshll.u32 %v2231, 16
      %v2277 = vrot.slane %v2275, 5
      %v2278 = vor.u32 %v2274, %v2277
      %v2279 = vrot.slane %v2278, 4
      %v2281 = vshll.u32 %v2232, 16
      %v2283 = vrot.slane %v2281, 5
      %v2284 = vsel %vm412, %v2279, %v2283
      %v2286 = vshrl.u32 %v2233, 16
      %v2288 = vrot.slane %v2286, 4
      %v2289 = vshll.u32 %v2233, 16
      %v2291 = vrot.slane %v2289, 5
      %v2292 = vor.u32 %v2288, %v2291
      %v2293 = vrot.slane %v2292, 4
      %v2295 = vshll.u32 %v2234, 16
      %v2297 = vrot.slane %v2295, 5
      %v2298 = vsel %vm412, %v2293, %v2297
      %v2300 = vshrl.u32 %v2235, 16
      %v2302 = vrot.slane %v2300, 4
      %v2303 = vshll.u32 %v2235, 16
      %v2305 = vrot.slane %v2303, 5
      %v2306 = vor.u32 %v2302, %v2305
      %v2307 = vrot.slane %v2306, 4
      %v2309 = vshll.u32 %v2236, 16
      %v2311 = vrot.slane %v2309, 5
      %v2312 = vsel %vm412, %v2307, %v2311
      %v2314 = vshrl.u32 %v2237, 16
      %v2316 = vrot.slane %v2314, 4
      %v2317 = vshll.u32 %v2237, 16
      %v2319 = vrot.slane %v2317, 5
      %v2320 = vor.u32 %v2316, %v2319
      %v2321 = vrot.slane %v2320, 4
      %v2323 = vshll.u32 %v2238, 16
      %v2325 = vrot.slane %v2323, 5
      %v2326 = vsel %vm412, %v2321, %v2325
      %v2328 = vshrl.u32 %v2239, 16
      %v2330 = vrot.slane %v2328, 4
      %v2331 = vshll.u32 %v2239, 16
      %v2333 = vrot.slane %v2331, 5
      %v2334 = vor.u32 %v2330, %v2333
      %v2335 = vrot.slane %v2334, 4
      %v2337 = vshll.u32 %v2240, 16
      %v2339 = vrot.slane %v2337, 5
      %v2340 = vsel %vm412, %v2335, %v2339
      %v2342 = vshrl.u32 %v2241, 16
      %v2344 = vrot.slane %v2342, 4
      %v2345 = vshll.u32 %v2241, 16
      %v2347 = vrot.slane %v2345, 5
      %v2348 = vor.u32 %v2344, %v2347
      %v2349 = vrot.slane %v2348, 4
      %v2351 = vshll.u32 %v2242, 16
      %v2353 = vrot.slane %v2351, 5
      %v2354 = vsel %vm412, %v2349, %v2353
      %2355 = vrot.lane.b32.xlu0 %v2256, 24
      %v2356 = vpop.permute.xlu0 %2355
      %2357 = vrot.lane.b32.xlu0 %v2270, 24
      %v2358 = vpop.permute.xlu0 %2357
      %2359 = vrot.lane.b32.xlu0 %v2284, 24
      %v2360 = vpop.permute.xlu0 %2359
      %2361 = vrot.lane.b32.xlu0 %v2298, 24
      %v2362 = vpop.permute.xlu0 %2361
      %2363 = vrot.lane.b32.xlu0 %v2312, 24
      %v2364 = vpop.permute.xlu0 %2363
      %2365 = vrot.lane.b32.xlu0 %v2326, 24
      %v2366 = vpop.permute.xlu0 %2365
      %2367 = vrot.lane.b32.xlu0 %v2340, 24
      %v2368 = vpop.permute.xlu0 %2367
      %2369 = vrot.lane.b32.xlu0 %v2354, 24
      %v2370 = vpop.permute.xlu0 %2369
      %2379 = vst.msk [vmem:[#allocation2 + $0x4] sm:$0xf] %vm699, %v2356
      %2380 = vst.msk [vmem:[#allocation2 + $0xc] sm:$0xf] %vm699, %v2358
      %2381 = vst.msk [vmem:[#allocation2 + $0x14] sm:$0xf] %vm699, %v2360
      %2382 = vst.msk [vmem:[#allocation2 + $0x1c] sm:$0xf] %vm699, %v2362
      %2383 = vst.msk [vmem:[#allocation2 + $0x24] sm:$0xf] %vm699, %v2364
      %2384 = vst.msk [vmem:[#allocation2 + $0x2c] sm:$0xf] %vm699, %v2366
      %2385 = vst.msk [vmem:[#allocation2 + $0x34] sm:$0xf] %vm699, %v2368
      %2386 = vst.msk [vmem:[#allocation2 + $0x3c] sm:$0xf] %vm699, %v2370
      %v2387 = vld [vmem:[%s330] sm:$0xe]
      %v2388 = vld [vmem:[%s330 + $0x4] sm:$0x1]
      %v2389 = vld [vmem:[%s330 + $0x8] sm:$0xe]
      %v2390 = vld [vmem:[%s330 + $0xc] sm:$0x1]
      %v2391 = vld [vmem:[%s330 + $0x10] sm:$0xe]
      %v2392 = vld [vmem:[%s330 + $0x14] sm:$0x1]
      %v2393 = vld [vmem:[%s330 + $0x18] sm:$0xe]
      %v2394 = vld [vmem:[%s330 + $0x1c] sm:$0x1]
      %v2395 = vld [vmem:[%s330 + $0x20] sm:$0xe]
      %v2396 = vld [vmem:[%s330 + $0x24] sm:$0x1]
      %v2397 = vld [vmem:[%s330 + $0x28] sm:$0xe]
      %v2398 = vld [vmem:[%s330 + $0x2c] sm:$0x1]
      %v2399 = vld [vmem:[%s330 + $0x30] sm:$0xe]
      %v2400 = vld [vmem:[%s330 + $0x34] sm:$0x1]
      %v2401 = vld [vmem:[%s330 + $0x38] sm:$0xe]
      %v2402 = vld [vmem:[%s330 + $0x3c] sm:$0x1]
      %v2419 = vrot.slane %v2387, 5
      %v2420 = vrot.slane %v2419, 4
      %v2421 = vrot.slane %v2388, 5
      %v2422 = vsel %vm592, %v2420, %v2421
      %v2423 = vrot.slane %v2389, 5
      %v2424 = vrot.slane %v2423, 4
      %v2425 = vrot.slane %v2390, 5
      %v2426 = vsel %vm592, %v2424, %v2425
      %v2427 = vrot.slane %v2391, 5
      %v2428 = vrot.slane %v2427, 4
      %v2429 = vrot.slane %v2392, 5
      %v2430 = vsel %vm592, %v2428, %v2429
      %v2431 = vrot.slane %v2393, 5
      %v2432 = vrot.slane %v2431, 4
      %v2433 = vrot.slane %v2394, 5
      %v2434 = vsel %vm592, %v2432, %v2433
      %v2435 = vrot.slane %v2395, 5
      %v2436 = vrot.slane %v2435, 4
      %v2437 = vrot.slane %v2396, 5
      %v2438 = vsel %vm592, %v2436, %v2437
      %v2439 = vrot.slane %v2397, 5
      %v2440 = vrot.slane %v2439, 4
      %v2441 = vrot.slane %v2398, 5
      %v2442 = vsel %vm592, %v2440, %v2441
      %v2443 = vrot.slane %v2399, 5
      %v2444 = vrot.slane %v2443, 4
      %v2445 = vrot.slane %v2400, 5
      %v2446 = vsel %vm592, %v2444, %v2445
      %v2447 = vrot.slane %v2401, 5
      %v2448 = vrot.slane %v2447, 4
      %v2449 = vrot.slane %v2402, 5
      %v2450 = vsel %vm592, %v2448, %v2449
      %2451 = vrot.lane.b32.xlu0 %v2422, 32
      %v2452 = vpop.permute.xlu0 %2451
      %2453 = vrot.lane.b32.xlu0 %v2426, 32
      %v2454 = vpop.permute.xlu0 %2453
      %2455 = vrot.lane.b32.xlu0 %v2430, 32
      %v2456 = vpop.permute.xlu0 %2455
      %2457 = vrot.lane.b32.xlu0 %v2434, 32
      %v2458 = vpop.permute.xlu0 %2457
      %2459 = vrot.lane.b32.xlu0 %v2438, 32
      %v2460 = vpop.permute.xlu0 %2459
      %2461 = vrot.lane.b32.xlu0 %v2442, 32
      %v2462 = vpop.permute.xlu0 %2461
      %2463 = vrot.lane.b32.xlu0 %v2446, 32
      %v2464 = vpop.permute.xlu0 %2463
      %2465 = vrot.lane.b32.xlu0 %v2450, 32
      %v2466 = vpop.permute.xlu0 %2465
      %2475 = vst.msk [vmem:[#allocation2 + $0x4] sm:$0xf] %vm860, %v2452
      %2476 = vst.msk [vmem:[#allocation2 + $0xc] sm:$0xf] %vm860, %v2454
      %2477 = vst.msk [vmem:[#allocation2 + $0x14] sm:$0xf] %vm860, %v2456
      %2478 = vst.msk [vmem:[#allocation2 + $0x1c] sm:$0xf] %vm860, %v2458
      %2479 = vst.msk [vmem:[#allocation2 + $0x24] sm:$0xf] %vm860, %v2460
      %2480 = vst.msk [vmem:[#allocation2 + $0x2c] sm:$0xf] %vm860, %v2462
      %2481 = vst.msk [vmem:[#allocation2 + $0x34] sm:$0xf] %vm860, %v2464
      %2482 = vst.msk [vmem:[#allocation2 + $0x3c] sm:$0xf] %vm860, %v2466
      %s2483 = scalar_lea.vmem %s330, 8
      %v2484 = vld [vmem:[%s2483] sm:$0xf]
      %v2485 = vld [vmem:[%s2483 + $0x8] sm:$0xf]
      %v2486 = vld [vmem:[%s2483 + $0x10] sm:$0xf]
      %v2487 = vld [vmem:[%s2483 + $0x18] sm:$0xf]
      %v2488 = vld [vmem:[%s2483 + $0x20] sm:$0xf]
      %v2489 = vld [vmem:[%s2483 + $0x28] sm:$0xf]
      %v2490 = vld [vmem:[%s2483 + $0x30] sm:$0xf]
      %v2491 = vld [vmem:[%s2483 + $0x38] sm:$0xf]
      %2500 = vrot.lane.b32.xlu0 %v2484, 40
      %v2501 = vpop.permute.xlu0 %2500
      %2502 = vrot.lane.b32.xlu0 %v2485, 40
      %v2503 = vpop.permute.xlu0 %2502
      %2504 = vrot.lane.b32.xlu0 %v2486, 40
      %v2505 = vpop.permute.xlu0 %2504
      %2506 = vrot.lane.b32.xlu0 %v2487, 40
      %v2507 = vpop.permute.xlu0 %2506
      %2508 = vrot.lane.b32.xlu0 %v2488, 40
      %v2509 = vpop.permute.xlu0 %2508
      %2510 = vrot.lane.b32.xlu0 %v2489, 40
      %v2511 = vpop.permute.xlu0 %2510
      %2512 = vrot.lane.b32.xlu0 %v2490, 40
      %v2513 = vpop.permute.xlu0 %2512
      %2514 = vrot.lane.b32.xlu0 %v2491, 40
      %v2515 = vpop.permute.xlu0 %2514
      %2524 = vst.msk [vmem:[#allocation2 + $0x4] sm:$0xf] %vm957, %v2501
      %2525 = vst.msk [vmem:[#allocation2 + $0xc] sm:$0xf] %vm957, %v2503
      %2526 = vst.msk [vmem:[#allocation2 + $0x14] sm:$0xf] %vm957, %v2505
      %2527 = vst.msk [vmem:[#allocation2 + $0x1c] sm:$0xf] %vm957, %v2507
      %2528 = vst.msk [vmem:[#allocation2 + $0x24] sm:$0xf] %vm957, %v2509
      %2529 = vst.msk [vmem:[#allocation2 + $0x2c] sm:$0xf] %vm957, %v2511
      %2530 = vst.msk [vmem:[#allocation2 + $0x34] sm:$0xf] %vm957, %v2513
      %2531 = vst.msk [vmem:[#allocation2 + $0x3c] sm:$0xf] %vm957, %v2515
      %v2532 = vld [vmem:[%s2483] sm:$0xf]
      %v2533 = vld [vmem:[%s2483 + $0x4] sm:$0x1]
      %v2534 = vld [vmem:[%s2483 + $0x8] sm:$0xf]
      %v2535 = vld [vmem:[%s2483 + $0xc] sm:$0x1]
      %v2536 = vld [vmem:[%s2483 + $0x10] sm:$0xf]
      %v2537 = vld [vmem:[%s2483 + $0x14] sm:$0x1]
      %v2538 = vld [vmem:[%s2483 + $0x18] sm:$0xf]
      %v2539 = vld [vmem:[%s2483 + $0x1c] sm:$0x1]
      %v2540 = vld [vmem:[%s2483 + $0x20] sm:$0xf]
      %v2541 = vld [vmem:[%s2483 + $0x24] sm:$0x1]
      %v2542 = vld [vmem:[%s2483 + $0x28] sm:$0xf]
      %v2543 = vld [vmem:[%s2483 + $0x2c] sm:$0x1]
      %v2544 = vld [vmem:[%s2483 + $0x30] sm:$0xf]
      %v2545 = vld [vmem:[%s2483 + $0x34] sm:$0x1]
      %v2546 = vld [vmem:[%s2483 + $0x38] sm:$0xf]
      %v2547 = vld [vmem:[%s2483 + $0x3c] sm:$0x1]
      %v2549 = vshrl.u32 %v2532, 16
      %v2551 = vrot.slane %v2549, 4
      %v2552 = vshll.u32 %v2532, 16
      %v2554 = vrot.slane %v2552, 5
      %v2555 = vor.u32 %v2551, %v2554
      %v2556 = vrot.slane %v2555, 4
      %v2558 = vshll.u32 %v2533, 16
      %v2560 = vrot.slane %v2558, 5
      %v2561 = vsel %vm412, %v2556, %v2560
      %v2563 = vshrl.u32 %v2534, 16
      %v2565 = vrot.slane %v2563, 4
      %v2566 = vshll.u32 %v2534, 16
      %v2568 = vrot.slane %v2566, 5
      %v2569 = vor.u32 %v2565, %v2568
      %v2570 = vrot.slane %v2569, 4
      %v2572 = vshll.u32 %v2535, 16
      %v2574 = vrot.slane %v2572, 5
      %v2575 = vsel %vm412, %v2570, %v2574
      %v2577 = vshrl.u32 %v2536, 16
      %v2579 = vrot.slane %v2577, 4
      %v2580 = vshll.u32 %v2536, 16
      %v2582 = vrot.slane %v2580, 5
      %v2583 = vor.u32 %v2579, %v2582
      %v2584 = vrot.slane %v2583, 4
      %v2586 = vshll.u32 %v2537, 16
      %v2588 = vrot.slane %v2586, 5
      %v2589 = vsel %vm412, %v2584, %v2588
      %v2591 = vshrl.u32 %v2538, 16
      %v2593 = vrot.slane %v2591, 4
      %v2594 = vshll.u32 %v2538, 16
      %v2596 = vrot.slane %v2594, 5
      %v2597 = vor.u32 %v2593, %v2596
      %v2598 = vrot.slane %v2597, 4
      %v2600 = vshll.u32 %v2539, 16
      %v2602 = vrot.slane %v2600, 5
      %v2603 = vsel %vm412, %v2598, %v2602
      %v2605 = vshrl.u32 %v2540, 16
      %v2607 = vrot.slane %v2605, 4
      %v2608 = vshll.u32 %v2540, 16
      %v2610 = vrot.slane %v2608, 5
      %v2611 = vor.u32 %v2607, %v2610
      %v2612 = vrot.slane %v2611, 4
      %v2614 = vshll.u32 %v2541, 16
      %v2616 = vrot.slane %v2614, 5
      %v2617 = vsel %vm412, %v2612, %v2616
      %v2619 = vshrl.u32 %v2542, 16
      %v2621 = vrot.slane %v2619, 4
      %v2622 = vshll.u32 %v2542, 16
      %v2624 = vrot.slane %v2622, 5
      %v2625 = vor.u32 %v2621, %v2624
      %v2626 = vrot.slane %v2625, 4
      %v2628 = vshll.u32 %v2543, 16
      %v2630 = vrot.slane %v2628, 5
      %v2631 = vsel %vm412, %v2626, %v2630
      %v2633 = vshrl.u32 %v2544, 16
      %v2635 = vrot.slane %v2633, 4
      %v2636 = vshll.u32 %v2544, 16
      %v2638 = vrot.slane %v2636, 5
      %v2639 = vor.u32 %v2635, %v2638
      %v2640 = vrot.slane %v2639, 4
      %v2642 = vshll.u32 %v2545, 16
      %v2644 = vrot.slane %v2642, 5
      %v2645 = vsel %vm412, %v2640, %v2644
      %v2647 = vshrl.u32 %v2546, 16
      %v2649 = vrot.slane %v2647, 4
      %v2650 = vshll.u32 %v2546, 16
      %v2652 = vrot.slane %v2650, 5
      %v2653 = vor.u32 %v2649, %v2652
      %v2654 = vrot.slane %v2653, 4
      %v2656 = vshll.u32 %v2547, 16
      %v2658 = vrot.slane %v2656, 5
      %v2659 = vsel %vm412, %v2654, %v2658
      %2660 = vrot.lane.b32.xlu0 %v2561, 48
      %v2661 = vpop.permute.xlu0 %2660
      %2662 = vrot.lane.b32.xlu0 %v2575, 48
      %v2663 = vpop.permute.xlu0 %2662
      %2664 = vrot.lane.b32.xlu0 %v2589, 48
      %v2665 = vpop.permute.xlu0 %2664
      %2666 = vrot.lane.b32.xlu0 %v2603, 48
      %v2667 = vpop.permute.xlu0 %2666
      %2668 = vrot.lane.b32.xlu0 %v2617, 48
      %v2669 = vpop.permute.xlu0 %2668
      %2670 = vrot.lane.b32.xlu0 %v2631, 48
      %v2671 = vpop.permute.xlu0 %2670
      %2672 = vrot.lane.b32.xlu0 %v2645, 48
      %v2673 = vpop.permute.xlu0 %2672
      %2674 = vrot.lane.b32.xlu0 %v2659, 48
      %v2675 = vpop.permute.xlu0 %2674
      %2684 = vst.msk [vmem:[#allocation2 + $0x4] sm:$0xf] %vm1007, %v2661
      %2685 = vst.msk [vmem:[#allocation2 + $0xc] sm:$0xf] %vm1007, %v2663
      %2686 = vst.msk [vmem:[#allocation2 + $0x14] sm:$0xf] %vm1007, %v2665
      %2687 = vst.msk [vmem:[#allocation2 + $0x1c] sm:$0xf] %vm1007, %v2667
      %2688 = vst.msk [vmem:[#allocation2 + $0x24] sm:$0xf] %vm1007, %v2669
      %2689 = vst.msk [vmem:[#allocation2 + $0x2c] sm:$0xf] %vm1007, %v2671
      %2690 = vst.msk [vmem:[#allocation2 + $0x34] sm:$0xf] %vm1007, %v2673
      %2691 = vst.msk [vmem:[#allocation2 + $0x3c] sm:$0xf] %vm1007, %v2675
      %v2692 = vld [vmem:[%s2483] sm:$0xe]
      %v2693 = vld [vmem:[%s2483 + $0x4] sm:$0x1]
      %v2694 = vld [vmem:[%s2483 + $0x8] sm:$0xe]
      %v2695 = vld [vmem:[%s2483 + $0xc] sm:$0x1]
      %v2696 = vld [vmem:[%s2483 + $0x10] sm:$0xe]
      %v2697 = vld [vmem:[%s2483 + $0x14] sm:$0x1]
      %v2698 = vld [vmem:[%s2483 + $0x18] sm:$0xe]
      %v2699 = vld [vmem:[%s2483 + $0x1c] sm:$0x1]
      %v2700 = vld [vmem:[%s2483 + $0x20] sm:$0xe]
      %v2701 = vld [vmem:[%s2483 + $0x24] sm:$0x1]
      %v2702 = vld [vmem:[%s2483 + $0x28] sm:$0xe]
      %v2703 = vld [vmem:[%s2483 + $0x2c] sm:$0x1]
      %v2704 = vld [vmem:[%s2483 + $0x30] sm:$0xe]
      %v2705 = vld [vmem:[%s2483 + $0x34] sm:$0x1]
      %v2706 = vld [vmem:[%s2483 + $0x38] sm:$0xe]
      %v2707 = vld [vmem:[%s2483 + $0x3c] sm:$0x1]
      %v2724 = vrot.slane %v2692, 5
      %v2725 = vrot.slane %v2724, 4
      %v2726 = vrot.slane %v2693, 5
      %v2727 = vsel %vm592, %v2725, %v2726
      %v2728 = vrot.slane %v2694, 5
      %v2729 = vrot.slane %v2728, 4
      %v2730 = vrot.slane %v2695, 5
      %v2731 = vsel %vm592, %v2729, %v2730
      %v2732 = vrot.slane %v2696, 5
      %v2733 = vrot.slane %v2732, 4
      %v2734 = vrot.slane %v2697, 5
      %v2735 = vsel %vm592, %v2733, %v2734
      %v2736 = vrot.slane %v2698, 5
      %v2737 = vrot.slane %v2736, 4
      %v2738 = vrot.slane %v2699, 5
      %v2739 = vsel %vm592, %v2737, %v2738
      %v2740 = vrot.slane %v2700, 5
      %v2741 = vrot.slane %v2740, 4
      %v2742 = vrot.slane %v2701, 5
      %v2743 = vsel %vm592, %v2741, %v2742
      %v2744 = vrot.slane %v2702, 5
      %v2745 = vrot.slane %v2744, 4
      %v2746 = vrot.slane %v2703, 5
      %v2747 = vsel %vm592, %v2745, %v2746
      %v2748 = vrot.slane %v2704, 5
      %v2749 = vrot.slane %v2748, 4
      %v2750 = vrot.slane %v2705, 5
      %v2751 = vsel %vm592, %v2749, %v2750
      %v2752 = vrot.slane %v2706, 5
      %v2753 = vrot.slane %v2752, 4
      %v2754 = vrot.slane %v2707, 5
      %v2755 = vsel %vm592, %v2753, %v2754
      %2756 = vrot.lane.b32.xlu0 %v2727, 56
      %v2757 = vpop.permute.xlu0 %2756
      %2758 = vrot.lane.b32.xlu0 %v2731, 56
      %v2759 = vpop.permute.xlu0 %2758
      %2760 = vrot.lane.b32.xlu0 %v2735, 56
      %v2761 = vpop.permute.xlu0 %2760
      %2762 = vrot.lane.b32.xlu0 %v2739, 56
      %v2763 = vpop.permute.xlu0 %2762
      %2764 = vrot.lane.b32.xlu0 %v2743, 56
      %v2765 = vpop.permute.xlu0 %2764
      %2766 = vrot.lane.b32.xlu0 %v2747, 56
      %v2767 = vpop.permute.xlu0 %2766
      %2768 = vrot.lane.b32.xlu0 %v2751, 56
      %v2769 = vpop.permute.xlu0 %2768
      %2770 = vrot.lane.b32.xlu0 %v2755, 56
      %v2771 = vpop.permute.xlu0 %2770
      %2780 = vst.msk [vmem:[#allocation2 + $0x4] sm:$0xf] %vm1168, %v2757
      %2781 = vst.msk [vmem:[#allocation2 + $0xc] sm:$0xf] %vm1168, %v2759
      %2782 = vst.msk [vmem:[#allocation2 + $0x14] sm:$0xf] %vm1168, %v2761
      %2783 = vst.msk [vmem:[#allocation2 + $0x1c] sm:$0xf] %vm1168, %v2763
      %2784 = vst.msk [vmem:[#allocation2 + $0x24] sm:$0xf] %vm1168, %v2765
      %2785 = vst.msk [vmem:[#allocation2 + $0x2c] sm:$0xf] %vm1168, %v2767
      %2786 = vst.msk [vmem:[#allocation2 + $0x34] sm:$0xf] %vm1168, %v2769
      %2787 = vst.msk [vmem:[#allocation2 + $0x3c] sm:$0xf] %vm1168, %v2771
      %s2788 = scalar_lea.vmem %s330, 16
      %v2789 = vld [vmem:[%s2788] sm:$0xf]
      %v2790 = vld [vmem:[%s2788 + $0x8] sm:$0xf]
      %v2791 = vld [vmem:[%s2788 + $0x10] sm:$0xf]
      %v2792 = vld [vmem:[%s2788 + $0x18] sm:$0xf]
      %v2793 = vld [vmem:[%s2788 + $0x20] sm:$0xf]
      %v2794 = vld [vmem:[%s2788 + $0x28] sm:$0xf]
      %v2795 = vld [vmem:[%s2788 + $0x30] sm:$0xf]
      %v2796 = vld [vmem:[%s2788 + $0x38] sm:$0xf]
      %2805 = vrot.lane.b32.xlu0 %v2789, 64
      %v2806 = vpop.permute.xlu0 %2805
      %2807 = vrot.lane.b32.xlu0 %v2790, 64
      %v2808 = vpop.permute.xlu0 %2807
      %2809 = vrot.lane.b32.xlu0 %v2791, 64
      %v2810 = vpop.permute.xlu0 %2809
      %2811 = vrot.lane.b32.xlu0 %v2792, 64
      %v2812 = vpop.permute.xlu0 %2811
      %2813 = vrot.lane.b32.xlu0 %v2793, 64
      %v2814 = vpop.permute.xlu0 %2813
      %2815 = vrot.lane.b32.xlu0 %v2794, 64
      %v2816 = vpop.permute.xlu0 %2815
      %2817 = vrot.lane.b32.xlu0 %v2795, 64
      %v2818 = vpop.permute.xlu0 %2817
      %2819 = vrot.lane.b32.xlu0 %v2796, 64
      %v2820 = vpop.permute.xlu0 %2819
      %2829 = vst.msk [vmem:[#allocation2 + $0x4] sm:$0xf] %vm1265, %v2806
      %2830 = vst.msk [vmem:[#allocation2 + $0xc] sm:$0xf] %vm1265, %v2808
      %2831 = vst.msk [vmem:[#allocation2 + $0x14] sm:$0xf] %vm1265, %v2810
      %2832 = vst.msk [vmem:[#allocation2 + $0x1c] sm:$0xf] %vm1265, %v2812
      %2833 = vst.msk [vmem:[#allocation2 + $0x24] sm:$0xf] %vm1265, %v2814
      %2834 = vst.msk [vmem:[#allocation2 + $0x2c] sm:$0xf] %vm1265, %v2816
      %2835 = vst.msk [vmem:[#allocation2 + $0x34] sm:$0xf] %vm1265, %v2818
      %2836 = vst.msk [vmem:[#allocation2 + $0x3c] sm:$0xf] %vm1265, %v2820
      %v2837 = vld [vmem:[%s2788] sm:$0xf]
      %v2838 = vld [vmem:[%s2788 + $0x4] sm:$0x1]
      %v2839 = vld [vmem:[%s2788 + $0x8] sm:$0xf]
      %v2840 = vld [vmem:[%s2788 + $0xc] sm:$0x1]
      %v2841 = vld [vmem:[%s2788 + $0x10] sm:$0xf]
      %v2842 = vld [vmem:[%s2788 + $0x14] sm:$0x1]
      %v2843 = vld [vmem:[%s2788 + $0x18] sm:$0xf]
      %v2844 = vld [vmem:[%s2788 + $0x1c] sm:$0x1]
      %v2845 = vld [vmem:[%s2788 + $0x20] sm:$0xf]
      %v2846 = vld [vmem:[%s2788 + $0x24] sm:$0x1]
      %v2847 = vld [vmem:[%s2788 + $0x28] sm:$0xf]
      %v2848 = vld [vmem:[%s2788 + $0x2c] sm:$0x1]
      %v2849 = vld [vmem:[%s2788 + $0x30] sm:$0xf]
      %v2850 = vld [vmem:[%s2788 + $0x34] sm:$0x1]
      %v2851 = vld [vmem:[%s2788 + $0x38] sm:$0xf]
      %v2852 = vld [vmem:[%s2788 + $0x3c] sm:$0x1]
      %v2854 = vshrl.u32 %v2837, 16
      %v2856 = vrot.slane %v2854, 4
      %v2857 = vshll.u32 %v2837, 16
      %v2859 = vrot.slane %v2857, 5
      %v2860 = vor.u32 %v2856, %v2859
      %v2861 = vrot.slane %v2860, 4
      %v2863 = vshll.u32 %v2838, 16
      %v2865 = vrot.slane %v2863, 5
      %v2866 = vsel %vm412, %v2861, %v2865
      %v2868 = vshrl.u32 %v2839, 16
      %v2870 = vrot.slane %v2868, 4
      %v2871 = vshll.u32 %v2839, 16
      %v2873 = vrot.slane %v2871, 5
      %v2874 = vor.u32 %v2870, %v2873
      %v2875 = vrot.slane %v2874, 4
      %v2877 = vshll.u32 %v2840, 16
      %v2879 = vrot.slane %v2877, 5
      %v2880 = vsel %vm412, %v2875, %v2879
      %v2882 = vshrl.u32 %v2841, 16
      %v2884 = vrot.slane %v2882, 4
      %v2885 = vshll.u32 %v2841, 16
      %v2887 = vrot.slane %v2885, 5
      %v2888 = vor.u32 %v2884, %v2887
      %v2889 = vrot.slane %v2888, 4
      %v2891 = vshll.u32 %v2842, 16
      %v2893 = vrot.slane %v2891, 5
      %v2894 = vsel %vm412, %v2889, %v2893
      %v2896 = vshrl.u32 %v2843, 16
      %v2898 = vrot.slane %v2896, 4
      %v2899 = vshll.u32 %v2843, 16
      %v2901 = vrot.slane %v2899, 5
      %v2902 = vor.u32 %v2898, %v2901
      %v2903 = vrot.slane %v2902, 4
      %v2905 = vshll.u32 %v2844, 16
      %v2907 = vrot.slane %v2905, 5
      %v2908 = vsel %vm412, %v2903, %v2907
      %v2910 = vshrl.u32 %v2845, 16
      %v2912 = vrot.slane %v2910, 4
      %v2913 = vshll.u32 %v2845, 16
      %v2915 = vrot.slane %v2913, 5
      %v2916 = vor.u32 %v2912, %v2915
      %v2917 = vrot.slane %v2916, 4
      %v2919 = vshll.u32 %v2846, 16
      %v2921 = vrot.slane %v2919, 5
      %v2922 = vsel %vm412, %v2917, %v2921
      %v2924 = vshrl.u32 %v2847, 16
      %v2926 = vrot.slane %v2924, 4
      %v2927 = vshll.u32 %v2847, 16
      %v2929 = vrot.slane %v2927, 5
      %v2930 = vor.u32 %v2926, %v2929
      %v2931 = vrot.slane %v2930, 4
      %v2933 = vshll.u32 %v2848, 16
      %v2935 = vrot.slane %v2933, 5
      %v2936 = vsel %vm412, %v2931, %v2935
      %v2938 = vshrl.u32 %v2849, 16
      %v2940 = vrot.slane %v2938, 4
      %v2941 = vshll.u32 %v2849, 16
      %v2943 = vrot.slane %v2941, 5
      %v2944 = vor.u32 %v2940, %v2943
      %v2945 = vrot.slane %v2944, 4
      %v2947 = vshll.u32 %v2850, 16
      %v2949 = vrot.slane %v2947, 5
      %v2950 = vsel %vm412, %v2945, %v2949
      %v2952 = vshrl.u32 %v2851, 16
      %v2954 = vrot.slane %v2952, 4
      %v2955 = vshll.u32 %v2851, 16
      %v2957 = vrot.slane %v2955, 5
      %v2958 = vor.u32 %v2954, %v2957
      %v2959 = vrot.slane %v2958, 4
      %v2961 = vshll.u32 %v2852, 16
      %v2963 = vrot.slane %v2961, 5
      %v2964 = vsel %vm412, %v2959, %v2963
      %2965 = vrot.lane.b32.xlu0 %v2866, 72
      %v2966 = vpop.permute.xlu0 %2965
      %2967 = vrot.lane.b32.xlu0 %v2880, 72
      %v2968 = vpop.permute.xlu0 %2967
      %2969 = vrot.lane.b32.xlu0 %v2894, 72
      %v2970 = vpop.permute.xlu0 %2969
      %2971 = vrot.lane.b32.xlu0 %v2908, 72
      %v2972 = vpop.permute.xlu0 %2971
      %2973 = vrot.lane.b32.xlu0 %v2922, 72
      %v2974 = vpop.permute.xlu0 %2973
      %2975 = vrot.lane.b32.xlu0 %v2936, 72
      %v2976 = vpop.permute.xlu0 %2975
      %2977 = vrot.lane.b32.xlu0 %v2950, 72
      %v2978 = vpop.permute.xlu0 %2977
      %2979 = vrot.lane.b32.xlu0 %v2964, 72
      %v2980 = vpop.permute.xlu0 %2979
      %2989 = vst.msk [vmem:[#allocation2 + $0x4] sm:$0xf] %vm1314, %v2966
      %2990 = vst.msk [vmem:[#allocation2 + $0xc] sm:$0xf] %vm1314, %v2968
      %2991 = vst.msk [vmem:[#allocation2 + $0x14] sm:$0xf] %vm1314, %v2970
      %2992 = vst.msk [vmem:[#allocation2 + $0x1c] sm:$0xf] %vm1314, %v2972
      %2993 = vst.msk [vmem:[#allocation2 + $0x24] sm:$0xf] %vm1314, %v2974
      %2994 = vst.msk [vmem:[#allocation2 + $0x2c] sm:$0xf] %vm1314, %v2976
      %2995 = vst.msk [vmem:[#allocation2 + $0x34] sm:$0xf] %vm1314, %v2978
      %2996 = vst.msk [vmem:[#allocation2 + $0x3c] sm:$0xf] %vm1314, %v2980
      %v2997 = vld [vmem:[%s2788] sm:$0xe]
      %v2998 = vld [vmem:[%s2788 + $0x4] sm:$0x1]
      %v2999 = vld [vmem:[%s2788 + $0x8] sm:$0xe]
      %v3000 = vld [vmem:[%s2788 + $0xc] sm:$0x1]
      %v3001 = vld [vmem:[%s2788 + $0x10] sm:$0xe]
      %v3002 = vld [vmem:[%s2788 + $0x14] sm:$0x1]
      %v3003 = vld [vmem:[%s2788 + $0x18] sm:$0xe]
      %v3004 = vld [vmem:[%s2788 + $0x1c] sm:$0x1]
      %v3005 = vld [vmem:[%s2788 + $0x20] sm:$0xe]
      %v3006 = vld [vmem:[%s2788 + $0x24] sm:$0x1]
      %v3007 = vld [vmem:[%s2788 + $0x28] sm:$0xe]
      %v3008 = vld [vmem:[%s2788 + $0x2c] sm:$0x1]
      %v3009 = vld [vmem:[%s2788 + $0x30] sm:$0xe]
      %v3010 = vld [vmem:[%s2788 + $0x34] sm:$0x1]
      %v3011 = vld [vmem:[%s2788 + $0x38] sm:$0xe]
      %v3012 = vld [vmem:[%s2788 + $0x3c] sm:$0x1]
      %v3029 = vrot.slane %v2997, 5
      %v3030 = vrot.slane %v3029, 4
      %v3031 = vrot.slane %v2998, 5
      %v3032 = vsel %vm592, %v3030, %v3031
      %v3033 = vrot.slane %v2999, 5
      %v3034 = vrot.slane %v3033, 4
      %v3035 = vrot.slane %v3000, 5
      %v3036 = vsel %vm592, %v3034, %v3035
      %v3037 = vrot.slane %v3001, 5
      %v3038 = vrot.slane %v3037, 4
      %v3039 = vrot.slane %v3002, 5
      %v3040 = vsel %vm592, %v3038, %v3039
      %v3041 = vrot.slane %v3003, 5
      %v3042 = vrot.slane %v3041, 4
      %v3043 = vrot.slane %v3004, 5
      %v3044 = vsel %vm592, %v3042, %v3043
      %v3045 = vrot.slane %v3005, 5
      %v3046 = vrot.slane %v3045, 4
      %v3047 = vrot.slane %v3006, 5
      %v3048 = vsel %vm592, %v3046, %v3047
      %v3049 = vrot.slane %v3007, 5
      %v3050 = vrot.slane %v3049, 4
      %v3051 = vrot.slane %v3008, 5
      %v3052 = vsel %vm592, %v3050, %v3051
      %v3053 = vrot.slane %v3009, 5
      %v3054 = vrot.slane %v3053, 4
      %v3055 = vrot.slane %v3010, 5
      %v3056 = vsel %vm592, %v3054, %v3055
      %v3057 = vrot.slane %v3011, 5
      %v3058 = vrot.slane %v3057, 4
      %v3059 = vrot.slane %v3012, 5
      %v3060 = vsel %vm592, %v3058, %v3059
      %3061 = vrot.lane.b32.xlu0 %v3032, 80
      %v3062 = vpop.permute.xlu0 %3061
      %3063 = vrot.lane.b32.xlu0 %v3036, 80
      %v3064 = vpop.permute.xlu0 %3063
      %3065 = vrot.lane.b32.xlu0 %v3040, 80
      %v3066 = vpop.permute.xlu0 %3065
      %3067 = vrot.lane.b32.xlu0 %v3044, 80
      %v3068 = vpop.permute.xlu0 %3067
      %3069 = vrot.lane.b32.xlu0 %v3048, 80
      %v3070 = vpop.permute.xlu0 %3069
      %3071 = vrot.lane.b32.xlu0 %v3052, 80
      %v3072 = vpop.permute.xlu0 %3071
      %3073 = vrot.lane.b32.xlu0 %v3056, 80
      %v3074 = vpop.permute.xlu0 %3073
      %3075 = vrot.lane.b32.xlu0 %v3060, 80
      %v3076 = vpop.permute.xlu0 %3075
      %3085 = vst.msk [vmem:[#allocation2 + $0x4] sm:$0xf] %vm1475, %v3062
      %3086 = vst.msk [vmem:[#allocation2 + $0xc] sm:$0xf] %vm1475, %v3064
      %3087 = vst.msk [vmem:[#allocation2 + $0x14] sm:$0xf] %vm1475, %v3066
      %3088 = vst.msk [vmem:[#allocation2 + $0x1c] sm:$0xf] %vm1475, %v3068
      %3089 = vst.msk [vmem:[#allocation2 + $0x24] sm:$0xf] %vm1475, %v3070
      %3090 = vst.msk [vmem:[#allocation2 + $0x2c] sm:$0xf] %vm1475, %v3072
      %3091 = vst.msk [vmem:[#allocation2 + $0x34] sm:$0xf] %vm1475, %v3074
      %3092 = vst.msk [vmem:[#allocation2 + $0x3c] sm:$0xf] %vm1475, %v3076
      %v3093 = vld [vmem:[#allocation2] sm:$0xff]
      %v3094 = vld [vmem:[#allocation2 + $0x8] sm:$0xff]
      %v3095 = vld [vmem:[#allocation2 + $0x10] sm:$0xff]
      %v3096 = vld [vmem:[#allocation2 + $0x18] sm:$0xff]
      %v3097 = vld [vmem:[#allocation2 + $0x20] sm:$0xff]
      %v3098 = vld [vmem:[#allocation2 + $0x28] sm:$0xff]
      %v3099 = vld [vmem:[#allocation2 + $0x30] sm:$0xff]
      %v3100 = vld [vmem:[#allocation2 + $0x38] sm:$0xff]
      %v3109 = vunpack.c.l.b16 %v3093
      %v3110 = vunpack.c.h.b16 %v3093
      %v3111 = vunpack.c.l.b16 %v3094
      %v3112 = vunpack.c.h.b16 %v3094
      %v3113 = vunpack.c.l.b16 %v3095
      %v3114 = vunpack.c.h.b16 %v3095
      %v3115 = vunpack.c.l.b16 %v3096
      %v3116 = vunpack.c.h.b16 %v3096
      %v3117 = vunpack.c.l.b16 %v3097
      %v3118 = vunpack.c.h.b16 %v3097
      %v3119 = vunpack.c.l.b16 %v3098
      %v3120 = vunpack.c.h.b16 %v3098
      %v3121 = vunpack.c.l.b16 %v3099
      %v3122 = vunpack.c.h.b16 %v3099
      %v3123 = vunpack.c.l.b16 %v3100
      %v3124 = vunpack.c.h.b16 %v3100
      %v3125 = vpack.c.b16 %v3111, %v3109
      %v3126 = vpack.c.b16 %v3112, %v3110
      %v3127 = vpack.c.b16 %v3115, %v3113
      %v3128 = vpack.c.b16 %v3116, %v3114
      %v3129 = vpack.c.b16 %v3119, %v3117
      %v3130 = vpack.c.b16 %v3120, %v3118
      %v3131 = vpack.c.b16 %v3123, %v3121
      %v3132 = vpack.c.b16 %v3124, %v3122
      %v3164 = vunpack.c.l.b16 %v350
      %v3165 = vunpack.c.l.b16 %v351
      %v3166 = vunpack.c.l.b16 %v352
      %v3167 = vunpack.c.l.b16 %v353
      %v3168 = vunpack.c.l.b16 %v354
      %v3169 = vunpack.c.l.b16 %v355
      %v3170 = vunpack.c.l.b16 %v356
      %v3171 = vunpack.c.l.b16 %v357
      %v3172 = vunpack.c.l.b16 %v358
      %v3173 = vunpack.c.l.b16 %v359
      %v3174 = vunpack.c.l.b16 %v360
      %v3175 = vunpack.c.l.b16 %v361
      %v3176 = vunpack.c.l.b16 %v362
      %v3177 = vunpack.c.l.b16 %v363
      %v3178 = vunpack.c.l.b16 %v364
      %v3179 = vunpack.c.l.b16 %v365
      %v3180 = vunpack.c.l.b16 %v366
      %v3181 = vunpack.c.l.b16 %v367
      %v3182 = vunpack.c.l.b16 %v368
      %v3183 = vunpack.c.l.b16 %v369
      %v3184 = vunpack.c.l.b16 %v370
      %v3185 = vunpack.c.l.b16 %v371
      %v3186 = vunpack.c.l.b16 %v372
      %v3187 = vunpack.c.l.b16 %v373
      %v3188 = vunpack.c.l.b16 %v374
      %v3189 = vunpack.c.l.b16 %v375
      %v3190 = vunpack.c.l.b16 %v376
      %v3191 = vpack.c.b16 %v3165, %v3164
      %v3192 = vpack.c.b16 %v3167, %v3166
      %v3193 = vpack.c.b16 %v3169, %v3168
      %v3194 = vpack.c.b16 %v3171, %v3170
      %v3195 = vpack.c.b16 %v3173, %v3172
      %v3196 = vpack.c.b16 %v3175, %v3174
      %v3197 = vpack.c.b16 %v3177, %v3176
      %v3198 = vpack.c.b16 %v3179, %v3178
      %v3199 = vpack.c.b16 %v3181, %v3180
      %v3200 = vpack.c.b16 %v3183, %v3182
      %v3201 = vpack.c.b16 %v3185, %v3184
      %v3202 = vpack.c.b16 %v3187, %v3186
      %v3203 = vpack.c.b16 %v3189, %v3188
      %v3204 = vpack.c.b16 %v3190, %v3190
      %vm3218 = vcmask 719872
      %v3220 = vsel %vm3218, %v3126, 0
      %v3223 = vsel %vm3218, %v3128, 0
      %v3226 = vsel %vm3218, %v3130, 0
      %v3229 = vsel %vm3218, %v3132, 0
      %vm3231 = vcmask 1043456
      %v3233 = vsel %vm3231, %v3204, 0
      %3235 = vmatprep.subr.bf16.mxu0 0
      %3236 = vmatpush1.bf16.msra.mxu0 %v3191
      %3237 = vmatprep.subr.bf16.mxu0 0
      %3238 = vmatpush1.bf16.msra.mxu0 %v3192
      %3239 = vmatprep.subr.bf16.mxu0 0
      %3240 = vmatpush1.bf16.msra.mxu0 %v3193
      %3241 = vmatprep.subr.bf16.mxu0 0
      %3242 = vmatpush1.bf16.msra.mxu0 %v3194
      %3243 = vmatprep.subr.bf16.mxu0 0
      %3244 = vmatpush1.bf16.msra.mxu0 %v3195
      %3245 = vmatprep.subr.bf16.mxu0 0
      %3246 = vmatpush1.bf16.msra.mxu0 %v3196
      %3247 = vmatprep.subr.bf16.mxu0 0
      %3248 = vmatpush1.bf16.msra.mxu0 %v3197
      %3249 = vmatprep.subr.bf16.mxu0 0
      %3250 = vmatpush1.bf16.msra.mxu0 %v3198
      %3251 = vmatprep.subr.bf16.mxu0 0
      %3252 = vmatpush1.bf16.msra.mxu0 %v3199
      %3253 = vmatprep.subr.bf16.mxu0 0
      %3254 = vmatpush1.bf16.msra.mxu0 %v3200
      %3255 = vmatprep.subr.bf16.mxu0 0
      %3256 = vmatpush1.bf16.msra.mxu0 %v3201
      %3257 = vmatprep.subr.bf16.mxu0 0
      %3258 = vmatpush1.bf16.msra.mxu0 %v3202
      %3259 = vmatprep.subr.bf16.mxu0 0
      %3260 = vmatpush1.bf16.msra.mxu0 %v3203
      %3261 = vmatprep.subr.bf16.mxu0 0
      %3262 = vmatpush1.bf16.msra.mxu0 %v3233
      %3263 = vmatprep.subr.bf16.mxu0 0
      %3264 = vmatpush1.bf16.msra.mxu0 0
      %3265 = vmatprep.subr.bf16.mxu0 0
      %3266 = vmatpush1.bf16.msra.mxu0 0
      %3267 = vmatprep.mubr.bf16.mxu0 %v3220
      %3268 = vmatmul.mubr.bf16.gmra.mrb[0].mxu0 %v3125
      %v3269 = vpop.f32.mrb[0].mxu0
      %v3270 = vadd.f32 0.0, %v3269
      %v3271 = vpop.f32.mrb[0].mxu0
      %v3272 = vpop.f32.mrb[0].mxu0
      %v3273 = vadd.f32 0.0, %v3272
      %v3274 = vpop.f32.mrb[0].mxu0
      %3275 = vmatprep.mubr.bf16.mxu0 %v3223
      %3276 = vmatmul.mubr.bf16.gmra.mrb[0].mxu0 %v3127
      %v3277 = vpop.f32.mrb[0].mxu0
      %v3278 = vadd.f32 0.0, %v3277
      %v3279 = vpop.f32.mrb[0].mxu0
      %v3280 = vpop.f32.mrb[0].mxu0
      %v3281 = vadd.f32 0.0, %v3280
      %v3282 = vpop.f32.mrb[0].mxu0
      %3283 = vmatprep.mubr.bf16.mxu0 %v3226
      %3284 = vmatmul.mubr.bf16.gmra.mrb[0].mxu0 %v3129
      %v3285 = vpop.f32.mrb[0].mxu0
      %v3286 = vadd.f32 0.0, %v3285
      %v3287 = vpop.f32.mrb[0].mxu0
      %v3288 = vpop.f32.mrb[0].mxu0
      %v3289 = vadd.f32 0.0, %v3288
      %v3290 = vpop.f32.mrb[0].mxu0
      %3291 = vmatprep.mubr.bf16.mxu0 %v3229
      %3292 = vmatmul.mubr.bf16.gmra.mrb[0].mxu0 %v3131
      %v3293 = vpop.f32.mrb[0].mxu0
      %v3294 = vadd.f32 0.0, %v3293
      %v3295 = vpop.f32.mrb[0].mxu0
      %v3296 = vpop.f32.mrb[0].mxu0
      %v3297 = vadd.f32 0.0, %v3296
      %v3298 = vpop.f32.mrb[0].mxu0
      %3299 = vdwg.mxu0
      %v3300 = vpack.c.bf16 %v3273, %v3270
      %v3301 = vpack.c.bf16 %v3281, %v3278
      %v3302 = vpack.c.bf16 %v3289, %v3286
      %v3303 = vpack.c.bf16 %v3297, %v3294
      %v3308 = vunpack.c.l.b16 %v3300
      %v3309 = vunpack.c.h.b16 %v3300
      %v3310 = vunpack.c.l.b16 %v3301
      %v3311 = vunpack.c.h.b16 %v3301
      %v3312 = vunpack.c.l.b16 %v3302
      %v3313 = vunpack.c.h.b16 %v3302
      %v3314 = vunpack.c.l.b16 %v3303
      %v3315 = vunpack.c.h.b16 %v3303
      %v3316 = vpack.c.b16 %v3308, %v3308
      %v3317 = vpack.c.b16 %v3309, %v3309
      %v3318 = vpack.c.b16 %v3310, %v3310
      %v3319 = vpack.c.b16 %v3311, %v3311
      %v3320 = vpack.c.b16 %v3312, %v3312
      %v3321 = vpack.c.b16 %v3313, %v3313
      %v3322 = vpack.c.b16 %v3314, %v3314
      %v3323 = vpack.c.b16 %v3315, %v3315
      %3332 = vst.msk [vmem:[%s340] sm:$0xf] %vm385, %v3316
      %3333 = vst.msk [vmem:[%s340 + $0x4] sm:$0xf] %vm385, %v3317
      %3334 = vst.msk [vmem:[%s340 + $0x8] sm:$0xf] %vm385, %v3318
      %3335 = vst.msk [vmem:[%s340 + $0xc] sm:$0xf] %vm385, %v3319
      %3336 = vst.msk [vmem:[%s340 + $0x10] sm:$0xf] %vm385, %v3320
      %3337 = vst.msk [vmem:[%s340 + $0x14] sm:$0xf] %vm385, %v3321
      %3338 = vst.msk [vmem:[%s340 + $0x18] sm:$0xf] %vm385, %v3322
      %3339 = vst.msk [vmem:[%s340 + $0x1c] sm:$0xf] %vm385, %v3323
      %v3340 = vunpack.c.l.bf16 %v3300
      %v3341 = vunpack.c.h.bf16 %v3300
      %v3342 = vunpack.c.l.bf16 %v3301
      %v3343 = vunpack.c.h.bf16 %v3301
      %v3344 = vunpack.c.l.bf16 %v3302
      %v3345 = vunpack.c.h.bf16 %v3302
      %v3346 = vunpack.c.l.bf16 %v3303
      %v3347 = vunpack.c.h.bf16 %v3303
      %vm3348 = vcmask 64512
      %v3349 = vsel %vm3348, %v3340, 0.0
      %v3350 = vsel %vm3348, %v3341, 0.0
      %v3351 = vadd.f32 %v3349, %v3350
      %v3352 = vsel %vm3348, %v3342, 0.0
      %v3353 = vadd.f32 %v3351, %v3352
      %v3354 = vsel %vm3348, %v3343, 0.0
      %v3355 = vadd.f32 %v3353, %v3354
      %v3356 = vsel %vm3348, %v3344, 0.0
      %v3357 = vadd.f32 %v3355, %v3356
      %v3358 = vsel %vm3348, %v3345, 0.0
      %v3359 = vadd.f32 %v3357, %v3358
      %v3360 = vsel %vm3348, %v3346, 0.0
      %v3361 = vadd.f32 %v3359, %v3360
      %v3362 = vsel %vm3348, %v3347, 0.0
      %v3363 = vadd.f32 %v3361, %v3362
      %v3364 = vrot.slane %v3363, 4
      %v3365 = vadd.f32 %v3363, %v3364
      %v3366 = vrot.slane %v3365, 2
      %v3367 = vadd.f32 %v3365, %v3366
      %v3368 = vrot.slane %v3367, 1
      %v3369 = vadd.f32 %v3367, %v3368
      %v3370 = vadd.f32 %v3369, 0.0
      %v3371 = vmul.f32 %v3340, %v3340
      %v3372 = vmul.f32 %v3341, %v3341
      %v3373 = vmul.f32 %v3342, %v3342
      %v3374 = vmul.f32 %v3343, %v3343
      %v3375 = vmul.f32 %v3344, %v3344
      %v3376 = vmul.f32 %v3345, %v3345
      %v3377 = vmul.f32 %v3346, %v3346
      %v3378 = vmul.f32 %v3347, %v3347
      %v3379 = vsel %vm3348, %v3371, 0.0
      %v3380 = vsel %vm3348, %v3372, 0.0
      %v3381 = vadd.f32 %v3379, %v3380
      %v3382 = vsel %vm3348, %v3373, 0.0
      %v3383 = vadd.f32 %v3381, %v3382
      %v3384 = vsel %vm3348, %v3374, 0.0
      %v3385 = vadd.f32 %v3383, %v3384
      %v3386 = vsel %vm3348, %v3375, 0.0
      %v3387 = vadd.f32 %v3385, %v3386
      %v3388 = vsel %vm3348, %v3376, 0.0
      %v3389 = vadd.f32 %v3387, %v3388
      %v3390 = vsel %vm3348, %v3377, 0.0
      %v3391 = vadd.f32 %v3389, %v3390
      %v3392 = vsel %vm3348, %v3378, 0.0
      %v3393 = vadd.f32 %v3391, %v3392
      %v3394 = vrot.slane %v3393, 4
      %v3395 = vadd.f32 %v3393, %v3394
      %v3396 = vrot.slane %v3395, 2
      %v3397 = vadd.f32 %v3395, %v3396
      %v3398 = vrot.slane %v3397, 1
      %v3399 = vadd.f32 %v3397, %v3398
      %v3400 = vadd.f32 %v3399, 0.0
      %v3401 = vld [vmem:[%s5] sm:$0x3]
      %vm3402 = vcmask 1040384
      %v3403 = vsel %vm3402, %v3370, %v3400
      %v3404 = vadd.f32 %v3401, %v3403
      %vm3405 = vcmask 58368
      %3406 = vst.msk [vmem:[%s5] sm:$0x3] %vm3405, %v3404
      %p3407 = scmp.lt.s32.totalorder %s21, 1
      %s3408 = scalar_select %p3407, %s21, 1
      %p3409 = scmp.lt.s32.totalorder %s22, 7
      %s3410 = scalar_select %p3409, %s22, 7
      %s3411 = smul.addr %s3410, 8
      %s3412 = smul.addr %s3408, 64
      %s3413 = sadd.s32 %s3411, %s3412
      %s3414 = smul.addr %s3413, 4
      %s3415 = scalar_lea.vmem %s4, %s3414
      // Predicated region
      $region41: #{double_conv_forward.8} parent=35 // pred_check
        %p3416 = pneg %p158
      $region42: #{double_conv_forward.8} parent=35 // pred_check_branch
        %3418 = sbr.rel (%p3416) target = $region44
      $region43: #{double_conv_forward.8} parent=35 // pred_region
        _
      $region44: #{double_conv_forward.8} parent=35 // pred_fallthru
        _
      // Predicated region
      $region45: #{double_conv_forward.8} parent=35 // pred_check
        %p3419 = pneg %p179
      $region46: #{double_conv_forward.8} parent=35 // pred_check_branch
        %3421 = sbr.rel (%p3419) target = $region48
      $region47: #{double_conv_forward.8} parent=35 // pred_region
        _
      $region48: #{double_conv_forward.8} parent=35 // pred_fallthru
        _
      // Predicated region
      $region49: #{double_conv_forward.8} parent=35 // pred_check
        %p3422 = pneg %p179
      $region50: #{double_conv_forward.8} parent=35 // pred_check_branch
        %3424 = sbr.rel (%p3422) target = $region52
      $region51: #{double_conv_forward.8} parent=35 // pred_region
        _
      $region52: #{double_conv_forward.8} parent=35 // pred_fallthru
        _
    $region36: #{double_conv_forward.8} parent=5 // pred_fallthru
      _
    %p3425 = scmp.le.s32.totalorder 2, %s12
    // Predicated region
    $region53: #{double_conv_forward.8} parent=5 // pred_check
      %p3426 = pneg %p3425
    $region54: #{double_conv_forward.8} parent=5 // pred_check_branch
      %3428 = sbr.rel (%p3426) target = $region56
    $region55: #{double_conv_forward.8} parent=5 // pred_region
      %s3429 = ssub.s32 %s12, 2
      // Predicated region
      $region57: #{double_conv_forward.8} parent=55 // pred_check
        %p3430 = pneg %p164
      $region58: #{double_conv_forward.8} parent=55 // pred_check_branch
        %3432 = sbr.rel (%p3430) target = $region60
      $region59: #{double_conv_forward.8} parent=55 // pred_region
        %p3433 = scmp.lt.s32.totalorder %s23, 1
        %s3434 = scalar_select %p3433, %s23, 1
        %p3435 = scmp.lt.s32.totalorder %s24, 7
        %s3436 = scalar_select %p3435, %s24, 7
        %s3437 = smul.addr %s3436, 8
        %s3438 = smul.addr %s3434, 64
        %s3439 = sadd.s32 %s3437, %s3438
        %s3440 = smul.addr %s3439, 4
        %s3441 = scalar_lea.vmem %s4, %s3440
      $region60: #{double_conv_forward.8} parent=55 // pred_fallthru
        _
    $region56: #{double_conv_forward.8} parent=5 // pred_fallthru
      _
  $region6: #{double_conv_forward.8} parent=0 // loop_footer
    %s16 = sadd.s32 1, %s12
  $region7: #{double_conv_forward.8} parent=0 // loop_footer_branch
    %11 = sbr.rel target = $region3
  $region8: #{double_conv_forward.8} parent=0 // loop_exit
    _

</llo_original>
